<compile_context>
chip_gen: v7x
topology: tpu7x:2x2x1
jax: 0.10.0
libtpu: 0.0.40
codegen_flags: <defaults>
</compile_context>

<pallas_src>
import functools

import jax
import jax.numpy as jnp
from jax import lax
from jax.experimental import pallas as pl
from jax.experimental.pallas import tpu as pltpu

LEAKY_SLOPE = 0.2
BN_EPS = 1e-5
_VMEM_LIMIT_BYTES = 48 * 1024 * 1024
_TARGET_M = 2048          # target flattened rows (tile_rows * Wout) per grid step
_CONCAT_CIN_MAX = 128     # below this Cin: single big-K im2col matmul; else accumulate


def _conv_taps(xpad, w_flat, kh, kw, hout, wout, cin, use_concat):
    """Stride-1 (kh x kw) conv on an already zero-padded bf16 window.

    xpad:   (>= hout+kh-1, >= wout+kw-1, cin) bf16 value
    w_flat: (kh*kw*cin, cout) bf16 value, rows ordered (dh, dw, cin)
    Returns f32 (hout*wout, cout).
    """
    if use_concat:
        taps = [xpad[dh:dh + hout, dw:dw + wout, :]
                for dh in range(kh) for dw in range(kw)]
        patches = jnp.concatenate(taps, axis=-1).reshape(hout * wout, kh * kw * cin)
        return jnp.dot(patches, w_flat, preferred_element_type=jnp.float32)
    acc = None
    t = 0
    for dh in range(kh):
        for dw in range(kw):
            tap = xpad[dh:dh + hout, dw:dw + wout, :].reshape(hout * wout, cin)
            part = jnp.dot(tap, w_flat[t * cin:(t + 1) * cin, :],
                           preferred_element_type=jnp.float32)
            acc = part if acc is None else acc + part
            t += 1
    return acc


def _s2d_conv_kernel(x_ref, w_ref, scale_ref, shift_ref, o_ref, *,
                     tile_rows, wout, cin, alpha, use_concat):
    """One (batch, row-tile) step of a stride-2 4x4 conv rewritten as a
    stride-1 2x2 conv on space-to-depth'ed input, fused affine (+LeakyReLU)."""
    r = pl.program_id(1)
    row0 = pl.multiple_of(r * tile_rows, tile_rows)
    xw = x_ref[0, pl.ds(row0, tile_rows + 1), :, :]      # (tr+1, wout+1, cin) bf16
    y = _conv_taps(xw, w_ref[...], 2, 2, tile_rows, wout, cin, use_concat)
    y = y * scale_ref[...] + shift_ref[...]              # bias + folded BN (f32)
    if alpha is not None:
        y = jnp.maximum(y, alpha * y)                    # LeakyReLU(alpha)
    o_ref[0] = y.reshape(tile_rows, wout, -1).astype(o_ref.dtype)


def _tail_kernel(x_ref, w4_ref, s4_ref, t4_ref, w5_ref, b5_ref, o_ref,
                 p4_ref, p5_ref, *, h3, w3, c3, c4, use_concat4, use_concat5):
    """Fused last two stride-1 layers for one batch element:
    conv4x4 + BN + LeakyReLU (8*ndf channels, kept in VMEM only), then the
    final conv4x4 to 1 channel.  Zero-padding is done in VMEM scratch."""
    hout4, wout4 = h3 + 1, w3 + 1
    hout5, wout5 = hout4 + 1, wout4 + 1

    @pl.when(pl.program_id(0) == 0)
    def _():   # borders are only ever zero; interior is rewritten every step
        p4_ref[...] = jnp.zeros_like(p4_ref)
        p5_ref[...] = jnp.zeros_like(p5_ref)

    p4_ref[2:2 + h3, 2:2 + w3, :] = x_ref[0]
    y4 = _conv_taps(p4_ref[...], w4_ref[...], 4, 4, hout4, wout4, c3, use_concat4)
    y4 = y4 * s4_ref[...] + t4_ref[...]
    y4 = jnp.maximum(y4, LEAKY_SLOPE * y4)
    p5_ref[2:2 + hout4, 2:2 + wout4, :] = (
        y4.reshape(hout4, wout4, c4).astype(p5_ref.dtype))
    y5 = _conv_taps(p5_ref[...], w5_ref[...], 4, 4, hout5, wout5, c4, use_concat5)
    y5 = y5[:, 0:1] + b5_ref[...]                        # logits live in lane 0
    o_ref[0] = y5.reshape(hout5, wout5, 1).astype(o_ref.dtype)


def _pick_row_tile(hout, wout):
    max_rows = max(1, _TARGET_M // max(wout, 1))
    for cand in range(min(hout, max_rows), 0, -1):
        if hout % cand == 0:
            return cand
    return hout


def conv4x4_s2_block(x, w_hwio, scale, shift, *, alpha):
    """4x4 conv (stride 2, pad 2) + per-channel affine + optional LeakyReLU.

    Rewritten as space-to-depth + stride-1 2x2 conv so the kernel never does
    strided VMEM slicing.  x: (N,H,W,Cin); returns (N,Hout,Wout,Cout) bf16."""
    n, h, w, cin = x.shape
    cout = w_hwio.shape[-1]
    hout, wout = h // 2 + 1, w // 2 + 1
    hp, wp = 2 * (hout + 1), 2 * (wout + 1)

    xb = x.astype(jnp.bfloat16)
    xp = jnp.pad(xb, ((0, 0), (2, hp - h - 2), (2, wp - w - 2), (0, 0)))
    xs = xp.reshape(n, hout + 1, 2, wout + 1, 2, cin)
    xs = xs.transpose(0, 1, 3, 2, 4, 5).reshape(n, hout + 1, wout + 1, 4 * cin)

    cin_eff = 4 * cin
    kdim = 4 * cin_eff
    w_eff = w_hwio.reshape(2, 2, 2, 2, cin, cout).transpose(0, 2, 1, 3, 4, 5)
    w_flat = w_eff.reshape(kdim, cout).astype(jnp.bfloat16)

    scale2 = scale.reshape(1, cout).astype(jnp.float32)
    shift2 = shift.reshape(1, cout).astype(jnp.float32)

    tile_rows = _pick_row_tile(hout, wout)
    grid = (n, hout // tile_rows)
    use_concat = cin_eff < _CONCAT_CIN_MAX

    kernel = functools.partial(_s2d_conv_kernel, tile_rows=tile_rows, wout=wout,
                               cin=cin_eff, alpha=alpha, use_concat=use_concat)

    flops = 2 * n * hout * wout * kdim * cout
    bytes_accessed = (xs.size * 2 + w_flat.size * 2
                      + (scale2.size + shift2.size) * 4
                      + n * hout * wout * cout * 2)

    return pl.pallas_call(
        kernel,
        out_shape=jax.ShapeDtypeStruct((n, hout, wout, cout), jnp.bfloat16),
        grid=grid,
        in_specs=[
            pl.BlockSpec((1, hout + 1, wout + 1, cin_eff), lambda b, r: (b, 0, 0, 0)),
            pl.BlockSpec((kdim, cout), lambda b, r: (0, 0)),
            pl.BlockSpec((1, cout), lambda b, r: (0, 0)),
            pl.BlockSpec((1, cout), lambda b, r: (0, 0)),
        ],
        out_specs=pl.BlockSpec((1, tile_rows, wout, cout), lambda b, r: (b, r, 0, 0)),
        compiler_params=pltpu.CompilerParams(
            dimension_semantics=("parallel", "arbitrary"),
            vmem_limit_bytes=_VMEM_LIMIT_BYTES),
        cost_estimate=pl.CostEstimate(flops=flops, transcendentals=0,
                                      bytes_accessed=bytes_accessed),
    )(xs, w_flat, scale2, shift2)


def conv_tail_fused(x, w4_hwio, scale4, shift4, w5_hwio, b5):
    """Fused last two stride-1 layers (4x4 conv + BN + LeakyReLU, then 4x4 conv
    to 1 channel).  The 8*ndf activation never touches HBM."""
    n, h3, w3, c3 = x.shape
    c4 = w4_hwio.shape[-1]
    hout4, wout4 = h3 + 1, w3 + 1
    hout5, wout5 = hout4 + 1, wout4 + 1

    w4 = w4_hwio.reshape(16 * c3, c4).astype(jnp.bfloat16)
    w5 = jnp.pad(w5_hwio.reshape(16 * c4, 1), ((0, 0), (0, 127)))   # lane-dense RHS
    w5 = w5.astype(jnp.bfloat16)
    s4 = scale4.reshape(1, c4).astype(jnp.float32)
    t4 = shift4.reshape(1, c4).astype(jnp.float32)
    b5_ = b5.reshape(1, 1).astype(jnp.float32)
    xb = x.astype(jnp.bfloat16)

    kernel = functools.partial(_tail_kernel, h3=h3, w3=w3, c3=c3, c4=c4,
                               use_concat4=(c3 < _CONCAT_CIN_MAX),
                               use_concat5=(c4 < _CONCAT_CIN_MAX))

    flops = 2 * n * (hout4 * wout4 * 16 * c3 * c4 + hout5 * wout5 * 16 * c4 * 128)
    bytes_accessed = (xb.size * 2 + w4.size * 2 + w5.size * 2
                      + (s4.size + t4.size + b5_.size) * 4
                      + n * hout5 * wout5 * 4)

    return pl.pallas_call(
        kernel,
        out_shape=jax.ShapeDtypeStruct((n, hout5, wout5, 1), jnp.float32),
        grid=(n,),
        in_specs=[
            pl.BlockSpec((1, h3, w3, c3), lambda b: (b, 0, 0, 0)),
            pl.BlockSpec((16 * c3, c4), lambda b: (0, 0)),
            pl.BlockSpec((1, c4), lambda b: (0, 0)),
            pl.BlockSpec((1, c4), lambda b: (0, 0)),
            pl.BlockSpec((16 * c4, 128), lambda b: (0, 0)),
            pl.BlockSpec((1, 1), lambda b: (0, 0)),
        ],
        out_specs=pl.BlockSpec((1, hout5, wout5, 1), lambda b: (b, 0, 0, 0)),
        scratch_shapes=[
            pltpu.VMEM((h3 + 4, w3 + 4, c3), jnp.bfloat16),
            pltpu.VMEM((hout4 + 4, wout4 + 4, c4), jnp.bfloat16),
        ],
        compiler_params=pltpu.CompilerParams(
            dimension_semantics=("parallel",),
            vmem_limit_bytes=_VMEM_LIMIT_BYTES),
        cost_estimate=pl.CostEstimate(flops=flops, transcendentals=0,
                                      bytes_accessed=bytes_accessed),
    )(xb, w4, s4, t4, w5, b5_)


def _fold_bn(p):
    """Fold conv bias + eval-mode BatchNorm into per-channel scale/shift."""
    if p["bn"] is None:
        return jnp.ones_like(p["b"]), p["b"]
    g, beta, rmean, rvar = p["bn"]
    scale = g * lax.rsqrt(rvar + BN_EPS)
    return scale, beta + (p["b"] - rmean) * scale


def discriminator_forward(x_nhwc, params, cfgs):
    """Full NLayerDiscriminator forward (getIntermFeat=False, use_sigmoid=False).

    params: tuple of dicts {w: HWIO f32, b: (Cout,), bn: None | (g,beta,mean,var)}
    cfgs:   static tuple of (stride, has_act) matching the module structure."""
    assert cfgs[-2] == (1, True) and cfgs[-1] == (1, False)
    h = x_nhwc
    for p, (stride, act) in zip(params[:-2], cfgs[:-2]):
        assert stride == 2
        scale, shift = _fold_bn(p)
        h = conv4x4_s2_block(h, p["w"], scale, shift,
                             alpha=LEAKY_SLOPE if act else None)
    s4, t4 = _fold_bn(params[-2])
    return conv_tail_fused(h, params[-2]["w"], s4, t4,
                           params[-1]["w"], params[-1]["b"])


def discriminator_ref(x_nhwc, params, cfgs):
    """Pure-JAX reference (lax.conv, unfolded BN).  Conv inputs are cast to bf16
    with f32 accumulation, emulating the kernels' MXU numerics and the bf16
    intermediate-activation storage."""
    h = x_nhwc
    for p, (stride, act) in zip(params, cfgs):
        hp = jnp.pad(h, ((0, 0), (2, 2), (2, 2), (0, 0)))
        y = lax.conv_general_dilated(
            hp.astype(jnp.bfloat16), p["w"].astype(jnp.bfloat16),
            window_strides=(stride, stride), padding="VALID",
            dimension_numbers=("NHWC", "HWIO", "NHWC"),
            preferred_element_type=jnp.float32)
        y = y + p["b"].reshape(1, 1, 1, -1)
        if p["bn"] is not None:
            g, beta, rmean, rvar = p["bn"]
            y = ((y - rmean.reshape(1, 1, 1, -1))
                 * lax.rsqrt(rvar + BN_EPS).reshape(1, 1, 1, -1)
                 * g.reshape(1, 1, 1, -1) + beta.reshape(1, 1, 1, -1))
        if act:
            y = jnp.where(y >= 0.0, y, LEAKY_SLOPE * y)
        h = y
    return h


if __name__ == "__main__":
    N, input_nc, H, W = 2, 3, 16, 16
    ndf, n_layers = 16, 3

    # Layer plan (cin, cout, stride, has_bn, has_act) — mirrors __init__.
    plan = [(input_nc, ndf, 2, False, True)]
    nf = ndf
    for _ in range(1, n_layers):
        nf_prev, nf = nf, min(nf * 2, 512)
        plan.append((nf_prev, nf, 2, True, True))
    nf_prev, nf = nf, min(nf * 2, 512)
    plan.append((nf_prev, nf, 1, True, True))
    plan.append((nf, 1, 1, False, False))

    key = jax.random.PRNGKey(0)
    key, kx = jax.random.split(key)
    x_nchw = jax.random.normal(kx, (N, input_nc, H, W), dtype=jnp.float32)
    x = jnp.transpose(x_nchw, (0, 2, 3, 1))               # NCHW -> NHWC

    params, cfgs = [], []
    for (cin, cout, stride, has_bn, has_act) in plan:
        key, k_w, k_b, k_g, k_bt, k_m, k_v = jax.random.split(key, 7)
        w_oihw = jax.random.normal(k_w, (cout, cin, 4, 4), jnp.float32)
        w_oihw = w_oihw / jnp.sqrt(16.0 * cin)
        w_hwio = jnp.transpose(w_oihw, (2, 3, 1, 0))      # OIHW -> HWIO
        b = 0.1 * jax.random.normal(k_b, (cout,), jnp.float32)
        bn = None
        if has_bn:
            bn = (1.0 + 0.1 * jax.random.normal(k_g, (cout,), jnp.float32),
                  0.1 * jax.random.normal(k_bt, (cout,), jnp.float32),
                  0.1 * jax.random.normal(k_m, (cout,), jnp.float32),
                  jax.random.uniform(k_v, (cout,), jnp.float32, 0.5, 1.5))
        params.append({"w": w_hwio, "b": b, "bn": bn})
        cfgs.append((stride, has_act))
    params, cfgs = tuple(params), tuple(cfgs)

    fwd = jax.jit(discriminator_forward, static_argnums=(2,))
    out_nhwc = jax.block_until_ready(fwd(x, params, cfgs))
    ref_nhwc = jax.block_until_ready(discriminator_ref(x, params, cfgs))

    out_nchw = jnp.transpose(out_nhwc, (0, 3, 1, 2))
    assert out_nchw.shape == (N, 1, 5, 5), out_nchw.shape
    max_err = float(jnp.max(jnp.abs(out_nhwc - ref_nhwc)))
    assert jnp.allclose(out_nhwc, ref_nhwc, atol=2e-2, rtol=2e-2), max_err

    print("KERNEL_OK")
</pallas_src>

<mosaic_0001>
module attributes {stable_mosaic.version = 11 : i64} {
  func.func @_s2d_conv_kernel(%arg0: i32, %arg1: i32, %arg2: memref<1x10x10x12xbf16, #tpu.memory_space<vmem>>, %arg3: memref<48x16xbf16, #tpu.memory_space<vmem>>, %arg4: memref<1x16xf32, #tpu.memory_space<vmem>>, %arg5: memref<1x16xf32, #tpu.memory_space<vmem>>, %arg6: memref<1x9x9x16xbf16, #tpu.memory_space<vmem>>) attributes {dimension_semantics = [#tpu.dimension_semantics<parallel>, #tpu.dimension_semantics<arbitrary>], iteration_bounds = array<i64: 2, 1>, scalar_prefetch = 0 : i64, scratch_operands = 0 : i64, tpu.core_type = #tpu.core_type<tc>, window_params = [{transform_indices = @transform_0, window_bounds = array<i64: 1, 10, 10, 12>}, {pipeline_mode = #tpu.pipeline_mode<synchronous>, transform_indices = @transform_1, window_bounds = array<i64: 48, 16>}, {pipeline_mode = #tpu.pipeline_mode<synchronous>, transform_indices = @transform_2, window_bounds = array<i64: 1, 16>}, {pipeline_mode = #tpu.pipeline_mode<synchronous>, transform_indices = @transform_3, window_bounds = array<i64: 1, 16>}, {transform_indices = @transform_4, window_bounds = array<i64: 1, 9, 9, 16>}]} {
    %c9_i32 = arith.constant 9 : i32
    %0 = arith.muli %arg1, %c9_i32 : i32
    %1 = tpu.assume_multiple %0, 9 : i32
    %c0 = arith.constant 0 : index
    %2 = arith.index_cast %1 : i32 to index
    %c0_0 = arith.constant 0 : index
    %c0_1 = arith.constant 0 : index
    %3 = vector.load %arg2[%c0, %2, %c0_0, %c0_1] : memref<1x10x10x12xbf16, #tpu.memory_space<vmem>>, vector<1x10x10x12xbf16>
    %4 = vector.shape_cast %3 : vector<1x10x10x12xbf16> to vector<10x10x12xbf16>
    %c0_2 = arith.constant 0 : index
    %c0_3 = arith.constant 0 : index
    %5 = vector.load %arg3[%c0_2, %c0_3] : memref<48x16xbf16, #tpu.memory_space<vmem>>, vector<48x16xbf16>
    %6 = vector.extract_strided_slice %4 {offsets = [0, 0, 0], sizes = [9, 9, 12], strides = [1, 1, 1]} : vector<10x10x12xbf16> to vector<9x9x12xbf16>
    %7 = vector.extract_strided_slice %4 {offsets = [0, 1, 0], sizes = [9, 9, 12], strides = [1, 1, 1]} : vector<10x10x12xbf16> to vector<9x9x12xbf16>
    %8 = vector.extract_strided_slice %4 {offsets = [1, 0, 0], sizes = [9, 9, 12], strides = [1, 1, 1]} : vector<10x10x12xbf16> to vector<9x9x12xbf16>
    %9 = vector.extract_strided_slice %4 {offsets = [1, 1, 0], sizes = [9, 9, 12], strides = [1, 1, 1]} : vector<10x10x12xbf16> to vector<9x9x12xbf16>
    %10 = tpu.concatenate %6, %7, %8, %9 in 2 : vector<9x9x12xbf16>, vector<9x9x12xbf16>, vector<9x9x12xbf16>, vector<9x9x12xbf16> -> vector<9x9x48xbf16>
    %11 = vector.shape_cast %10 : vector<9x9x48xbf16> to vector<81x48xbf16>
    %cst = arith.constant dense<0.000000e+00> : vector<81x16xf32>
    %12 = tpu.matmul %11, %5, %cst {dimension_numbers = #tpu.dot_dimension_numbers<[1], [0], [0], [1], [0, 0, 1, 1], [], []>} : vector<81x48xbf16>, vector<48x16xbf16>, vector<81x16xf32> -> vector<81x16xf32>
    %c0_4 = arith.constant 0 : index
    %c0_5 = arith.constant 0 : index
    %13 = vector.load %arg4[%c0_4, %c0_5] : memref<1x16xf32, #tpu.memory_space<vmem>>, vector<1x16xf32>
    %14 = vector.broadcast %13 : vector<1x16xf32> to vector<81x16xf32>
    %15 = arith.mulf %12, %14 : vector<81x16xf32>
    %c0_6 = arith.constant 0 : index
    %c0_7 = arith.constant 0 : index
    %16 = vector.load %arg5[%c0_6, %c0_7] : memref<1x16xf32, #tpu.memory_space<vmem>>, vector<1x16xf32>
    %17 = vector.broadcast %16 : vector<1x16xf32> to vector<81x16xf32>
    %18 = arith.addf %15, %17 : vector<81x16xf32>
    %cst_8 = arith.constant 2.000000e-01 : f32
    %19 = vector.broadcast %cst_8 : f32 to vector<81x16xf32>
    %20 = arith.mulf %19, %18 : vector<81x16xf32>
    %21 = arith.maximumf %18, %20 : vector<81x16xf32>
    %22 = vector.shape_cast %21 : vector<81x16xf32> to vector<9x9x16xf32>
    %23 = arith.truncf %22 : vector<9x9x16xf32> to vector<9x9x16xbf16>
    %c0_9 = arith.constant 0 : index
    %c0_10 = arith.constant 0 : index
    %c0_11 = arith.constant 0 : index
    %c0_12 = arith.constant 0 : index
    %24 = vector.load %arg6[%c0_9, %c0_10, %c0_11, %c0_12] : memref<1x9x9x16xbf16, #tpu.memory_space<vmem>>, vector<1x9x9x16xbf16>
    %25 = vector.shape_cast %24 : vector<1x9x9x16xbf16> to vector<9x9x16xbf16>
    %26 = vector.shape_cast %23 : vector<9x9x16xbf16> to vector<1x9x9x16xbf16>
    tpu.vector_store %arg6[%c0_9, %c0_10, %c0_11, %c0_12], %26 {strides = array<i32>} : memref<1x9x9x16xbf16, #tpu.memory_space<vmem>>, vector<1x9x9x16xbf16>,
    return
  }
  func.func @transform_0(%arg0: i32, %arg1: i32) -> (i32, i32, i32, i32) {
    %c0_i32 = arith.constant 0 : i32
    %c0_i32_0 = arith.constant 0 : i32
    %c0_i32_1 = arith.constant 0 : i32
    %c0_i32_2 = arith.constant 0 : i32
    return %arg0, %c0_i32, %c0_i32_0, %c0_i32_1 : i32, i32, i32, i32
  }
  func.func @transform_1(%arg0: i32, %arg1: i32) -> (i32, i32) {
    %c0_i32 = arith.constant 0 : i32
    %c0_i32_0 = arith.constant 0 : i32
    %c0_i32_1 = arith.constant 0 : i32
    return %c0_i32, %c0_i32_0 : i32, i32
  }
  func.func @transform_2(%arg0: i32, %arg1: i32) -> (i32, i32) {
    %c0_i32 = arith.constant 0 : i32
    %c0_i32_0 = arith.constant 0 : i32
    %c0_i32_1 = arith.constant 0 : i32
    return %c0_i32, %c0_i32_0 : i32, i32
  }
  func.func @transform_3(%arg0: i32, %arg1: i32) -> (i32, i32) {
    %c0_i32 = arith.constant 0 : i32
    %c0_i32_0 = arith.constant 0 : i32
    %c0_i32_1 = arith.constant 0 : i32
    return %c0_i32, %c0_i32_0 : i32, i32
  }
  func.func @transform_4(%arg0: i32, %arg1: i32) -> (i32, i32, i32, i32) {
    %c0_i32 = arith.constant 0 : i32
    %c0_i32_0 = arith.constant 0 : i32
    %c0_i32_1 = arith.constant 0 : i32
    return %arg0, %arg1, %c0_i32, %c0_i32_0 : i32, i32, i32, i32
  }
}

module attributes {stable_mosaic.version = 11 : i64} {
  func.func @_s2d_conv_kernel(%arg0: i32, %arg1: i32, %arg2: memref<1x6x6x64xbf16, #tpu.memory_space<vmem>>, %arg3: memref<256x32xbf16, #tpu.memory_space<vmem>>, %arg4: memref<1x32xf32, #tpu.memory_space<vmem>>, %arg5: memref<1x32xf32, #tpu.memory_space<vmem>>, %arg6: memref<1x5x5x32xbf16, #tpu.memory_space<vmem>>) attributes {dimension_semantics = [#tpu.dimension_semantics<parallel>, #tpu.dimension_semantics<arbitrary>], iteration_bounds = array<i64: 2, 1>, scalar_prefetch = 0 : i64, scratch_operands = 0 : i64, tpu.core_type = #tpu.core_type<tc>, window_params = [{transform_indices = @transform_0, window_bounds = array<i64: 1, 6, 6, 64>}, {pipeline_mode = #tpu.pipeline_mode<synchronous>, transform_indices = @transform_1, window_bounds = array<i64: 256, 32>}, {pipeline_mode = #tpu.pipeline_mode<synchronous>, transform_indices = @transform_2, window_bounds = array<i64: 1, 32>}, {pipeline_mode = #tpu.pipeline_mode<synchronous>, transform_indices = @transform_3, window_bounds = array<i64: 1, 32>}, {transform_indices = @transform_4, window_bounds = array<i64: 1, 5, 5, 32>}]} {
    %c5_i32 = arith.constant 5 : i32
    %0 = arith.muli %arg1, %c5_i32 : i32
    %1 = tpu.assume_multiple %0, 5 : i32
    %c0 = arith.constant 0 : index
    %2 = arith.index_cast %1 : i32 to index
    %c0_0 = arith.constant 0 : index
    %c0_1 = arith.constant 0 : index
    %3 = vector.load %arg2[%c0, %2, %c0_0, %c0_1] : memref<1x6x6x64xbf16, #tpu.memory_space<vmem>>, vector<1x6x6x64xbf16>
    %4 = vector.shape_cast %3 : vector<1x6x6x64xbf16> to vector<6x6x64xbf16>
    %c0_2 = arith.constant 0 : index
    %c0_3 = arith.constant 0 : index
    %5 = vector.load %arg3[%c0_2, %c0_3] : memref<256x32xbf16, #tpu.memory_space<vmem>>, vector<256x32xbf16>
    %6 = vector.extract_strided_slice %4 {offsets = [0, 0, 0], sizes = [5, 5, 64], strides = [1, 1, 1]} : vector<6x6x64xbf16> to vector<5x5x64xbf16>
    %7 = vector.extract_strided_slice %4 {offsets = [0, 1, 0], sizes = [5, 5, 64], strides = [1, 1, 1]} : vector<6x6x64xbf16> to vector<5x5x64xbf16>
    %8 = vector.extract_strided_slice %4 {offsets = [1, 0, 0], sizes = [5, 5, 64], strides = [1, 1, 1]} : vector<6x6x64xbf16> to vector<5x5x64xbf16>
    %9 = vector.extract_strided_slice %4 {offsets = [1, 1, 0], sizes = [5, 5, 64], strides = [1, 1, 1]} : vector<6x6x64xbf16> to vector<5x5x64xbf16>
    %10 = tpu.concatenate %6, %7, %8, %9 in 2 : vector<5x5x64xbf16>, vector<5x5x64xbf16>, vector<5x5x64xbf16>, vector<5x5x64xbf16> -> vector<5x5x256xbf16>
    %11 = vector.shape_cast %10 : vector<5x5x256xbf16> to vector<25x256xbf16>
    %cst = arith.constant dense<0.000000e+00> : vector<25x32xf32>
    %12 = tpu.matmul %11, %5, %cst {dimension_numbers = #tpu.dot_dimension_numbers<[1], [0], [0], [1], [0, 0, 1, 1], [], []>} : vector<25x256xbf16>, vector<256x32xbf16>, vector<25x32xf32> -> vector<25x32xf32>
    %c0_4 = arith.constant 0 : index
    %c0_5 = arith.constant 0 : index
    %13 = vector.load %arg4[%c0_4, %c0_5] : memref<1x32xf32, #tpu.memory_space<vmem>>, vector<1x32xf32>
    %14 = vector.broadcast %13 : vector<1x32xf32> to vector<25x32xf32>
    %15 = arith.mulf %12, %14 : vector<25x32xf32>
    %c0_6 = arith.constant 0 : index
    %c0_7 = arith.constant 0 : index
    %16 = vector.load %arg5[%c0_6, %c0_7] : memref<1x32xf32, #tpu.memory_space<vmem>>, vector<1x32xf32>
    %17 = vector.broadcast %16 : vector<1x32xf32> to vector<25x32xf32>
    %18 = arith.addf %15, %17 : vector<25x32xf32>
    %cst_8 = arith.constant 2.000000e-01 : f32
    %19 = vector.broadcast %cst_8 : f32 to vector<25x32xf32>
    %20 = arith.mulf %19, %18 : vector<25x32xf32>
    %21 = arith.maximumf %18, %20 : vector<25x32xf32>
    %22 = vector.shape_cast %21 : vector<25x32xf32> to vector<5x5x32xf32>
    %23 = arith.truncf %22 : vector<5x5x32xf32> to vector<5x5x32xbf16>
    %c0_9 = arith.constant 0 : index
    %c0_10 = arith.constant 0 : index
    %c0_11 = arith.constant 0 : index
    %c0_12 = arith.constant 0 : index
    %24 = vector.load %arg6[%c0_9, %c0_10, %c0_11, %c0_12] : memref<1x5x5x32xbf16, #tpu.memory_space<vmem>>, vector<1x5x5x32xbf16>
    %25 = vector.shape_cast %24 : vector<1x5x5x32xbf16> to vector<5x5x32xbf16>
    %26 = vector.shape_cast %23 : vector<5x5x32xbf16> to vector<1x5x5x32xbf16>
    tpu.vector_store %arg6[%c0_9, %c0_10, %c0_11, %c0_12], %26 {strides = array<i32>} : memref<1x5x5x32xbf16, #tpu.memory_space<vmem>>, vector<1x5x5x32xbf16>,
    return
  }
  func.func @transform_0(%arg0: i32, %arg1: i32) -> (i32, i32, i32, i32) {
    %c0_i32 = arith.constant 0 : i32
    %c0_i32_0 = arith.constant 0 : i32
    %c0_i32_1 = arith.constant 0 : i32
    %c0_i32_2 = arith.constant 0 : i32
    return %arg0, %c0_i32, %c0_i32_0, %c0_i32_1 : i32, i32, i32, i32
  }
  func.func @transform_1(%arg0: i32, %arg1: i32) -> (i32, i32) {
    %c0_i32 = arith.constant 0 : i32
    %c0_i32_0 = arith.constant 0 : i32
    %c0_i32_1 = arith.constant 0 : i32
    return %c0_i32, %c0_i32_0 : i32, i32
  }
  func.func @transform_2(%arg0: i32, %arg1: i32) -> (i32, i32) {
    %c0_i32 = arith.constant 0 : i32
    %c0_i32_0 = arith.constant 0 : i32
    %c0_i32_1 = arith.constant 0 : i32
    return %c0_i32, %c0_i32_0 : i32, i32
  }
  func.func @transform_3(%arg0: i32, %arg1: i32) -> (i32, i32) {
    %c0_i32 = arith.constant 0 : i32
    %c0_i32_0 = arith.constant 0 : i32
    %c0_i32_1 = arith.constant 0 : i32
    return %c0_i32, %c0_i32_0 : i32, i32
  }
  func.func @transform_4(%arg0: i32, %arg1: i32) -> (i32, i32, i32, i32) {
    %c0_i32 = arith.constant 0 : i32
    %c0_i32_0 = arith.constant 0 : i32
    %c0_i32_1 = arith.constant 0 : i32
    return %arg0, %arg1, %c0_i32, %c0_i32_0 : i32, i32, i32, i32
  }
}

module attributes {stable_mosaic.version = 11 : i64} {
  func.func @_s2d_conv_kernel(%arg0: i32, %arg1: i32, %arg2: memref<1x4x4x128xbf16, #tpu.memory_space<vmem>>, %arg3: memref<512x64xbf16, #tpu.memory_space<vmem>>, %arg4: memref<1x64xf32, #tpu.memory_space<vmem>>, %arg5: memref<1x64xf32, #tpu.memory_space<vmem>>, %arg6: memref<1x3x3x64xbf16, #tpu.memory_space<vmem>>) attributes {dimension_semantics = [#tpu.dimension_semantics<parallel>, #tpu.dimension_semantics<arbitrary>], iteration_bounds = array<i64: 2, 1>, scalar_prefetch = 0 : i64, scratch_operands = 0 : i64, tpu.core_type = #tpu.core_type<tc>, window_params = [{transform_indices = @transform_0, window_bounds = array<i64: 1, 4, 4, 128>}, {pipeline_mode = #tpu.pipeline_mode<synchronous>, transform_indices = @transform_1, window_bounds = array<i64: 512, 64>}, {pipeline_mode = #tpu.pipeline_mode<synchronous>, transform_indices = @transform_2, window_bounds = array<i64: 1, 64>}, {pipeline_mode = #tpu.pipeline_mode<synchronous>, transform_indices = @transform_3, window_bounds = array<i64: 1, 64>}, {transform_indices = @transform_4, window_bounds = array<i64: 1, 3, 3, 64>}]} {
    %c3_i32 = arith.constant 3 : i32
    %0 = arith.muli %arg1, %c3_i32 : i32
    %1 = tpu.assume_multiple %0, 3 : i32
    %c0 = arith.constant 0 : index
    %2 = arith.index_cast %1 : i32 to index
    %c0_0 = arith.constant 0 : index
    %c0_1 = arith.constant 0 : index
    %3 = vector.load %arg2[%c0, %2, %c0_0, %c0_1] : memref<1x4x4x128xbf16, #tpu.memory_space<vmem>>, vector<1x4x4x128xbf16>
    %4 = vector.shape_cast %3 : vector<1x4x4x128xbf16> to vector<4x4x128xbf16>
    %c0_2 = arith.constant 0 : index
    %c0_3 = arith.constant 0 : index
    %5 = vector.load %arg3[%c0_2, %c0_3] : memref<512x64xbf16, #tpu.memory_space<vmem>>, vector<512x64xbf16>
    %6 = vector.extract_strided_slice %4 {offsets = [0, 0, 0], sizes = [3, 3, 128], strides = [1, 1, 1]} : vector<4x4x128xbf16> to vector<3x3x128xbf16>
    %7 = vector.shape_cast %6 : vector<3x3x128xbf16> to vector<9x128xbf16>
    %8 = vector.extract_strided_slice %5 {offsets = [0, 0], sizes = [128, 64], strides = [1, 1]} : vector<512x64xbf16> to vector<128x64xbf16>
    %cst = arith.constant dense<0.000000e+00> : vector<9x64xf32>
    %9 = tpu.matmul %7, %8, %cst {dimension_numbers = #tpu.dot_dimension_numbers<[1], [0], [0], [1], [0, 0, 1, 1], [], []>} : vector<9x128xbf16>, vector<128x64xbf16>, vector<9x64xf32> -> vector<9x64xf32>
    %10 = vector.extract_strided_slice %4 {offsets = [0, 1, 0], sizes = [3, 3, 128], strides = [1, 1, 1]} : vector<4x4x128xbf16> to vector<3x3x128xbf16>
    %11 = vector.shape_cast %10 : vector<3x3x128xbf16> to vector<9x128xbf16>
    %12 = vector.extract_strided_slice %5 {offsets = [128, 0], sizes = [128, 64], strides = [1, 1]} : vector<512x64xbf16> to vector<128x64xbf16>
    %cst_4 = arith.constant dense<0.000000e+00> : vector<9x64xf32>
    %13 = tpu.matmul %11, %12, %cst_4 {dimension_numbers = #tpu.dot_dimension_numbers<[1], [0], [0], [1], [0, 0, 1, 1], [], []>} : vector<9x128xbf16>, vector<128x64xbf16>, vector<9x64xf32> -> vector<9x64xf32>
    %14 = arith.addf %9, %13 : vector<9x64xf32>
    %15 = vector.extract_strided_slice %4 {offsets = [1, 0, 0], sizes = [3, 3, 128], strides = [1, 1, 1]} : vector<4x4x128xbf16> to vector<3x3x128xbf16>
    %16 = vector.shape_cast %15 : vector<3x3x128xbf16> to vector<9x128xbf16>
    %17 = vector.extract_strided_slice %5 {offsets = [256, 0], sizes = [128, 64], strides = [1, 1]} : vector<512x64xbf16> to vector<128x64xbf16>
    %cst_5 = arith.constant dense<0.000000e+00> : vector<9x64xf32>
    %18 = tpu.matmul %16, %17, %cst_5 {dimension_numbers = #tpu.dot_dimension_numbers<[1], [0], [0], [1], [0, 0, 1, 1], [], []>} : vector<9x128xbf16>, vector<128x64xbf16>, vector<9x64xf32> -> vector<9x64xf32>
    %19 = arith.addf %14, %18 : vector<9x64xf32>
    %20 = vector.extract_strided_slice %4 {offsets = [1, 1, 0], sizes = [3, 3, 128], strides = [1, 1, 1]} : vector<4x4x128xbf16> to vector<3x3x128xbf16>
    %21 = vector.shape_cast %20 : vector<3x3x128xbf16> to vector<9x128xbf16>
    %22 = vector.extract_strided_slice %5 {offsets = [384, 0], sizes = [128, 64], strides = [1, 1]} : vector<512x64xbf16> to vector<128x64xbf16>
    %cst_6 = arith.constant dense<0.000000e+00> : vector<9x64xf32>
    %23 = tpu.matmul %21, %22, %cst_6 {dimension_numbers = #tpu.dot_dimension_numbers<[1], [0], [0], [1], [0, 0, 1, 1], [], []>} : vector<9x128xbf16>, vector<128x64xbf16>, vector<9x64xf32> -> vector<9x64xf32>
    %24 = arith.addf %19, %23 : vector<9x64xf32>
    %c0_7 = arith.constant 0 : index
    %c0_8 = arith.constant 0 : index
    %25 = vector.load %arg4[%c0_7, %c0_8] : memref<1x64xf32, #tpu.memory_space<vmem>>, vector<1x64xf32>
    %26 = vector.broadcast %25 : vector<1x64xf32> to vector<9x64xf32>
    %27 = arith.mulf %24, %26 : vector<9x64xf32>
    %c0_9 = arith.constant 0 : index
    %c0_10 = arith.constant 0 : index
    %28 = vector.load %arg5[%c0_9, %c0_10] : memref<1x64xf32, #tpu.memory_space<vmem>>, vector<1x64xf32>
    %29 = vector.broadcast %28 : vector<1x64xf32> to vector<9x64xf32>
    %30 = arith.addf %27, %29 : vector<9x64xf32>
    %cst_11 = arith.constant 2.000000e-01 : f32
    %31 = vector.broadcast %cst_11 : f32 to vector<9x64xf32>
    %32 = arith.mulf %31, %30 : vector<9x64xf32>
    %33 = arith.maximumf %30, %32 : vector<9x64xf32>
    %34 = vector.shape_cast %33 : vector<9x64xf32> to vector<3x3x64xf32>
    %35 = arith.truncf %34 : vector<3x3x64xf32> to vector<3x3x64xbf16>
    %c0_12 = arith.constant 0 : index
    %c0_13 = arith.constant 0 : index
    %c0_14 = arith.constant 0 : index
    %c0_15 = arith.constant 0 : index
    %36 = vector.load %arg6[%c0_12, %c0_13, %c0_14, %c0_15] : memref<1x3x3x64xbf16, #tpu.memory_space<vmem>>, vector<1x3x3x64xbf16>
    %37 = vector.shape_cast %36 : vector<1x3x3x64xbf16> to vector<3x3x64xbf16>
    %38 = vector.shape_cast %35 : vector<3x3x64xbf16> to vector<1x3x3x64xbf16>
    tpu.vector_store %arg6[%c0_12, %c0_13, %c0_14, %c0_15], %38 {strides = array<i32>} : memref<1x3x3x64xbf16, #tpu.memory_space<vmem>>, vector<1x3x3x64xbf16>,
    return
  }
  func.func @transform_0(%arg0: i32, %arg1: i32) -> (i32, i32, i32, i32) {
    %c0_i32 = arith.constant 0 : i32
    %c0_i32_0 = arith.constant 0 : i32
    %c0_i32_1 = arith.constant 0 : i32
    %c0_i32_2 = arith.constant 0 : i32
    return %arg0, %c0_i32, %c0_i32_0, %c0_i32_1 : i32, i32, i32, i32
  }
  func.func @transform_1(%arg0: i32, %arg1: i32) -> (i32, i32) {
    %c0_i32 = arith.constant 0 : i32
    %c0_i32_0 = arith.constant 0 : i32
    %c0_i32_1 = arith.constant 0 : i32
    return %c0_i32, %c0_i32_0 : i32, i32
  }
  func.func @transform_2(%arg0: i32, %arg1: i32) -> (i32, i32) {
    %c0_i32 = arith.constant 0 : i32
    %c0_i32_0 = arith.constant 0 : i32
    %c0_i32_1 = arith.constant 0 : i32
    return %c0_i32, %c0_i32_0 : i32, i32
  }
  func.func @transform_3(%arg0: i32, %arg1: i32) -> (i32, i32) {
    %c0_i32 = arith.constant 0 : i32
    %c0_i32_0 = arith.constant 0 : i32
    %c0_i32_1 = arith.constant 0 : i32
    return %c0_i32, %c0_i32_0 : i32, i32
  }
  func.func @transform_4(%arg0: i32, %arg1: i32) -> (i32, i32, i32, i32) {
    %c0_i32 = arith.constant 0 : i32
    %c0_i32_0 = arith.constant 0 : i32
    %c0_i32_1 = arith.constant 0 : i32
    return %arg0, %arg1, %c0_i32, %c0_i32_0 : i32, i32, i32, i32
  }
}

module attributes {stable_mosaic.version = 11 : i64} {
  func.func @_tail_kernel(%arg0: i32, %arg1: memref<1x3x3x64xbf16, #tpu.memory_space<vmem>>, %arg2: memref<1024x128xbf16, #tpu.memory_space<vmem>>, %arg3: memref<1x128xf32, #tpu.memory_space<vmem>>, %arg4: memref<1x128xf32, #tpu.memory_space<vmem>>, %arg5: memref<2048x128xbf16, #tpu.memory_space<vmem>>, %arg6: memref<1x1xf32, #tpu.memory_space<vmem>>, %arg7: memref<1x5x5x1xf32, #tpu.memory_space<vmem>>, %arg8: memref<7x7x64xbf16, #tpu.memory_space<vmem>>, %arg9: memref<8x8x128xbf16, #tpu.memory_space<vmem>>) attributes {dimension_semantics = [#tpu.dimension_semantics<parallel>], iteration_bounds = array<i64: 2>, scalar_prefetch = 0 : i64, scratch_operands = 2 : i64, tpu.core_type = #tpu.core_type<tc>, window_params = [{transform_indices = @transform_0, window_bounds = array<i64: 1, 3, 3, 64>}, {pipeline_mode = #tpu.pipeline_mode<synchronous>, transform_indices = @transform_1, window_bounds = array<i64: 1024, 128>}, {pipeline_mode = #tpu.pipeline_mode<synchronous>, transform_indices = @transform_2, window_bounds = array<i64: 1, 128>}, {pipeline_mode = #tpu.pipeline_mode<synchronous>, transform_indices = @transform_3, window_bounds = array<i64: 1, 128>}, {pipeline_mode = #tpu.pipeline_mode<synchronous>, transform_indices = @transform_4, window_bounds = array<i64: 2048, 128>}, {pipeline_mode = #tpu.pipeline_mode<synchronous>, transform_indices = @transform_5, window_bounds = array<i64: 1, 1>}, {transform_indices = @transform_6, window_bounds = array<i64: 1, 5, 5, 1>}]} {
    %c0_i32 = arith.constant 0 : i32
    %0 = arith.cmpi eq, %arg0, %c0_i32 : i32
    %1 = arith.extui %0 : i1 to i32
    %c0_i32_0 = arith.constant 0 : i32
    %2 = arith.cmpi ne, %1, %c0_i32_0 : i32
    scf.if %2 {
      %cst_46 = arith.constant 0.000000e+00 : bf16
      %128 = vector.broadcast %cst_46 : bf16 to vector<7x7x64xbf16>
      %c0_47 = arith.constant 0 : index
      %c0_48 = arith.constant 0 : index
      %c0_49 = arith.constant 0 : index
      %129 = vector.load %arg8[%c0_47, %c0_48, %c0_49] : memref<7x7x64xbf16, #tpu.memory_space<vmem>>, vector<7x7x64xbf16>
      tpu.vector_store %arg8[%c0_47, %c0_48, %c0_49], %128 {strides = array<i32>} : memref<7x7x64xbf16, #tpu.memory_space<vmem>>, vector<7x7x64xbf16>,
      %cst_50 = arith.constant 0.000000e+00 : bf16
      %130 = vector.broadcast %cst_50 : bf16 to vector<8x8x128xbf16>
      %c0_51 = arith.constant 0 : index
      %c0_52 = arith.constant 0 : index
      %c0_53 = arith.constant 0 : index
      %131 = vector.load %arg9[%c0_51, %c0_52, %c0_53] : memref<8x8x128xbf16, #tpu.memory_space<vmem>>, vector<8x8x128xbf16>
      tpu.vector_store %arg9[%c0_51, %c0_52, %c0_53], %130 {strides = array<i32>} : memref<8x8x128xbf16, #tpu.memory_space<vmem>>, vector<8x8x128xbf16>,
    } else {
    }
    %c0 = arith.constant 0 : index
    %c0_1 = arith.constant 0 : index
    %c0_2 = arith.constant 0 : index
    %c0_3 = arith.constant 0 : index
    %3 = vector.load %arg1[%c0, %c0_1, %c0_2, %c0_3] : memref<1x3x3x64xbf16, #tpu.memory_space<vmem>>, vector<1x3x3x64xbf16>
    %4 = vector.shape_cast %3 : vector<1x3x3x64xbf16> to vector<3x3x64xbf16>
    %c2 = arith.constant 2 : index
    %c2_4 = arith.constant 2 : index
    %c0_5 = arith.constant 0 : index
    %5 = vector.load %arg8[%c2, %c2_4, %c0_5] : memref<7x7x64xbf16, #tpu.memory_space<vmem>>, vector<3x3x64xbf16>
    tpu.vector_store %arg8[%c2, %c2_4, %c0_5], %4 {strides = array<i32>} : memref<7x7x64xbf16, #tpu.memory_space<vmem>>, vector<3x3x64xbf16>,
    %c0_6 = arith.constant 0 : index
    %c0_7 = arith.constant 0 : index
    %c0_8 = arith.constant 0 : index
    %6 = vector.load %arg8[%c0_6, %c0_7, %c0_8] : memref<7x7x64xbf16, #tpu.memory_space<vmem>>, vector<7x7x64xbf16>
    %c0_9 = arith.constant 0 : index
    %c0_10 = arith.constant 0 : index
    %7 = vector.load %arg2[%c0_9, %c0_10] : memref<1024x128xbf16, #tpu.memory_space<vmem>>, vector<1024x128xbf16>
    %8 = vector.extract_strided_slice %6 {offsets = [0, 0, 0], sizes = [4, 4, 64], strides = [1, 1, 1]} : vector<7x7x64xbf16> to vector<4x4x64xbf16>
    %9 = vector.extract_strided_slice %6 {offsets = [0, 1, 0], sizes = [4, 4, 64], strides = [1, 1, 1]} : vector<7x7x64xbf16> to vector<4x4x64xbf16>
    %10 = vector.extract_strided_slice %6 {offsets = [0, 2, 0], sizes = [4, 4, 64], strides = [1, 1, 1]} : vector<7x7x64xbf16> to vector<4x4x64xbf16>
    %11 = vector.extract_strided_slice %6 {offsets = [0, 3, 0], sizes = [4, 4, 64], strides = [1, 1, 1]} : vector<7x7x64xbf16> to vector<4x4x64xbf16>
    %12 = vector.extract_strided_slice %6 {offsets = [1, 0, 0], sizes = [4, 4, 64], strides = [1, 1, 1]} : vector<7x7x64xbf16> to vector<4x4x64xbf16>
    %13 = vector.extract_strided_slice %6 {offsets = [1, 1, 0], sizes = [4, 4, 64], strides = [1, 1, 1]} : vector<7x7x64xbf16> to vector<4x4x64xbf16>
    %14 = vector.extract_strided_slice %6 {offsets = [1, 2, 0], sizes = [4, 4, 64], strides = [1, 1, 1]} : vector<7x7x64xbf16> to vector<4x4x64xbf16>
    %15 = vector.extract_strided_slice %6 {offsets = [1, 3, 0], sizes = [4, 4, 64], strides = [1, 1, 1]} : vector<7x7x64xbf16> to vector<4x4x64xbf16>
    %16 = vector.extract_strided_slice %6 {offsets = [2, 0, 0], sizes = [4, 4, 64], strides = [1, 1, 1]} : vector<7x7x64xbf16> to vector<4x4x64xbf16>
    %17 = vector.extract_strided_slice %6 {offsets = [2, 1, 0], sizes = [4, 4, 64], strides = [1, 1, 1]} : vector<7x7x64xbf16> to vector<4x4x64xbf16>
    %18 = vector.extract_strided_slice %6 {offsets = [2, 2, 0], sizes = [4, 4, 64], strides = [1, 1, 1]} : vector<7x7x64xbf16> to vector<4x4x64xbf16>
    %19 = vector.extract_strided_slice %6 {offsets = [2, 3, 0], sizes = [4, 4, 64], strides = [1, 1, 1]} : vector<7x7x64xbf16> to vector<4x4x64xbf16>
    %20 = vector.extract_strided_slice %6 {offsets = [3, 0, 0], sizes = [4, 4, 64], strides = [1, 1, 1]} : vector<7x7x64xbf16> to vector<4x4x64xbf16>
    %21 = vector.extract_strided_slice %6 {offsets = [3, 1, 0], sizes = [4, 4, 64], strides = [1, 1, 1]} : vector<7x7x64xbf16> to vector<4x4x64xbf16>
    %22 = vector.extract_strided_slice %6 {offsets = [3, 2, 0], sizes = [4, 4, 64], strides = [1, 1, 1]} : vector<7x7x64xbf16> to vector<4x4x64xbf16>
    %23 = vector.extract_strided_slice %6 {offsets = [3, 3, 0], sizes = [4, 4, 64], strides = [1, 1, 1]} : vector<7x7x64xbf16> to vector<4x4x64xbf16>
    %24 = tpu.concatenate %8, %9, %10, %11, %12, %13, %14, %15, %16, %17, %18, %19, %20, %21, %22, %23 in 2 : vector<4x4x64xbf16>, vector<4x4x64xbf16>, vector<4x4x64xbf16>, vector<4x4x64xbf16>, vector<4x4x64xbf16>, vector<4x4x64xbf16>, vector<4x4x64xbf16>, vector<4x4x64xbf16>, vector<4x4x64xbf16>, vector<4x4x64xbf16>, vector<4x4x64xbf16>, vector<4x4x64xbf16>, vector<4x4x64xbf16>, vector<4x4x64xbf16>, vector<4x4x64xbf16>, vector<4x4x64xbf16> -> vector<4x4x1024xbf16>
    %25 = vector.shape_cast %24 : vector<4x4x1024xbf16> to vector<16x1024xbf16>
    %cst = arith.constant dense<0.000000e+00> : vector<16x128xf32>
    %26 = tpu.matmul %25, %7, %cst {dimension_numbers = #tpu.dot_dimension_numbers<[1], [0], [0], [1], [0, 0, 1, 1], [], []>} : vector<16x1024xbf16>, vector<1024x128xbf16>, vector<16x128xf32> -> vector<16x128xf32>
    %c0_11 = arith.constant 0 : index
    %c0_12 = arith.constant 0 : index
    %27 = vector.load %arg3[%c0_11, %c0_12] : memref<1x128xf32, #tpu.memory_space<vmem>>, vector<1x128xf32>
    %28 = vector.broadcast %27 : vector<1x128xf32> to vector<16x128xf32>
    %29 = arith.mulf %26, %28 : vector<16x128xf32>
    %c0_13 = arith.constant 0 : index
    %c0_14 = arith.constant 0 : index
    %30 = vector.load %arg4[%c0_13, %c0_14] : memref<1x128xf32, #tpu.memory_space<vmem>>, vector<1x128xf32>
    %31 = vector.broadcast %30 : vector<1x128xf32> to vector<16x128xf32>
    %32 = arith.addf %29, %31 : vector<16x128xf32>
    %cst_15 = arith.constant 2.000000e-01 : f32
    %33 = vector.broadcast %cst_15 : f32 to vector<16x128xf32>
    %34 = arith.mulf %33, %32 : vector<16x128xf32>
    %35 = arith.maximumf %32, %34 : vector<16x128xf32>
    %36 = vector.shape_cast %35 : vector<16x128xf32> to vector<4x4x128xf32>
    %37 = arith.truncf %36 : vector<4x4x128xf32> to vector<4x4x128xbf16>
    %c2_16 = arith.constant 2 : index
    %c2_17 = arith.constant 2 : index
    %c0_18 = arith.constant 0 : index
    %38 = vector.load %arg9[%c2_16, %c2_17, %c0_18] : memref<8x8x128xbf16, #tpu.memory_space<vmem>>, vector<4x4x128xbf16>
    tpu.vector_store %arg9[%c2_16, %c2_17, %c0_18], %37 {strides = array<i32>} : memref<8x8x128xbf16, #tpu.memory_space<vmem>>, vector<4x4x128xbf16>,
    %c0_19 = arith.constant 0 : index
    %c0_20 = arith.constant 0 : index
    %c0_21 = arith.constant 0 : index
    %39 = vector.load %arg9[%c0_19, %c0_20, %c0_21] : memref<8x8x128xbf16, #tpu.memory_space<vmem>>, vector<8x8x128xbf16>
    %c0_22 = arith.constant 0 : index
    %c0_23 = arith.constant 0 : index
    %40 = vector.load %arg5[%c0_22, %c0_23] : memref<2048x128xbf16, #tpu.memory_space<vmem>>, vector<2048x128xbf16>
    %41 = vector.extract_strided_slice %39 {offsets = [0, 0, 0], sizes = [5, 5, 128], strides = [1, 1, 1]} : vector<8x8x128xbf16> to vector<5x5x128xbf16>
    %42 = vector.shape_cast %41 : vector<5x5x128xbf16> to vector<25x128xbf16>
    %43 = vector.extract_strided_slice %40 {offsets = [0, 0], sizes = [128, 128], strides = [1, 1]} : vector<2048x128xbf16> to vector<128x128xbf16>
    %cst_24 = arith.constant dense<0.000000e+00> : vector<25x128xf32>
    %44 = tpu.matmul %42, %43, %cst_24 {dimension_numbers = #tpu.dot_dimension_numbers<[1], [0], [0], [1], [0, 0, 1, 1], [], []>} : vector<25x128xbf16>, vector<128x128xbf16>, vector<25x128xf32> -> vector<25x128xf32>
    %45 = vector.extract_strided_slice %39 {offsets = [0, 1, 0], sizes = [5, 5, 128], strides = [1, 1, 1]} : vector<8x8x128xbf16> to vector<5x5x128xbf16>
    %46 = vector.shape_cast %45 : vector<5x5x128xbf16> to vector<25x128xbf16>
    %47 = vector.extract_strided_slice %40 {offsets = [128, 0], sizes = [128, 128], strides = [1, 1]} : vector<2048x128xbf16> to vector<128x128xbf16>
    %cst_25 = arith.constant dense<0.000000e+00> : vector<25x128xf32>
    %48 = tpu.matmul %46, %47, %cst_25 {dimension_numbers = #tpu.dot_dimension_numbers<[1], [0], [0], [1], [0, 0, 1, 1], [], []>} : vector<25x128xbf16>, vector<128x128xbf16>, vector<25x128xf32> -> vector<25x128xf32>
    %49 = arith.addf %44, %48 : vector<25x128xf32>
    %50 = vector.extract_strided_slice %39 {offsets = [0, 2, 0], sizes = [5, 5, 128], strides = [1, 1, 1]} : vector<8x8x128xbf16> to vector<5x5x128xbf16>
    %51 = vector.shape_cast %50 : vector<5x5x128xbf16> to vector<25x128xbf16>
    %52 = vector.extract_strided_slice %40 {offsets = [256, 0], sizes = [128, 128], strides = [1, 1]} : vector<2048x128xbf16> to vector<128x128xbf16>
    %cst_26 = arith.constant dense<0.000000e+00> : vector<25x128xf32>
    %53 = tpu.matmul %51, %52, %cst_26 {dimension_numbers = #tpu.dot_dimension_numbers<[1], [0], [0], [1], [0, 0, 1, 1], [], []>} : vector<25x128xbf16>, vector<128x128xbf16>, vector<25x128xf32> -> vector<25x128xf32>
    %54 = arith.addf %49, %53 : vector<25x128xf32>
    %55 = vector.extract_strided_slice %39 {offsets = [0, 3, 0], sizes = [5, 5, 128], strides = [1, 1, 1]} : vector<8x8x128xbf16> to vector<5x5x128xbf16>
    %56 = vector.shape_cast %55 : vector<5x5x128xbf16> to vector<25x128xbf16>
    %57 = vector.extract_strided_slice %40 {offsets = [384, 0], sizes = [128, 128], strides = [1, 1]} : vector<2048x128xbf16> to vector<128x128xbf16>
    %cst_27 = arith.constant dense<0.000000e+00> : vector<25x128xf32>
    %58 = tpu.matmul %56, %57, %cst_27 {dimension_numbers = #tpu.dot_dimension_numbers<[1], [0], [0], [1], [0, 0, 1, 1], [], []>} : vector<25x128xbf16>, vector<128x128xbf16>, vector<25x128xf32> -> vector<25x128xf32>
    %59 = arith.addf %54, %58 : vector<25x128xf32>
    %60 = vector.extract_strided_slice %39 {offsets = [1, 0, 0], sizes = [5, 5, 128], strides = [1, 1, 1]} : vector<8x8x128xbf16> to vector<5x5x128xbf16>
    %61 = vector.shape_cast %60 : vector<5x5x128xbf16> to vector<25x128xbf16>
    %62 = vector.extract_strided_slice %40 {offsets = [512, 0], sizes = [128, 128], strides = [1, 1]} : vector<2048x128xbf16> to vector<128x128xbf16>
    %cst_28 = arith.constant dense<0.000000e+00> : vector<25x128xf32>
    %63 = tpu.matmul %61, %62, %cst_28 {dimension_numbers = #tpu.dot_dimension_numbers<[1], [0], [0], [1], [0, 0, 1, 1], [], []>} : vector<25x128xbf16>, vector<128x128xbf16>, vector<25x128xf32> -> vector<25x128xf32>
    %64 = arith.addf %59, %63 : vector<25x128xf32>
    %65 = vector.extract_strided_slice %39 {offsets = [1, 1, 0], sizes = [5, 5, 128], strides = [1, 1, 1]} : vector<8x8x128xbf16> to vector<5x5x128xbf16>
    %66 = vector.shape_cast %65 : vector<5x5x128xbf16> to vector<25x128xbf16>
    %67 = vector.extract_strided_slice %40 {offsets = [640, 0], sizes = [128, 128], strides = [1, 1]} : vector<2048x128xbf16> to vector<128x128xbf16>
    %cst_29 = arith.constant dense<0.000000e+00> : vector<25x128xf32>
    %68 = tpu.matmul %66, %67, %cst_29 {dimension_numbers = #tpu.dot_dimension_numbers<[1], [0], [0], [1], [0, 0, 1, 1], [], []>} : vector<25x128xbf16>, vector<128x128xbf16>, vector<25x128xf32> -> vector<25x128xf32>
    %69 = arith.addf %64, %68 : vector<25x128xf32>
    %70 = vector.extract_strided_slice %39 {offsets = [1, 2, 0], sizes = [5, 5, 128], strides = [1, 1, 1]} : vector<8x8x128xbf16> to vector<5x5x128xbf16>
    %71 = vector.shape_cast %70 : vector<5x5x128xbf16> to vector<25x128xbf16>
    %72 = vector.extract_strided_slice %40 {offsets = [768, 0], sizes = [128, 128], strides = [1, 1]} : vector<2048x128xbf16> to vector<128x128xbf16>
    %cst_30 = arith.constant dense<0.000000e+00> : vector<25x128xf32>
    %73 = tpu.matmul %71, %72, %cst_30 {dimension_numbers = #tpu.dot_dimension_numbers<[1], [0], [0], [1], [0, 0, 1, 1], [], []>} : vector<25x128xbf16>, vector<128x128xbf16>, vector<25x128xf32> -> vector<25x128xf32>
    %74 = arith.addf %69, %73 : vector<25x128xf32>
    %75 = vector.extract_strided_slice %39 {offsets = [1, 3, 0], sizes = [5, 5, 128], strides = [1, 1, 1]} : vector<8x8x128xbf16> to vector<5x5x128xbf16>
    %76 = vector.shape_cast %75 : vector<5x5x128xbf16> to vector<25x128xbf16>
    %77 = vector.extract_strided_slice %40 {offsets = [896, 0], sizes = [128, 128], strides = [1, 1]} : vector<2048x128xbf16> to vector<128x128xbf16>
    %cst_31 = arith.constant dense<0.000000e+00> : vector<25x128xf32>
    %78 = tpu.matmul %76, %77, %cst_31 {dimension_numbers = #tpu.dot_dimension_numbers<[1], [0], [0], [1], [0, 0, 1, 1], [], []>} : vector<25x128xbf16>, vector<128x128xbf16>, vector<25x128xf32> -> vector<25x128xf32>
    %79 = arith.addf %74, %78 : vector<25x128xf32>
    %80 = vector.extract_strided_slice %39 {offsets = [2, 0, 0], sizes = [5, 5, 128], strides = [1, 1, 1]} : vector<8x8x128xbf16> to vector<5x5x128xbf16>
    %81 = vector.shape_cast %80 : vector<5x5x128xbf16> to vector<25x128xbf16>
    %82 = vector.extract_strided_slice %40 {offsets = [1024, 0], sizes = [128, 128], strides = [1, 1]} : vector<2048x128xbf16> to vector<128x128xbf16>
    %cst_32 = arith.constant dense<0.000000e+00> : vector<25x128xf32>
    %83 = tpu.matmul %81, %82, %cst_32 {dimension_numbers = #tpu.dot_dimension_numbers<[1], [0], [0], [1], [0, 0, 1, 1], [], []>} : vector<25x128xbf16>, vector<128x128xbf16>, vector<25x128xf32> -> vector<25x128xf32>
    %84 = arith.addf %79, %83 : vector<25x128xf32>
    %85 = vector.extract_strided_slice %39 {offsets = [2, 1, 0], sizes = [5, 5, 128], strides = [1, 1, 1]} : vector<8x8x128xbf16> to vector<5x5x128xbf16>
    %86 = vector.shape_cast %85 : vector<5x5x128xbf16> to vector<25x128xbf16>
    %87 = vector.extract_strided_slice %40 {offsets = [1152, 0], sizes = [128, 128], strides = [1, 1]} : vector<2048x128xbf16> to vector<128x128xbf16>
    %cst_33 = arith.constant dense<0.000000e+00> : vector<25x128xf32>
    %88 = tpu.matmul %86, %87, %cst_33 {dimension_numbers = #tpu.dot_dimension_numbers<[1], [0], [0], [1], [0, 0, 1, 1], [], []>} : vector<25x128xbf16>, vector<128x128xbf16>, vector<25x128xf32> -> vector<25x128xf32>
    %89 = arith.addf %84, %88 : vector<25x128xf32>
    %90 = vector.extract_strided_slice %39 {offsets = [2, 2, 0], sizes = [5, 5, 128], strides = [1, 1, 1]} : vector<8x8x128xbf16> to vector<5x5x128xbf16>
    %91 = vector.shape_cast %90 : vector<5x5x128xbf16> to vector<25x128xbf16>
    %92 = vector.extract_strided_slice %40 {offsets = [1280, 0], sizes = [128, 128], strides = [1, 1]} : vector<2048x128xbf16> to vector<128x128xbf16>
    %cst_34 = arith.constant dense<0.000000e+00> : vector<25x128xf32>
    %93 = tpu.matmul %91, %92, %cst_34 {dimension_numbers = #tpu.dot_dimension_numbers<[1], [0], [0], [1], [0, 0, 1, 1], [], []>} : vector<25x128xbf16>, vector<128x128xbf16>, vector<25x128xf32> -> vector<25x128xf32>
    %94 = arith.addf %89, %93 : vector<25x128xf32>
    %95 = vector.extract_strided_slice %39 {offsets = [2, 3, 0], sizes = [5, 5, 128], strides = [1, 1, 1]} : vector<8x8x128xbf16> to vector<5x5x128xbf16>
    %96 = vector.shape_cast %95 : vector<5x5x128xbf16> to vector<25x128xbf16>
    %97 = vector.extract_strided_slice %40 {offsets = [1408, 0], sizes = [128, 128], strides = [1, 1]} : vector<2048x128xbf16> to vector<128x128xbf16>
    %cst_35 = arith.constant dense<0.000000e+00> : vector<25x128xf32>
    %98 = tpu.matmul %96, %97, %cst_35 {dimension_numbers = #tpu.dot_dimension_numbers<[1], [0], [0], [1], [0, 0, 1, 1], [], []>} : vector<25x128xbf16>, vector<128x128xbf16>, vector<25x128xf32> -> vector<25x128xf32>
    %99 = arith.addf %94, %98 : vector<25x128xf32>
    %100 = vector.extract_strided_slice %39 {offsets = [3, 0, 0], sizes = [5, 5, 128], strides = [1, 1, 1]} : vector<8x8x128xbf16> to vector<5x5x128xbf16>
    %101 = vector.shape_cast %100 : vector<5x5x128xbf16> to vector<25x128xbf16>
    %102 = vector.extract_strided_slice %40 {offsets = [1536, 0], sizes = [128, 128], strides = [1, 1]} : vector<2048x128xbf16> to vector<128x128xbf16>
    %cst_36 = arith.constant dense<0.000000e+00> : vector<25x128xf32>
    %103 = tpu.matmul %101, %102, %cst_36 {dimension_numbers = #tpu.dot_dimension_numbers<[1], [0], [0], [1], [0, 0, 1, 1], [], []>} : vector<25x128xbf16>, vector<128x128xbf16>, vector<25x128xf32> -> vector<25x128xf32>
    %104 = arith.addf %99, %103 : vector<25x128xf32>
    %105 = vector.extract_strided_slice %39 {offsets = [3, 1, 0], sizes = [5, 5, 128], strides = [1, 1, 1]} : vector<8x8x128xbf16> to vector<5x5x128xbf16>
    %106 = vector.shape_cast %105 : vector<5x5x128xbf16> to vector<25x128xbf16>
    %107 = vector.extract_strided_slice %40 {offsets = [1664, 0], sizes = [128, 128], strides = [1, 1]} : vector<2048x128xbf16> to vector<128x128xbf16>
    %cst_37 = arith.constant dense<0.000000e+00> : vector<25x128xf32>
    %108 = tpu.matmul %106, %107, %cst_37 {dimension_numbers = #tpu.dot_dimension_numbers<[1], [0], [0], [1], [0, 0, 1, 1], [], []>} : vector<25x128xbf16>, vector<128x128xbf16>, vector<25x128xf32> -> vector<25x128xf32>
    %109 = arith.addf %104, %108 : vector<25x128xf32>
    %110 = vector.extract_strided_slice %39 {offsets = [3, 2, 0], sizes = [5, 5, 128], strides = [1, 1, 1]} : vector<8x8x128xbf16> to vector<5x5x128xbf16>
    %111 = vector.shape_cast %110 : vector<5x5x128xbf16> to vector<25x128xbf16>
    %112 = vector.extract_strided_slice %40 {offsets = [1792, 0], sizes = [128, 128], strides = [1, 1]} : vector<2048x128xbf16> to vector<128x128xbf16>
    %cst_38 = arith.constant dense<0.000000e+00> : vector<25x128xf32>
    %113 = tpu.matmul %111, %112, %cst_38 {dimension_numbers = #tpu.dot_dimension_numbers<[1], [0], [0], [1], [0, 0, 1, 1], [], []>} : vector<25x128xbf16>, vector<128x128xbf16>, vector<25x128xf32> -> vector<25x128xf32>
    %114 = arith.addf %109, %113 : vector<25x128xf32>
    %115 = vector.extract_strided_slice %39 {offsets = [3, 3, 0], sizes = [5, 5, 128], strides = [1, 1, 1]} : vector<8x8x128xbf16> to vector<5x5x128xbf16>
    %116 = vector.shape_cast %115 : vector<5x5x128xbf16> to vector<25x128xbf16>
    %117 = vector.extract_strided_slice %40 {offsets = [1920, 0], sizes = [128, 128], strides = [1, 1]} : vector<2048x128xbf16> to vector<128x128xbf16>
    %cst_39 = arith.constant dense<0.000000e+00> : vector<25x128xf32>
    %118 = tpu.matmul %116, %117, %cst_39 {dimension_numbers = #tpu.dot_dimension_numbers<[1], [0], [0], [1], [0, 0, 1, 1], [], []>} : vector<25x128xbf16>, vector<128x128xbf16>, vector<25x128xf32> -> vector<25x128xf32>
    %119 = arith.addf %114, %118 : vector<25x128xf32>
    %120 = vector.extract_strided_slice %119 {offsets = [0, 0], sizes = [25, 1], strides = [1, 1]} : vector<25x128xf32> to vector<25x1xf32>
    %c0_40 = arith.constant 0 : index
    %c0_41 = arith.constant 0 : index
    %121 = vector.load %arg6[%c0_40, %c0_41] : memref<1x1xf32, #tpu.memory_space<vmem>>, vector<1x1xf32>
    %122 = vector.broadcast %121 : vector<1x1xf32> to vector<25x1xf32>
    %123 = arith.addf %120, %122 : vector<25x1xf32>
    %124 = vector.shape_cast %123 : vector<25x1xf32> to vector<5x5x1xf32>
    %c0_42 = arith.constant 0 : index
    %c0_43 = arith.constant 0 : index
    %c0_44 = arith.constant 0 : index
    %c0_45 = arith.constant 0 : index
    %125 = vector.load %arg7[%c0_42, %c0_43, %c0_44, %c0_45] : memref<1x5x5x1xf32, #tpu.memory_space<vmem>>, vector<1x5x5x1xf32>
    %126 = vector.shape_cast %125 : vector<1x5x5x1xf32> to vector<5x5x1xf32>
    %127 = vector.shape_cast %124 : vector<5x5x1xf32> to vector<1x5x5x1xf32>
    tpu.vector_store %arg7[%c0_42, %c0_43, %c0_44, %c0_45], %127 {strides = array<i32>} : memref<1x5x5x1xf32, #tpu.memory_space<vmem>>, vector<1x5x5x1xf32>,
    return
  }
  func.func @transform_0(%arg0: i32) -> (i32, i32, i32, i32) {
    %c0_i32 = arith.constant 0 : i32
    %c0_i32_0 = arith.constant 0 : i32
    %c0_i32_1 = arith.constant 0 : i32
    %c0_i32_2 = arith.constant 0 : i32
    return %arg0, %c0_i32, %c0_i32_0, %c0_i32_1 : i32, i32, i32, i32
  }
  func.func @transform_1(%arg0: i32) -> (i32, i32) {
    %c0_i32 = arith.constant 0 : i32
    %c0_i32_0 = arith.constant 0 : i32
    %c0_i32_1 = arith.constant 0 : i32
    return %c0_i32, %c0_i32_0 : i32, i32
  }
  func.func @transform_2(%arg0: i32) -> (i32, i32) {
    %c0_i32 = arith.constant 0 : i32
    %c0_i32_0 = arith.constant 0 : i32
    %c0_i32_1 = arith.constant 0 : i32
    return %c0_i32, %c0_i32_0 : i32, i32
  }
  func.func @transform_3(%arg0: i32) -> (i32, i32) {
    %c0_i32 = arith.constant 0 : i32
    %c0_i32_0 = arith.constant 0 : i32
    %c0_i32_1 = arith.constant 0 : i32
    return %c0_i32, %c0_i32_0 : i32, i32
  }
  func.func @transform_4(%arg0: i32) -> (i32, i32) {
    %c0_i32 = arith.constant 0 : i32
    %c0_i32_0 = arith.constant 0 : i32
    %c0_i32_1 = arith.constant 0 : i32
    return %c0_i32, %c0_i32_0 : i32, i32
  }
  func.func @transform_5(%arg0: i32) -> (i32, i32) {
    %c0_i32 = arith.constant 0 : i32
    %c0_i32_0 = arith.constant 0 : i32
    %c0_i32_1 = arith.constant 0 : i32
    return %c0_i32, %c0_i32_0 : i32, i32
  }
  func.func @transform_6(%arg0: i32) -> (i32, i32, i32, i32) {
    %c0_i32 = arith.constant 0 : i32
    %c0_i32_0 = arith.constant 0 : i32
    %c0_i32_1 = arith.constant 0 : i32
    %c0_i32_2 = arith.constant 0 : i32
    return %arg0, %c0_i32, %c0_i32_0, %c0_i32_1 : i32, i32, i32, i32
  }
}

</mosaic_0001>

<llo_original>
// kernel: discriminator_forward.4
$region0: #{discriminator_forward.4}
  #allocation0 [shape = 'u32[]', space=smem, size = 0x4, offset = 0x4, fixed_abs, tag = 'smem constant byte address 0x4 - core index']
  #allocation1 [shape = 'u32[144,128]{1,0:T(1,128)}', space=vmem, size = 0x12000, scoped, tag = 'internal scratch']
  %s0 = inlined_call_operand.vmem [shape: bf16[2,10,10,12], index: 0, kind: input, shape index: {}]
  %s1 = inlined_call_operand.vmem [shape: bf16[48,16], index: 1, kind: input, shape index: {}]
  %s2 = inlined_call_operand.vmem [shape: f32[1,16], index: 2, kind: input, shape index: {}]
  %s3 = inlined_call_operand.vmem [shape: f32[1,16], index: 3, kind: input, shape index: {}]
  %s4 = inlined_call_operand.vmem [shape: bf16[2,9,9,16], index: 4, kind: output, shape index: {}]
  %s5 = sld [smem:[#allocation0]]
  $region49: #{discriminator_forward.4} parent=0
    _
  %s7 = ssub.s32 1, %s5
  %s8 = scalar_select 0, %s7, %s5
  loop: start=0, step=1, limit=4
  $region2: #{discriminator_forward.4} parent=0 // loop_pre_header
    _
  $region3: #{discriminator_forward.4} parent=0 // loop_header
    %s10 = sphi 0, %s14
    %p11 = scmp.ge.s32.totalorder %s10, 4
    %s17 = sphi 0, %s29
    %s18 = sphi 0, %s25
    %s19 = sphi 0, %s17
    %s20 = sphi 0, %s18
    %s21 = sphi 0, %s19
    %s22 = sphi 0, %s20
    %s32 = sphi 0, %s34
    %s35 = sphi 0, %s32
    %s36 = sphi 0, %s35
    %s52 = sphi 0, %s36
    %s56 = sphi 0, %s56
    %s58 = sphi 0, %s56
    %s59 = sphi 0, %s58
    %s73 = sphi 0, %s59
    %s77 = sphi 0, %s77
    %s79 = sphi 0, %s77
    %s80 = sphi 0, %s79
    %s94 = sphi 0, %s80
    %s98 = sphi 0, %s98
    %s100 = sphi 0, %s98
    %s101 = sphi 0, %s100
    %s115 = sphi 0, %s101
    %s123 = sphi 0, %s125
    %s126 = sphi 0, %s123
    %s127 = sphi 0, %s126
    %s143 = sphi 0, %s127
  $region4: #{discriminator_forward.4} parent=0 // loop_header_branch
    %13 = sbr.rel (%p11) target = $region8
  $region5: #{discriminator_forward.4} parent=0 // loop_body
    %s15 = ssub.s32 %s10, 1
    %s16 = ssub.s32 %s10, 2
    %s23 = sadd.s32 1, %s18
    %p24 = scmp.ge.s32.totalorder %s23, 1
    %s25 = scalar_select %p24, 0, %s23
    %s26 = sadd.s32 1, %s17
    %s27 = scalar_select %p24, %s26, %s17
    %p28 = scmp.ge.s32.totalorder %s27, 2
    %s29 = scalar_select %p28, 0, %s27
    %s30 = ssub.s32 %s17, %s29
    %p31 = scmp.eq.s32.totalorder %s30, 0
    %s33 = sadd.s32 %s32, 1
    %s34 = scalar_select %p31, %s32, %s33
    %p37 = pneg %p31
    %p38 = scmp.eq.s32.totalorder %s10, 1
    %p39 = por %p37, %p38
    %p40 = scmp.ne.s32.totalorder %s32, %s35
    %p41 = scmp.eq.s32.totalorder %s10, 0
    %p42 = por %p40, %p41
    %p43 = scmp.ne.s32.totalorder %s32, %s35
    %p44 = scmp.eq.s32.totalorder %s15, 1
    %p45 = por %p43, %p44
    %p46 = scmp.ne.s32.totalorder %s35, %s36
    %p47 = scmp.eq.s32.totalorder %s15, 0
    %p48 = por %p46, %p47
    %p49 = scmp.ne.s32.totalorder %s35, %s36
    %p50 = scmp.eq.s32.totalorder %s16, 1
    %p51 = por %p49, %p50
    %p53 = scmp.ne.s32.totalorder %s36, %s52
    %p54 = scmp.eq.s32.totalorder %s16, 0
    %p55 = por %p53, %p54
    %s57 = sadd.s32 %s56, 1
    %p60 = scmp.eq.s32.totalorder %s10, 1
    %p61 = scmp.ne.s32.totalorder %s56, %s58
    %p62 = scmp.eq.s32.totalorder %s10, 0
    %p63 = por %p61, %p62
    %p64 = scmp.ne.s32.totalorder %s56, %s58
    %p65 = scmp.eq.s32.totalorder %s15, 1
    %p66 = por %p64, %p65
    %p67 = scmp.ne.s32.totalorder %s58, %s59
    %p68 = scmp.eq.s32.totalorder %s15, 0
    %p69 = por %p67, %p68
    %p70 = scmp.ne.s32.totalorder %s58, %s59
    %p71 = scmp.eq.s32.totalorder %s16, 1
    %p72 = por %p70, %p71
    %p74 = scmp.ne.s32.totalorder %s59, %s73
    %p75 = scmp.eq.s32.totalorder %s16, 0
    %p76 = por %p74, %p75
    %s78 = sadd.s32 %s77, 1
    %p81 = scmp.eq.s32.totalorder %s10, 1
    %p82 = scmp.ne.s32.totalorder %s77, %s79
    %p83 = scmp.eq.s32.totalorder %s10, 0
    %p84 = por %p82, %p83
    %p85 = scmp.ne.s32.totalorder %s77, %s79
    %p86 = scmp.eq.s32.totalorder %s15, 1
    %p87 = por %p85, %p86
    %p88 = scmp.ne.s32.totalorder %s79, %s80
    %p89 = scmp.eq.s32.totalorder %s15, 0
    %p90 = por %p88, %p89
    %p91 = scmp.ne.s32.totalorder %s79, %s80
    %p92 = scmp.eq.s32.totalorder %s16, 1
    %p93 = por %p91, %p92
    %p95 = scmp.ne.s32.totalorder %s80, %s94
    %p96 = scmp.eq.s32.totalorder %s16, 0
    %p97 = por %p95, %p96
    %s99 = sadd.s32 %s98, 1
    %p102 = scmp.eq.s32.totalorder %s10, 1
    %p103 = scmp.ne.s32.totalorder %s98, %s100
    %p104 = scmp.eq.s32.totalorder %s10, 0
    %p105 = por %p103, %p104
    %p106 = scmp.ne.s32.totalorder %s98, %s100
    %p107 = scmp.eq.s32.totalorder %s15, 1
    %p108 = por %p106, %p107
    %p109 = scmp.ne.s32.totalorder %s100, %s101
    %p110 = scmp.eq.s32.totalorder %s15, 0
    %p111 = por %p109, %p110
    %p112 = scmp.ne.s32.totalorder %s100, %s101
    %p113 = scmp.eq.s32.totalorder %s16, 1
    %p114 = por %p112, %p113
    %p116 = scmp.ne.s32.totalorder %s101, %s115
    %p117 = scmp.eq.s32.totalorder %s16, 0
    %p118 = por %p116, %p117
    %s119 = ssub.s32 %s17, %s29
    %s120 = ssub.s32 %s18, %s25
    %s121 = sor.u32 %s119, %s120
    %p122 = scmp.eq.s32.totalorder %s121, 0
    %s124 = sadd.s32 %s123, 1
    %s125 = scalar_select %p122, %s123, %s124
    %p128 = pneg %p122
    %p129 = scmp.eq.s32.totalorder %s10, 1
    %p130 = por %p128, %p129
    %p131 = scmp.ne.s32.totalorder %s123, %s126
    %p132 = scmp.eq.s32.totalorder %s10, 0
    %p133 = por %p131, %p132
    %p134 = scmp.ne.s32.totalorder %s123, %s126
    %p135 = scmp.eq.s32.totalorder %s15, 1
    %p136 = por %p134, %p135
    %p137 = scmp.ne.s32.totalorder %s126, %s127
    %p138 = scmp.eq.s32.totalorder %s15, 0
    %p139 = por %p137, %p138
    %p140 = scmp.ne.s32.totalorder %s126, %s127
    %p141 = scmp.eq.s32.totalorder %s16, 1
    %p142 = por %p140, %p141
    %p144 = scmp.ne.s32.totalorder %s127, %s143
    %p145 = scmp.eq.s32.totalorder %s16, 0
    %p146 = por %p144, %p145
    %p147 = scmp.le.s32.totalorder 1, %s10
    %p148 = scmp.lt.s32.totalorder %s10, 3
    %p149 = pnand %p147, %p148
    %p150 = pneg %p149
    // Predicated region
    $region9: #{discriminator_forward.4} parent=5 // pred_check
      _
    $region10: #{discriminator_forward.4} parent=5 // pred_check_branch
      %152 = sbr.rel (%p149) target = $region12
    $region11: #{discriminator_forward.4} parent=5 // pred_region
      %s153 = ssub.s32 %s10, 1
      // Predicated region
      $region13: #{discriminator_forward.4} parent=11 // pred_check
        %p154 = pneg %p69
      $region14: #{discriminator_forward.4} parent=11 // pred_check_branch
        %156 = sbr.rel (%p154) target = $region16
      $region15: #{discriminator_forward.4} parent=11 // pred_region
        _
      $region16: #{discriminator_forward.4} parent=11 // pred_fallthru
        _
      // Predicated region
      $region17: #{discriminator_forward.4} parent=11 // pred_check
        %p157 = pneg %p90
      $region18: #{discriminator_forward.4} parent=11 // pred_check_branch
        %159 = sbr.rel (%p157) target = $region20
      $region19: #{discriminator_forward.4} parent=11 // pred_region
        _
      $region20: #{discriminator_forward.4} parent=11 // pred_fallthru
        _
      // Predicated region
      $region21: #{discriminator_forward.4} parent=11 // pred_check
        %p160 = pneg %p111
      $region22: #{discriminator_forward.4} parent=11 // pred_check_branch
        %162 = sbr.rel (%p160) target = $region24
      $region23: #{discriminator_forward.4} parent=11 // pred_region
        _
      $region24: #{discriminator_forward.4} parent=11 // pred_fallthru
        _
    $region12: #{discriminator_forward.4} parent=5 // pred_fallthru
      _
    %p163 = scmp.lt.s32.totalorder %s10, 2
    // Predicated region
    $region25: #{discriminator_forward.4} parent=5 // pred_check
      %p164 = pneg %p163
    $region26: #{discriminator_forward.4} parent=5 // pred_check_branch
      %166 = sbr.rel (%p164) target = $region28
    $region27: #{discriminator_forward.4} parent=5 // pred_region
      // Predicated region
      $region29: #{discriminator_forward.4} parent=27 // pred_check
        %p167 = pneg %p42
      $region30: #{discriminator_forward.4} parent=27 // pred_check_branch
        %169 = sbr.rel (%p167) target = $region32
      $region31: #{discriminator_forward.4} parent=27 // pred_region
        %p170 = scmp.lt.s32.totalorder %s17, 1
        %s171 = scalar_select %p170, %s17, 1
        %s172 = smul.addr %s171, 20
        %s173 = smul.addr %s172, 4
        %s174 = scalar_lea.vmem %s0, %s173
      $region32: #{discriminator_forward.4} parent=27 // pred_fallthru
        _
    $region28: #{discriminator_forward.4} parent=5 // pred_fallthru
      _
    %p175 = scmp.le.s32.totalorder 1, %s10
    %p176 = scmp.lt.s32.totalorder %s10, 3
    %p177 = pnand %p175, %p176
    %p178 = pneg %p177
    // Predicated region
    $region33: #{discriminator_forward.4} parent=5 // pred_check
      _
    $region34: #{discriminator_forward.4} parent=5 // pred_check_branch
      %180 = sbr.rel (%p177) target = $region36
    $region35: #{discriminator_forward.4} parent=5 // pred_region
      %s181 = ssub.s32 %s10, 1
      %p182 = scmp.lt.s32.totalorder %s19, 1
      %s183 = scalar_select %p182, %s19, 1
      %s184 = smul.addr %s183, 20
      %s185 = smul.addr %s184, 4
      %s186 = scalar_lea.vmem %s0, %s185
      %p187 = pneg %p48
      %p188 = pneg %p45
      %p189 = pneg %p69
      %p190 = pneg %p66
      %p191 = pneg %p90
      %p192 = pneg %p87
      %p193 = pneg %p111
      %p194 = pneg %p108
      %p195 = pneg %p139
      %p196 = pneg %p136
      %s197 = smul.u32 9, %s20
      %p198 = scmp.lt.s32.totalorder %s19, 1
      %s199 = scalar_select %p198, %s19, 1
      %p200 = scmp.lt.s32.totalorder %s197, 8
      %s201 = scalar_select %p200, %s197, 8
      %s202 = smul.addr %s201, 2
      %s203 = smul.addr %s199, 18
      %s204 = sadd.s32 %s202, %s203
      %s205 = smul.addr %s204, 4
      %s206 = scalar_lea.vmem %s4, %s205
      %p207 = scmp.lt.s32.totalorder %s19, 1
      %s208 = scalar_select %p207, %s19, 1
      %s209 = smul.addr %s208, 20
      %s210 = smul.addr %s209, 4
      %s211 = scalar_lea.vmem %s0, %s210
      %s212 = smul.u32 9, %s20
      %p213 = scmp.lt.s32.totalorder %s19, 1
      %s214 = scalar_select %p213, %s19, 1
      %p215 = scmp.lt.s32.totalorder %s212, 8
      %s216 = scalar_select %p215, %s212, 8
      %s217 = smul.addr %s216, 2
      %s218 = smul.addr %s214, 18
      %s219 = sadd.s32 %s217, %s218
      %s220 = smul.addr %s219, 4
      %s221 = scalar_lea.vmem %s4, %s220
      %s222 = smul.u32 9, %s20
      %s224 = smul.u32 %s20, 9
      %s225 = smul.u32 %s224, 2
      %s226 = smul.addr %s225, 4
      %s227 = scalar_lea.vmem %s211, %s226
      %v228 = vld [vmem:[%s227] sm:$0xf]
      %v229 = vld [vmem:[%s227 + $0x4] sm:$0x1]
      %v230 = vld [vmem:[%s227 + $0x8] sm:$0xf]
      %v231 = vld [vmem:[%s227 + $0xc] sm:$0x1]
      %v232 = vld [vmem:[%s227 + $0x10] sm:$0xf]
      %v233 = vld [vmem:[%s227 + $0x14] sm:$0x1]
      %v234 = vld [vmem:[%s227 + $0x18] sm:$0xf]
      %v235 = vld [vmem:[%s227 + $0x1c] sm:$0x1]
      %v236 = vld [vmem:[%s227 + $0x20] sm:$0xf]
      %v237 = vld [vmem:[%s227 + $0x24] sm:$0x1]
      %v238 = vld [vmem:[%s227 + $0x28] sm:$0xf]
      %v239 = vld [vmem:[%s227 + $0x2c] sm:$0x1]
      %v240 = vld [vmem:[%s227 + $0x30] sm:$0xf]
      %v241 = vld [vmem:[%s227 + $0x34] sm:$0x1]
      %v242 = vld [vmem:[%s227 + $0x38] sm:$0xf]
      %v243 = vld [vmem:[%s227 + $0x3c] sm:$0x1]
      %v244 = vld [vmem:[%s227 + $0x40] sm:$0xf]
      %v245 = vld [vmem:[%s227 + $0x44] sm:$0x1]
      %v246 = vld [vmem:[%s227 + $0x48] sm:$0xf]
      %v247 = vld [vmem:[%s227 + $0x4c] sm:$0x1]
      %v248 = vld [vmem:[%s1] sm:$0xf]
      %v249 = vld [vmem:[%s1 + $0x4] sm:$0xf]
      %v250 = vld [vmem:[%s1 + $0x8] sm:$0xf]
      %v251 = vld [vmem:[%s1 + $0xc] sm:$0xf]
      %v252 = vld [vmem:[%s1 + $0x10] sm:$0xf]
      %v253 = vld [vmem:[%s1 + $0x14] sm:$0xf]
      %v272 = vunpack.c.l.b16 %v228
      %v273 = vunpack.c.l.b16 %v229
      %v274 = vunpack.c.l.b16 %v230
      %v275 = vunpack.c.l.b16 %v231
      %v276 = vunpack.c.l.b16 %v232
      %v277 = vunpack.c.l.b16 %v233
      %v278 = vunpack.c.l.b16 %v234
      %v279 = vunpack.c.l.b16 %v235
      %v280 = vunpack.c.l.b16 %v236
      %v281 = vunpack.c.l.b16 %v237
      %v282 = vunpack.c.l.b16 %v238
      %v283 = vunpack.c.l.b16 %v239
      %v284 = vunpack.c.l.b16 %v240
      %v285 = vunpack.c.l.b16 %v241
      %v286 = vunpack.c.l.b16 %v242
      %v287 = vunpack.c.l.b16 %v243
      %v288 = vunpack.c.l.b16 %v244
      %v289 = vunpack.c.l.b16 %v245
      %v290 = vpack.c.b16 %v273, %v272
      %v291 = vpack.c.b16 %v275, %v274
      %v292 = vpack.c.b16 %v277, %v276
      %v293 = vpack.c.b16 %v279, %v278
      %v294 = vpack.c.b16 %v281, %v280
      %v295 = vpack.c.b16 %v283, %v282
      %v296 = vpack.c.b16 %v285, %v284
      %v297 = vpack.c.b16 %v287, %v286
      %v298 = vpack.c.b16 %v289, %v288
      %v300 = vshrl.u32 %v290, 16
      %v302 = vshll.u32 %v290, 16
      %v304 = vrot.slane %v302, 1
      %v305 = vor.u32 %v300, %v304
      %v307 = vshrl.u32 %v291, 16
      %v309 = vshll.u32 %v291, 16
      %v311 = vrot.slane %v309, 1
      %v312 = vor.u32 %v307, %v311
      %v314 = vshrl.u32 %v292, 16
      %v316 = vshll.u32 %v292, 16
      %v318 = vrot.slane %v316, 1
      %v319 = vor.u32 %v314, %v318
      %v321 = vshrl.u32 %v293, 16
      %v323 = vshll.u32 %v293, 16
      %v325 = vrot.slane %v323, 1
      %v326 = vor.u32 %v321, %v325
      %v328 = vshrl.u32 %v294, 16
      %v330 = vshll.u32 %v294, 16
      %v332 = vrot.slane %v330, 1
      %v333 = vor.u32 %v328, %v332
      %v335 = vshrl.u32 %v295, 16
      %v337 = vshll.u32 %v295, 16
      %v339 = vrot.slane %v337, 1
      %v340 = vor.u32 %v335, %v339
      %v342 = vshrl.u32 %v296, 16
      %v344 = vshll.u32 %v296, 16
      %v346 = vrot.slane %v344, 1
      %v347 = vor.u32 %v342, %v346
      %v349 = vshrl.u32 %v297, 16
      %v351 = vshll.u32 %v297, 16
      %v353 = vrot.slane %v351, 1
      %v354 = vor.u32 %v349, %v353
      %v356 = vshrl.u32 %v298, 16
      %v358 = vshll.u32 %v298, 16
      %v360 = vrot.slane %v358, 1
      %v361 = vor.u32 %v356, %v360
      %362 = vrot.lane.b32.xlu0 %v305, 12
      %v363 = vpop.permute.xlu0 %362
      %364 = vrot.lane.b32.xlu0 %v312, 12
      %v365 = vpop.permute.xlu0 %364
      %366 = vrot.lane.b32.xlu0 %v319, 12
      %v367 = vpop.permute.xlu0 %366
      %368 = vrot.lane.b32.xlu0 %v326, 12
      %v369 = vpop.permute.xlu0 %368
      %370 = vrot.lane.b32.xlu0 %v333, 12
      %v371 = vpop.permute.xlu0 %370
      %372 = vrot.lane.b32.xlu0 %v340, 12
      %v373 = vpop.permute.xlu0 %372
      %374 = vrot.lane.b32.xlu0 %v347, 12
      %v375 = vpop.permute.xlu0 %374
      %376 = vrot.lane.b32.xlu0 %v354, 12
      %v377 = vpop.permute.xlu0 %376
      %378 = vrot.lane.b32.xlu0 %v361, 12
      %v379 = vpop.permute.xlu0 %378
      %v382 = vunpack.c.l.b16 %v246
      %v383 = vunpack.c.l.b16 %v247
      %v384 = vpack.c.b16 %v383, %v382
      %385 = vrot.lane.b32.xlu0 %v291, 24
      %v386 = vpop.permute.xlu0 %385
      %387 = vrot.lane.b32.xlu0 %v292, 24
      %v388 = vpop.permute.xlu0 %387
      %389 = vrot.lane.b32.xlu0 %v293, 24
      %v390 = vpop.permute.xlu0 %389
      %391 = vrot.lane.b32.xlu0 %v294, 24
      %v392 = vpop.permute.xlu0 %391
      %393 = vrot.lane.b32.xlu0 %v295, 24
      %v394 = vpop.permute.xlu0 %393
      %395 = vrot.lane.b32.xlu0 %v296, 24
      %v396 = vpop.permute.xlu0 %395
      %397 = vrot.lane.b32.xlu0 %v297, 24
      %v398 = vpop.permute.xlu0 %397
      %399 = vrot.lane.b32.xlu0 %v298, 24
      %v400 = vpop.permute.xlu0 %399
      %401 = vrot.lane.b32.xlu0 %v384, 24
      %v402 = vpop.permute.xlu0 %401
      %v404 = vshrl.u32 %v384, 16
      %v406 = vshll.u32 %v384, 16
      %v408 = vrot.slane %v406, 1
      %v409 = vor.u32 %v404, %v408
      %410 = vrot.lane.b32.xlu0 %v312, 36
      %v411 = vpop.permute.xlu0 %410
      %412 = vrot.lane.b32.xlu0 %v319, 36
      %v413 = vpop.permute.xlu0 %412
      %414 = vrot.lane.b32.xlu0 %v326, 36
      %v415 = vpop.permute.xlu0 %414
      %416 = vrot.lane.b32.xlu0 %v333, 36
      %v417 = vpop.permute.xlu0 %416
      %418 = vrot.lane.b32.xlu0 %v340, 36
      %v419 = vpop.permute.xlu0 %418
      %420 = vrot.lane.b32.xlu0 %v347, 36
      %v421 = vpop.permute.xlu0 %420
      %422 = vrot.lane.b32.xlu0 %v354, 36
      %v423 = vpop.permute.xlu0 %422
      %424 = vrot.lane.b32.xlu0 %v361, 36
      %v425 = vpop.permute.xlu0 %424
      %426 = vrot.lane.b32.xlu0 %v409, 36
      %v427 = vpop.permute.xlu0 %426
      %vm428 = vcmask 97280
      %v430 = vsel %vm428, %v290, %v363
      %v432 = vsel %vm428, %v291, %v365
      %v434 = vsel %vm428, %v292, %v367
      %v436 = vsel %vm428, %v293, %v369
      %v438 = vsel %vm428, %v294, %v371
      %v440 = vsel %vm428, %v295, %v373
      %v442 = vsel %vm428, %v296, %v375
      %v444 = vsel %vm428, %v297, %v377
      %v446 = vsel %vm428, %v298, %v379
      %vm447 = vcmask 195584
      %v449 = vsel %vm447, %v430, %v386
      %v451 = vsel %vm447, %v432, %v388
      %v453 = vsel %vm447, %v434, %v390
      %v455 = vsel %vm447, %v436, %v392
      %v457 = vsel %vm447, %v438, %v394
      %v459 = vsel %vm447, %v440, %v396
      %v461 = vsel %vm447, %v442, %v398
      %v463 = vsel %vm447, %v444, %v400
      %v465 = vsel %vm447, %v446, %v402
      %vm466 = vcmask 293888
      %v468 = vsel %vm466, %v449, %v411
      %v470 = vsel %vm466, %v451, %v413
      %v472 = vsel %vm466, %v453, %v415
      %v474 = vsel %vm466, %v455, %v417
      %v476 = vsel %vm466, %v457, %v419
      %v478 = vsel %vm466, %v459, %v421
      %v480 = vsel %vm466, %v461, %v423
      %v482 = vsel %vm466, %v463, %v425
      %v484 = vsel %vm466, %v465, %v427
      %v494 = vcombine.high %v468, %v468
      %v496 = vunpack.c.l.s4 1966171168
      %v497 = vunpack.c.0.s8 %v496
      %v498 = vlaneseq
      %v499 = vshrl.u32 %v498, 7
      %v500 = vsub.s32 %v497, %v499
      %v501 = vrot.slane %v468, %v500
      %v503 = vunpack.c.l.s4 1966171168
      %v504 = vunpack.c.0.s8 %v503
      %v505 = vlaneseq
      %v506 = vshrl.u32 %v505, 7
      %v507 = vsub.s32 %v504, %v506
      %v508 = vrot.slane %v494, %v507
      %v509 = vcombine.high %v501, %v501
      %v511 = vunpack.c.l.s4 1966171168
      %v512 = vunpack.c.0.s8 %v511
      %v513 = vlaneseq
      %v514 = vshrl.u32 %v513, 7
      %v515 = vsub.s32 %v512, %v514
      %v516 = vrot.slane %v501, %v515
      %v518 = vunpack.c.l.s4 1966171168
      %v519 = vunpack.c.0.s8 %v518
      %v520 = vlaneseq
      %v521 = vshrl.u32 %v520, 7
      %v522 = vsub.s32 %v519, %v521
      %v523 = vrot.slane %v508, %v522
      %v525 = vunpack.c.l.s4 1966171168
      %v526 = vunpack.c.0.s8 %v525
      %v527 = vlaneseq
      %v528 = vshrl.u32 %v527, 7
      %v529 = vsub.s32 %v526, %v528
      %v530 = vrot.slane %v509, %v529
      %v531 = vcombine.high %v516, %v516
      %v532 = vcombine.high %v530, %v530
      %v533 = vcombine.high %v470, %v470
      %v535 = vunpack.c.l.s4 1966171168
      %v536 = vunpack.c.0.s8 %v535
      %v537 = vlaneseq
      %v538 = vshrl.u32 %v537, 7
      %v539 = vsub.s32 %v536, %v538
      %v540 = vrot.slane %v470, %v539
      %v542 = vunpack.c.l.s4 1966171168
      %v543 = vunpack.c.0.s8 %v542
      %v544 = vlaneseq
      %v545 = vshrl.u32 %v544, 7
      %v546 = vsub.s32 %v543, %v545
      %v547 = vrot.slane %v533, %v546
      %v548 = vcombine.high %v540, %v540
      %v550 = vunpack.c.l.s4 1966171168
      %v551 = vunpack.c.0.s8 %v550
      %v552 = vlaneseq
      %v553 = vshrl.u32 %v552, 7
      %v554 = vsub.s32 %v551, %v553
      %v555 = vrot.slane %v540, %v554
      %v557 = vunpack.c.l.s4 1966171168
      %v558 = vunpack.c.0.s8 %v557
      %v559 = vlaneseq
      %v560 = vshrl.u32 %v559, 7
      %v561 = vsub.s32 %v558, %v560
      %v562 = vrot.slane %v547, %v561
      %v564 = vunpack.c.l.s4 1966171168
      %v565 = vunpack.c.0.s8 %v564
      %v566 = vlaneseq
      %v567 = vshrl.u32 %v566, 7
      %v568 = vsub.s32 %v565, %v567
      %v569 = vrot.slane %v548, %v568
      %v570 = vcombine.high %v555, %v555
      %v571 = vcombine.high %v569, %v569
      %v572 = vcombine.high %v472, %v472
      %v574 = vunpack.c.l.s4 1966171168
      %v575 = vunpack.c.0.s8 %v574
      %v576 = vlaneseq
      %v577 = vshrl.u32 %v576, 7
      %v578 = vsub.s32 %v575, %v577
      %v579 = vrot.slane %v472, %v578
      %v581 = vunpack.c.l.s4 1966171168
      %v582 = vunpack.c.0.s8 %v581
      %v583 = vlaneseq
      %v584 = vshrl.u32 %v583, 7
      %v585 = vsub.s32 %v582, %v584
      %v586 = vrot.slane %v572, %v585
      %v587 = vcombine.high %v579, %v579
      %v589 = vunpack.c.l.s4 1966171168
      %v590 = vunpack.c.0.s8 %v589
      %v591 = vlaneseq
      %v592 = vshrl.u32 %v591, 7
      %v593 = vsub.s32 %v590, %v592
      %v594 = vrot.slane %v579, %v593
      %v596 = vunpack.c.l.s4 1966171168
      %v597 = vunpack.c.0.s8 %v596
      %v598 = vlaneseq
      %v599 = vshrl.u32 %v598, 7
      %v600 = vsub.s32 %v597, %v599
      %v601 = vrot.slane %v586, %v600
      %v603 = vunpack.c.l.s4 1966171168
      %v604 = vunpack.c.0.s8 %v603
      %v605 = vlaneseq
      %v606 = vshrl.u32 %v605, 7
      %v607 = vsub.s32 %v604, %v606
      %v608 = vrot.slane %v587, %v607
      %v609 = vcombine.high %v594, %v594
      %v610 = vcombine.high %v608, %v608
      %v611 = vcombine.high %v474, %v474
      %v613 = vunpack.c.l.s4 1966171168
      %v614 = vunpack.c.0.s8 %v613
      %v615 = vlaneseq
      %v616 = vshrl.u32 %v615, 7
      %v617 = vsub.s32 %v614, %v616
      %v618 = vrot.slane %v474, %v617
      %v620 = vunpack.c.l.s4 1966171168
      %v621 = vunpack.c.0.s8 %v620
      %v622 = vlaneseq
      %v623 = vshrl.u32 %v622, 7
      %v624 = vsub.s32 %v621, %v623
      %v625 = vrot.slane %v611, %v624
      %v626 = vcombine.high %v618, %v618
      %v628 = vunpack.c.l.s4 1966171168
      %v629 = vunpack.c.0.s8 %v628
      %v630 = vlaneseq
      %v631 = vshrl.u32 %v630, 7
      %v632 = vsub.s32 %v629, %v631
      %v633 = vrot.slane %v618, %v632
      %v635 = vunpack.c.l.s4 1966171168
      %v636 = vunpack.c.0.s8 %v635
      %v637 = vlaneseq
      %v638 = vshrl.u32 %v637, 7
      %v639 = vsub.s32 %v636, %v638
      %v640 = vrot.slane %v625, %v639
      %v642 = vunpack.c.l.s4 1966171168
      %v643 = vunpack.c.0.s8 %v642
      %v644 = vlaneseq
      %v645 = vshrl.u32 %v644, 7
      %v646 = vsub.s32 %v643, %v645
      %v647 = vrot.slane %v626, %v646
      %v648 = vcombine.high %v633, %v633
      %v649 = vcombine.high %v647, %v647
      %v650 = vcombine.high %v476, %v476
      %v652 = vunpack.c.l.s4 1966171168
      %v653 = vunpack.c.0.s8 %v652
      %v654 = vlaneseq
      %v655 = vshrl.u32 %v654, 7
      %v656 = vsub.s32 %v653, %v655
      %v657 = vrot.slane %v476, %v656
      %v659 = vunpack.c.l.s4 1966171168
      %v660 = vunpack.c.0.s8 %v659
      %v661 = vlaneseq
      %v662 = vshrl.u32 %v661, 7
      %v663 = vsub.s32 %v660, %v662
      %v664 = vrot.slane %v650, %v663
      %v665 = vcombine.high %v657, %v657
      %v667 = vunpack.c.l.s4 1966171168
      %v668 = vunpack.c.0.s8 %v667
      %v669 = vlaneseq
      %v670 = vshrl.u32 %v669, 7
      %v671 = vsub.s32 %v668, %v670
      %v672 = vrot.slane %v657, %v671
      %v674 = vunpack.c.l.s4 1966171168
      %v675 = vunpack.c.0.s8 %v674
      %v676 = vlaneseq
      %v677 = vshrl.u32 %v676, 7
      %v678 = vsub.s32 %v675, %v677
      %v679 = vrot.slane %v664, %v678
      %v681 = vunpack.c.l.s4 1966171168
      %v682 = vunpack.c.0.s8 %v681
      %v683 = vlaneseq
      %v684 = vshrl.u32 %v683, 7
      %v685 = vsub.s32 %v682, %v684
      %v686 = vrot.slane %v665, %v685
      %v687 = vcombine.high %v672, %v672
      %v688 = vcombine.high %v686, %v686
      %v689 = vcombine.high %v478, %v478
      %v691 = vunpack.c.l.s4 1966171168
      %v692 = vunpack.c.0.s8 %v691
      %v693 = vlaneseq
      %v694 = vshrl.u32 %v693, 7
      %v695 = vsub.s32 %v692, %v694
      %v696 = vrot.slane %v478, %v695
      %v698 = vunpack.c.l.s4 1966171168
      %v699 = vunpack.c.0.s8 %v698
      %v700 = vlaneseq
      %v701 = vshrl.u32 %v700, 7
      %v702 = vsub.s32 %v699, %v701
      %v703 = vrot.slane %v689, %v702
      %v704 = vcombine.high %v696, %v696
      %v706 = vunpack.c.l.s4 1966171168
      %v707 = vunpack.c.0.s8 %v706
      %v708 = vlaneseq
      %v709 = vshrl.u32 %v708, 7
      %v710 = vsub.s32 %v707, %v709
      %v711 = vrot.slane %v696, %v710
      %v713 = vunpack.c.l.s4 1966171168
      %v714 = vunpack.c.0.s8 %v713
      %v715 = vlaneseq
      %v716 = vshrl.u32 %v715, 7
      %v717 = vsub.s32 %v714, %v716
      %v718 = vrot.slane %v703, %v717
      %v720 = vunpack.c.l.s4 1966171168
      %v721 = vunpack.c.0.s8 %v720
      %v722 = vlaneseq
      %v723 = vshrl.u32 %v722, 7
      %v724 = vsub.s32 %v721, %v723
      %v725 = vrot.slane %v704, %v724
      %v726 = vcombine.high %v711, %v711
      %v727 = vcombine.high %v725, %v725
      %v728 = vcombine.high %v480, %v480
      %v730 = vunpack.c.l.s4 1966171168
      %v731 = vunpack.c.0.s8 %v730
      %v732 = vlaneseq
      %v733 = vshrl.u32 %v732, 7
      %v734 = vsub.s32 %v731, %v733
      %v735 = vrot.slane %v480, %v734
      %v737 = vunpack.c.l.s4 1966171168
      %v738 = vunpack.c.0.s8 %v737
      %v739 = vlaneseq
      %v740 = vshrl.u32 %v739, 7
      %v741 = vsub.s32 %v738, %v740
      %v742 = vrot.slane %v728, %v741
      %v743 = vcombine.high %v735, %v735
      %v745 = vunpack.c.l.s4 1966171168
      %v746 = vunpack.c.0.s8 %v745
      %v747 = vlaneseq
      %v748 = vshrl.u32 %v747, 7
      %v749 = vsub.s32 %v746, %v748
      %v750 = vrot.slane %v735, %v749
      %v752 = vunpack.c.l.s4 1966171168
      %v753 = vunpack.c.0.s8 %v752
      %v754 = vlaneseq
      %v755 = vshrl.u32 %v754, 7
      %v756 = vsub.s32 %v753, %v755
      %v757 = vrot.slane %v742, %v756
      %v759 = vunpack.c.l.s4 1966171168
      %v760 = vunpack.c.0.s8 %v759
      %v761 = vlaneseq
      %v762 = vshrl.u32 %v761, 7
      %v763 = vsub.s32 %v760, %v762
      %v764 = vrot.slane %v743, %v763
      %v765 = vcombine.high %v750, %v750
      %v766 = vcombine.high %v764, %v764
      %v767 = vcombine.high %v482, %v482
      %v769 = vunpack.c.l.s4 1966171168
      %v770 = vunpack.c.0.s8 %v769
      %v771 = vlaneseq
      %v772 = vshrl.u32 %v771, 7
      %v773 = vsub.s32 %v770, %v772
      %v774 = vrot.slane %v482, %v773
      %v776 = vunpack.c.l.s4 1966171168
      %v777 = vunpack.c.0.s8 %v776
      %v778 = vlaneseq
      %v779 = vshrl.u32 %v778, 7
      %v780 = vsub.s32 %v777, %v779
      %v781 = vrot.slane %v767, %v780
      %v782 = vcombine.high %v774, %v774
      %v784 = vunpack.c.l.s4 1966171168
      %v785 = vunpack.c.0.s8 %v784
      %v786 = vlaneseq
      %v787 = vshrl.u32 %v786, 7
      %v788 = vsub.s32 %v785, %v787
      %v789 = vrot.slane %v774, %v788
      %v791 = vunpack.c.l.s4 1966171168
      %v792 = vunpack.c.0.s8 %v791
      %v793 = vlaneseq
      %v794 = vshrl.u32 %v793, 7
      %v795 = vsub.s32 %v792, %v794
      %v796 = vrot.slane %v781, %v795
      %v798 = vunpack.c.l.s4 1966171168
      %v799 = vunpack.c.0.s8 %v798
      %v800 = vlaneseq
      %v801 = vshrl.u32 %v800, 7
      %v802 = vsub.s32 %v799, %v801
      %v803 = vrot.slane %v782, %v802
      %v804 = vcombine.high %v789, %v789
      %v805 = vcombine.high %v803, %v803
      %v806 = vcombine.high %v484, %v484
      %v808 = vunpack.c.l.s4 1966171168
      %v809 = vunpack.c.0.s8 %v808
      %v810 = vlaneseq
      %v811 = vshrl.u32 %v810, 7
      %v812 = vsub.s32 %v809, %v811
      %v813 = vrot.slane %v484, %v812
      %v815 = vunpack.c.l.s4 1966171168
      %v816 = vunpack.c.0.s8 %v815
      %v817 = vlaneseq
      %v818 = vshrl.u32 %v817, 7
      %v819 = vsub.s32 %v816, %v818
      %v820 = vrot.slane %v806, %v819
      %v821 = vcombine.high %v813, %v813
      %v823 = vunpack.c.l.s4 1966171168
      %v824 = vunpack.c.0.s8 %v823
      %v825 = vlaneseq
      %v826 = vshrl.u32 %v825, 7
      %v827 = vsub.s32 %v824, %v826
      %v828 = vrot.slane %v813, %v827
      %v830 = vunpack.c.l.s4 1966171168
      %v831 = vunpack.c.0.s8 %v830
      %v832 = vlaneseq
      %v833 = vshrl.u32 %v832, 7
      %v834 = vsub.s32 %v831, %v833
      %v835 = vrot.slane %v820, %v834
      %v837 = vunpack.c.l.s4 1966171168
      %v838 = vunpack.c.0.s8 %v837
      %v839 = vlaneseq
      %v840 = vshrl.u32 %v839, 7
      %v841 = vsub.s32 %v838, %v840
      %v842 = vrot.slane %v821, %v841
      %v843 = vcombine.high %v828, %v828
      %v844 = vcombine.high %v842, %v842
      %v845 = vunpack.i.l.s16 %v516
      %v846 = vunpack.i.h.s16 %v516
      %v847 = vunpack.i.l.s16 %v530
      %v848 = vunpack.i.h.s16 %v530
      %v849 = vunpack.i.l.s16 %v531
      %v850 = vunpack.i.h.s16 %v531
      %v851 = vunpack.i.l.s16 %v532
      %v852 = vunpack.i.h.s16 %v532
      %v853 = vunpack.i.l.s16 %v523
      %v854 = vunpack.i.l.s16 %v555
      %v855 = vunpack.i.h.s16 %v555
      %v856 = vunpack.i.l.s16 %v569
      %v857 = vunpack.i.h.s16 %v569
      %v858 = vunpack.i.l.s16 %v570
      %v859 = vunpack.i.h.s16 %v570
      %v860 = vunpack.i.l.s16 %v571
      %v861 = vunpack.i.h.s16 %v571
      %v862 = vunpack.i.l.s16 %v562
      %v863 = vunpack.i.l.s16 %v594
      %v864 = vunpack.i.h.s16 %v594
      %v865 = vunpack.i.l.s16 %v608
      %v866 = vunpack.i.h.s16 %v608
      %v867 = vunpack.i.l.s16 %v609
      %v868 = vunpack.i.h.s16 %v609
      %v869 = vunpack.i.l.s16 %v610
      %v870 = vunpack.i.h.s16 %v610
      %v871 = vunpack.i.l.s16 %v601
      %v872 = vunpack.i.l.s16 %v633
      %v873 = vunpack.i.h.s16 %v633
      %v874 = vunpack.i.l.s16 %v647
      %v875 = vunpack.i.h.s16 %v647
      %v876 = vunpack.i.l.s16 %v648
      %v877 = vunpack.i.h.s16 %v648
      %v878 = vunpack.i.l.s16 %v649
      %v879 = vunpack.i.h.s16 %v649
      %v880 = vunpack.i.l.s16 %v640
      %v881 = vunpack.i.l.s16 %v672
      %v882 = vunpack.i.h.s16 %v672
      %v883 = vunpack.i.l.s16 %v686
      %v884 = vunpack.i.h.s16 %v686
      %v885 = vunpack.i.l.s16 %v687
      %v886 = vunpack.i.h.s16 %v687
      %v887 = vunpack.i.l.s16 %v688
      %v888 = vunpack.i.h.s16 %v688
      %v889 = vunpack.i.l.s16 %v679
      %v890 = vunpack.i.l.s16 %v711
      %v891 = vunpack.i.h.s16 %v711
      %v892 = vunpack.i.l.s16 %v725
      %v893 = vunpack.i.h.s16 %v725
      %v894 = vunpack.i.l.s16 %v726
      %v895 = vunpack.i.h.s16 %v726
      %v896 = vunpack.i.l.s16 %v727
      %v897 = vunpack.i.h.s16 %v727
      %v898 = vunpack.i.l.s16 %v718
      %v899 = vunpack.i.l.s16 %v750
      %v900 = vunpack.i.h.s16 %v750
      %v901 = vunpack.i.l.s16 %v764
      %v902 = vunpack.i.h.s16 %v764
      %v903 = vunpack.i.l.s16 %v765
      %v904 = vunpack.i.h.s16 %v765
      %v905 = vunpack.i.l.s16 %v766
      %v906 = vunpack.i.h.s16 %v766
      %v907 = vunpack.i.l.s16 %v757
      %v908 = vunpack.i.l.s16 %v789
      %v909 = vunpack.i.h.s16 %v789
      %v910 = vunpack.i.l.s16 %v803
      %v911 = vunpack.i.h.s16 %v803
      %v912 = vunpack.i.l.s16 %v804
      %v913 = vunpack.i.h.s16 %v804
      %v914 = vunpack.i.l.s16 %v805
      %v915 = vunpack.i.h.s16 %v805
      %v916 = vunpack.i.l.s16 %v796
      %v917 = vunpack.i.l.s16 %v828
      %v918 = vunpack.i.h.s16 %v828
      %v919 = vunpack.i.l.s16 %v842
      %v920 = vunpack.i.h.s16 %v842
      %v921 = vunpack.i.l.s16 %v843
      %v922 = vunpack.i.h.s16 %v843
      %v923 = vunpack.i.l.s16 %v844
      %v924 = vunpack.i.h.s16 %v844
      %v925 = vunpack.i.l.s16 %v835
      %v926 = vpack.i.b16 %v846, %v845
      %v927 = vpack.i.b16 %v848, %v847
      %v928 = vpack.i.b16 %v850, %v849
      %v929 = vpack.i.b16 %v852, %v851
      %v930 = vpack.i.b16 %v854, %v853
      %v931 = vpack.i.b16 %v856, %v855
      %v932 = vpack.i.b16 %v858, %v857
      %v933 = vpack.i.b16 %v860, %v859
      %v934 = vpack.i.b16 %v862, %v861
      %v935 = vpack.i.b16 %v864, %v863
      %v936 = vpack.i.b16 %v866, %v865
      %v937 = vpack.i.b16 %v868, %v867
      %v938 = vpack.i.b16 %v870, %v869
      %v939 = vpack.i.b16 %v872, %v871
      %v940 = vpack.i.b16 %v874, %v873
      %v941 = vpack.i.b16 %v876, %v875
      %v942 = vpack.i.b16 %v878, %v877
      %v943 = vpack.i.b16 %v880, %v879
      %v944 = vpack.i.b16 %v882, %v881
      %v945 = vpack.i.b16 %v884, %v883
      %v946 = vpack.i.b16 %v886, %v885
      %v947 = vpack.i.b16 %v888, %v887
      %v948 = vpack.i.b16 %v890, %v889
      %v949 = vpack.i.b16 %v892, %v891
      %v950 = vpack.i.b16 %v894, %v893
      %v951 = vpack.i.b16 %v896, %v895
      %v952 = vpack.i.b16 %v898, %v897
      %v953 = vpack.i.b16 %v900, %v899
      %v954 = vpack.i.b16 %v902, %v901
      %v955 = vpack.i.b16 %v904, %v903
      %v956 = vpack.i.b16 %v906, %v905
      %v957 = vpack.i.b16 %v908, %v907
      %v958 = vpack.i.b16 %v910, %v909
      %v959 = vpack.i.b16 %v912, %v911
      %v960 = vpack.i.b16 %v914, %v913
      %v961 = vpack.i.b16 %v916, %v915
      %v962 = vpack.i.b16 %v918, %v917
      %v963 = vpack.i.b16 %v920, %v919
      %v964 = vpack.i.b16 %v922, %v921
      %v965 = vpack.i.b16 %v924, %v923
      %v967 = vcombine.low %v926, %v927
      %v968 = vcombine.low %v928, %v929
      %v969 = vcombine.low %v930, %v931
      %v970 = vcombine.low %v932, %v933
      %v972 = vunpack.c.l.s4 1966171168
      %v973 = vunpack.c.0.s8 %v972
      %v974 = vlaneseq
      %v975 = vshrl.u32 %v974, 7
      %v976 = vsub.s32 %v973, %v975
      %v977 = vrot.slane %v967, %v976
      %v979 = vunpack.c.l.s4 1966171168
      %v980 = vunpack.c.0.s8 %v979
      %v981 = vlaneseq
      %v982 = vshrl.u32 %v981, 7
      %v983 = vsub.s32 %v980, %v982
      %v984 = vrot.slane %v968, %v983
      %v986 = vunpack.c.l.s4 1966171168
      %v987 = vunpack.c.0.s8 %v986
      %v988 = vlaneseq
      %v989 = vshrl.u32 %v988, 7
      %v990 = vsub.s32 %v987, %v989
      %v991 = vrot.slane %v969, %v990
      %v993 = vunpack.c.l.s4 1966171168
      %v994 = vunpack.c.0.s8 %v993
      %v995 = vlaneseq
      %v996 = vshrl.u32 %v995, 7
      %v997 = vsub.s32 %v994, %v996
      %v998 = vrot.slane %v970, %v997
      %v999 = vcombine.low %v977, %v984
      %v1000 = vcombine.low %v991, %v998
      %v1002 = vunpack.c.l.s4 1966171168
      %v1003 = vunpack.c.0.s8 %v1002
      %v1004 = vlaneseq
      %v1005 = vshrl.u32 %v1004, 7
      %v1006 = vsub.s32 %v1003, %v1005
      %v1007 = vrot.slane %v999, %v1006
      %v1009 = vunpack.c.l.s4 1966171168
      %v1010 = vunpack.c.0.s8 %v1009
      %v1011 = vlaneseq
      %v1012 = vshrl.u32 %v1011, 7
      %v1013 = vsub.s32 %v1010, %v1012
      %v1014 = vrot.slane %v1000, %v1013
      %v1015 = vcombine.low %v1007, %v1014
      %v1016 = vcombine.low %v934, %v935
      %v1017 = vcombine.low %v936, %v937
      %v1018 = vcombine.low %v938, %v939
      %v1019 = vcombine.low %v940, %v941
      %v1021 = vunpack.c.l.s4 1966171168
      %v1022 = vunpack.c.0.s8 %v1021
      %v1023 = vlaneseq
      %v1024 = vshrl.u32 %v1023, 7
      %v1025 = vsub.s32 %v1022, %v1024
      %v1026 = vrot.slane %v1016, %v1025
      %v1028 = vunpack.c.l.s4 1966171168
      %v1029 = vunpack.c.0.s8 %v1028
      %v1030 = vlaneseq
      %v1031 = vshrl.u32 %v1030, 7
      %v1032 = vsub.s32 %v1029, %v1031
      %v1033 = vrot.slane %v1017, %v1032
      %v1035 = vunpack.c.l.s4 1966171168
      %v1036 = vunpack.c.0.s8 %v1035
      %v1037 = vlaneseq
      %v1038 = vshrl.u32 %v1037, 7
      %v1039 = vsub.s32 %v1036, %v1038
      %v1040 = vrot.slane %v1018, %v1039
      %v1042 = vunpack.c.l.s4 1966171168
      %v1043 = vunpack.c.0.s8 %v1042
      %v1044 = vlaneseq
      %v1045 = vshrl.u32 %v1044, 7
      %v1046 = vsub.s32 %v1043, %v1045
      %v1047 = vrot.slane %v1019, %v1046
      %v1048 = vcombine.low %v1026, %v1033
      %v1049 = vcombine.low %v1040, %v1047
      %v1051 = vunpack.c.l.s4 1966171168
      %v1052 = vunpack.c.0.s8 %v1051
      %v1053 = vlaneseq
      %v1054 = vshrl.u32 %v1053, 7
      %v1055 = vsub.s32 %v1052, %v1054
      %v1056 = vrot.slane %v1048, %v1055
      %v1058 = vunpack.c.l.s4 1966171168
      %v1059 = vunpack.c.0.s8 %v1058
      %v1060 = vlaneseq
      %v1061 = vshrl.u32 %v1060, 7
      %v1062 = vsub.s32 %v1059, %v1061
      %v1063 = vrot.slane %v1049, %v1062
      %v1064 = vcombine.low %v1056, %v1063
      %v1065 = vcombine.low %v942, %v943
      %v1066 = vcombine.low %v944, %v945
      %v1067 = vcombine.low %v946, %v947
      %v1068 = vcombine.low %v948, %v949
      %v1070 = vunpack.c.l.s4 1966171168
      %v1071 = vunpack.c.0.s8 %v1070
      %v1072 = vlaneseq
      %v1073 = vshrl.u32 %v1072, 7
      %v1074 = vsub.s32 %v1071, %v1073
      %v1075 = vrot.slane %v1065, %v1074
      %v1077 = vunpack.c.l.s4 1966171168
      %v1078 = vunpack.c.0.s8 %v1077
      %v1079 = vlaneseq
      %v1080 = vshrl.u32 %v1079, 7
      %v1081 = vsub.s32 %v1078, %v1080
      %v1082 = vrot.slane %v1066, %v1081
      %v1084 = vunpack.c.l.s4 1966171168
      %v1085 = vunpack.c.0.s8 %v1084
      %v1086 = vlaneseq
      %v1087 = vshrl.u32 %v1086, 7
      %v1088 = vsub.s32 %v1085, %v1087
      %v1089 = vrot.slane %v1067, %v1088
      %v1091 = vunpack.c.l.s4 1966171168
      %v1092 = vunpack.c.0.s8 %v1091
      %v1093 = vlaneseq
      %v1094 = vshrl.u32 %v1093, 7
      %v1095 = vsub.s32 %v1092, %v1094
      %v1096 = vrot.slane %v1068, %v1095
      %v1097 = vcombine.low %v1075, %v1082
      %v1098 = vcombine.low %v1089, %v1096
      %v1100 = vunpack.c.l.s4 1966171168
      %v1101 = vunpack.c.0.s8 %v1100
      %v1102 = vlaneseq
      %v1103 = vshrl.u32 %v1102, 7
      %v1104 = vsub.s32 %v1101, %v1103
      %v1105 = vrot.slane %v1097, %v1104
      %v1107 = vunpack.c.l.s4 1966171168
      %v1108 = vunpack.c.0.s8 %v1107
      %v1109 = vlaneseq
      %v1110 = vshrl.u32 %v1109, 7
      %v1111 = vsub.s32 %v1108, %v1110
      %v1112 = vrot.slane %v1098, %v1111
      %v1113 = vcombine.low %v1105, %v1112
      %v1114 = vcombine.low %v950, %v951
      %v1115 = vcombine.low %v952, %v953
      %v1116 = vcombine.low %v954, %v955
      %v1117 = vcombine.low %v956, %v957
      %v1119 = vunpack.c.l.s4 1966171168
      %v1120 = vunpack.c.0.s8 %v1119
      %v1121 = vlaneseq
      %v1122 = vshrl.u32 %v1121, 7
      %v1123 = vsub.s32 %v1120, %v1122
      %v1124 = vrot.slane %v1114, %v1123
      %v1126 = vunpack.c.l.s4 1966171168
      %v1127 = vunpack.c.0.s8 %v1126
      %v1128 = vlaneseq
      %v1129 = vshrl.u32 %v1128, 7
      %v1130 = vsub.s32 %v1127, %v1129
      %v1131 = vrot.slane %v1115, %v1130
      %v1133 = vunpack.c.l.s4 1966171168
      %v1134 = vunpack.c.0.s8 %v1133
      %v1135 = vlaneseq
      %v1136 = vshrl.u32 %v1135, 7
      %v1137 = vsub.s32 %v1134, %v1136
      %v1138 = vrot.slane %v1116, %v1137
      %v1140 = vunpack.c.l.s4 1966171168
      %v1141 = vunpack.c.0.s8 %v1140
      %v1142 = vlaneseq
      %v1143 = vshrl.u32 %v1142, 7
      %v1144 = vsub.s32 %v1141, %v1143
      %v1145 = vrot.slane %v1117, %v1144
      %v1146 = vcombine.low %v1124, %v1131
      %v1147 = vcombine.low %v1138, %v1145
      %v1149 = vunpack.c.l.s4 1966171168
      %v1150 = vunpack.c.0.s8 %v1149
      %v1151 = vlaneseq
      %v1152 = vshrl.u32 %v1151, 7
      %v1153 = vsub.s32 %v1150, %v1152
      %v1154 = vrot.slane %v1146, %v1153
      %v1156 = vunpack.c.l.s4 1966171168
      %v1157 = vunpack.c.0.s8 %v1156
      %v1158 = vlaneseq
      %v1159 = vshrl.u32 %v1158, 7
      %v1160 = vsub.s32 %v1157, %v1159
      %v1161 = vrot.slane %v1147, %v1160
      %v1162 = vcombine.low %v1154, %v1161
      %v1163 = vcombine.low %v958, %v959
      %v1164 = vcombine.low %v960, %v961
      %v1165 = vcombine.low %v962, %v963
      %v1166 = vcombine.low %v964, %v965
      %v1168 = vunpack.c.l.s4 1966171168
      %v1169 = vunpack.c.0.s8 %v1168
      %v1170 = vlaneseq
      %v1171 = vshrl.u32 %v1170, 7
      %v1172 = vsub.s32 %v1169, %v1171
      %v1173 = vrot.slane %v1163, %v1172
      %v1175 = vunpack.c.l.s4 1966171168
      %v1176 = vunpack.c.0.s8 %v1175
      %v1177 = vlaneseq
      %v1178 = vshrl.u32 %v1177, 7
      %v1179 = vsub.s32 %v1176, %v1178
      %v1180 = vrot.slane %v1164, %v1179
      %v1182 = vunpack.c.l.s4 1966171168
      %v1183 = vunpack.c.0.s8 %v1182
      %v1184 = vlaneseq
      %v1185 = vshrl.u32 %v1184, 7
      %v1186 = vsub.s32 %v1183, %v1185
      %v1187 = vrot.slane %v1165, %v1186
      %v1189 = vunpack.c.l.s4 1966171168
      %v1190 = vunpack.c.0.s8 %v1189
      %v1191 = vlaneseq
      %v1192 = vshrl.u32 %v1191, 7
      %v1193 = vsub.s32 %v1190, %v1192
      %v1194 = vrot.slane %v1166, %v1193
      %v1195 = vcombine.low %v1173, %v1180
      %v1196 = vcombine.low %v1187, %v1194
      %v1198 = vunpack.c.l.s4 1966171168
      %v1199 = vunpack.c.0.s8 %v1198
      %v1200 = vlaneseq
      %v1201 = vshrl.u32 %v1200, 7
      %v1202 = vsub.s32 %v1199, %v1201
      %v1203 = vrot.slane %v1195, %v1202
      %v1205 = vunpack.c.l.s4 1966171168
      %v1206 = vunpack.c.0.s8 %v1205
      %v1207 = vlaneseq
      %v1208 = vshrl.u32 %v1207, 7
      %v1209 = vsub.s32 %v1206, %v1208
      %v1210 = vrot.slane %v1196, %v1209
      %v1211 = vcombine.low %v1203, %v1210
      %v1213 = vunpack.c.l.s4 1966171168
      %v1214 = vunpack.c.0.s8 %v1213
      %v1215 = vlaneseq
      %v1216 = vshrl.u32 %v1215, 7
      %v1217 = vsub.s32 %v1214, %v1216
      %v1218 = vrot.slane %v925, %v1217
      %v1220 = vunpack.c.l.s4 1966171168
      %v1221 = vunpack.c.0.s8 %v1220
      %v1222 = vlaneseq
      %v1223 = vshrl.u32 %v1222, 7
      %v1224 = vsub.s32 %v1221, %v1223
      %v1225 = vrot.slane %v1218, %v1224
      %v1232 = vunpack.c.l.b16 %v248
      %v1233 = vunpack.c.l.b16 %v249
      %v1234 = vunpack.c.l.b16 %v250
      %v1235 = vunpack.c.l.b16 %v251
      %v1236 = vunpack.c.l.b16 %v252
      %v1237 = vunpack.c.l.b16 %v253
      %v1238 = vpack.c.b16 %v1233, %v1232
      %v1239 = vpack.c.b16 %v1235, %v1234
      %v1240 = vpack.c.b16 %v1237, %v1236
      %vm1244 = vcmask 392192
      %v1246 = vsel %vm1244, %v1015, 0
      %v1249 = vsel %vm1244, %v1064, 0
      %v1252 = vsel %vm1244, %v1113, 0
      %v1255 = vsel %vm1244, %v1162, 0
      %v1258 = vsel %vm1244, %v1211, 0
      %v1261 = vsel %vm1244, %v1225, 0
      %1263 = vmatprep.subr.bf16.mxu0 0
      %1264 = vmatpush1.bf16.msra.mxu0 %v1238
      %1265 = vmatprep.subr.bf16.mxu0 0
      %1266 = vmatpush1.bf16.msra.mxu0 %v1239
      %1267 = vmatprep.subr.bf16.mxu0 0
      %1268 = vmatpush1.bf16.msra.mxu0 %v1240
      %1269 = vmatprep.subr.bf16.mxu0 0
      %1270 = vmatpush1.bf16.msra.mxu0 0
      %1271 = vmatprep.subr.bf16.mxu0 0
      %1272 = vmatpush1.bf16.msra.mxu0 0
      %1273 = vmatprep.subr.bf16.mxu0 0
      %1274 = vmatpush1.bf16.msra.mxu0 0
      %1275 = vmatprep.subr.bf16.mxu0 0
      %1276 = vmatpush1.bf16.msra.mxu0 0
      %1277 = vmatprep.subr.bf16.mxu0 0
      %1278 = vmatpush1.bf16.msra.mxu0 0
      %1279 = vmatprep.subr.bf16.mxu0 0
      %1280 = vmatpush1.bf16.msra.mxu0 0
      %1281 = vmatprep.subr.bf16.mxu0 0
      %1282 = vmatpush1.bf16.msra.mxu0 0
      %1283 = vmatprep.subr.bf16.mxu0 0
      %1284 = vmatpush1.bf16.msra.mxu0 0
      %1285 = vmatprep.subr.bf16.mxu0 0
      %1286 = vmatpush1.bf16.msra.mxu0 0
      %1287 = vmatprep.subr.bf16.mxu0 0
      %1288 = vmatpush1.bf16.msra.mxu0 0
      %1289 = vmatprep.subr.bf16.mxu0 0
      %1290 = vmatpush1.bf16.msra.mxu0 0
      %1291 = vmatprep.subr.bf16.mxu0 0
      %1292 = vmatpush1.bf16.msra.mxu0 0
      %1293 = vmatprep.subr.bf16.mxu0 0
      %1294 = vmatpush1.bf16.msra.mxu0 0
      %1295 = vmatprep.mubr.bf16.mxu0 0
      %1296 = vmatmul.mubr.bf16.gmra.mrb[0].mxu0 %v1246
      %v1297 = vpop.f32.mrb[0].mxu0
      %v1298 = vadd.f32 0.0, %v1297
      %v1299 = vpop.f32.mrb[0].mxu0
      %v1300 = vpop.f32.mrb[0].mxu0
      %v1301 = vadd.f32 0.0, %v1300
      %v1302 = vpop.f32.mrb[0].mxu0
      %1303 = vmatprep.mubr.bf16.mxu0 0
      %1304 = vmatmul.mubr.bf16.gmra.mrb[0].mxu0 %v1249
      %v1305 = vpop.f32.mrb[0].mxu0
      %v1306 = vadd.f32 0.0, %v1305
      %v1307 = vpop.f32.mrb[0].mxu0
      %v1308 = vpop.f32.mrb[0].mxu0
      %v1309 = vadd.f32 0.0, %v1308
      %v1310 = vpop.f32.mrb[0].mxu0
      %1311 = vmatprep.mubr.bf16.mxu0 0
      %1312 = vmatmul.mubr.bf16.gmra.mrb[0].mxu0 %v1252
      %v1313 = vpop.f32.mrb[0].mxu0
      %v1314 = vadd.f32 0.0, %v1313
      %v1315 = vpop.f32.mrb[0].mxu0
      %v1316 = vpop.f32.mrb[0].mxu0
      %v1317 = vadd.f32 0.0, %v1316
      %v1318 = vpop.f32.mrb[0].mxu0
      %1319 = vmatprep.mubr.bf16.mxu0 0
      %1320 = vmatmul.mubr.bf16.gmra.mrb[0].mxu0 %v1255
      %v1321 = vpop.f32.mrb[0].mxu0
      %v1322 = vadd.f32 0.0, %v1321
      %v1323 = vpop.f32.mrb[0].mxu0
      %v1324 = vpop.f32.mrb[0].mxu0
      %v1325 = vadd.f32 0.0, %v1324
      %v1326 = vpop.f32.mrb[0].mxu0
      %1327 = vmatprep.mubr.bf16.mxu0 0
      %1328 = vmatmul.mubr.bf16.gmra.mrb[0].mxu0 %v1258
      %v1329 = vpop.f32.mrb[0].mxu0
      %v1330 = vadd.f32 0.0, %v1329
      %v1331 = vpop.f32.mrb[0].mxu0
      %v1332 = vpop.f32.mrb[0].mxu0
      %v1333 = vadd.f32 0.0, %v1332
      %v1334 = vpop.f32.mrb[0].mxu0
      %1335 = vmatprep.mubr.bf16.mxu0 0
      %1336 = vmatmul.mubr.bf16.gmra.mrb[0].mxu0 %v1261
      %v1337 = vpop.f32.mrb[0].mxu0
      %v1338 = vadd.f32 0.0, %v1337
      %v1339 = vpop.f32.mrb[0].mxu0
      %v1340 = vpop.f32.mrb[0].mxu0
      %v1341 = vpop.f32.mrb[0].mxu0
      %1342 = vdwg.mxu0
      %v1343 = vld [vmem:[%s2] sm:$0x1]
      %v1345 = vlaneseq
      %v1346 = vshrl.u32 %v1345, 7
      %v1347 = vsub.s32 0, %v1346
      %v1348 = vrot.slane %v1343, %v1347
      %v1350 = vmul.f32 %v1298, %v1348
      %v1351 = vmul.f32 %v1301, %v1348
      %v1352 = vmul.f32 %v1306, %v1348
      %v1353 = vmul.f32 %v1309, %v1348
      %v1354 = vmul.f32 %v1314, %v1348
      %v1355 = vmul.f32 %v1317, %v1348
      %v1356 = vmul.f32 %v1322, %v1348
      %v1357 = vmul.f32 %v1325, %v1348
      %v1358 = vmul.f32 %v1330, %v1348
      %v1359 = vmul.f32 %v1333, %v1348
      %v1360 = vmul.f32 %v1338, %v1348
      %v1361 = vld [vmem:[%s3] sm:$0x1]
      %v1363 = vlaneseq
      %v1364 = vshrl.u32 %v1363, 7
      %v1365 = vsub.s32 0, %v1364
      %v1366 = vrot.slane %v1361, %v1365
      %v1368 = vadd.f32 %v1350, %v1366
      %v1369 = vadd.f32 %v1351, %v1366
      %v1370 = vadd.f32 %v1352, %v1366
      %v1371 = vadd.f32 %v1353, %v1366
      %v1372 = vadd.f32 %v1354, %v1366
      %v1373 = vadd.f32 %v1355, %v1366
      %v1374 = vadd.f32 %v1356, %v1366
      %v1375 = vadd.f32 %v1357, %v1366
      %v1376 = vadd.f32 %v1358, %v1366
      %v1377 = vadd.f32 %v1359, %v1366
      %v1378 = vadd.f32 %v1360, %v1366
      %v1379 = vmul.f32 %v1368, 0.2
      %v1380 = vmul.f32 %v1369, 0.2
      %v1381 = vmul.f32 %v1370, 0.2
      %v1382 = vmul.f32 %v1371, 0.2
      %v1383 = vmul.f32 %v1372, 0.2
      %v1384 = vmul.f32 %v1373, 0.2
      %v1385 = vmul.f32 %v1374, 0.2
      %v1386 = vmul.f32 %v1375, 0.2
      %v1387 = vmul.f32 %v1376, 0.2
      %v1388 = vmul.f32 %v1377, 0.2
      %v1389 = vmul.f32 %v1378, 0.2
      %v1390 = vmax.f32 %v1368, %v1379
      %v1391 = vmax.f32 %v1369, %v1380
      %v1392 = vmax.f32 %v1370, %v1381
      %v1393 = vmax.f32 %v1371, %v1382
      %v1394 = vmax.f32 %v1372, %v1383
      %v1395 = vmax.f32 %v1373, %v1384
      %v1396 = vmax.f32 %v1374, %v1385
      %v1397 = vmax.f32 %v1375, %v1386
      %v1398 = vmax.f32 %v1376, %v1387
      %v1399 = vmax.f32 %v1377, %v1388
      %v1400 = vmax.f32 %v1378, %v1389
      %v1412 = vcombine.high %v1390, %v1390
      %v1414 = vunpack.c.l.s4 1966171168
      %v1415 = vunpack.c.0.s8 %v1414
      %v1416 = vlaneseq
      %v1417 = vshrl.u32 %v1416, 7
      %v1418 = vsub.s32 %v1415, %v1417
      %v1419 = vrot.slane %v1390, %v1418
      %v1421 = vunpack.c.l.s4 1966171168
      %v1422 = vunpack.c.0.s8 %v1421
      %v1423 = vlaneseq
      %v1424 = vshrl.u32 %v1423, 7
      %v1425 = vsub.s32 %v1422, %v1424
      %v1426 = vrot.slane %v1412, %v1425
      %v1427 = vcombine.high %v1419, %v1419
      %v1428 = vcombine.high %v1426, %v1426
      %v1430 = vunpack.c.l.s4 1966171168
      %v1431 = vunpack.c.0.s8 %v1430
      %v1432 = vlaneseq
      %v1433 = vshrl.u32 %v1432, 7
      %v1434 = vsub.s32 %v1431, %v1433
      %v1435 = vrot.slane %v1419, %v1434
      %v1437 = vunpack.c.l.s4 1966171168
      %v1438 = vunpack.c.0.s8 %v1437
      %v1439 = vlaneseq
      %v1440 = vshrl.u32 %v1439, 7
      %v1441 = vsub.s32 %v1438, %v1440
      %v1442 = vrot.slane %v1426, %v1441
      %v1444 = vunpack.c.l.s4 1966171168
      %v1445 = vunpack.c.0.s8 %v1444
      %v1446 = vlaneseq
      %v1447 = vshrl.u32 %v1446, 7
      %v1448 = vsub.s32 %v1445, %v1447
      %v1449 = vrot.slane %v1427, %v1448
      %v1451 = vunpack.c.l.s4 1966171168
      %v1452 = vunpack.c.0.s8 %v1451
      %v1453 = vlaneseq
      %v1454 = vshrl.u32 %v1453, 7
      %v1455 = vsub.s32 %v1452, %v1454
      %v1456 = vrot.slane %v1428, %v1455
      %v1457 = vcombine.high %v1435, %v1435
      %v1458 = vcombine.high %v1442, %v1442
      %v1459 = vcombine.high %v1449, %v1449
      %v1460 = vcombine.high %v1456, %v1456
      %v1461 = vcombine.high %v1391, %v1391
      %v1463 = vunpack.c.l.s4 1966171168
      %v1464 = vunpack.c.0.s8 %v1463
      %v1465 = vlaneseq
      %v1466 = vshrl.u32 %v1465, 7
      %v1467 = vsub.s32 %v1464, %v1466
      %v1468 = vrot.slane %v1391, %v1467
      %v1470 = vunpack.c.l.s4 1966171168
      %v1471 = vunpack.c.0.s8 %v1470
      %v1472 = vlaneseq
      %v1473 = vshrl.u32 %v1472, 7
      %v1474 = vsub.s32 %v1471, %v1473
      %v1475 = vrot.slane %v1461, %v1474
      %v1476 = vcombine.high %v1468, %v1468
      %v1477 = vcombine.high %v1475, %v1475
      %v1479 = vunpack.c.l.s4 1966171168
      %v1480 = vunpack.c.0.s8 %v1479
      %v1481 = vlaneseq
      %v1482 = vshrl.u32 %v1481, 7
      %v1483 = vsub.s32 %v1480, %v1482
      %v1484 = vrot.slane %v1468, %v1483
      %v1486 = vunpack.c.l.s4 1966171168
      %v1487 = vunpack.c.0.s8 %v1486
      %v1488 = vlaneseq
      %v1489 = vshrl.u32 %v1488, 7
      %v1490 = vsub.s32 %v1487, %v1489
      %v1491 = vrot.slane %v1475, %v1490
      %v1493 = vunpack.c.l.s4 1966171168
      %v1494 = vunpack.c.0.s8 %v1493
      %v1495 = vlaneseq
      %v1496 = vshrl.u32 %v1495, 7
      %v1497 = vsub.s32 %v1494, %v1496
      %v1498 = vrot.slane %v1476, %v1497
      %v1500 = vunpack.c.l.s4 1966171168
      %v1501 = vunpack.c.0.s8 %v1500
      %v1502 = vlaneseq
      %v1503 = vshrl.u32 %v1502, 7
      %v1504 = vsub.s32 %v1501, %v1503
      %v1505 = vrot.slane %v1477, %v1504
      %v1506 = vcombine.high %v1484, %v1484
      %v1507 = vcombine.high %v1491, %v1491
      %v1508 = vcombine.high %v1498, %v1498
      %v1509 = vcombine.high %v1505, %v1505
      %v1510 = vcombine.high %v1392, %v1392
      %v1512 = vunpack.c.l.s4 1966171168
      %v1513 = vunpack.c.0.s8 %v1512
      %v1514 = vlaneseq
      %v1515 = vshrl.u32 %v1514, 7
      %v1516 = vsub.s32 %v1513, %v1515
      %v1517 = vrot.slane %v1392, %v1516
      %v1519 = vunpack.c.l.s4 1966171168
      %v1520 = vunpack.c.0.s8 %v1519
      %v1521 = vlaneseq
      %v1522 = vshrl.u32 %v1521, 7
      %v1523 = vsub.s32 %v1520, %v1522
      %v1524 = vrot.slane %v1510, %v1523
      %v1525 = vcombine.high %v1517, %v1517
      %v1526 = vcombine.high %v1524, %v1524
      %v1528 = vunpack.c.l.s4 1966171168
      %v1529 = vunpack.c.0.s8 %v1528
      %v1530 = vlaneseq
      %v1531 = vshrl.u32 %v1530, 7
      %v1532 = vsub.s32 %v1529, %v1531
      %v1533 = vrot.slane %v1517, %v1532
      %v1535 = vunpack.c.l.s4 1966171168
      %v1536 = vunpack.c.0.s8 %v1535
      %v1537 = vlaneseq
      %v1538 = vshrl.u32 %v1537, 7
      %v1539 = vsub.s32 %v1536, %v1538
      %v1540 = vrot.slane %v1524, %v1539
      %v1542 = vunpack.c.l.s4 1966171168
      %v1543 = vunpack.c.0.s8 %v1542
      %v1544 = vlaneseq
      %v1545 = vshrl.u32 %v1544, 7
      %v1546 = vsub.s32 %v1543, %v1545
      %v1547 = vrot.slane %v1525, %v1546
      %v1549 = vunpack.c.l.s4 1966171168
      %v1550 = vunpack.c.0.s8 %v1549
      %v1551 = vlaneseq
      %v1552 = vshrl.u32 %v1551, 7
      %v1553 = vsub.s32 %v1550, %v1552
      %v1554 = vrot.slane %v1526, %v1553
      %v1555 = vcombine.high %v1533, %v1533
      %v1556 = vcombine.high %v1540, %v1540
      %v1557 = vcombine.high %v1547, %v1547
      %v1558 = vcombine.high %v1554, %v1554
      %v1559 = vcombine.high %v1393, %v1393
      %v1561 = vunpack.c.l.s4 1966171168
      %v1562 = vunpack.c.0.s8 %v1561
      %v1563 = vlaneseq
      %v1564 = vshrl.u32 %v1563, 7
      %v1565 = vsub.s32 %v1562, %v1564
      %v1566 = vrot.slane %v1393, %v1565
      %v1568 = vunpack.c.l.s4 1966171168
      %v1569 = vunpack.c.0.s8 %v1568
      %v1570 = vlaneseq
      %v1571 = vshrl.u32 %v1570, 7
      %v1572 = vsub.s32 %v1569, %v1571
      %v1573 = vrot.slane %v1559, %v1572
      %v1574 = vcombine.high %v1566, %v1566
      %v1575 = vcombine.high %v1573, %v1573
      %v1577 = vunpack.c.l.s4 1966171168
      %v1578 = vunpack.c.0.s8 %v1577
      %v1579 = vlaneseq
      %v1580 = vshrl.u32 %v1579, 7
      %v1581 = vsub.s32 %v1578, %v1580
      %v1582 = vrot.slane %v1566, %v1581
      %v1584 = vunpack.c.l.s4 1966171168
      %v1585 = vunpack.c.0.s8 %v1584
      %v1586 = vlaneseq
      %v1587 = vshrl.u32 %v1586, 7
      %v1588 = vsub.s32 %v1585, %v1587
      %v1589 = vrot.slane %v1573, %v1588
      %v1591 = vunpack.c.l.s4 1966171168
      %v1592 = vunpack.c.0.s8 %v1591
      %v1593 = vlaneseq
      %v1594 = vshrl.u32 %v1593, 7
      %v1595 = vsub.s32 %v1592, %v1594
      %v1596 = vrot.slane %v1574, %v1595
      %v1598 = vunpack.c.l.s4 1966171168
      %v1599 = vunpack.c.0.s8 %v1598
      %v1600 = vlaneseq
      %v1601 = vshrl.u32 %v1600, 7
      %v1602 = vsub.s32 %v1599, %v1601
      %v1603 = vrot.slane %v1575, %v1602
      %v1604 = vcombine.high %v1582, %v1582
      %v1605 = vcombine.high %v1589, %v1589
      %v1606 = vcombine.high %v1596, %v1596
      %v1607 = vcombine.high %v1603, %v1603
      %v1608 = vcombine.high %v1394, %v1394
      %v1610 = vunpack.c.l.s4 1966171168
      %v1611 = vunpack.c.0.s8 %v1610
      %v1612 = vlaneseq
      %v1613 = vshrl.u32 %v1612, 7
      %v1614 = vsub.s32 %v1611, %v1613
      %v1615 = vrot.slane %v1394, %v1614
      %v1617 = vunpack.c.l.s4 1966171168
      %v1618 = vunpack.c.0.s8 %v1617
      %v1619 = vlaneseq
      %v1620 = vshrl.u32 %v1619, 7
      %v1621 = vsub.s32 %v1618, %v1620
      %v1622 = vrot.slane %v1608, %v1621
      %v1623 = vcombine.high %v1615, %v1615
      %v1624 = vcombine.high %v1622, %v1622
      %v1626 = vunpack.c.l.s4 1966171168
      %v1627 = vunpack.c.0.s8 %v1626
      %v1628 = vlaneseq
      %v1629 = vshrl.u32 %v1628, 7
      %v1630 = vsub.s32 %v1627, %v1629
      %v1631 = vrot.slane %v1615, %v1630
      %v1633 = vunpack.c.l.s4 1966171168
      %v1634 = vunpack.c.0.s8 %v1633
      %v1635 = vlaneseq
      %v1636 = vshrl.u32 %v1635, 7
      %v1637 = vsub.s32 %v1634, %v1636
      %v1638 = vrot.slane %v1622, %v1637
      %v1640 = vunpack.c.l.s4 1966171168
      %v1641 = vunpack.c.0.s8 %v1640
      %v1642 = vlaneseq
      %v1643 = vshrl.u32 %v1642, 7
      %v1644 = vsub.s32 %v1641, %v1643
      %v1645 = vrot.slane %v1623, %v1644
      %v1647 = vunpack.c.l.s4 1966171168
      %v1648 = vunpack.c.0.s8 %v1647
      %v1649 = vlaneseq
      %v1650 = vshrl.u32 %v1649, 7
      %v1651 = vsub.s32 %v1648, %v1650
      %v1652 = vrot.slane %v1624, %v1651
      %v1653 = vcombine.high %v1631, %v1631
      %v1654 = vcombine.high %v1638, %v1638
      %v1655 = vcombine.high %v1645, %v1645
      %v1656 = vcombine.high %v1652, %v1652
      %v1657 = vcombine.high %v1395, %v1395
      %v1659 = vunpack.c.l.s4 1966171168
      %v1660 = vunpack.c.0.s8 %v1659
      %v1661 = vlaneseq
      %v1662 = vshrl.u32 %v1661, 7
      %v1663 = vsub.s32 %v1660, %v1662
      %v1664 = vrot.slane %v1395, %v1663
      %v1666 = vunpack.c.l.s4 1966171168
      %v1667 = vunpack.c.0.s8 %v1666
      %v1668 = vlaneseq
      %v1669 = vshrl.u32 %v1668, 7
      %v1670 = vsub.s32 %v1667, %v1669
      %v1671 = vrot.slane %v1657, %v1670
      %v1672 = vcombine.high %v1664, %v1664
      %v1673 = vcombine.high %v1671, %v1671
      %v1675 = vunpack.c.l.s4 1966171168
      %v1676 = vunpack.c.0.s8 %v1675
      %v1677 = vlaneseq
      %v1678 = vshrl.u32 %v1677, 7
      %v1679 = vsub.s32 %v1676, %v1678
      %v1680 = vrot.slane %v1664, %v1679
      %v1682 = vunpack.c.l.s4 1966171168
      %v1683 = vunpack.c.0.s8 %v1682
      %v1684 = vlaneseq
      %v1685 = vshrl.u32 %v1684, 7
      %v1686 = vsub.s32 %v1683, %v1685
      %v1687 = vrot.slane %v1671, %v1686
      %v1689 = vunpack.c.l.s4 1966171168
      %v1690 = vunpack.c.0.s8 %v1689
      %v1691 = vlaneseq
      %v1692 = vshrl.u32 %v1691, 7
      %v1693 = vsub.s32 %v1690, %v1692
      %v1694 = vrot.slane %v1672, %v1693
      %v1696 = vunpack.c.l.s4 1966171168
      %v1697 = vunpack.c.0.s8 %v1696
      %v1698 = vlaneseq
      %v1699 = vshrl.u32 %v1698, 7
      %v1700 = vsub.s32 %v1697, %v1699
      %v1701 = vrot.slane %v1673, %v1700
      %v1702 = vcombine.high %v1680, %v1680
      %v1703 = vcombine.high %v1687, %v1687
      %v1704 = vcombine.high %v1694, %v1694
      %v1705 = vcombine.high %v1701, %v1701
      %v1706 = vcombine.high %v1396, %v1396
      %v1708 = vunpack.c.l.s4 1966171168
      %v1709 = vunpack.c.0.s8 %v1708
      %v1710 = vlaneseq
      %v1711 = vshrl.u32 %v1710, 7
      %v1712 = vsub.s32 %v1709, %v1711
      %v1713 = vrot.slane %v1396, %v1712
      %v1715 = vunpack.c.l.s4 1966171168
      %v1716 = vunpack.c.0.s8 %v1715
      %v1717 = vlaneseq
      %v1718 = vshrl.u32 %v1717, 7
      %v1719 = vsub.s32 %v1716, %v1718
      %v1720 = vrot.slane %v1706, %v1719
      %v1721 = vcombine.high %v1713, %v1713
      %v1722 = vcombine.high %v1720, %v1720
      %v1724 = vunpack.c.l.s4 1966171168
      %v1725 = vunpack.c.0.s8 %v1724
      %v1726 = vlaneseq
      %v1727 = vshrl.u32 %v1726, 7
      %v1728 = vsub.s32 %v1725, %v1727
      %v1729 = vrot.slane %v1713, %v1728
      %v1731 = vunpack.c.l.s4 1966171168
      %v1732 = vunpack.c.0.s8 %v1731
      %v1733 = vlaneseq
      %v1734 = vshrl.u32 %v1733, 7
      %v1735 = vsub.s32 %v1732, %v1734
      %v1736 = vrot.slane %v1720, %v1735
      %v1738 = vunpack.c.l.s4 1966171168
      %v1739 = vunpack.c.0.s8 %v1738
      %v1740 = vlaneseq
      %v1741 = vshrl.u32 %v1740, 7
      %v1742 = vsub.s32 %v1739, %v1741
      %v1743 = vrot.slane %v1721, %v1742
      %v1745 = vunpack.c.l.s4 1966171168
      %v1746 = vunpack.c.0.s8 %v1745
      %v1747 = vlaneseq
      %v1748 = vshrl.u32 %v1747, 7
      %v1749 = vsub.s32 %v1746, %v1748
      %v1750 = vrot.slane %v1722, %v1749
      %v1751 = vcombine.high %v1729, %v1729
      %v1752 = vcombine.high %v1736, %v1736
      %v1753 = vcombine.high %v1743, %v1743
      %v1754 = vcombine.high %v1750, %v1750
      %v1755 = vcombine.high %v1397, %v1397
      %v1757 = vunpack.c.l.s4 1966171168
      %v1758 = vunpack.c.0.s8 %v1757
      %v1759 = vlaneseq
      %v1760 = vshrl.u32 %v1759, 7
      %v1761 = vsub.s32 %v1758, %v1760
      %v1762 = vrot.slane %v1397, %v1761
      %v1764 = vunpack.c.l.s4 1966171168
      %v1765 = vunpack.c.0.s8 %v1764
      %v1766 = vlaneseq
      %v1767 = vshrl.u32 %v1766, 7
      %v1768 = vsub.s32 %v1765, %v1767
      %v1769 = vrot.slane %v1755, %v1768
      %v1770 = vcombine.high %v1762, %v1762
      %v1771 = vcombine.high %v1769, %v1769
      %v1773 = vunpack.c.l.s4 1966171168
      %v1774 = vunpack.c.0.s8 %v1773
      %v1775 = vlaneseq
      %v1776 = vshrl.u32 %v1775, 7
      %v1777 = vsub.s32 %v1774, %v1776
      %v1778 = vrot.slane %v1762, %v1777
      %v1780 = vunpack.c.l.s4 1966171168
      %v1781 = vunpack.c.0.s8 %v1780
      %v1782 = vlaneseq
      %v1783 = vshrl.u32 %v1782, 7
      %v1784 = vsub.s32 %v1781, %v1783
      %v1785 = vrot.slane %v1769, %v1784
      %v1787 = vunpack.c.l.s4 1966171168
      %v1788 = vunpack.c.0.s8 %v1787
      %v1789 = vlaneseq
      %v1790 = vshrl.u32 %v1789, 7
      %v1791 = vsub.s32 %v1788, %v1790
      %v1792 = vrot.slane %v1770, %v1791
      %v1794 = vunpack.c.l.s4 1966171168
      %v1795 = vunpack.c.0.s8 %v1794
      %v1796 = vlaneseq
      %v1797 = vshrl.u32 %v1796, 7
      %v1798 = vsub.s32 %v1795, %v1797
      %v1799 = vrot.slane %v1771, %v1798
      %v1800 = vcombine.high %v1778, %v1778
      %v1801 = vcombine.high %v1785, %v1785
      %v1802 = vcombine.high %v1792, %v1792
      %v1803 = vcombine.high %v1799, %v1799
      %v1804 = vcombine.high %v1398, %v1398
      %v1806 = vunpack.c.l.s4 1966171168
      %v1807 = vunpack.c.0.s8 %v1806
      %v1808 = vlaneseq
      %v1809 = vshrl.u32 %v1808, 7
      %v1810 = vsub.s32 %v1807, %v1809
      %v1811 = vrot.slane %v1398, %v1810
      %v1813 = vunpack.c.l.s4 1966171168
      %v1814 = vunpack.c.0.s8 %v1813
      %v1815 = vlaneseq
      %v1816 = vshrl.u32 %v1815, 7
      %v1817 = vsub.s32 %v1814, %v1816
      %v1818 = vrot.slane %v1804, %v1817
      %v1819 = vcombine.high %v1811, %v1811
      %v1820 = vcombine.high %v1818, %v1818
      %v1822 = vunpack.c.l.s4 1966171168
      %v1823 = vunpack.c.0.s8 %v1822
      %v1824 = vlaneseq
      %v1825 = vshrl.u32 %v1824, 7
      %v1826 = vsub.s32 %v1823, %v1825
      %v1827 = vrot.slane %v1811, %v1826
      %v1829 = vunpack.c.l.s4 1966171168
      %v1830 = vunpack.c.0.s8 %v1829
      %v1831 = vlaneseq
      %v1832 = vshrl.u32 %v1831, 7
      %v1833 = vsub.s32 %v1830, %v1832
      %v1834 = vrot.slane %v1818, %v1833
      %v1836 = vunpack.c.l.s4 1966171168
      %v1837 = vunpack.c.0.s8 %v1836
      %v1838 = vlaneseq
      %v1839 = vshrl.u32 %v1838, 7
      %v1840 = vsub.s32 %v1837, %v1839
      %v1841 = vrot.slane %v1819, %v1840
      %v1843 = vunpack.c.l.s4 1966171168
      %v1844 = vunpack.c.0.s8 %v1843
      %v1845 = vlaneseq
      %v1846 = vshrl.u32 %v1845, 7
      %v1847 = vsub.s32 %v1844, %v1846
      %v1848 = vrot.slane %v1820, %v1847
      %v1849 = vcombine.high %v1827, %v1827
      %v1850 = vcombine.high %v1834, %v1834
      %v1851 = vcombine.high %v1841, %v1841
      %v1852 = vcombine.high %v1848, %v1848
      %v1853 = vcombine.high %v1399, %v1399
      %v1855 = vunpack.c.l.s4 1966171168
      %v1856 = vunpack.c.0.s8 %v1855
      %v1857 = vlaneseq
      %v1858 = vshrl.u32 %v1857, 7
      %v1859 = vsub.s32 %v1856, %v1858
      %v1860 = vrot.slane %v1399, %v1859
      %v1862 = vunpack.c.l.s4 1966171168
      %v1863 = vunpack.c.0.s8 %v1862
      %v1864 = vlaneseq
      %v1865 = vshrl.u32 %v1864, 7
      %v1866 = vsub.s32 %v1863, %v1865
      %v1867 = vrot.slane %v1853, %v1866
      %v1868 = vcombine.high %v1860, %v1860
      %v1869 = vcombine.high %v1867, %v1867
      %v1871 = vunpack.c.l.s4 1966171168
      %v1872 = vunpack.c.0.s8 %v1871
      %v1873 = vlaneseq
      %v1874 = vshrl.u32 %v1873, 7
      %v1875 = vsub.s32 %v1872, %v1874
      %v1876 = vrot.slane %v1860, %v1875
      %v1878 = vunpack.c.l.s4 1966171168
      %v1879 = vunpack.c.0.s8 %v1878
      %v1880 = vlaneseq
      %v1881 = vshrl.u32 %v1880, 7
      %v1882 = vsub.s32 %v1879, %v1881
      %v1883 = vrot.slane %v1867, %v1882
      %v1885 = vunpack.c.l.s4 1966171168
      %v1886 = vunpack.c.0.s8 %v1885
      %v1887 = vlaneseq
      %v1888 = vshrl.u32 %v1887, 7
      %v1889 = vsub.s32 %v1886, %v1888
      %v1890 = vrot.slane %v1868, %v1889
      %v1892 = vunpack.c.l.s4 1966171168
      %v1893 = vunpack.c.0.s8 %v1892
      %v1894 = vlaneseq
      %v1895 = vshrl.u32 %v1894, 7
      %v1896 = vsub.s32 %v1893, %v1895
      %v1897 = vrot.slane %v1869, %v1896
      %v1898 = vcombine.high %v1876, %v1876
      %v1899 = vcombine.high %v1883, %v1883
      %v1900 = vcombine.high %v1890, %v1890
      %v1901 = vcombine.high %v1897, %v1897
      %v1903 = vunpack.c.l.s4 1966171168
      %v1904 = vunpack.c.0.s8 %v1903
      %v1905 = vlaneseq
      %v1906 = vshrl.u32 %v1905, 7
      %v1907 = vsub.s32 %v1904, %v1906
      %v1908 = vrot.slane %v1400, %v1907
      %v1910 = vunpack.c.l.s4 1966171168
      %v1911 = vunpack.c.0.s8 %v1910
      %v1912 = vlaneseq
      %v1913 = vshrl.u32 %v1912, 7
      %v1914 = vsub.s32 %v1911, %v1913
      %v1915 = vrot.slane %v1908, %v1914
      %v1916 = vcombine.low %v1435, %v1449
      %v1917 = vcombine.low %v1457, %v1459
      %v1918 = vcombine.low %v1442, %v1456
      %v1919 = vcombine.low %v1458, %v1460
      %v1921 = vunpack.c.l.s4 1966171168
      %v1922 = vunpack.c.0.s8 %v1921
      %v1923 = vlaneseq
      %v1924 = vshrl.u32 %v1923, 7
      %v1925 = vsub.s32 %v1922, %v1924
      %v1926 = vrot.slane %v1916, %v1925
      %v1928 = vunpack.c.l.s4 1966171168
      %v1929 = vunpack.c.0.s8 %v1928
      %v1930 = vlaneseq
      %v1931 = vshrl.u32 %v1930, 7
      %v1932 = vsub.s32 %v1929, %v1931
      %v1933 = vrot.slane %v1917, %v1932
      %v1935 = vunpack.c.l.s4 1966171168
      %v1936 = vunpack.c.0.s8 %v1935
      %v1937 = vlaneseq
      %v1938 = vshrl.u32 %v1937, 7
      %v1939 = vsub.s32 %v1936, %v1938
      %v1940 = vrot.slane %v1918, %v1939
      %v1942 = vunpack.c.l.s4 1966171168
      %v1943 = vunpack.c.0.s8 %v1942
      %v1944 = vlaneseq
      %v1945 = vshrl.u32 %v1944, 7
      %v1946 = vsub.s32 %v1943, %v1945
      %v1947 = vrot.slane %v1919, %v1946
      %v1948 = vcombine.low %v1926, %v1933
      %v1949 = vcombine.low %v1940, %v1947
      %v1951 = vunpack.c.l.s4 1966171168
      %v1952 = vunpack.c.0.s8 %v1951
      %v1953 = vlaneseq
      %v1954 = vshrl.u32 %v1953, 7
      %v1955 = vsub.s32 %v1952, %v1954
      %v1956 = vrot.slane %v1948, %v1955
      %v1958 = vunpack.c.l.s4 1966171168
      %v1959 = vunpack.c.0.s8 %v1958
      %v1960 = vlaneseq
      %v1961 = vshrl.u32 %v1960, 7
      %v1962 = vsub.s32 %v1959, %v1961
      %v1963 = vrot.slane %v1949, %v1962
      %v1964 = vcombine.low %v1956, %v1963
      %v1966 = vunpack.c.l.s4 1966171168
      %v1967 = vunpack.c.0.s8 %v1966
      %v1968 = vlaneseq
      %v1969 = vshrl.u32 %v1968, 7
      %v1970 = vsub.s32 %v1967, %v1969
      %v1971 = vrot.slane %v1484, %v1970
      %v1973 = vunpack.c.l.s4 1966171168
      %v1974 = vunpack.c.0.s8 %v1973
      %v1975 = vlaneseq
      %v1976 = vshrl.u32 %v1975, 7
      %v1977 = vsub.s32 %v1974, %v1976
      %v1978 = vrot.slane %v1971, %v1977
      %v1979 = vcombine.low %v1498, %v1506
      %v1980 = vcombine.low %v1508, %v1491
      %v1981 = vcombine.low %v1505, %v1507
      %v1982 = vcombine.low %v1509, %v1533
      %v1984 = vunpack.c.l.s4 1966171168
      %v1985 = vunpack.c.0.s8 %v1984
      %v1986 = vlaneseq
      %v1987 = vshrl.u32 %v1986, 7
      %v1988 = vsub.s32 %v1985, %v1987
      %v1989 = vrot.slane %v1979, %v1988
      %v1991 = vunpack.c.l.s4 1966171168
      %v1992 = vunpack.c.0.s8 %v1991
      %v1993 = vlaneseq
      %v1994 = vshrl.u32 %v1993, 7
      %v1995 = vsub.s32 %v1992, %v1994
      %v1996 = vrot.slane %v1980, %v1995
      %v1998 = vunpack.c.l.s4 1966171168
      %v1999 = vunpack.c.0.s8 %v1998
      %v2000 = vlaneseq
      %v2001 = vshrl.u32 %v2000, 7
      %v2002 = vsub.s32 %v1999, %v2001
      %v2003 = vrot.slane %v1981, %v2002
      %v2005 = vunpack.c.l.s4 1966171168
      %v2006 = vunpack.c.0.s8 %v2005
      %v2007 = vlaneseq
      %v2008 = vshrl.u32 %v2007, 7
      %v2009 = vsub.s32 %v2006, %v2008
      %v2010 = vrot.slane %v1982, %v2009
      %v2011 = vcombine.low %v1989, %v1996
      %v2012 = vcombine.low %v2003, %v2010
      %v2014 = vunpack.c.l.s4 1966171168
      %v2015 = vunpack.c.0.s8 %v2014
      %v2016 = vlaneseq
      %v2017 = vshrl.u32 %v2016, 7
      %v2018 = vsub.s32 %v2015, %v2017
      %v2019 = vrot.slane %v2011, %v2018
      %v2021 = vunpack.c.l.s4 1966171168
      %v2022 = vunpack.c.0.s8 %v2021
      %v2023 = vlaneseq
      %v2024 = vshrl.u32 %v2023, 7
      %v2025 = vsub.s32 %v2022, %v2024
      %v2026 = vrot.slane %v2012, %v2025
      %v2027 = vcombine.low %v2019, %v2026
      %v2029 = vunpack.c.l.s4 1966171168
      %v2030 = vunpack.c.0.s8 %v2029
      %v2031 = vlaneseq
      %v2032 = vshrl.u32 %v2031, 7
      %v2033 = vsub.s32 %v2030, %v2032
      %v2034 = vrot.slane %v1547, %v2033
      %v2036 = vunpack.c.l.s4 1966171168
      %v2037 = vunpack.c.0.s8 %v2036
      %v2038 = vlaneseq
      %v2039 = vshrl.u32 %v2038, 7
      %v2040 = vsub.s32 %v2037, %v2039
      %v2041 = vrot.slane %v2034, %v2040
      %v2042 = vcombine.low %v1555, %v1557
      %v2043 = vcombine.low %v1540, %v1554
      %v2044 = vcombine.low %v1556, %v1558
      %v2045 = vcombine.low %v1582, %v1596
      %v2047 = vunpack.c.l.s4 1966171168
      %v2048 = vunpack.c.0.s8 %v2047
      %v2049 = vlaneseq
      %v2050 = vshrl.u32 %v2049, 7
      %v2051 = vsub.s32 %v2048, %v2050
      %v2052 = vrot.slane %v2042, %v2051
      %v2054 = vunpack.c.l.s4 1966171168
      %v2055 = vunpack.c.0.s8 %v2054
      %v2056 = vlaneseq
      %v2057 = vshrl.u32 %v2056, 7
      %v2058 = vsub.s32 %v2055, %v2057
      %v2059 = vrot.slane %v2043, %v2058
      %v2061 = vunpack.c.l.s4 1966171168
      %v2062 = vunpack.c.0.s8 %v2061
      %v2063 = vlaneseq
      %v2064 = vshrl.u32 %v2063, 7
      %v2065 = vsub.s32 %v2062, %v2064
      %v2066 = vrot.slane %v2044, %v2065
      %v2068 = vunpack.c.l.s4 1966171168
      %v2069 = vunpack.c.0.s8 %v2068
      %v2070 = vlaneseq
      %v2071 = vshrl.u32 %v2070, 7
      %v2072 = vsub.s32 %v2069, %v2071
      %v2073 = vrot.slane %v2045, %v2072
      %v2074 = vcombine.low %v2052, %v2059
      %v2075 = vcombine.low %v2066, %v2073
      %v2077 = vunpack.c.l.s4 1966171168
      %v2078 = vunpack.c.0.s8 %v2077
      %v2079 = vlaneseq
      %v2080 = vshrl.u32 %v2079, 7
      %v2081 = vsub.s32 %v2078, %v2080
      %v2082 = vrot.slane %v2074, %v2081
      %v2084 = vunpack.c.l.s4 1966171168
      %v2085 = vunpack.c.0.s8 %v2084
      %v2086 = vlaneseq
      %v2087 = vshrl.u32 %v2086, 7
      %v2088 = vsub.s32 %v2085, %v2087
      %v2089 = vrot.slane %v2075, %v2088
      %v2090 = vcombine.low %v2082, %v2089
      %v2092 = vunpack.c.l.s4 1966171168
      %v2093 = vunpack.c.0.s8 %v2092
      %v2094 = vlaneseq
      %v2095 = vshrl.u32 %v2094, 7
      %v2096 = vsub.s32 %v2093, %v2095
      %v2097 = vrot.slane %v1604, %v2096
      %v2099 = vunpack.c.l.s4 1966171168
      %v2100 = vunpack.c.0.s8 %v2099
      %v2101 = vlaneseq
      %v2102 = vshrl.u32 %v2101, 7
      %v2103 = vsub.s32 %v2100, %v2102
      %v2104 = vrot.slane %v2097, %v2103
      %v2105 = vcombine.low %v1606, %v1589
      %v2106 = vcombine.low %v1603, %v1605
      %v2107 = vcombine.low %v1607, %v1631
      %v2108 = vcombine.low %v1645, %v1653
      %v2110 = vunpack.c.l.s4 1966171168
      %v2111 = vunpack.c.0.s8 %v2110
      %v2112 = vlaneseq
      %v2113 = vshrl.u32 %v2112, 7
      %v2114 = vsub.s32 %v2111, %v2113
      %v2115 = vrot.slane %v2105, %v2114
      %v2117 = vunpack.c.l.s4 1966171168
      %v2118 = vunpack.c.0.s8 %v2117
      %v2119 = vlaneseq
      %v2120 = vshrl.u32 %v2119, 7
      %v2121 = vsub.s32 %v2118, %v2120
      %v2122 = vrot.slane %v2106, %v2121
      %v2124 = vunpack.c.l.s4 1966171168
      %v2125 = vunpack.c.0.s8 %v2124
      %v2126 = vlaneseq
      %v2127 = vshrl.u32 %v2126, 7
      %v2128 = vsub.s32 %v2125, %v2127
      %v2129 = vrot.slane %v2107, %v2128
      %v2131 = vunpack.c.l.s4 1966171168
      %v2132 = vunpack.c.0.s8 %v2131
      %v2133 = vlaneseq
      %v2134 = vshrl.u32 %v2133, 7
      %v2135 = vsub.s32 %v2132, %v2134
      %v2136 = vrot.slane %v2108, %v2135
      %v2137 = vcombine.low %v2115, %v2122
      %v2138 = vcombine.low %v2129, %v2136
      %v2140 = vunpack.c.l.s4 1966171168
      %v2141 = vunpack.c.0.s8 %v2140
      %v2142 = vlaneseq
      %v2143 = vshrl.u32 %v2142, 7
      %v2144 = vsub.s32 %v2141, %v2143
      %v2145 = vrot.slane %v2137, %v2144
      %v2147 = vunpack.c.l.s4 1966171168
      %v2148 = vunpack.c.0.s8 %v2147
      %v2149 = vlaneseq
      %v2150 = vshrl.u32 %v2149, 7
      %v2151 = vsub.s32 %v2148, %v2150
      %v2152 = vrot.slane %v2138, %v2151
      %v2153 = vcombine.low %v2145, %v2152
      %v2155 = vunpack.c.l.s4 1966171168
      %v2156 = vunpack.c.0.s8 %v2155
      %v2157 = vlaneseq
      %v2158 = vshrl.u32 %v2157, 7
      %v2159 = vsub.s32 %v2156, %v2158
      %v2160 = vrot.slane %v1655, %v2159
      %v2162 = vunpack.c.l.s4 1966171168
      %v2163 = vunpack.c.0.s8 %v2162
      %v2164 = vlaneseq
      %v2165 = vshrl.u32 %v2164, 7
      %v2166 = vsub.s32 %v2163, %v2165
      %v2167 = vrot.slane %v2160, %v2166
      %v2168 = vcombine.low %v1638, %v1652
      %v2169 = vcombine.low %v1654, %v1656
      %v2170 = vcombine.low %v1680, %v1694
      %v2171 = vcombine.low %v1702, %v1704
      %v2173 = vunpack.c.l.s4 1966171168
      %v2174 = vunpack.c.0.s8 %v2173
      %v2175 = vlaneseq
      %v2176 = vshrl.u32 %v2175, 7
      %v2177 = vsub.s32 %v2174, %v2176
      %v2178 = vrot.slane %v2168, %v2177
      %v2180 = vunpack.c.l.s4 1966171168
      %v2181 = vunpack.c.0.s8 %v2180
      %v2182 = vlaneseq
      %v2183 = vshrl.u32 %v2182, 7
      %v2184 = vsub.s32 %v2181, %v2183
      %v2185 = vrot.slane %v2169, %v2184
      %v2187 = vunpack.c.l.s4 1966171168
      %v2188 = vunpack.c.0.s8 %v2187
      %v2189 = vlaneseq
      %v2190 = vshrl.u32 %v2189, 7
      %v2191 = vsub.s32 %v2188, %v2190
      %v2192 = vrot.slane %v2170, %v2191
      %v2194 = vunpack.c.l.s4 1966171168
      %v2195 = vunpack.c.0.s8 %v2194
      %v2196 = vlaneseq
      %v2197 = vshrl.u32 %v2196, 7
      %v2198 = vsub.s32 %v2195, %v2197
      %v2199 = vrot.slane %v2171, %v2198
      %v2200 = vcombine.low %v2178, %v2185
      %v2201 = vcombine.low %v2192, %v2199
      %v2203 = vunpack.c.l.s4 1966171168
      %v2204 = vunpack.c.0.s8 %v2203
      %v2205 = vlaneseq
      %v2206 = vshrl.u32 %v2205, 7
      %v2207 = vsub.s32 %v2204, %v2206
      %v2208 = vrot.slane %v2200, %v2207
      %v2210 = vunpack.c.l.s4 1966171168
      %v2211 = vunpack.c.0.s8 %v2210
      %v2212 = vlaneseq
      %v2213 = vshrl.u32 %v2212, 7
      %v2214 = vsub.s32 %v2211, %v2213
      %v2215 = vrot.slane %v2201, %v2214
      %v2216 = vcombine.low %v2208, %v2215
      %v2218 = vunpack.c.l.s4 1966171168
      %v2219 = vunpack.c.0.s8 %v2218
      %v2220 = vlaneseq
      %v2221 = vshrl.u32 %v2220, 7
      %v2222 = vsub.s32 %v2219, %v2221
      %v2223 = vrot.slane %v1687, %v2222
      %v2225 = vunpack.c.l.s4 1966171168
      %v2226 = vunpack.c.0.s8 %v2225
      %v2227 = vlaneseq
      %v2228 = vshrl.u32 %v2227, 7
      %v2229 = vsub.s32 %v2226, %v2228
      %v2230 = vrot.slane %v2223, %v2229
      %v2231 = vcombine.low %v1701, %v1703
      %v2232 = vcombine.low %v1705, %v1729
      %v2233 = vcombine.low %v1743, %v1751
      %v2234 = vcombine.low %v1753, %v1736
      %v2236 = vunpack.c.l.s4 1966171168
      %v2237 = vunpack.c.0.s8 %v2236
      %v2238 = vlaneseq
      %v2239 = vshrl.u32 %v2238, 7
      %v2240 = vsub.s32 %v2237, %v2239
      %v2241 = vrot.slane %v2231, %v2240
      %v2243 = vunpack.c.l.s4 1966171168
      %v2244 = vunpack.c.0.s8 %v2243
      %v2245 = vlaneseq
      %v2246 = vshrl.u32 %v2245, 7
      %v2247 = vsub.s32 %v2244, %v2246
      %v2248 = vrot.slane %v2232, %v2247
      %v2250 = vunpack.c.l.s4 1966171168
      %v2251 = vunpack.c.0.s8 %v2250
      %v2252 = vlaneseq
      %v2253 = vshrl.u32 %v2252, 7
      %v2254 = vsub.s32 %v2251, %v2253
      %v2255 = vrot.slane %v2233, %v2254
      %v2257 = vunpack.c.l.s4 1966171168
      %v2258 = vunpack.c.0.s8 %v2257
      %v2259 = vlaneseq
      %v2260 = vshrl.u32 %v2259, 7
      %v2261 = vsub.s32 %v2258, %v2260
      %v2262 = vrot.slane %v2234, %v2261
      %v2263 = vcombine.low %v2241, %v2248
      %v2264 = vcombine.low %v2255, %v2262
      %v2266 = vunpack.c.l.s4 1966171168
      %v2267 = vunpack.c.0.s8 %v2266
      %v2268 = vlaneseq
      %v2269 = vshrl.u32 %v2268, 7
      %v2270 = vsub.s32 %v2267, %v2269
      %v2271 = vrot.slane %v2263, %v2270
      %v2273 = vunpack.c.l.s4 1966171168
      %v2274 = vunpack.c.0.s8 %v2273
      %v2275 = vlaneseq
      %v2276 = vshrl.u32 %v2275, 7
      %v2277 = vsub.s32 %v2274, %v2276
      %v2278 = vrot.slane %v2264, %v2277
      %v2279 = vcombine.low %v2271, %v2278
      %v2281 = vunpack.c.l.s4 1966171168
      %v2282 = vunpack.c.0.s8 %v2281
      %v2283 = vlaneseq
      %v2284 = vshrl.u32 %v2283, 7
      %v2285 = vsub.s32 %v2282, %v2284
      %v2286 = vrot.slane %v1750, %v2285
      %v2288 = vunpack.c.l.s4 1966171168
      %v2289 = vunpack.c.0.s8 %v2288
      %v2290 = vlaneseq
      %v2291 = vshrl.u32 %v2290, 7
      %v2292 = vsub.s32 %v2289, %v2291
      %v2293 = vrot.slane %v2286, %v2292
      %v2294 = vcombine.low %v1752, %v1754
      %v2295 = vcombine.low %v1778, %v1792
      %v2296 = vcombine.low %v1800, %v1802
      %v2297 = vcombine.low %v1785, %v1799
      %v2299 = vunpack.c.l.s4 1966171168
      %v2300 = vunpack.c.0.s8 %v2299
      %v2301 = vlaneseq
      %v2302 = vshrl.u32 %v2301, 7
      %v2303 = vsub.s32 %v2300, %v2302
      %v2304 = vrot.slane %v2294, %v2303
      %v2306 = vunpack.c.l.s4 1966171168
      %v2307 = vunpack.c.0.s8 %v2306
      %v2308 = vlaneseq
      %v2309 = vshrl.u32 %v2308, 7
      %v2310 = vsub.s32 %v2307, %v2309
      %v2311 = vrot.slane %v2295, %v2310
      %v2313 = vunpack.c.l.s4 1966171168
      %v2314 = vunpack.c.0.s8 %v2313
      %v2315 = vlaneseq
      %v2316 = vshrl.u32 %v2315, 7
      %v2317 = vsub.s32 %v2314, %v2316
      %v2318 = vrot.slane %v2296, %v2317
      %v2320 = vunpack.c.l.s4 1966171168
      %v2321 = vunpack.c.0.s8 %v2320
      %v2322 = vlaneseq
      %v2323 = vshrl.u32 %v2322, 7
      %v2324 = vsub.s32 %v2321, %v2323
      %v2325 = vrot.slane %v2297, %v2324
      %v2326 = vcombine.low %v2304, %v2311
      %v2327 = vcombine.low %v2318, %v2325
      %v2329 = vunpack.c.l.s4 1966171168
      %v2330 = vunpack.c.0.s8 %v2329
      %v2331 = vlaneseq
      %v2332 = vshrl.u32 %v2331, 7
      %v2333 = vsub.s32 %v2330, %v2332
      %v2334 = vrot.slane %v2326, %v2333
      %v2336 = vunpack.c.l.s4 1966171168
      %v2337 = vunpack.c.0.s8 %v2336
      %v2338 = vlaneseq
      %v2339 = vshrl.u32 %v2338, 7
      %v2340 = vsub.s32 %v2337, %v2339
      %v2341 = vrot.slane %v2327, %v2340
      %v2342 = vcombine.low %v2334, %v2341
      %v2344 = vunpack.c.l.s4 1966171168
      %v2345 = vunpack.c.0.s8 %v2344
      %v2346 = vlaneseq
      %v2347 = vshrl.u32 %v2346, 7
      %v2348 = vsub.s32 %v2345, %v2347
      %v2349 = vrot.slane %v1801, %v2348
      %v2351 = vunpack.c.l.s4 1966171168
      %v2352 = vunpack.c.0.s8 %v2351
      %v2353 = vlaneseq
      %v2354 = vshrl.u32 %v2353, 7
      %v2355 = vsub.s32 %v2352, %v2354
      %v2356 = vrot.slane %v2349, %v2355
      %v2357 = vcombine.low %v1803, %v1827
      %v2358 = vcombine.low %v1841, %v1849
      %v2359 = vcombine.low %v1851, %v1834
      %v2360 = vcombine.low %v1848, %v1850
      %v2362 = vunpack.c.l.s4 1966171168
      %v2363 = vunpack.c.0.s8 %v2362
      %v2364 = vlaneseq
      %v2365 = vshrl.u32 %v2364, 7
      %v2366 = vsub.s32 %v2363, %v2365
      %v2367 = vrot.slane %v2357, %v2366
      %v2369 = vunpack.c.l.s4 1966171168
      %v2370 = vunpack.c.0.s8 %v2369
      %v2371 = vlaneseq
      %v2372 = vshrl.u32 %v2371, 7
      %v2373 = vsub.s32 %v2370, %v2372
      %v2374 = vrot.slane %v2358, %v2373
      %v2376 = vunpack.c.l.s4 1966171168
      %v2377 = vunpack.c.0.s8 %v2376
      %v2378 = vlaneseq
      %v2379 = vshrl.u32 %v2378, 7
      %v2380 = vsub.s32 %v2377, %v2379
      %v2381 = vrot.slane %v2359, %v2380
      %v2383 = vunpack.c.l.s4 1966171168
      %v2384 = vunpack.c.0.s8 %v2383
      %v2385 = vlaneseq
      %v2386 = vshrl.u32 %v2385, 7
      %v2387 = vsub.s32 %v2384, %v2386
      %v2388 = vrot.slane %v2360, %v2387
      %v2389 = vcombine.low %v2367, %v2374
      %v2390 = vcombine.low %v2381, %v2388
      %v2392 = vunpack.c.l.s4 1966171168
      %v2393 = vunpack.c.0.s8 %v2392
      %v2394 = vlaneseq
      %v2395 = vshrl.u32 %v2394, 7
      %v2396 = vsub.s32 %v2393, %v2395
      %v2397 = vrot.slane %v2389, %v2396
      %v2399 = vunpack.c.l.s4 1966171168
      %v2400 = vunpack.c.0.s8 %v2399
      %v2401 = vlaneseq
      %v2402 = vshrl.u32 %v2401, 7
      %v2403 = vsub.s32 %v2400, %v2402
      %v2404 = vrot.slane %v2390, %v2403
      %v2405 = vcombine.low %v2397, %v2404
      %v2407 = vunpack.c.l.s4 1966171168
      %v2408 = vunpack.c.0.s8 %v2407
      %v2409 = vlaneseq
      %v2410 = vshrl.u32 %v2409, 7
      %v2411 = vsub.s32 %v2408, %v2410
      %v2412 = vrot.slane %v1852, %v2411
      %v2414 = vunpack.c.l.s4 1966171168
      %v2415 = vunpack.c.0.s8 %v2414
      %v2416 = vlaneseq
      %v2417 = vshrl.u32 %v2416, 7
      %v2418 = vsub.s32 %v2415, %v2417
      %v2419 = vrot.slane %v2412, %v2418
      %v2420 = vcombine.low %v1876, %v1890
      %v2421 = vcombine.low %v1898, %v1900
      %v2422 = vcombine.low %v1883, %v1897
      %v2423 = vcombine.low %v1899, %v1901
      %v2425 = vunpack.c.l.s4 1966171168
      %v2426 = vunpack.c.0.s8 %v2425
      %v2427 = vlaneseq
      %v2428 = vshrl.u32 %v2427, 7
      %v2429 = vsub.s32 %v2426, %v2428
      %v2430 = vrot.slane %v2420, %v2429
      %v2432 = vunpack.c.l.s4 1966171168
      %v2433 = vunpack.c.0.s8 %v2432
      %v2434 = vlaneseq
      %v2435 = vshrl.u32 %v2434, 7
      %v2436 = vsub.s32 %v2433, %v2435
      %v2437 = vrot.slane %v2421, %v2436
      %v2439 = vunpack.c.l.s4 1966171168
      %v2440 = vunpack.c.0.s8 %v2439
      %v2441 = vlaneseq
      %v2442 = vshrl.u32 %v2441, 7
      %v2443 = vsub.s32 %v2440, %v2442
      %v2444 = vrot.slane %v2422, %v2443
      %v2446 = vunpack.c.l.s4 1966171168
      %v2447 = vunpack.c.0.s8 %v2446
      %v2448 = vlaneseq
      %v2449 = vshrl.u32 %v2448, 7
      %v2450 = vsub.s32 %v2447, %v2449
      %v2451 = vrot.slane %v2423, %v2450
      %v2452 = vcombine.low %v2430, %v2437
      %v2453 = vcombine.low %v2444, %v2451
      %v2455 = vunpack.c.l.s4 1966171168
      %v2456 = vunpack.c.0.s8 %v2455
      %v2457 = vlaneseq
      %v2458 = vshrl.u32 %v2457, 7
      %v2459 = vsub.s32 %v2456, %v2458
      %v2460 = vrot.slane %v2452, %v2459
      %v2462 = vunpack.c.l.s4 1966171168
      %v2463 = vunpack.c.0.s8 %v2462
      %v2464 = vlaneseq
      %v2465 = vshrl.u32 %v2464, 7
      %v2466 = vsub.s32 %v2463, %v2465
      %v2467 = vrot.slane %v2453, %v2466
      %v2468 = vcombine.low %v2460, %v2467
      %v2470 = vunpack.c.l.s4 1966171168
      %v2471 = vunpack.c.0.s8 %v2470
      %v2472 = vlaneseq
      %v2473 = vshrl.u32 %v2472, 7
      %v2474 = vsub.s32 %v2471, %v2473
      %v2475 = vrot.slane %v1915, %v2474
      %v2477 = vunpack.c.l.s4 1966171168
      %v2478 = vunpack.c.0.s8 %v2477
      %v2479 = vlaneseq
      %v2480 = vshrl.u32 %v2479, 7
      %v2481 = vsub.s32 %v2478, %v2480
      %v2482 = vrot.slane %v2475, %v2481
      %v2501 = vpack.c.bf16 %v1978, %v1964
      %v2502 = vpack.c.bf16 %v2041, %v2027
      %v2503 = vpack.c.bf16 %v2104, %v2090
      %v2504 = vpack.c.bf16 %v2167, %v2153
      %v2505 = vpack.c.bf16 %v2230, %v2216
      %v2506 = vpack.c.bf16 %v2293, %v2279
      %v2507 = vpack.c.bf16 %v2356, %v2342
      %v2508 = vpack.c.bf16 %v2419, %v2405
      %v2509 = vpack.c.bf16 %v2482, %v2468
      %v2519 = vunpack.c.l.b16 %v2501
      %v2520 = vunpack.c.h.b16 %v2501
      %v2521 = vunpack.c.l.b16 %v2502
      %v2522 = vunpack.c.h.b16 %v2502
      %v2523 = vunpack.c.l.b16 %v2503
      %v2524 = vunpack.c.h.b16 %v2503
      %v2525 = vunpack.c.l.b16 %v2504
      %v2526 = vunpack.c.h.b16 %v2504
      %v2527 = vunpack.c.l.b16 %v2505
      %v2528 = vunpack.c.h.b16 %v2505
      %v2529 = vunpack.c.l.b16 %v2506
      %v2530 = vunpack.c.h.b16 %v2506
      %v2531 = vunpack.c.l.b16 %v2507
      %v2532 = vunpack.c.h.b16 %v2507
      %v2533 = vunpack.c.l.b16 %v2508
      %v2534 = vunpack.c.h.b16 %v2508
      %v2535 = vunpack.c.l.b16 %v2509
      %v2536 = vunpack.c.h.b16 %v2509
      %v2537 = vpack.c.b16 %v2519, %v2519
      %v2538 = vpack.c.b16 %v2520, %v2520
      %v2539 = vpack.c.b16 %v2521, %v2521
      %v2540 = vpack.c.b16 %v2522, %v2522
      %v2541 = vpack.c.b16 %v2523, %v2523
      %v2542 = vpack.c.b16 %v2524, %v2524
      %v2543 = vpack.c.b16 %v2525, %v2525
      %v2544 = vpack.c.b16 %v2526, %v2526
      %v2545 = vpack.c.b16 %v2527, %v2527
      %v2546 = vpack.c.b16 %v2528, %v2528
      %v2547 = vpack.c.b16 %v2529, %v2529
      %v2548 = vpack.c.b16 %v2530, %v2530
      %v2549 = vpack.c.b16 %v2531, %v2531
      %v2550 = vpack.c.b16 %v2532, %v2532
      %v2551 = vpack.c.b16 %v2533, %v2533
      %v2552 = vpack.c.b16 %v2534, %v2534
      %v2553 = vpack.c.b16 %v2535, %v2535
      %v2554 = vpack.c.b16 %v2536, %v2536
      %vm2573 = vcmask 125952
      %2574 = vst.msk [vmem:[%s221] sm:$0xf] %vm2573, %v2537
      %vm2575 = vcmask 122880
      %vm2576 = vsmask.f32 256
      %vm2577 = vmand %vm2575, %vm2576
      %v2578 = vld [vmem:[%s221 + $0x4] sm:$0x1]
      %v2579 = vsel %vm2577, %v2538, %v2578
      %2580 = vst [vmem:[%s221 + $0x4] sm:$0x1] %v2579
      %2581 = vst.msk [vmem:[%s221 + $0x8] sm:$0xf] %vm2573, %v2539
      %v2582 = vld [vmem:[%s221 + $0xc] sm:$0x1]
      %v2583 = vsel %vm2577, %v2540, %v2582
      %2584 = vst [vmem:[%s221 + $0xc] sm:$0x1] %v2583
      %2585 = vst.msk [vmem:[%s221 + $0x10] sm:$0xf] %vm2573, %v2541
      %v2586 = vld [vmem:[%s221 + $0x14] sm:$0x1]
      %v2587 = vsel %vm2577, %v2542, %v2586
      %2588 = vst [vmem:[%s221 + $0x14] sm:$0x1] %v2587
      %2589 = vst.msk [vmem:[%s221 + $0x18] sm:$0xf] %vm2573, %v2543
      %v2590 = vld [vmem:[%s221 + $0x1c] sm:$0x1]
      %v2591 = vsel %vm2577, %v2544, %v2590
      %2592 = vst [vmem:[%s221 + $0x1c] sm:$0x1] %v2591
      %2593 = vst.msk [vmem:[%s221 + $0x20] sm:$0xf] %vm2573, %v2545
      %v2594 = vld [vmem:[%s221 + $0x24] sm:$0x1]
      %v2595 = vsel %vm2577, %v2546, %v2594
      %2596 = vst [vmem:[%s221 + $0x24] sm:$0x1] %v2595
      %2597 = vst.msk [vmem:[%s221 + $0x28] sm:$0xf] %vm2573, %v2547
      %v2598 = vld [vmem:[%s221 + $0x2c] sm:$0x1]
      %v2599 = vsel %vm2577, %v2548, %v2598
      %2600 = vst [vmem:[%s221 + $0x2c] sm:$0x1] %v2599
      %2601 = vst.msk [vmem:[%s221 + $0x30] sm:$0xf] %vm2573, %v2549
      %v2602 = vld [vmem:[%s221 + $0x34] sm:$0x1]
      %v2603 = vsel %vm2577, %v2550, %v2602
      %2604 = vst [vmem:[%s221 + $0x34] sm:$0x1] %v2603
      %2605 = vst.msk [vmem:[%s221 + $0x38] sm:$0xf] %vm2573, %v2551
      %v2606 = vld [vmem:[%s221 + $0x3c] sm:$0x1]
      %v2607 = vsel %vm2577, %v2552, %v2606
      %2608 = vst [vmem:[%s221 + $0x3c] sm:$0x1] %v2607
      %2609 = vst.msk [vmem:[%s221 + $0x40] sm:$0xf] %vm2573, %v2553
      %v2610 = vld [vmem:[%s221 + $0x44] sm:$0x1]
      %v2611 = vsel %vm2577, %v2554, %v2610
      %2612 = vst [vmem:[%s221 + $0x44] sm:$0x1] %v2611
      %s2613 = smul.u32 9, %s20
      %p2614 = scmp.lt.s32.totalorder %s19, 1
      %s2615 = scalar_select %p2614, %s19, 1
      %p2616 = scmp.lt.s32.totalorder %s2613, 8
      %s2617 = scalar_select %p2616, %s2613, 8
      %s2618 = smul.addr %s2617, 2
      %s2619 = smul.addr %s2615, 18
      %s2620 = sadd.s32 %s2618, %s2619
      %s2621 = smul.addr %s2620, 4
      %s2622 = scalar_lea.vmem %s4, %s2621
      // Predicated region
      $region37: #{discriminator_forward.4} parent=35 // pred_check
        %p2623 = pneg %p136
      $region38: #{discriminator_forward.4} parent=35 // pred_check_branch
        %2625 = sbr.rel (%p2623) target = $region40
      $region39: #{discriminator_forward.4} parent=35 // pred_region
        %s2626 = smul.u32 9, %s20
      $region40: #{discriminator_forward.4} parent=35 // pred_fallthru
        _
    $region36: #{discriminator_forward.4} parent=5 // pred_fallthru
      _
    %p2627 = scmp.le.s32.totalorder 2, %s10
    // Predicated region
    $region41: #{discriminator_forward.4} parent=5 // pred_check
      %p2628 = pneg %p2627
    $region42: #{discriminator_forward.4} parent=5 // pred_check_branch
      %2630 = sbr.rel (%p2628) target = $region44
    $region43: #{discriminator_forward.4} parent=5 // pred_region
      %s2631 = ssub.s32 %s10, 2
      // Predicated region
      $region45: #{discriminator_forward.4} parent=43 // pred_check
        %p2632 = pneg %p142
      $region46: #{discriminator_forward.4} parent=43 // pred_check_branch
        %2634 = sbr.rel (%p2632) target = $region48
      $region47: #{discriminator_forward.4} parent=43 // pred_region
        %s2635 = smul.u32 9, %s22
        %p2636 = scmp.lt.s32.totalorder %s21, 1
        %s2637 = scalar_select %p2636, %s21, 1
        %p2638 = scmp.lt.s32.totalorder %s2635, 8
        %s2639 = scalar_select %p2638, %s2635, 8
        %s2640 = smul.addr %s2639, 2
        %s2641 = smul.addr %s2637, 18
        %s2642 = sadd.s32 %s2640, %s2641
        %s2643 = smul.addr %s2642, 4
        %s2644 = scalar_lea.vmem %s4, %s2643
      $region48: #{discriminator_forward.4} parent=43 // pred_fallthru
        _
    $region44: #{discriminator_forward.4} parent=5 // pred_fallthru
      _
  $region6: #{discriminator_forward.4} parent=0 // loop_footer
    %s14 = sadd.s32 1, %s10
  $region7: #{discriminator_forward.4} parent=0 // loop_footer_branch
    %9 = sbr.rel target = $region3
  $region8: #{discriminator_forward.4} parent=0 // loop_exit
    _

// kernel: discriminator_forward.5
$region0: #{discriminator_forward.5}
  #allocation0 [shape = 'u32[]', space=smem, size = 0x4, offset = 0x4, fixed_abs, tag = 'smem constant byte address 0x4 - core index']
  #allocation1 [shape = 'u32[144,128]{1,0:T(1,128)}', space=vmem, size = 0x12000, scoped, tag = 'internal scratch']
  %s0 = inlined_call_operand.vmem [shape: bf16[2,6,6,64], index: 0, kind: input, shape index: {}]
  %s1 = inlined_call_operand.vmem [shape: bf16[256,32], index: 1, kind: input, shape index: {}]
  %s2 = inlined_call_operand.vmem [shape: f32[1,32], index: 2, kind: input, shape index: {}]
  %s3 = inlined_call_operand.vmem [shape: f32[1,32], index: 3, kind: input, shape index: {}]
  %s4 = inlined_call_operand.vmem [shape: bf16[2,5,5,32], index: 4, kind: output, shape index: {}]
  %s5 = sld [smem:[#allocation0]]
  $region49: #{discriminator_forward.5} parent=0
    _
  %s7 = ssub.s32 1, %s5
  %s8 = scalar_select 0, %s7, %s5
  loop: start=0, step=1, limit=4
  $region2: #{discriminator_forward.5} parent=0 // loop_pre_header
    _
  $region3: #{discriminator_forward.5} parent=0 // loop_header
    %s10 = sphi 0, %s14
    %p11 = scmp.ge.s32.totalorder %s10, 4
    %s17 = sphi 0, %s29
    %s18 = sphi 0, %s25
    %s19 = sphi 0, %s17
    %s20 = sphi 0, %s18
    %s21 = sphi 0, %s19
    %s22 = sphi 0, %s20
    %s32 = sphi 0, %s34
    %s35 = sphi 0, %s32
    %s36 = sphi 0, %s35
    %s52 = sphi 0, %s36
    %s56 = sphi 0, %s56
    %s58 = sphi 0, %s56
    %s59 = sphi 0, %s58
    %s73 = sphi 0, %s59
    %s77 = sphi 0, %s77
    %s79 = sphi 0, %s77
    %s80 = sphi 0, %s79
    %s94 = sphi 0, %s80
    %s98 = sphi 0, %s98
    %s100 = sphi 0, %s98
    %s101 = sphi 0, %s100
    %s115 = sphi 0, %s101
    %s123 = sphi 0, %s125
    %s126 = sphi 0, %s123
    %s127 = sphi 0, %s126
    %s143 = sphi 0, %s127
  $region4: #{discriminator_forward.5} parent=0 // loop_header_branch
    %13 = sbr.rel (%p11) target = $region8
  $region5: #{discriminator_forward.5} parent=0 // loop_body
    %s15 = ssub.s32 %s10, 1
    %s16 = ssub.s32 %s10, 2
    %s23 = sadd.s32 1, %s18
    %p24 = scmp.ge.s32.totalorder %s23, 1
    %s25 = scalar_select %p24, 0, %s23
    %s26 = sadd.s32 1, %s17
    %s27 = scalar_select %p24, %s26, %s17
    %p28 = scmp.ge.s32.totalorder %s27, 2
    %s29 = scalar_select %p28, 0, %s27
    %s30 = ssub.s32 %s17, %s29
    %p31 = scmp.eq.s32.totalorder %s30, 0
    %s33 = sadd.s32 %s32, 1
    %s34 = scalar_select %p31, %s32, %s33
    %p37 = pneg %p31
    %p38 = scmp.eq.s32.totalorder %s10, 1
    %p39 = por %p37, %p38
    %p40 = scmp.ne.s32.totalorder %s32, %s35
    %p41 = scmp.eq.s32.totalorder %s10, 0
    %p42 = por %p40, %p41
    %p43 = scmp.ne.s32.totalorder %s32, %s35
    %p44 = scmp.eq.s32.totalorder %s15, 1
    %p45 = por %p43, %p44
    %p46 = scmp.ne.s32.totalorder %s35, %s36
    %p47 = scmp.eq.s32.totalorder %s15, 0
    %p48 = por %p46, %p47
    %p49 = scmp.ne.s32.totalorder %s35, %s36
    %p50 = scmp.eq.s32.totalorder %s16, 1
    %p51 = por %p49, %p50
    %p53 = scmp.ne.s32.totalorder %s36, %s52
    %p54 = scmp.eq.s32.totalorder %s16, 0
    %p55 = por %p53, %p54
    %s57 = sadd.s32 %s56, 1
    %p60 = scmp.eq.s32.totalorder %s10, 1
    %p61 = scmp.ne.s32.totalorder %s56, %s58
    %p62 = scmp.eq.s32.totalorder %s10, 0
    %p63 = por %p61, %p62
    %p64 = scmp.ne.s32.totalorder %s56, %s58
    %p65 = scmp.eq.s32.totalorder %s15, 1
    %p66 = por %p64, %p65
    %p67 = scmp.ne.s32.totalorder %s58, %s59
    %p68 = scmp.eq.s32.totalorder %s15, 0
    %p69 = por %p67, %p68
    %p70 = scmp.ne.s32.totalorder %s58, %s59
    %p71 = scmp.eq.s32.totalorder %s16, 1
    %p72 = por %p70, %p71
    %p74 = scmp.ne.s32.totalorder %s59, %s73
    %p75 = scmp.eq.s32.totalorder %s16, 0
    %p76 = por %p74, %p75
    %s78 = sadd.s32 %s77, 1
    %p81 = scmp.eq.s32.totalorder %s10, 1
    %p82 = scmp.ne.s32.totalorder %s77, %s79
    %p83 = scmp.eq.s32.totalorder %s10, 0
    %p84 = por %p82, %p83
    %p85 = scmp.ne.s32.totalorder %s77, %s79
    %p86 = scmp.eq.s32.totalorder %s15, 1
    %p87 = por %p85, %p86
    %p88 = scmp.ne.s32.totalorder %s79, %s80
    %p89 = scmp.eq.s32.totalorder %s15, 0
    %p90 = por %p88, %p89
    %p91 = scmp.ne.s32.totalorder %s79, %s80
    %p92 = scmp.eq.s32.totalorder %s16, 1
    %p93 = por %p91, %p92
    %p95 = scmp.ne.s32.totalorder %s80, %s94
    %p96 = scmp.eq.s32.totalorder %s16, 0
    %p97 = por %p95, %p96
    %s99 = sadd.s32 %s98, 1
    %p102 = scmp.eq.s32.totalorder %s10, 1
    %p103 = scmp.ne.s32.totalorder %s98, %s100
    %p104 = scmp.eq.s32.totalorder %s10, 0
    %p105 = por %p103, %p104
    %p106 = scmp.ne.s32.totalorder %s98, %s100
    %p107 = scmp.eq.s32.totalorder %s15, 1
    %p108 = por %p106, %p107
    %p109 = scmp.ne.s32.totalorder %s100, %s101
    %p110 = scmp.eq.s32.totalorder %s15, 0
    %p111 = por %p109, %p110
    %p112 = scmp.ne.s32.totalorder %s100, %s101
    %p113 = scmp.eq.s32.totalorder %s16, 1
    %p114 = por %p112, %p113
    %p116 = scmp.ne.s32.totalorder %s101, %s115
    %p117 = scmp.eq.s32.totalorder %s16, 0
    %p118 = por %p116, %p117
    %s119 = ssub.s32 %s17, %s29
    %s120 = ssub.s32 %s18, %s25
    %s121 = sor.u32 %s119, %s120
    %p122 = scmp.eq.s32.totalorder %s121, 0
    %s124 = sadd.s32 %s123, 1
    %s125 = scalar_select %p122, %s123, %s124
    %p128 = pneg %p122
    %p129 = scmp.eq.s32.totalorder %s10, 1
    %p130 = por %p128, %p129
    %p131 = scmp.ne.s32.totalorder %s123, %s126
    %p132 = scmp.eq.s32.totalorder %s10, 0
    %p133 = por %p131, %p132
    %p134 = scmp.ne.s32.totalorder %s123, %s126
    %p135 = scmp.eq.s32.totalorder %s15, 1
    %p136 = por %p134, %p135
    %p137 = scmp.ne.s32.totalorder %s126, %s127
    %p138 = scmp.eq.s32.totalorder %s15, 0
    %p139 = por %p137, %p138
    %p140 = scmp.ne.s32.totalorder %s126, %s127
    %p141 = scmp.eq.s32.totalorder %s16, 1
    %p142 = por %p140, %p141
    %p144 = scmp.ne.s32.totalorder %s127, %s143
    %p145 = scmp.eq.s32.totalorder %s16, 0
    %p146 = por %p144, %p145
    %p147 = scmp.le.s32.totalorder 1, %s10
    %p148 = scmp.lt.s32.totalorder %s10, 3
    %p149 = pnand %p147, %p148
    %p150 = pneg %p149
    // Predicated region
    $region9: #{discriminator_forward.5} parent=5 // pred_check
      _
    $region10: #{discriminator_forward.5} parent=5 // pred_check_branch
      %152 = sbr.rel (%p149) target = $region12
    $region11: #{discriminator_forward.5} parent=5 // pred_region
      %s153 = ssub.s32 %s10, 1
      // Predicated region
      $region13: #{discriminator_forward.5} parent=11 // pred_check
        %p154 = pneg %p69
      $region14: #{discriminator_forward.5} parent=11 // pred_check_branch
        %156 = sbr.rel (%p154) target = $region16
      $region15: #{discriminator_forward.5} parent=11 // pred_region
        _
      $region16: #{discriminator_forward.5} parent=11 // pred_fallthru
        _
      // Predicated region
      $region17: #{discriminator_forward.5} parent=11 // pred_check
        %p157 = pneg %p90
      $region18: #{discriminator_forward.5} parent=11 // pred_check_branch
        %159 = sbr.rel (%p157) target = $region20
      $region19: #{discriminator_forward.5} parent=11 // pred_region
        _
      $region20: #{discriminator_forward.5} parent=11 // pred_fallthru
        _
      // Predicated region
      $region21: #{discriminator_forward.5} parent=11 // pred_check
        %p160 = pneg %p111
      $region22: #{discriminator_forward.5} parent=11 // pred_check_branch
        %162 = sbr.rel (%p160) target = $region24
      $region23: #{discriminator_forward.5} parent=11 // pred_region
        _
      $region24: #{discriminator_forward.5} parent=11 // pred_fallthru
        _
    $region12: #{discriminator_forward.5} parent=5 // pred_fallthru
      _
    %p163 = scmp.lt.s32.totalorder %s10, 2
    // Predicated region
    $region25: #{discriminator_forward.5} parent=5 // pred_check
      %p164 = pneg %p163
    $region26: #{discriminator_forward.5} parent=5 // pred_check_branch
      %166 = sbr.rel (%p164) target = $region28
    $region27: #{discriminator_forward.5} parent=5 // pred_region
      // Predicated region
      $region29: #{discriminator_forward.5} parent=27 // pred_check
        %p167 = pneg %p42
      $region30: #{discriminator_forward.5} parent=27 // pred_check_branch
        %169 = sbr.rel (%p167) target = $region32
      $region31: #{discriminator_forward.5} parent=27 // pred_region
        %p170 = scmp.lt.s32.totalorder %s17, 1
        %s171 = scalar_select %p170, %s17, 1
        %s172 = smul.addr %s171, 6
        %s173 = smul.addr %s172, 4
        %s174 = scalar_lea.vmem %s0, %s173
      $region32: #{discriminator_forward.5} parent=27 // pred_fallthru
        _
    $region28: #{discriminator_forward.5} parent=5 // pred_fallthru
      _
    %p175 = scmp.le.s32.totalorder 1, %s10
    %p176 = scmp.lt.s32.totalorder %s10, 3
    %p177 = pnand %p175, %p176
    %p178 = pneg %p177
    // Predicated region
    $region33: #{discriminator_forward.5} parent=5 // pred_check
      _
    $region34: #{discriminator_forward.5} parent=5 // pred_check_branch
      %180 = sbr.rel (%p177) target = $region36
    $region35: #{discriminator_forward.5} parent=5 // pred_region
      %s181 = ssub.s32 %s10, 1
      %p182 = scmp.lt.s32.totalorder %s19, 1
      %s183 = scalar_select %p182, %s19, 1
      %s184 = smul.addr %s183, 6
      %s185 = smul.addr %s184, 4
      %s186 = scalar_lea.vmem %s0, %s185
      %p187 = pneg %p48
      %p188 = pneg %p45
      %p189 = pneg %p69
      %p190 = pneg %p66
      %p191 = pneg %p90
      %p192 = pneg %p87
      %p193 = pneg %p111
      %p194 = pneg %p108
      %p195 = pneg %p139
      %p196 = pneg %p136
      %s197 = smul.u32 5, %s20
      %p198 = scmp.lt.s32.totalorder %s19, 1
      %s199 = scalar_select %p198, %s19, 1
      %p200 = scmp.lt.s32.totalorder %s197, 4
      %s201 = scalar_select %p200, %s197, 4
      %s202 = smul.addr %s199, 5
      %s203 = sadd.s32 %s201, %s202
      %s204 = smul.addr %s203, 4
      %s205 = scalar_lea.vmem %s4, %s204
      %p206 = scmp.lt.s32.totalorder %s19, 1
      %s207 = scalar_select %p206, %s19, 1
      %s208 = smul.addr %s207, 6
      %s209 = smul.addr %s208, 4
      %s210 = scalar_lea.vmem %s0, %s209
      %s211 = smul.u32 5, %s20
      %p212 = scmp.lt.s32.totalorder %s19, 1
      %s213 = scalar_select %p212, %s19, 1
      %p214 = scmp.lt.s32.totalorder %s211, 4
      %s215 = scalar_select %p214, %s211, 4
      %s216 = smul.addr %s213, 5
      %s217 = sadd.s32 %s215, %s216
      %s218 = smul.addr %s217, 4
      %s219 = scalar_lea.vmem %s4, %s218
      %s220 = smul.u32 5, %s20
      %s222 = smul.u32 %s20, 5
      %s223 = smul.addr %s222, 4
      %s224 = scalar_lea.vmem %s210, %s223
      %v225 = vld [vmem:[%s224] sm:$0x7]
      %v226 = vld [vmem:[%s224 + $0x4] sm:$0x7]
      %v227 = vld [vmem:[%s224 + $0x8] sm:$0x7]
      %v228 = vld [vmem:[%s224 + $0xc] sm:$0x7]
      %v229 = vld [vmem:[%s224 + $0x10] sm:$0x7]
      %v230 = vld [vmem:[%s224 + $0x14] sm:$0x7]
      %v231 = vld [vmem:[%s1] sm:$0xf]
      %v232 = vld [vmem:[%s1 + $0x4] sm:$0xf]
      %v233 = vld [vmem:[%s1 + $0x8] sm:$0xf]
      %v234 = vld [vmem:[%s1 + $0xc] sm:$0xf]
      %v235 = vld [vmem:[%s1 + $0x10] sm:$0xf]
      %v236 = vld [vmem:[%s1 + $0x14] sm:$0xf]
      %v237 = vld [vmem:[%s1 + $0x18] sm:$0xf]
      %v238 = vld [vmem:[%s1 + $0x1c] sm:$0xf]
      %v239 = vld [vmem:[%s1 + $0x20] sm:$0xf]
      %v240 = vld [vmem:[%s1 + $0x24] sm:$0xf]
      %v241 = vld [vmem:[%s1 + $0x28] sm:$0xf]
      %v242 = vld [vmem:[%s1 + $0x2c] sm:$0xf]
      %v243 = vld [vmem:[%s1 + $0x30] sm:$0xf]
      %v244 = vld [vmem:[%s1 + $0x34] sm:$0xf]
      %v245 = vld [vmem:[%s1 + $0x38] sm:$0xf]
      %v246 = vld [vmem:[%s1 + $0x3c] sm:$0xf]
      %v247 = vld [vmem:[%s1 + $0x40] sm:$0xf]
      %v248 = vld [vmem:[%s1 + $0x44] sm:$0xf]
      %v249 = vld [vmem:[%s1 + $0x48] sm:$0xf]
      %v250 = vld [vmem:[%s1 + $0x4c] sm:$0xf]
      %v251 = vld [vmem:[%s1 + $0x50] sm:$0xf]
      %v252 = vld [vmem:[%s1 + $0x54] sm:$0xf]
      %v253 = vld [vmem:[%s1 + $0x58] sm:$0xf]
      %v254 = vld [vmem:[%s1 + $0x5c] sm:$0xf]
      %v255 = vld [vmem:[%s1 + $0x60] sm:$0xf]
      %v256 = vld [vmem:[%s1 + $0x64] sm:$0xf]
      %v257 = vld [vmem:[%s1 + $0x68] sm:$0xf]
      %v258 = vld [vmem:[%s1 + $0x6c] sm:$0xf]
      %v259 = vld [vmem:[%s1 + $0x70] sm:$0xf]
      %v260 = vld [vmem:[%s1 + $0x74] sm:$0xf]
      %v261 = vld [vmem:[%s1 + $0x78] sm:$0xf]
      %v262 = vld [vmem:[%s1 + $0x7c] sm:$0xf]
      %v268 = vunpack.c.l.b16 %v225
      %v269 = vunpack.c.l.b16 %v226
      %v270 = vunpack.c.l.b16 %v227
      %v271 = vunpack.c.l.b16 %v228
      %v272 = vunpack.c.l.b16 %v229
      %v273 = vpack.c.b16 %v268, %v268
      %v274 = vpack.c.b16 %v269, %v269
      %v275 = vpack.c.b16 %v270, %v270
      %v276 = vpack.c.b16 %v271, %v271
      %v277 = vpack.c.b16 %v272, %v272
      %v279 = vshrl.u32 %v273, 16
      %v281 = vshll.u32 %v273, 16
      %v283 = vrot.slane %v281, 1
      %v284 = vor.u32 %v279, %v283
      %v286 = vshrl.u32 %v274, 16
      %v288 = vshll.u32 %v274, 16
      %v290 = vrot.slane %v288, 1
      %v291 = vor.u32 %v286, %v290
      %v293 = vshrl.u32 %v275, 16
      %v295 = vshll.u32 %v275, 16
      %v297 = vrot.slane %v295, 1
      %v298 = vor.u32 %v293, %v297
      %v300 = vshrl.u32 %v276, 16
      %v302 = vshll.u32 %v276, 16
      %v304 = vrot.slane %v302, 1
      %v305 = vor.u32 %v300, %v304
      %v307 = vshrl.u32 %v277, 16
      %v309 = vshll.u32 %v277, 16
      %v311 = vrot.slane %v309, 1
      %v312 = vor.u32 %v307, %v311
      %313 = vrot.lane.b32.xlu0 %v284, 64
      %v314 = vpop.permute.xlu0 %313
      %315 = vrot.lane.b32.xlu0 %v291, 64
      %v316 = vpop.permute.xlu0 %315
      %317 = vrot.lane.b32.xlu0 %v298, 64
      %v318 = vpop.permute.xlu0 %317
      %319 = vrot.lane.b32.xlu0 %v305, 64
      %v320 = vpop.permute.xlu0 %319
      %321 = vrot.lane.b32.xlu0 %v312, 64
      %v322 = vpop.permute.xlu0 %321
      %v324 = vunpack.c.l.b16 %v230
      %v325 = vpack.c.b16 %v324, %v324
      %v327 = vshrl.u32 %v325, 16
      %v329 = vshll.u32 %v325, 16
      %v331 = vrot.slane %v329, 1
      %v332 = vor.u32 %v327, %v331
      %333 = vrot.lane.b32.xlu0 %v332, 64
      %v334 = vpop.permute.xlu0 %333
      %vm335 = vcmask 523264
      %v338 = vsel %vm335, %v225, %v314
      %v341 = vsel %vm335, %v226, %v316
      %v344 = vsel %vm335, %v227, %v318
      %v347 = vsel %vm335, %v228, %v320
      %v350 = vsel %vm335, %v229, %v322
      %v353 = vsel %vm335, %v230, %v334
      %v360 = vcombine.low %v338, %v341
      %v362 = vunpack.c.l.s4 1966171168
      %v363 = vunpack.c.0.s8 %v362
      %v364 = vlaneseq
      %v365 = vshrl.u32 %v364, 7
      %v366 = vsub.s32 %v363, %v365
      %v367 = vrot.slane %v360, %v366
      %v368 = vcombine.high %v367, %v367
      %v370 = vunpack.c.l.s4 1966171168
      %v371 = vunpack.c.0.s8 %v370
      %v372 = vlaneseq
      %v373 = vshrl.u32 %v372, 7
      %v374 = vsub.s32 %v371, %v373
      %v375 = vrot.slane %v367, %v374
      %v377 = vunpack.c.l.s4 1966171168
      %v378 = vunpack.c.0.s8 %v377
      %v379 = vlaneseq
      %v380 = vshrl.u32 %v379, 7
      %v381 = vsub.s32 %v378, %v380
      %v382 = vrot.slane %v368, %v381
      %v383 = vcombine.high %v375, %v375
      %v384 = vcombine.low %v341, %v344
      %v386 = vunpack.c.l.s4 1966171168
      %v387 = vunpack.c.0.s8 %v386
      %v388 = vlaneseq
      %v389 = vshrl.u32 %v388, 7
      %v390 = vsub.s32 %v387, %v389
      %v391 = vrot.slane %v384, %v390
      %v392 = vcombine.high %v391, %v391
      %v394 = vunpack.c.l.s4 1966171168
      %v395 = vunpack.c.0.s8 %v394
      %v396 = vlaneseq
      %v397 = vshrl.u32 %v396, 7
      %v398 = vsub.s32 %v395, %v397
      %v399 = vrot.slane %v391, %v398
      %v401 = vunpack.c.l.s4 1966171168
      %v402 = vunpack.c.0.s8 %v401
      %v403 = vlaneseq
      %v404 = vshrl.u32 %v403, 7
      %v405 = vsub.s32 %v402, %v404
      %v406 = vrot.slane %v392, %v405
      %v407 = vcombine.high %v399, %v399
      %v408 = vcombine.low %v344, %v347
      %v410 = vunpack.c.l.s4 1966171168
      %v411 = vunpack.c.0.s8 %v410
      %v412 = vlaneseq
      %v413 = vshrl.u32 %v412, 7
      %v414 = vsub.s32 %v411, %v413
      %v415 = vrot.slane %v408, %v414
      %v416 = vcombine.high %v415, %v415
      %v418 = vunpack.c.l.s4 1966171168
      %v419 = vunpack.c.0.s8 %v418
      %v420 = vlaneseq
      %v421 = vshrl.u32 %v420, 7
      %v422 = vsub.s32 %v419, %v421
      %v423 = vrot.slane %v415, %v422
      %v425 = vunpack.c.l.s4 1966171168
      %v426 = vunpack.c.0.s8 %v425
      %v427 = vlaneseq
      %v428 = vshrl.u32 %v427, 7
      %v429 = vsub.s32 %v426, %v428
      %v430 = vrot.slane %v416, %v429
      %v431 = vcombine.high %v423, %v423
      %v432 = vcombine.low %v347, %v350
      %v434 = vunpack.c.l.s4 1966171168
      %v435 = vunpack.c.0.s8 %v434
      %v436 = vlaneseq
      %v437 = vshrl.u32 %v436, 7
      %v438 = vsub.s32 %v435, %v437
      %v439 = vrot.slane %v432, %v438
      %v440 = vcombine.high %v439, %v439
      %v442 = vunpack.c.l.s4 1966171168
      %v443 = vunpack.c.0.s8 %v442
      %v444 = vlaneseq
      %v445 = vshrl.u32 %v444, 7
      %v446 = vsub.s32 %v443, %v445
      %v447 = vrot.slane %v439, %v446
      %v449 = vunpack.c.l.s4 1966171168
      %v450 = vunpack.c.0.s8 %v449
      %v451 = vlaneseq
      %v452 = vshrl.u32 %v451, 7
      %v453 = vsub.s32 %v450, %v452
      %v454 = vrot.slane %v440, %v453
      %v455 = vcombine.high %v447, %v447
      %v456 = vcombine.low %v350, %v353
      %v458 = vunpack.c.l.s4 1966171168
      %v459 = vunpack.c.0.s8 %v458
      %v460 = vlaneseq
      %v461 = vshrl.u32 %v460, 7
      %v462 = vsub.s32 %v459, %v461
      %v463 = vrot.slane %v456, %v462
      %v464 = vcombine.high %v463, %v463
      %v466 = vunpack.c.l.s4 1966171168
      %v467 = vunpack.c.0.s8 %v466
      %v468 = vlaneseq
      %v469 = vshrl.u32 %v468, 7
      %v470 = vsub.s32 %v467, %v469
      %v471 = vrot.slane %v463, %v470
      %v473 = vunpack.c.l.s4 1966171168
      %v474 = vunpack.c.0.s8 %v473
      %v475 = vlaneseq
      %v476 = vshrl.u32 %v475, 7
      %v477 = vsub.s32 %v474, %v476
      %v478 = vrot.slane %v464, %v477
      %v479 = vcombine.high %v471, %v471
      %v480 = vunpack.i.l.s16 %v375
      %v481 = vunpack.i.h.s16 %v375
      %v482 = vunpack.i.l.s16 %v382
      %v483 = vunpack.i.h.s16 %v382
      %v484 = vunpack.i.l.s16 %v383
      %v485 = vunpack.i.l.s16 %v399
      %v486 = vunpack.i.h.s16 %v399
      %v487 = vunpack.i.l.s16 %v406
      %v488 = vunpack.i.h.s16 %v406
      %v489 = vunpack.i.l.s16 %v407
      %v490 = vunpack.i.l.s16 %v423
      %v491 = vunpack.i.h.s16 %v423
      %v492 = vunpack.i.l.s16 %v430
      %v493 = vunpack.i.h.s16 %v430
      %v494 = vunpack.i.l.s16 %v431
      %v495 = vunpack.i.l.s16 %v447
      %v496 = vunpack.i.h.s16 %v447
      %v497 = vunpack.i.l.s16 %v454
      %v498 = vunpack.i.h.s16 %v454
      %v499 = vunpack.i.l.s16 %v455
      %v500 = vunpack.i.l.s16 %v471
      %v501 = vunpack.i.h.s16 %v471
      %v502 = vunpack.i.l.s16 %v478
      %v503 = vunpack.i.h.s16 %v478
      %v504 = vunpack.i.l.s16 %v479
      %v505 = vpack.i.b16 %v481, %v480
      %v506 = vpack.i.b16 %v483, %v482
      %v507 = vpack.i.b16 %v485, %v484
      %v508 = vpack.i.b16 %v487, %v486
      %v509 = vpack.i.b16 %v489, %v488
      %v510 = vpack.i.b16 %v491, %v490
      %v511 = vpack.i.b16 %v493, %v492
      %v512 = vpack.i.b16 %v495, %v494
      %v513 = vpack.i.b16 %v497, %v496
      %v514 = vpack.i.b16 %v499, %v498
      %v515 = vpack.i.b16 %v501, %v500
      %v516 = vpack.i.b16 %v503, %v502
      %v518 = vcombine.low %v505, %v506
      %v519 = vcombine.low %v507, %v508
      %v520 = vcombine.low %v509, %v510
      %v521 = vcombine.low %v511, %v512
      %v523 = vunpack.c.l.s4 1966171168
      %v524 = vunpack.c.0.s8 %v523
      %v525 = vlaneseq
      %v526 = vshrl.u32 %v525, 7
      %v527 = vsub.s32 %v524, %v526
      %v528 = vrot.slane %v518, %v527
      %v530 = vunpack.c.l.s4 1966171168
      %v531 = vunpack.c.0.s8 %v530
      %v532 = vlaneseq
      %v533 = vshrl.u32 %v532, 7
      %v534 = vsub.s32 %v531, %v533
      %v535 = vrot.slane %v519, %v534
      %v537 = vunpack.c.l.s4 1966171168
      %v538 = vunpack.c.0.s8 %v537
      %v539 = vlaneseq
      %v540 = vshrl.u32 %v539, 7
      %v541 = vsub.s32 %v538, %v540
      %v542 = vrot.slane %v520, %v541
      %v544 = vunpack.c.l.s4 1966171168
      %v545 = vunpack.c.0.s8 %v544
      %v546 = vlaneseq
      %v547 = vshrl.u32 %v546, 7
      %v548 = vsub.s32 %v545, %v547
      %v549 = vrot.slane %v521, %v548
      %v550 = vcombine.low %v528, %v535
      %v551 = vcombine.high %v528, %v535
      %v552 = vcombine.low %v542, %v549
      %v553 = vcombine.high %v542, %v549
      %v555 = vunpack.c.l.s4 1966171168
      %v556 = vunpack.c.0.s8 %v555
      %v557 = vlaneseq
      %v558 = vshrl.u32 %v557, 7
      %v559 = vsub.s32 %v556, %v558
      %v560 = vrot.slane %v550, %v559
      %v562 = vunpack.c.l.s4 1966171168
      %v563 = vunpack.c.0.s8 %v562
      %v564 = vlaneseq
      %v565 = vshrl.u32 %v564, 7
      %v566 = vsub.s32 %v563, %v565
      %v567 = vrot.slane %v551, %v566
      %v569 = vunpack.c.l.s4 1966171168
      %v570 = vunpack.c.0.s8 %v569
      %v571 = vlaneseq
      %v572 = vshrl.u32 %v571, 7
      %v573 = vsub.s32 %v570, %v572
      %v574 = vrot.slane %v552, %v573
      %v576 = vunpack.c.l.s4 1966171168
      %v577 = vunpack.c.0.s8 %v576
      %v578 = vlaneseq
      %v579 = vshrl.u32 %v578, 7
      %v580 = vsub.s32 %v577, %v579
      %v581 = vrot.slane %v553, %v580
      %v582 = vcombine.low %v560, %v574
      %v583 = vcombine.low %v567, %v581
      %v584 = vcombine.low %v513, %v514
      %v585 = vcombine.low %v515, %v516
      %v587 = vunpack.c.l.s4 1966171168
      %v588 = vunpack.c.0.s8 %v587
      %v589 = vlaneseq
      %v590 = vshrl.u32 %v589, 7
      %v591 = vsub.s32 %v588, %v590
      %v592 = vrot.slane %v584, %v591
      %v594 = vunpack.c.l.s4 1966171168
      %v595 = vunpack.c.0.s8 %v594
      %v596 = vlaneseq
      %v597 = vshrl.u32 %v596, 7
      %v598 = vsub.s32 %v595, %v597
      %v599 = vrot.slane %v585, %v598
      %v601 = vunpack.c.l.s4 1966171168
      %v602 = vunpack.c.0.s8 %v601
      %v603 = vlaneseq
      %v604 = vshrl.u32 %v603, 7
      %v605 = vsub.s32 %v602, %v604
      %v606 = vrot.slane %v504, %v605
      %v607 = vcombine.low %v592, %v599
      %v608 = vcombine.high %v592, %v599
      %v609 = vcombine.high %v606, %v606
      %v611 = vunpack.c.l.s4 1966171168
      %v612 = vunpack.c.0.s8 %v611
      %v613 = vlaneseq
      %v614 = vshrl.u32 %v613, 7
      %v615 = vsub.s32 %v612, %v614
      %v616 = vrot.slane %v607, %v615
      %v618 = vunpack.c.l.s4 1966171168
      %v619 = vunpack.c.0.s8 %v618
      %v620 = vlaneseq
      %v621 = vshrl.u32 %v620, 7
      %v622 = vsub.s32 %v619, %v621
      %v623 = vrot.slane %v608, %v622
      %v625 = vunpack.c.l.s4 1966171168
      %v626 = vunpack.c.0.s8 %v625
      %v627 = vlaneseq
      %v628 = vshrl.u32 %v627, 7
      %v629 = vsub.s32 %v626, %v628
      %v630 = vrot.slane %v606, %v629
      %v632 = vunpack.c.l.s4 1966171168
      %v633 = vunpack.c.0.s8 %v632
      %v634 = vlaneseq
      %v635 = vshrl.u32 %v634, 7
      %v636 = vsub.s32 %v633, %v635
      %v637 = vrot.slane %v609, %v636
      %v638 = vcombine.low %v616, %v630
      %v639 = vcombine.low %v623, %v637
      %v676 = vunpack.c.l.b16 %v231
      %v677 = vunpack.c.l.b16 %v232
      %v678 = vunpack.c.l.b16 %v233
      %v679 = vunpack.c.l.b16 %v234
      %v680 = vunpack.c.l.b16 %v235
      %v681 = vunpack.c.l.b16 %v236
      %v682 = vunpack.c.l.b16 %v237
      %v683 = vunpack.c.l.b16 %v238
      %v684 = vunpack.c.l.b16 %v239
      %v685 = vunpack.c.l.b16 %v240
      %v686 = vunpack.c.l.b16 %v241
      %v687 = vunpack.c.l.b16 %v242
      %v688 = vunpack.c.l.b16 %v243
      %v689 = vunpack.c.l.b16 %v244
      %v690 = vunpack.c.l.b16 %v245
      %v691 = vunpack.c.l.b16 %v246
      %v692 = vunpack.c.l.b16 %v247
      %v693 = vunpack.c.l.b16 %v248
      %v694 = vunpack.c.l.b16 %v249
      %v695 = vunpack.c.l.b16 %v250
      %v696 = vunpack.c.l.b16 %v251
      %v697 = vunpack.c.l.b16 %v252
      %v698 = vunpack.c.l.b16 %v253
      %v699 = vunpack.c.l.b16 %v254
      %v700 = vunpack.c.l.b16 %v255
      %v701 = vunpack.c.l.b16 %v256
      %v702 = vunpack.c.l.b16 %v257
      %v703 = vunpack.c.l.b16 %v258
      %v704 = vunpack.c.l.b16 %v259
      %v705 = vunpack.c.l.b16 %v260
      %v706 = vunpack.c.l.b16 %v261
      %v707 = vunpack.c.l.b16 %v262
      %v708 = vpack.c.b16 %v677, %v676
      %v709 = vpack.c.b16 %v679, %v678
      %v710 = vpack.c.b16 %v681, %v680
      %v711 = vpack.c.b16 %v683, %v682
      %v712 = vpack.c.b16 %v685, %v684
      %v713 = vpack.c.b16 %v687, %v686
      %v714 = vpack.c.b16 %v689, %v688
      %v715 = vpack.c.b16 %v691, %v690
      %v716 = vpack.c.b16 %v693, %v692
      %v717 = vpack.c.b16 %v695, %v694
      %v718 = vpack.c.b16 %v697, %v696
      %v719 = vpack.c.b16 %v699, %v698
      %v720 = vpack.c.b16 %v701, %v700
      %v721 = vpack.c.b16 %v703, %v702
      %v722 = vpack.c.b16 %v705, %v704
      %v723 = vpack.c.b16 %v707, %v706
      %740 = vmatprep.subr.bf16.mxu0 0
      %741 = vmatpush1.bf16.msra.mxu0 %v708
      %742 = vmatprep.subr.bf16.mxu0 0
      %743 = vmatpush1.bf16.msra.mxu0 %v709
      %744 = vmatprep.subr.bf16.mxu0 0
      %745 = vmatpush1.bf16.msra.mxu0 %v710
      %746 = vmatprep.subr.bf16.mxu0 0
      %747 = vmatpush1.bf16.msra.mxu0 %v711
      %748 = vmatprep.subr.bf16.mxu0 0
      %749 = vmatpush1.bf16.msra.mxu0 %v712
      %750 = vmatprep.subr.bf16.mxu0 0
      %751 = vmatpush1.bf16.msra.mxu0 %v713
      %752 = vmatprep.subr.bf16.mxu0 0
      %753 = vmatpush1.bf16.msra.mxu0 %v714
      %754 = vmatprep.subr.bf16.mxu0 0
      %755 = vmatpush1.bf16.msra.mxu0 %v715
      %756 = vmatprep.subr.bf16.mxu0 0
      %757 = vmatpush1.bf16.msra.mxu0 %v716
      %758 = vmatprep.subr.bf16.mxu0 0
      %759 = vmatpush1.bf16.msra.mxu0 %v717
      %760 = vmatprep.subr.bf16.mxu0 0
      %761 = vmatpush1.bf16.msra.mxu0 %v718
      %762 = vmatprep.subr.bf16.mxu0 0
      %763 = vmatpush1.bf16.msra.mxu0 %v719
      %764 = vmatprep.subr.bf16.mxu0 0
      %765 = vmatpush1.bf16.msra.mxu0 %v720
      %766 = vmatprep.subr.bf16.mxu0 0
      %767 = vmatpush1.bf16.msra.mxu0 %v721
      %768 = vmatprep.subr.bf16.mxu0 0
      %769 = vmatpush1.bf16.msra.mxu0 %v722
      %770 = vmatprep.subr.bf16.mxu0 0
      %771 = vmatpush1.bf16.msra.mxu0 %v723
      %772 = vmatprep.mubr.bf16.mxu0 %v583
      %773 = vmatmul.mubr.bf16.gmra.mrb[0].mxu0 %v582
      %v774 = vpop.f32.mrb[0].mxu0
      %v775 = vadd.f32 0.0, %v774
      %v776 = vpop.f32.mrb[0].mxu0
      %v777 = vpop.f32.mrb[0].mxu0
      %v778 = vadd.f32 0.0, %v777
      %v779 = vpop.f32.mrb[0].mxu0
      %780 = vmatprep.mubr.bf16.mxu0 %v639
      %781 = vmatmul.mubr.bf16.gmra.mrb[0].mxu0 %v638
      %v782 = vpop.f32.mrb[0].mxu0
      %v783 = vadd.f32 0.0, %v782
      %v784 = vpop.f32.mrb[0].mxu0
      %v785 = vpop.f32.mrb[0].mxu0
      %v786 = vadd.f32 0.0, %v785
      %v787 = vpop.f32.mrb[0].mxu0
      %788 = vdwg.mxu0
      %v789 = vld [vmem:[%s2] sm:$0x1]
      %v791 = vlaneseq
      %v792 = vshrl.u32 %v791, 7
      %v793 = vsub.s32 0, %v792
      %v794 = vrot.slane %v789, %v793
      %v796 = vmul.f32 %v775, %v794
      %v797 = vmul.f32 %v778, %v794
      %v798 = vmul.f32 %v783, %v794
      %v799 = vmul.f32 %v786, %v794
      %v800 = vld [vmem:[%s3] sm:$0x1]
      %v802 = vlaneseq
      %v803 = vshrl.u32 %v802, 7
      %v804 = vsub.s32 0, %v803
      %v805 = vrot.slane %v800, %v804
      %v807 = vadd.f32 %v796, %v805
      %v808 = vadd.f32 %v797, %v805
      %v809 = vadd.f32 %v798, %v805
      %v810 = vadd.f32 %v799, %v805
      %v811 = vmul.f32 %v807, 0.2
      %v812 = vmul.f32 %v808, 0.2
      %v813 = vmul.f32 %v809, 0.2
      %v814 = vmul.f32 %v810, 0.2
      %v815 = vmax.f32 %v807, %v811
      %v816 = vmax.f32 %v808, %v812
      %v817 = vmax.f32 %v809, %v813
      %v818 = vmax.f32 %v810, %v814
      %v823 = vcombine.high %v815, %v815
      %v825 = vunpack.c.l.s4 1966171168
      %v826 = vunpack.c.0.s8 %v825
      %v827 = vlaneseq
      %v828 = vshrl.u32 %v827, 7
      %v829 = vsub.s32 %v826, %v828
      %v830 = vrot.slane %v815, %v829
      %v832 = vunpack.c.l.s4 1966171168
      %v833 = vunpack.c.0.s8 %v832
      %v834 = vlaneseq
      %v835 = vshrl.u32 %v834, 7
      %v836 = vsub.s32 %v833, %v835
      %v837 = vrot.slane %v823, %v836
      %v838 = vcombine.high %v830, %v830
      %v839 = vcombine.high %v837, %v837
      %v841 = vunpack.c.l.s4 1966171168
      %v842 = vunpack.c.0.s8 %v841
      %v843 = vlaneseq
      %v844 = vshrl.u32 %v843, 7
      %v845 = vsub.s32 %v842, %v844
      %v846 = vrot.slane %v830, %v845
      %v848 = vunpack.c.l.s4 1966171168
      %v849 = vunpack.c.0.s8 %v848
      %v850 = vlaneseq
      %v851 = vshrl.u32 %v850, 7
      %v852 = vsub.s32 %v849, %v851
      %v853 = vrot.slane %v837, %v852
      %v855 = vunpack.c.l.s4 1966171168
      %v856 = vunpack.c.0.s8 %v855
      %v857 = vlaneseq
      %v858 = vshrl.u32 %v857, 7
      %v859 = vsub.s32 %v856, %v858
      %v860 = vrot.slane %v838, %v859
      %v862 = vunpack.c.l.s4 1966171168
      %v863 = vunpack.c.0.s8 %v862
      %v864 = vlaneseq
      %v865 = vshrl.u32 %v864, 7
      %v866 = vsub.s32 %v863, %v865
      %v867 = vrot.slane %v839, %v866
      %v868 = vcombine.high %v846, %v846
      %v869 = vcombine.high %v853, %v853
      %v870 = vcombine.high %v860, %v860
      %v871 = vcombine.high %v867, %v867
      %v872 = vcombine.high %v816, %v816
      %v874 = vunpack.c.l.s4 1966171168
      %v875 = vunpack.c.0.s8 %v874
      %v876 = vlaneseq
      %v877 = vshrl.u32 %v876, 7
      %v878 = vsub.s32 %v875, %v877
      %v879 = vrot.slane %v816, %v878
      %v881 = vunpack.c.l.s4 1966171168
      %v882 = vunpack.c.0.s8 %v881
      %v883 = vlaneseq
      %v884 = vshrl.u32 %v883, 7
      %v885 = vsub.s32 %v882, %v884
      %v886 = vrot.slane %v872, %v885
      %v887 = vcombine.high %v879, %v879
      %v888 = vcombine.high %v886, %v886
      %v890 = vunpack.c.l.s4 1966171168
      %v891 = vunpack.c.0.s8 %v890
      %v892 = vlaneseq
      %v893 = vshrl.u32 %v892, 7
      %v894 = vsub.s32 %v891, %v893
      %v895 = vrot.slane %v879, %v894
      %v897 = vunpack.c.l.s4 1966171168
      %v898 = vunpack.c.0.s8 %v897
      %v899 = vlaneseq
      %v900 = vshrl.u32 %v899, 7
      %v901 = vsub.s32 %v898, %v900
      %v902 = vrot.slane %v886, %v901
      %v904 = vunpack.c.l.s4 1966171168
      %v905 = vunpack.c.0.s8 %v904
      %v906 = vlaneseq
      %v907 = vshrl.u32 %v906, 7
      %v908 = vsub.s32 %v905, %v907
      %v909 = vrot.slane %v887, %v908
      %v911 = vunpack.c.l.s4 1966171168
      %v912 = vunpack.c.0.s8 %v911
      %v913 = vlaneseq
      %v914 = vshrl.u32 %v913, 7
      %v915 = vsub.s32 %v912, %v914
      %v916 = vrot.slane %v888, %v915
      %v917 = vcombine.high %v895, %v895
      %v918 = vcombine.high %v902, %v902
      %v919 = vcombine.high %v909, %v909
      %v920 = vcombine.high %v916, %v916
      %v921 = vcombine.high %v817, %v817
      %v923 = vunpack.c.l.s4 1966171168
      %v924 = vunpack.c.0.s8 %v923
      %v925 = vlaneseq
      %v926 = vshrl.u32 %v925, 7
      %v927 = vsub.s32 %v924, %v926
      %v928 = vrot.slane %v817, %v927
      %v930 = vunpack.c.l.s4 1966171168
      %v931 = vunpack.c.0.s8 %v930
      %v932 = vlaneseq
      %v933 = vshrl.u32 %v932, 7
      %v934 = vsub.s32 %v931, %v933
      %v935 = vrot.slane %v921, %v934
      %v936 = vcombine.high %v928, %v928
      %v937 = vcombine.high %v935, %v935
      %v939 = vunpack.c.l.s4 1966171168
      %v940 = vunpack.c.0.s8 %v939
      %v941 = vlaneseq
      %v942 = vshrl.u32 %v941, 7
      %v943 = vsub.s32 %v940, %v942
      %v944 = vrot.slane %v928, %v943
      %v946 = vunpack.c.l.s4 1966171168
      %v947 = vunpack.c.0.s8 %v946
      %v948 = vlaneseq
      %v949 = vshrl.u32 %v948, 7
      %v950 = vsub.s32 %v947, %v949
      %v951 = vrot.slane %v935, %v950
      %v953 = vunpack.c.l.s4 1966171168
      %v954 = vunpack.c.0.s8 %v953
      %v955 = vlaneseq
      %v956 = vshrl.u32 %v955, 7
      %v957 = vsub.s32 %v954, %v956
      %v958 = vrot.slane %v936, %v957
      %v960 = vunpack.c.l.s4 1966171168
      %v961 = vunpack.c.0.s8 %v960
      %v962 = vlaneseq
      %v963 = vshrl.u32 %v962, 7
      %v964 = vsub.s32 %v961, %v963
      %v965 = vrot.slane %v937, %v964
      %v966 = vcombine.high %v944, %v944
      %v967 = vcombine.high %v951, %v951
      %v968 = vcombine.high %v958, %v958
      %v969 = vcombine.high %v965, %v965
      %v971 = vunpack.c.l.s4 1966171168
      %v972 = vunpack.c.0.s8 %v971
      %v973 = vlaneseq
      %v974 = vshrl.u32 %v973, 7
      %v975 = vsub.s32 %v972, %v974
      %v976 = vrot.slane %v818, %v975
      %v978 = vunpack.c.l.s4 1966171168
      %v979 = vunpack.c.0.s8 %v978
      %v980 = vlaneseq
      %v981 = vshrl.u32 %v980, 7
      %v982 = vsub.s32 %v979, %v981
      %v983 = vrot.slane %v976, %v982
      %v984 = vcombine.low %v846, %v860
      %v985 = vcombine.low %v868, %v870
      %v987 = vunpack.c.l.s4 1966171168
      %v988 = vunpack.c.0.s8 %v987
      %v989 = vlaneseq
      %v990 = vshrl.u32 %v989, 7
      %v991 = vsub.s32 %v988, %v990
      %v992 = vrot.slane %v984, %v991
      %v994 = vunpack.c.l.s4 1966171168
      %v995 = vunpack.c.0.s8 %v994
      %v996 = vlaneseq
      %v997 = vshrl.u32 %v996, 7
      %v998 = vsub.s32 %v995, %v997
      %v999 = vrot.slane %v985, %v998
      %v1001 = vunpack.c.l.s4 1966171168
      %v1002 = vunpack.c.0.s8 %v1001
      %v1003 = vlaneseq
      %v1004 = vshrl.u32 %v1003, 7
      %v1005 = vsub.s32 %v1002, %v1004
      %v1006 = vrot.slane %v853, %v1005
      %v1007 = vcombine.low %v992, %v999
      %v1009 = vunpack.c.l.s4 1966171168
      %v1010 = vunpack.c.0.s8 %v1009
      %v1011 = vlaneseq
      %v1012 = vshrl.u32 %v1011, 7
      %v1013 = vsub.s32 %v1010, %v1012
      %v1014 = vrot.slane %v1007, %v1013
      %v1016 = vunpack.c.l.s4 1966171168
      %v1017 = vunpack.c.0.s8 %v1016
      %v1018 = vlaneseq
      %v1019 = vshrl.u32 %v1018, 7
      %v1020 = vsub.s32 %v1017, %v1019
      %v1021 = vrot.slane %v1006, %v1020
      %v1022 = vcombine.low %v1014, %v1021
      %v1023 = vcombine.low %v867, %v869
      %v1024 = vcombine.low %v871, %v895
      %v1026 = vunpack.c.l.s4 1966171168
      %v1027 = vunpack.c.0.s8 %v1026
      %v1028 = vlaneseq
      %v1029 = vshrl.u32 %v1028, 7
      %v1030 = vsub.s32 %v1027, %v1029
      %v1031 = vrot.slane %v1023, %v1030
      %v1033 = vunpack.c.l.s4 1966171168
      %v1034 = vunpack.c.0.s8 %v1033
      %v1035 = vlaneseq
      %v1036 = vshrl.u32 %v1035, 7
      %v1037 = vsub.s32 %v1034, %v1036
      %v1038 = vrot.slane %v1024, %v1037
      %v1040 = vunpack.c.l.s4 1966171168
      %v1041 = vunpack.c.0.s8 %v1040
      %v1042 = vlaneseq
      %v1043 = vshrl.u32 %v1042, 7
      %v1044 = vsub.s32 %v1041, %v1043
      %v1045 = vrot.slane %v909, %v1044
      %v1046 = vcombine.low %v1031, %v1038
      %v1048 = vunpack.c.l.s4 1966171168
      %v1049 = vunpack.c.0.s8 %v1048
      %v1050 = vlaneseq
      %v1051 = vshrl.u32 %v1050, 7
      %v1052 = vsub.s32 %v1049, %v1051
      %v1053 = vrot.slane %v1046, %v1052
      %v1055 = vunpack.c.l.s4 1966171168
      %v1056 = vunpack.c.0.s8 %v1055
      %v1057 = vlaneseq
      %v1058 = vshrl.u32 %v1057, 7
      %v1059 = vsub.s32 %v1056, %v1058
      %v1060 = vrot.slane %v1045, %v1059
      %v1061 = vcombine.low %v1053, %v1060
      %v1062 = vcombine.low %v917, %v919
      %v1063 = vcombine.low %v902, %v916
      %v1065 = vunpack.c.l.s4 1966171168
      %v1066 = vunpack.c.0.s8 %v1065
      %v1067 = vlaneseq
      %v1068 = vshrl.u32 %v1067, 7
      %v1069 = vsub.s32 %v1066, %v1068
      %v1070 = vrot.slane %v1062, %v1069
      %v1072 = vunpack.c.l.s4 1966171168
      %v1073 = vunpack.c.0.s8 %v1072
      %v1074 = vlaneseq
      %v1075 = vshrl.u32 %v1074, 7
      %v1076 = vsub.s32 %v1073, %v1075
      %v1077 = vrot.slane %v1063, %v1076
      %v1079 = vunpack.c.l.s4 1966171168
      %v1080 = vunpack.c.0.s8 %v1079
      %v1081 = vlaneseq
      %v1082 = vshrl.u32 %v1081, 7
      %v1083 = vsub.s32 %v1080, %v1082
      %v1084 = vrot.slane %v918, %v1083
      %v1085 = vcombine.low %v1070, %v1077
      %v1087 = vunpack.c.l.s4 1966171168
      %v1088 = vunpack.c.0.s8 %v1087
      %v1089 = vlaneseq
      %v1090 = vshrl.u32 %v1089, 7
      %v1091 = vsub.s32 %v1088, %v1090
      %v1092 = vrot.slane %v1085, %v1091
      %v1094 = vunpack.c.l.s4 1966171168
      %v1095 = vunpack.c.0.s8 %v1094
      %v1096 = vlaneseq
      %v1097 = vshrl.u32 %v1096, 7
      %v1098 = vsub.s32 %v1095, %v1097
      %v1099 = vrot.slane %v1084, %v1098
      %v1100 = vcombine.low %v1092, %v1099
      %v1101 = vcombine.low %v920, %v944
      %v1102 = vcombine.low %v958, %v966
      %v1104 = vunpack.c.l.s4 1966171168
      %v1105 = vunpack.c.0.s8 %v1104
      %v1106 = vlaneseq
      %v1107 = vshrl.u32 %v1106, 7
      %v1108 = vsub.s32 %v1105, %v1107
      %v1109 = vrot.slane %v1101, %v1108
      %v1111 = vunpack.c.l.s4 1966171168
      %v1112 = vunpack.c.0.s8 %v1111
      %v1113 = vlaneseq
      %v1114 = vshrl.u32 %v1113, 7
      %v1115 = vsub.s32 %v1112, %v1114
      %v1116 = vrot.slane %v1102, %v1115
      %v1118 = vunpack.c.l.s4 1966171168
      %v1119 = vunpack.c.0.s8 %v1118
      %v1120 = vlaneseq
      %v1121 = vshrl.u32 %v1120, 7
      %v1122 = vsub.s32 %v1119, %v1121
      %v1123 = vrot.slane %v968, %v1122
      %v1124 = vcombine.low %v1109, %v1116
      %v1126 = vunpack.c.l.s4 1966171168
      %v1127 = vunpack.c.0.s8 %v1126
      %v1128 = vlaneseq
      %v1129 = vshrl.u32 %v1128, 7
      %v1130 = vsub.s32 %v1127, %v1129
      %v1131 = vrot.slane %v1124, %v1130
      %v1133 = vunpack.c.l.s4 1966171168
      %v1134 = vunpack.c.0.s8 %v1133
      %v1135 = vlaneseq
      %v1136 = vshrl.u32 %v1135, 7
      %v1137 = vsub.s32 %v1134, %v1136
      %v1138 = vrot.slane %v1123, %v1137
      %v1139 = vcombine.low %v1131, %v1138
      %v1140 = vcombine.low %v951, %v965
      %v1141 = vcombine.low %v967, %v969
      %v1143 = vunpack.c.l.s4 1966171168
      %v1144 = vunpack.c.0.s8 %v1143
      %v1145 = vlaneseq
      %v1146 = vshrl.u32 %v1145, 7
      %v1147 = vsub.s32 %v1144, %v1146
      %v1148 = vrot.slane %v1140, %v1147
      %v1150 = vunpack.c.l.s4 1966171168
      %v1151 = vunpack.c.0.s8 %v1150
      %v1152 = vlaneseq
      %v1153 = vshrl.u32 %v1152, 7
      %v1154 = vsub.s32 %v1151, %v1153
      %v1155 = vrot.slane %v1141, %v1154
      %v1157 = vunpack.c.l.s4 1966171168
      %v1158 = vunpack.c.0.s8 %v1157
      %v1159 = vlaneseq
      %v1160 = vshrl.u32 %v1159, 7
      %v1161 = vsub.s32 %v1158, %v1160
      %v1162 = vrot.slane %v983, %v1161
      %v1163 = vcombine.low %v1148, %v1155
      %v1165 = vunpack.c.l.s4 1966171168
      %v1166 = vunpack.c.0.s8 %v1165
      %v1167 = vlaneseq
      %v1168 = vshrl.u32 %v1167, 7
      %v1169 = vsub.s32 %v1166, %v1168
      %v1170 = vrot.slane %v1163, %v1169
      %v1172 = vunpack.c.l.s4 1966171168
      %v1173 = vunpack.c.0.s8 %v1172
      %v1174 = vlaneseq
      %v1175 = vshrl.u32 %v1174, 7
      %v1176 = vsub.s32 %v1173, %v1175
      %v1177 = vrot.slane %v1162, %v1176
      %v1178 = vcombine.low %v1170, %v1177
      %v1184 = vpack.c.bf16 %v1022, %v1022
      %v1185 = vpack.c.bf16 %v1061, %v1061
      %v1186 = vpack.c.bf16 %v1100, %v1100
      %v1187 = vpack.c.bf16 %v1139, %v1139
      %v1188 = vpack.c.bf16 %v1178, %v1178
      %vm1189 = vcmask 256000
      %vm1190 = vsmask.f32 2304
      %vm1191 = vmand %vm1189, %vm1190
      %v1192 = vld [vmem:[%s219] sm:$0x7]
      %v1193 = vsel %vm1191, %v1184, %v1192
      %1194 = vst [vmem:[%s219] sm:$0x7] %v1193
      %v1195 = vld [vmem:[%s219 + $0x4] sm:$0x7]
      %v1196 = vsel %vm1191, %v1185, %v1195
      %1197 = vst [vmem:[%s219 + $0x4] sm:$0x7] %v1196
      %v1198 = vld [vmem:[%s219 + $0x8] sm:$0x7]
      %v1199 = vsel %vm1191, %v1186, %v1198
      %1200 = vst [vmem:[%s219 + $0x8] sm:$0x7] %v1199
      %v1201 = vld [vmem:[%s219 + $0xc] sm:$0x7]
      %v1202 = vsel %vm1191, %v1187, %v1201
      %1203 = vst [vmem:[%s219 + $0xc] sm:$0x7] %v1202
      %v1204 = vld [vmem:[%s219 + $0x10] sm:$0x7]
      %v1205 = vsel %vm1191, %v1188, %v1204
      %1206 = vst [vmem:[%s219 + $0x10] sm:$0x7] %v1205
      %s1207 = smul.u32 5, %s20
      %p1208 = scmp.lt.s32.totalorder %s19, 1
      %s1209 = scalar_select %p1208, %s19, 1
      %p1210 = scmp.lt.s32.totalorder %s1207, 4
      %s1211 = scalar_select %p1210, %s1207, 4
      %s1212 = smul.addr %s1209, 5
      %s1213 = sadd.s32 %s1211, %s1212
      %s1214 = smul.addr %s1213, 4
      %s1215 = scalar_lea.vmem %s4, %s1214
      // Predicated region
      $region37: #{discriminator_forward.5} parent=35 // pred_check
        %p1216 = pneg %p136
      $region38: #{discriminator_forward.5} parent=35 // pred_check_branch
        %1218 = sbr.rel (%p1216) target = $region40
      $region39: #{discriminator_forward.5} parent=35 // pred_region
        %s1219 = smul.u32 5, %s20
      $region40: #{discriminator_forward.5} parent=35 // pred_fallthru
        _
    $region36: #{discriminator_forward.5} parent=5 // pred_fallthru
      _
    %p1220 = scmp.le.s32.totalorder 2, %s10
    // Predicated region
    $region41: #{discriminator_forward.5} parent=5 // pred_check
      %p1221 = pneg %p1220
    $region42: #{discriminator_forward.5} parent=5 // pred_check_branch
      %1223 = sbr.rel (%p1221) target = $region44
    $region43: #{discriminator_forward.5} parent=5 // pred_region
      %s1224 = ssub.s32 %s10, 2
      // Predicated region
      $region45: #{discriminator_forward.5} parent=43 // pred_check
        %p1225 = pneg %p142
      $region46: #{discriminator_forward.5} parent=43 // pred_check_branch
        %1227 = sbr.rel (%p1225) target = $region48
      $region47: #{discriminator_forward.5} parent=43 // pred_region
        %s1228 = smul.u32 5, %s22
        %p1229 = scmp.lt.s32.totalorder %s21, 1
        %s1230 = scalar_select %p1229, %s21, 1
        %p1231 = scmp.lt.s32.totalorder %s1228, 4
        %s1232 = scalar_select %p1231, %s1228, 4
        %s1233 = smul.addr %s1230, 5
        %s1234 = sadd.s32 %s1232, %s1233
        %s1235 = smul.addr %s1234, 4
        %s1236 = scalar_lea.vmem %s4, %s1235
      $region48: #{discriminator_forward.5} parent=43 // pred_fallthru
        _
    $region44: #{discriminator_forward.5} parent=5 // pred_fallthru
      _
  $region6: #{discriminator_forward.5} parent=0 // loop_footer
    %s14 = sadd.s32 1, %s10
  $region7: #{discriminator_forward.5} parent=0 // loop_footer_branch
    %9 = sbr.rel target = $region3
  $region8: #{discriminator_forward.5} parent=0 // loop_exit
    _

// kernel: discriminator_forward.6
$region0: #{discriminator_forward.6}
  #allocation0 [shape = 'u32[]', space=smem, size = 0x4, offset = 0x4, fixed_abs, tag = 'smem constant byte address 0x4 - core index']
  #allocation1 [shape = 'u32[144,128]{1,0:T(1,128)}', space=vmem, size = 0x12000, scoped, tag = 'internal scratch']
  %s0 = inlined_call_operand.vmem [shape: bf16[2,4,4,128], index: 0, kind: input, shape index: {}]
  %s1 = inlined_call_operand.vmem [shape: bf16[512,64], index: 1, kind: input, shape index: {}]
  %s2 = inlined_call_operand.vmem [shape: f32[1,64], index: 2, kind: input, shape index: {}]
  %s3 = inlined_call_operand.vmem [shape: f32[1,64], index: 3, kind: input, shape index: {}]
  %s4 = inlined_call_operand.vmem [shape: bf16[2,3,3,64], index: 4, kind: output, shape index: {}]
  %s5 = sld [smem:[#allocation0]]
  $region49: #{discriminator_forward.6} parent=0
    _
  %s7 = ssub.s32 1, %s5
  %s8 = scalar_select 0, %s7, %s5
  loop: start=0, step=1, limit=4
  $region2: #{discriminator_forward.6} parent=0 // loop_pre_header
    _
  $region3: #{discriminator_forward.6} parent=0 // loop_header
    %s10 = sphi 0, %s14
    %p11 = scmp.ge.s32.totalorder %s10, 4
    %s17 = sphi 0, %s29
    %s18 = sphi 0, %s25
    %s19 = sphi 0, %s17
    %s20 = sphi 0, %s18
    %s21 = sphi 0, %s19
    %s22 = sphi 0, %s20
    %s32 = sphi 0, %s34
    %s35 = sphi 0, %s32
    %s36 = sphi 0, %s35
    %s52 = sphi 0, %s36
    %s56 = sphi 0, %s56
    %s58 = sphi 0, %s56
    %s59 = sphi 0, %s58
    %s73 = sphi 0, %s59
    %s77 = sphi 0, %s77
    %s79 = sphi 0, %s77
    %s80 = sphi 0, %s79
    %s94 = sphi 0, %s80
    %s98 = sphi 0, %s98
    %s100 = sphi 0, %s98
    %s101 = sphi 0, %s100
    %s115 = sphi 0, %s101
    %s123 = sphi 0, %s125
    %s126 = sphi 0, %s123
    %s127 = sphi 0, %s126
    %s143 = sphi 0, %s127
  $region4: #{discriminator_forward.6} parent=0 // loop_header_branch
    %13 = sbr.rel (%p11) target = $region8
  $region5: #{discriminator_forward.6} parent=0 // loop_body
    %s15 = ssub.s32 %s10, 1
    %s16 = ssub.s32 %s10, 2
    %s23 = sadd.s32 1, %s18
    %p24 = scmp.ge.s32.totalorder %s23, 1
    %s25 = scalar_select %p24, 0, %s23
    %s26 = sadd.s32 1, %s17
    %s27 = scalar_select %p24, %s26, %s17
    %p28 = scmp.ge.s32.totalorder %s27, 2
    %s29 = scalar_select %p28, 0, %s27
    %s30 = ssub.s32 %s17, %s29
    %p31 = scmp.eq.s32.totalorder %s30, 0
    %s33 = sadd.s32 %s32, 1
    %s34 = scalar_select %p31, %s32, %s33
    %p37 = pneg %p31
    %p38 = scmp.eq.s32.totalorder %s10, 1
    %p39 = por %p37, %p38
    %p40 = scmp.ne.s32.totalorder %s32, %s35
    %p41 = scmp.eq.s32.totalorder %s10, 0
    %p42 = por %p40, %p41
    %p43 = scmp.ne.s32.totalorder %s32, %s35
    %p44 = scmp.eq.s32.totalorder %s15, 1
    %p45 = por %p43, %p44
    %p46 = scmp.ne.s32.totalorder %s35, %s36
    %p47 = scmp.eq.s32.totalorder %s15, 0
    %p48 = por %p46, %p47
    %p49 = scmp.ne.s32.totalorder %s35, %s36
    %p50 = scmp.eq.s32.totalorder %s16, 1
    %p51 = por %p49, %p50
    %p53 = scmp.ne.s32.totalorder %s36, %s52
    %p54 = scmp.eq.s32.totalorder %s16, 0
    %p55 = por %p53, %p54
    %s57 = sadd.s32 %s56, 1
    %p60 = scmp.eq.s32.totalorder %s10, 1
    %p61 = scmp.ne.s32.totalorder %s56, %s58
    %p62 = scmp.eq.s32.totalorder %s10, 0
    %p63 = por %p61, %p62
    %p64 = scmp.ne.s32.totalorder %s56, %s58
    %p65 = scmp.eq.s32.totalorder %s15, 1
    %p66 = por %p64, %p65
    %p67 = scmp.ne.s32.totalorder %s58, %s59
    %p68 = scmp.eq.s32.totalorder %s15, 0
    %p69 = por %p67, %p68
    %p70 = scmp.ne.s32.totalorder %s58, %s59
    %p71 = scmp.eq.s32.totalorder %s16, 1
    %p72 = por %p70, %p71
    %p74 = scmp.ne.s32.totalorder %s59, %s73
    %p75 = scmp.eq.s32.totalorder %s16, 0
    %p76 = por %p74, %p75
    %s78 = sadd.s32 %s77, 1
    %p81 = scmp.eq.s32.totalorder %s10, 1
    %p82 = scmp.ne.s32.totalorder %s77, %s79
    %p83 = scmp.eq.s32.totalorder %s10, 0
    %p84 = por %p82, %p83
    %p85 = scmp.ne.s32.totalorder %s77, %s79
    %p86 = scmp.eq.s32.totalorder %s15, 1
    %p87 = por %p85, %p86
    %p88 = scmp.ne.s32.totalorder %s79, %s80
    %p89 = scmp.eq.s32.totalorder %s15, 0
    %p90 = por %p88, %p89
    %p91 = scmp.ne.s32.totalorder %s79, %s80
    %p92 = scmp.eq.s32.totalorder %s16, 1
    %p93 = por %p91, %p92
    %p95 = scmp.ne.s32.totalorder %s80, %s94
    %p96 = scmp.eq.s32.totalorder %s16, 0
    %p97 = por %p95, %p96
    %s99 = sadd.s32 %s98, 1
    %p102 = scmp.eq.s32.totalorder %s10, 1
    %p103 = scmp.ne.s32.totalorder %s98, %s100
    %p104 = scmp.eq.s32.totalorder %s10, 0
    %p105 = por %p103, %p104
    %p106 = scmp.ne.s32.totalorder %s98, %s100
    %p107 = scmp.eq.s32.totalorder %s15, 1
    %p108 = por %p106, %p107
    %p109 = scmp.ne.s32.totalorder %s100, %s101
    %p110 = scmp.eq.s32.totalorder %s15, 0
    %p111 = por %p109, %p110
    %p112 = scmp.ne.s32.totalorder %s100, %s101
    %p113 = scmp.eq.s32.totalorder %s16, 1
    %p114 = por %p112, %p113
    %p116 = scmp.ne.s32.totalorder %s101, %s115
    %p117 = scmp.eq.s32.totalorder %s16, 0
    %p118 = por %p116, %p117
    %s119 = ssub.s32 %s17, %s29
    %s120 = ssub.s32 %s18, %s25
    %s121 = sor.u32 %s119, %s120
    %p122 = scmp.eq.s32.totalorder %s121, 0
    %s124 = sadd.s32 %s123, 1
    %s125 = scalar_select %p122, %s123, %s124
    %p128 = pneg %p122
    %p129 = scmp.eq.s32.totalorder %s10, 1
    %p130 = por %p128, %p129
    %p131 = scmp.ne.s32.totalorder %s123, %s126
    %p132 = scmp.eq.s32.totalorder %s10, 0
    %p133 = por %p131, %p132
    %p134 = scmp.ne.s32.totalorder %s123, %s126
    %p135 = scmp.eq.s32.totalorder %s15, 1
    %p136 = por %p134, %p135
    %p137 = scmp.ne.s32.totalorder %s126, %s127
    %p138 = scmp.eq.s32.totalorder %s15, 0
    %p139 = por %p137, %p138
    %p140 = scmp.ne.s32.totalorder %s126, %s127
    %p141 = scmp.eq.s32.totalorder %s16, 1
    %p142 = por %p140, %p141
    %p144 = scmp.ne.s32.totalorder %s127, %s143
    %p145 = scmp.eq.s32.totalorder %s16, 0
    %p146 = por %p144, %p145
    %p147 = scmp.le.s32.totalorder 1, %s10
    %p148 = scmp.lt.s32.totalorder %s10, 3
    %p149 = pnand %p147, %p148
    %p150 = pneg %p149
    // Predicated region
    $region9: #{discriminator_forward.6} parent=5 // pred_check
      _
    $region10: #{discriminator_forward.6} parent=5 // pred_check_branch
      %152 = sbr.rel (%p149) target = $region12
    $region11: #{discriminator_forward.6} parent=5 // pred_region
      %s153 = ssub.s32 %s10, 1
      // Predicated region
      $region13: #{discriminator_forward.6} parent=11 // pred_check
        %p154 = pneg %p69
      $region14: #{discriminator_forward.6} parent=11 // pred_check_branch
        %156 = sbr.rel (%p154) target = $region16
      $region15: #{discriminator_forward.6} parent=11 // pred_region
        _
      $region16: #{discriminator_forward.6} parent=11 // pred_fallthru
        _
      // Predicated region
      $region17: #{discriminator_forward.6} parent=11 // pred_check
        %p157 = pneg %p90
      $region18: #{discriminator_forward.6} parent=11 // pred_check_branch
        %159 = sbr.rel (%p157) target = $region20
      $region19: #{discriminator_forward.6} parent=11 // pred_region
        _
      $region20: #{discriminator_forward.6} parent=11 // pred_fallthru
        _
      // Predicated region
      $region21: #{discriminator_forward.6} parent=11 // pred_check
        %p160 = pneg %p111
      $region22: #{discriminator_forward.6} parent=11 // pred_check_branch
        %162 = sbr.rel (%p160) target = $region24
      $region23: #{discriminator_forward.6} parent=11 // pred_region
        _
      $region24: #{discriminator_forward.6} parent=11 // pred_fallthru
        _
    $region12: #{discriminator_forward.6} parent=5 // pred_fallthru
      _
    %p163 = scmp.lt.s32.totalorder %s10, 2
    // Predicated region
    $region25: #{discriminator_forward.6} parent=5 // pred_check
      %p164 = pneg %p163
    $region26: #{discriminator_forward.6} parent=5 // pred_check_branch
      %166 = sbr.rel (%p164) target = $region28
    $region27: #{discriminator_forward.6} parent=5 // pred_region
      // Predicated region
      $region29: #{discriminator_forward.6} parent=27 // pred_check
        %p167 = pneg %p42
      $region30: #{discriminator_forward.6} parent=27 // pred_check_branch
        %169 = sbr.rel (%p167) target = $region32
      $region31: #{discriminator_forward.6} parent=27 // pred_region
        %p170 = scmp.lt.s32.totalorder %s17, 1
        %s171 = scalar_select %p170, %s17, 1
        %s172 = smul.addr %s171, 4
        %s173 = smul.addr %s172, 2
        %s174 = scalar_lea.vmem %s0, %s173
      $region32: #{discriminator_forward.6} parent=27 // pred_fallthru
        _
    $region28: #{discriminator_forward.6} parent=5 // pred_fallthru
      _
    %p175 = scmp.le.s32.totalorder 1, %s10
    %p176 = scmp.lt.s32.totalorder %s10, 3
    %p177 = pnand %p175, %p176
    %p178 = pneg %p177
    // Predicated region
    $region33: #{discriminator_forward.6} parent=5 // pred_check
      _
    $region34: #{discriminator_forward.6} parent=5 // pred_check_branch
      %180 = sbr.rel (%p177) target = $region36
    $region35: #{discriminator_forward.6} parent=5 // pred_region
      %s181 = ssub.s32 %s10, 1
      %p182 = scmp.lt.s32.totalorder %s19, 1
      %s183 = scalar_select %p182, %s19, 1
      %s184 = smul.addr %s183, 4
      %s185 = smul.addr %s184, 2
      %s186 = scalar_lea.vmem %s0, %s185
      %p187 = pneg %p48
      %p188 = pneg %p45
      %p189 = pneg %p69
      %p190 = pneg %p66
      %p191 = pneg %p90
      %p192 = pneg %p87
      %p193 = pneg %p111
      %p194 = pneg %p108
      %p195 = pneg %p139
      %p196 = pneg %p136
      %s197 = smul.u32 3, %s20
      %p198 = scmp.lt.s32.totalorder %s19, 1
      %s199 = scalar_select %p198, %s19, 1
      %p200 = scmp.lt.s32.totalorder %s197, 2
      %s201 = scalar_select %p200, %s197, 2
      %s202 = smul.addr %s199, 3
      %s203 = sadd.s32 %s201, %s202
      %s204 = smul.addr %s203, 2
      %s205 = scalar_lea.vmem %s4, %s204
      %p206 = scmp.lt.s32.totalorder %s19, 1
      %s207 = scalar_select %p206, %s19, 1
      %s208 = smul.addr %s207, 4
      %s209 = smul.addr %s208, 2
      %s210 = scalar_lea.vmem %s0, %s209
      %s211 = smul.u32 3, %s20
      %p212 = scmp.lt.s32.totalorder %s19, 1
      %s213 = scalar_select %p212, %s19, 1
      %p214 = scmp.lt.s32.totalorder %s211, 2
      %s215 = scalar_select %p214, %s211, 2
      %s216 = smul.addr %s213, 3
      %s217 = sadd.s32 %s215, %s216
      %s218 = smul.addr %s217, 2
      %s219 = scalar_lea.vmem %s4, %s218
      %s220 = smul.u32 3, %s20
      %s222 = smul.u32 %s20, 3
      %s223 = smul.addr %s222, 2
      %s224 = scalar_lea.vmem %s210, %s223
      %v225 = vld [vmem:[%s224] sm:$0x3]
      %v226 = vld [vmem:[%s224 + $0x2] sm:$0x3]
      %v227 = vld [vmem:[%s224 + $0x4] sm:$0x3]
      %v228 = vld [vmem:[%s224 + $0x6] sm:$0x3]
      %v229 = vld [vmem:[%s1] sm:$0xf]
      %v230 = vld [vmem:[%s1 + $0x4] sm:$0xf]
      %v231 = vld [vmem:[%s1 + $0x8] sm:$0xf]
      %v232 = vld [vmem:[%s1 + $0xc] sm:$0xf]
      %v233 = vld [vmem:[%s1 + $0x10] sm:$0xf]
      %v234 = vld [vmem:[%s1 + $0x14] sm:$0xf]
      %v235 = vld [vmem:[%s1 + $0x18] sm:$0xf]
      %v236 = vld [vmem:[%s1 + $0x1c] sm:$0xf]
      %v237 = vld [vmem:[%s1 + $0x20] sm:$0xf]
      %v238 = vld [vmem:[%s1 + $0x24] sm:$0xf]
      %v239 = vld [vmem:[%s1 + $0x28] sm:$0xf]
      %v240 = vld [vmem:[%s1 + $0x2c] sm:$0xf]
      %v241 = vld [vmem:[%s1 + $0x30] sm:$0xf]
      %v242 = vld [vmem:[%s1 + $0x34] sm:$0xf]
      %v243 = vld [vmem:[%s1 + $0x38] sm:$0xf]
      %v244 = vld [vmem:[%s1 + $0x3c] sm:$0xf]
      %v245 = vld [vmem:[%s1 + $0x40] sm:$0xf]
      %v246 = vld [vmem:[%s1 + $0x44] sm:$0xf]
      %v247 = vld [vmem:[%s1 + $0x48] sm:$0xf]
      %v248 = vld [vmem:[%s1 + $0x4c] sm:$0xf]
      %v249 = vld [vmem:[%s1 + $0x50] sm:$0xf]
      %v250 = vld [vmem:[%s1 + $0x54] sm:$0xf]
      %v251 = vld [vmem:[%s1 + $0x58] sm:$0xf]
      %v252 = vld [vmem:[%s1 + $0x5c] sm:$0xf]
      %v253 = vld [vmem:[%s1 + $0x60] sm:$0xf]
      %v254 = vld [vmem:[%s1 + $0x64] sm:$0xf]
      %v255 = vld [vmem:[%s1 + $0x68] sm:$0xf]
      %v256 = vld [vmem:[%s1 + $0x6c] sm:$0xf]
      %v257 = vld [vmem:[%s1 + $0x70] sm:$0xf]
      %v258 = vld [vmem:[%s1 + $0x74] sm:$0xf]
      %v259 = vld [vmem:[%s1 + $0x78] sm:$0xf]
      %v260 = vld [vmem:[%s1 + $0x7c] sm:$0xf]
      %v261 = vld [vmem:[%s1 + $0x80] sm:$0xf]
      %v262 = vld [vmem:[%s1 + $0x84] sm:$0xf]
      %v263 = vld [vmem:[%s1 + $0x88] sm:$0xf]
      %v264 = vld [vmem:[%s1 + $0x8c] sm:$0xf]
      %v265 = vld [vmem:[%s1 + $0x90] sm:$0xf]
      %v266 = vld [vmem:[%s1 + $0x94] sm:$0xf]
      %v267 = vld [vmem:[%s1 + $0x98] sm:$0xf]
      %v268 = vld [vmem:[%s1 + $0x9c] sm:$0xf]
      %v269 = vld [vmem:[%s1 + $0xa0] sm:$0xf]
      %v270 = vld [vmem:[%s1 + $0xa4] sm:$0xf]
      %v271 = vld [vmem:[%s1 + $0xa8] sm:$0xf]
      %v272 = vld [vmem:[%s1 + $0xac] sm:$0xf]
      %v273 = vld [vmem:[%s1 + $0xb0] sm:$0xf]
      %v274 = vld [vmem:[%s1 + $0xb4] sm:$0xf]
      %v275 = vld [vmem:[%s1 + $0xb8] sm:$0xf]
      %v276 = vld [vmem:[%s1 + $0xbc] sm:$0xf]
      %v277 = vld [vmem:[%s1 + $0xc0] sm:$0xf]
      %v278 = vld [vmem:[%s1 + $0xc4] sm:$0xf]
      %v279 = vld [vmem:[%s1 + $0xc8] sm:$0xf]
      %v280 = vld [vmem:[%s1 + $0xcc] sm:$0xf]
      %v281 = vld [vmem:[%s1 + $0xd0] sm:$0xf]
      %v282 = vld [vmem:[%s1 + $0xd4] sm:$0xf]
      %v283 = vld [vmem:[%s1 + $0xd8] sm:$0xf]
      %v284 = vld [vmem:[%s1 + $0xdc] sm:$0xf]
      %v285 = vld [vmem:[%s1 + $0xe0] sm:$0xf]
      %v286 = vld [vmem:[%s1 + $0xe4] sm:$0xf]
      %v287 = vld [vmem:[%s1 + $0xe8] sm:$0xf]
      %v288 = vld [vmem:[%s1 + $0xec] sm:$0xf]
      %v289 = vld [vmem:[%s1 + $0xf0] sm:$0xf]
      %v290 = vld [vmem:[%s1 + $0xf4] sm:$0xf]
      %v291 = vld [vmem:[%s1 + $0xf8] sm:$0xf]
      %v292 = vld [vmem:[%s1 + $0xfc] sm:$0xf]
      %v297 = vunpack.c.l.s4 1966171168
      %v298 = vunpack.c.0.s8 %v297
      %v299 = vlaneseq
      %v300 = vshrl.u32 %v299, 7
      %v301 = vsub.s32 %v298, %v300
      %v302 = vrot.slane %v225, %v301
      %v303 = vcombine.high %v302, %v302
      %v305 = vunpack.c.l.s4 1966171168
      %v306 = vunpack.c.0.s8 %v305
      %v307 = vlaneseq
      %v308 = vshrl.u32 %v307, 7
      %v309 = vsub.s32 %v306, %v308
      %v310 = vrot.slane %v226, %v309
      %v311 = vcombine.high %v310, %v310
      %v313 = vunpack.c.l.s4 1966171168
      %v314 = vunpack.c.0.s8 %v313
      %v315 = vlaneseq
      %v316 = vshrl.u32 %v315, 7
      %v317 = vsub.s32 %v314, %v316
      %v318 = vrot.slane %v227, %v317
      %v319 = vcombine.high %v318, %v318
      %v320 = vunpack.i.l.s16 %v302
      %v321 = vunpack.i.h.s16 %v302
      %v322 = vunpack.i.l.s16 %v303
      %v323 = vunpack.i.l.s16 %v310
      %v324 = vunpack.i.h.s16 %v310
      %v325 = vunpack.i.l.s16 %v311
      %v326 = vunpack.i.l.s16 %v318
      %v327 = vunpack.i.h.s16 %v318
      %v328 = vunpack.i.l.s16 %v319
      %v329 = vunpack.i.h.s16 %v303
      %v330 = vunpack.i.h.s16 %v311
      %v331 = vunpack.i.h.s16 %v319
      %v332 = vpack.i.b16 %v322, %v321
      %v333 = vpack.i.b16 %v324, %v329
      %v334 = vpack.i.b16 %v330, %v325
      %v335 = vpack.i.b16 %v328, %v327
      %v337 = vcombine.low %v332, %v333
      %v338 = vcombine.low %v334, %v335
      %v340 = vunpack.c.l.s4 1966171168
      %v341 = vunpack.c.0.s8 %v340
      %v342 = vlaneseq
      %v343 = vshrl.u32 %v342, 7
      %v344 = vsub.s32 %v341, %v343
      %v345 = vrot.slane %v337, %v344
      %v347 = vunpack.c.l.s4 1966171168
      %v348 = vunpack.c.0.s8 %v347
      %v349 = vlaneseq
      %v350 = vshrl.u32 %v349, 7
      %v351 = vsub.s32 %v348, %v350
      %v352 = vrot.slane %v338, %v351
      %v354 = vunpack.c.l.s4 1966171168
      %v355 = vunpack.c.0.s8 %v354
      %v356 = vlaneseq
      %v357 = vshrl.u32 %v356, 7
      %v358 = vsub.s32 %v355, %v357
      %v359 = vrot.slane %v331, %v358
      %v360 = vcombine.low %v345, %v352
      %v362 = vunpack.c.l.s4 1966171168
      %v363 = vunpack.c.0.s8 %v362
      %v364 = vlaneseq
      %v365 = vshrl.u32 %v364, 7
      %v366 = vsub.s32 %v363, %v365
      %v367 = vrot.slane %v360, %v366
      %v369 = vunpack.c.l.s4 1966171168
      %v370 = vunpack.c.0.s8 %v369
      %v371 = vlaneseq
      %v372 = vshrl.u32 %v371, 7
      %v373 = vsub.s32 %v370, %v372
      %v374 = vrot.slane %v359, %v373
      %v375 = vcombine.low %v367, %v374
      %v393 = vunpack.c.l.b16 %v245
      %v394 = vunpack.c.l.b16 %v246
      %v395 = vunpack.c.l.b16 %v247
      %v396 = vunpack.c.l.b16 %v248
      %v397 = vunpack.c.l.b16 %v249
      %v398 = vunpack.c.l.b16 %v250
      %v399 = vunpack.c.l.b16 %v251
      %v400 = vunpack.c.l.b16 %v252
      %v401 = vunpack.c.l.b16 %v253
      %v402 = vunpack.c.l.b16 %v254
      %v403 = vunpack.c.l.b16 %v255
      %v404 = vunpack.c.l.b16 %v256
      %v405 = vunpack.c.l.b16 %v257
      %v406 = vunpack.c.l.b16 %v258
      %v407 = vunpack.c.l.b16 %v259
      %v408 = vunpack.c.l.b16 %v260
      %v409 = vpack.c.b16 %v394, %v393
      %v410 = vpack.c.b16 %v396, %v395
      %v411 = vpack.c.b16 %v398, %v397
      %v412 = vpack.c.b16 %v400, %v399
      %v413 = vpack.c.b16 %v402, %v401
      %v414 = vpack.c.b16 %v404, %v403
      %v415 = vpack.c.b16 %v406, %v405
      %v416 = vpack.c.b16 %v408, %v407
      %425 = vmatprep.subr.bf16.mxu0 0
      %426 = vmatpush1.bf16.msra.mxu0 %v409
      %427 = vmatprep.subr.bf16.mxu0 0
      %428 = vmatpush1.bf16.msra.mxu0 %v410
      %429 = vmatprep.subr.bf16.mxu0 0
      %430 = vmatpush1.bf16.msra.mxu0 %v411
      %431 = vmatprep.subr.bf16.mxu0 0
      %432 = vmatpush1.bf16.msra.mxu0 %v412
      %433 = vmatprep.subr.bf16.mxu0 0
      %434 = vmatpush1.bf16.msra.mxu0 %v413
      %435 = vmatprep.subr.bf16.mxu0 0
      %436 = vmatpush1.bf16.msra.mxu0 %v414
      %437 = vmatprep.subr.bf16.mxu0 0
      %438 = vmatpush1.bf16.msra.mxu0 %v415
      %439 = vmatprep.subr.bf16.mxu0 0
      %440 = vmatpush1.bf16.msra.mxu0 %v416
      %441 = vmatprep.subr.bf16.mxu0 0
      %442 = vmatpush1.bf16.msra.mxu0 0
      %443 = vmatprep.subr.bf16.mxu0 0
      %444 = vmatpush1.bf16.msra.mxu0 0
      %445 = vmatprep.subr.bf16.mxu0 0
      %446 = vmatpush1.bf16.msra.mxu0 0
      %447 = vmatprep.subr.bf16.mxu0 0
      %448 = vmatpush1.bf16.msra.mxu0 0
      %449 = vmatprep.subr.bf16.mxu0 0
      %450 = vmatpush1.bf16.msra.mxu0 0
      %451 = vmatprep.subr.bf16.mxu0 0
      %452 = vmatpush1.bf16.msra.mxu0 0
      %453 = vmatprep.subr.bf16.mxu0 0
      %454 = vmatpush1.bf16.msra.mxu0 0
      %455 = vmatprep.subr.bf16.mxu0 0
      %456 = vmatpush1.bf16.msra.mxu0 0
      %457 = vmatprep.mubr.bf16.mxu0 0
      %458 = vmatmul.mubr.bf16.gmra.mrb[0].mxu0 %v375
      %v459 = vpop.f32.mrb[0].mxu0
      %v460 = vadd.f32 0.0, %v459
      %v461 = vpop.f32.mrb[0].mxu0
      %v462 = vpop.f32.mrb[0].mxu0
      %v463 = vadd.f32 0.0, %v462
      %v464 = vpop.f32.mrb[0].mxu0
      %465 = vdwg.mxu0
      %v466 = vpack.i.b16 %v321, %v320
      %v467 = vpack.i.b16 %v323, %v322
      %v468 = vpack.i.b16 %v325, %v324
      %v469 = vpack.i.b16 %v327, %v326
      %v471 = vcombine.low %v466, %v467
      %v472 = vcombine.low %v468, %v469
      %v474 = vunpack.c.l.s4 1966171168
      %v475 = vunpack.c.0.s8 %v474
      %v476 = vlaneseq
      %v477 = vshrl.u32 %v476, 7
      %v478 = vsub.s32 %v475, %v477
      %v479 = vrot.slane %v471, %v478
      %v481 = vunpack.c.l.s4 1966171168
      %v482 = vunpack.c.0.s8 %v481
      %v483 = vlaneseq
      %v484 = vshrl.u32 %v483, 7
      %v485 = vsub.s32 %v482, %v484
      %v486 = vrot.slane %v472, %v485
      %v488 = vunpack.c.l.s4 1966171168
      %v489 = vunpack.c.0.s8 %v488
      %v490 = vlaneseq
      %v491 = vshrl.u32 %v490, 7
      %v492 = vsub.s32 %v489, %v491
      %v493 = vrot.slane %v328, %v492
      %v494 = vcombine.low %v479, %v486
      %v496 = vunpack.c.l.s4 1966171168
      %v497 = vunpack.c.0.s8 %v496
      %v498 = vlaneseq
      %v499 = vshrl.u32 %v498, 7
      %v500 = vsub.s32 %v497, %v499
      %v501 = vrot.slane %v494, %v500
      %v503 = vunpack.c.l.s4 1966171168
      %v504 = vunpack.c.0.s8 %v503
      %v505 = vlaneseq
      %v506 = vshrl.u32 %v505, 7
      %v507 = vsub.s32 %v504, %v506
      %v508 = vrot.slane %v493, %v507
      %v509 = vcombine.low %v501, %v508
      %v527 = vunpack.c.l.b16 %v229
      %v528 = vunpack.c.l.b16 %v230
      %v529 = vunpack.c.l.b16 %v231
      %v530 = vunpack.c.l.b16 %v232
      %v531 = vunpack.c.l.b16 %v233
      %v532 = vunpack.c.l.b16 %v234
      %v533 = vunpack.c.l.b16 %v235
      %v534 = vunpack.c.l.b16 %v236
      %v535 = vunpack.c.l.b16 %v237
      %v536 = vunpack.c.l.b16 %v238
      %v537 = vunpack.c.l.b16 %v239
      %v538 = vunpack.c.l.b16 %v240
      %v539 = vunpack.c.l.b16 %v241
      %v540 = vunpack.c.l.b16 %v242
      %v541 = vunpack.c.l.b16 %v243
      %v542 = vunpack.c.l.b16 %v244
      %v543 = vpack.c.b16 %v528, %v527
      %v544 = vpack.c.b16 %v530, %v529
      %v545 = vpack.c.b16 %v532, %v531
      %v546 = vpack.c.b16 %v534, %v533
      %v547 = vpack.c.b16 %v536, %v535
      %v548 = vpack.c.b16 %v538, %v537
      %v549 = vpack.c.b16 %v540, %v539
      %v550 = vpack.c.b16 %v542, %v541
      %559 = vmatprep.subr.bf16.mxu0 0
      %560 = vmatpush1.bf16.msra.mxu0 %v543
      %561 = vmatprep.subr.bf16.mxu0 0
      %562 = vmatpush1.bf16.msra.mxu0 %v544
      %563 = vmatprep.subr.bf16.mxu0 0
      %564 = vmatpush1.bf16.msra.mxu0 %v545
      %565 = vmatprep.subr.bf16.mxu0 0
      %566 = vmatpush1.bf16.msra.mxu0 %v546
      %567 = vmatprep.subr.bf16.mxu0 0
      %568 = vmatpush1.bf16.msra.mxu0 %v547
      %569 = vmatprep.subr.bf16.mxu0 0
      %570 = vmatpush1.bf16.msra.mxu0 %v548
      %571 = vmatprep.subr.bf16.mxu0 0
      %572 = vmatpush1.bf16.msra.mxu0 %v549
      %573 = vmatprep.subr.bf16.mxu0 0
      %574 = vmatpush1.bf16.msra.mxu0 %v550
      %575 = vmatprep.subr.bf16.mxu0 0
      %576 = vmatpush1.bf16.msra.mxu0 0
      %577 = vmatprep.subr.bf16.mxu0 0
      %578 = vmatpush1.bf16.msra.mxu0 0
      %579 = vmatprep.subr.bf16.mxu0 0
      %580 = vmatpush1.bf16.msra.mxu0 0
      %581 = vmatprep.subr.bf16.mxu0 0
      %582 = vmatpush1.bf16.msra.mxu0 0
      %583 = vmatprep.subr.bf16.mxu0 0
      %584 = vmatpush1.bf16.msra.mxu0 0
      %585 = vmatprep.subr.bf16.mxu0 0
      %586 = vmatpush1.bf16.msra.mxu0 0
      %587 = vmatprep.subr.bf16.mxu0 0
      %588 = vmatpush1.bf16.msra.mxu0 0
      %589 = vmatprep.subr.bf16.mxu0 0
      %590 = vmatpush1.bf16.msra.mxu0 0
      %591 = vmatprep.mubr.bf16.mxu0 0
      %592 = vmatmul.mubr.bf16.gmra.mrb[0].mxu0 %v509
      %v593 = vpop.f32.mrb[0].mxu0
      %v594 = vadd.f32 %v460, %v593
      %v595 = vpop.f32.mrb[0].mxu0
      %v596 = vpop.f32.mrb[0].mxu0
      %v597 = vadd.f32 %v463, %v596
      %v598 = vpop.f32.mrb[0].mxu0
      %599 = vdwg.mxu0
      %v602 = vunpack.c.l.s4 1966171168
      %v603 = vunpack.c.0.s8 %v602
      %v604 = vlaneseq
      %v605 = vshrl.u32 %v604, 7
      %v606 = vsub.s32 %v603, %v605
      %v607 = vrot.slane %v228, %v606
      %v608 = vcombine.high %v607, %v607
      %v609 = vunpack.i.l.s16 %v607
      %v610 = vunpack.i.h.s16 %v607
      %v611 = vunpack.i.l.s16 %v608
      %v612 = vpack.i.b16 %v324, %v323
      %v613 = vpack.i.b16 %v326, %v325
      %v614 = vpack.i.b16 %v610, %v609
      %v616 = vcombine.low %v612, %v613
      %v617 = vcombine.low %v335, %v614
      %v619 = vunpack.c.l.s4 1966171168
      %v620 = vunpack.c.0.s8 %v619
      %v621 = vlaneseq
      %v622 = vshrl.u32 %v621, 7
      %v623 = vsub.s32 %v620, %v622
      %v624 = vrot.slane %v616, %v623
      %v626 = vunpack.c.l.s4 1966171168
      %v627 = vunpack.c.0.s8 %v626
      %v628 = vlaneseq
      %v629 = vshrl.u32 %v628, 7
      %v630 = vsub.s32 %v627, %v629
      %v631 = vrot.slane %v617, %v630
      %v633 = vunpack.c.l.s4 1966171168
      %v634 = vunpack.c.0.s8 %v633
      %v635 = vlaneseq
      %v636 = vshrl.u32 %v635, 7
      %v637 = vsub.s32 %v634, %v636
      %v638 = vrot.slane %v611, %v637
      %v639 = vcombine.low %v624, %v631
      %v641 = vunpack.c.l.s4 1966171168
      %v642 = vunpack.c.0.s8 %v641
      %v643 = vlaneseq
      %v644 = vshrl.u32 %v643, 7
      %v645 = vsub.s32 %v642, %v644
      %v646 = vrot.slane %v639, %v645
      %v648 = vunpack.c.l.s4 1966171168
      %v649 = vunpack.c.0.s8 %v648
      %v650 = vlaneseq
      %v651 = vshrl.u32 %v650, 7
      %v652 = vsub.s32 %v649, %v651
      %v653 = vrot.slane %v638, %v652
      %v654 = vcombine.low %v646, %v653
      %v672 = vunpack.c.l.b16 %v261
      %v673 = vunpack.c.l.b16 %v262
      %v674 = vunpack.c.l.b16 %v263
      %v675 = vunpack.c.l.b16 %v264
      %v676 = vunpack.c.l.b16 %v265
      %v677 = vunpack.c.l.b16 %v266
      %v678 = vunpack.c.l.b16 %v267
      %v679 = vunpack.c.l.b16 %v268
      %v680 = vunpack.c.l.b16 %v269
      %v681 = vunpack.c.l.b16 %v270
      %v682 = vunpack.c.l.b16 %v271
      %v683 = vunpack.c.l.b16 %v272
      %v684 = vunpack.c.l.b16 %v273
      %v685 = vunpack.c.l.b16 %v274
      %v686 = vunpack.c.l.b16 %v275
      %v687 = vunpack.c.l.b16 %v276
      %v688 = vpack.c.b16 %v673, %v672
      %v689 = vpack.c.b16 %v675, %v674
      %v690 = vpack.c.b16 %v677, %v676
      %v691 = vpack.c.b16 %v679, %v678
      %v692 = vpack.c.b16 %v681, %v680
      %v693 = vpack.c.b16 %v683, %v682
      %v694 = vpack.c.b16 %v685, %v684
      %v695 = vpack.c.b16 %v687, %v686
      %704 = vmatprep.subr.bf16.mxu0 0
      %705 = vmatpush1.bf16.msra.mxu0 %v688
      %706 = vmatprep.subr.bf16.mxu0 0
      %707 = vmatpush1.bf16.msra.mxu0 %v689
      %708 = vmatprep.subr.bf16.mxu0 0
      %709 = vmatpush1.bf16.msra.mxu0 %v690
      %710 = vmatprep.subr.bf16.mxu0 0
      %711 = vmatpush1.bf16.msra.mxu0 %v691
      %712 = vmatprep.subr.bf16.mxu0 0
      %713 = vmatpush1.bf16.msra.mxu0 %v692
      %714 = vmatprep.subr.bf16.mxu0 0
      %715 = vmatpush1.bf16.msra.mxu0 %v693
      %716 = vmatprep.subr.bf16.mxu0 0
      %717 = vmatpush1.bf16.msra.mxu0 %v694
      %718 = vmatprep.subr.bf16.mxu0 0
      %719 = vmatpush1.bf16.msra.mxu0 %v695
      %720 = vmatprep.subr.bf16.mxu0 0
      %721 = vmatpush1.bf16.msra.mxu0 0
      %722 = vmatprep.subr.bf16.mxu0 0
      %723 = vmatpush1.bf16.msra.mxu0 0
      %724 = vmatprep.subr.bf16.mxu0 0
      %725 = vmatpush1.bf16.msra.mxu0 0
      %726 = vmatprep.subr.bf16.mxu0 0
      %727 = vmatpush1.bf16.msra.mxu0 0
      %728 = vmatprep.subr.bf16.mxu0 0
      %729 = vmatpush1.bf16.msra.mxu0 0
      %730 = vmatprep.subr.bf16.mxu0 0
      %731 = vmatpush1.bf16.msra.mxu0 0
      %732 = vmatprep.subr.bf16.mxu0 0
      %733 = vmatpush1.bf16.msra.mxu0 0
      %734 = vmatprep.subr.bf16.mxu0 0
      %735 = vmatpush1.bf16.msra.mxu0 0
      %736 = vmatprep.mubr.bf16.mxu0 0
      %737 = vmatmul.mubr.bf16.gmra.mrb[0].mxu0 %v654
      %v738 = vpop.f32.mrb[0].mxu0
      %v739 = vadd.f32 0.0, %v738
      %v740 = vpop.f32.mrb[0].mxu0
      %v741 = vpop.f32.mrb[0].mxu0
      %v742 = vadd.f32 0.0, %v741
      %v743 = vpop.f32.mrb[0].mxu0
      %744 = vdwg.mxu0
      %v745 = vadd.f32 %v594, %v739
      %v746 = vadd.f32 %v597, %v742
      %v747 = vunpack.i.h.s16 %v608
      %v748 = vpack.i.b16 %v327, %v330
      %v749 = vpack.i.b16 %v331, %v328
      %v750 = vpack.i.b16 %v611, %v610
      %v752 = vcombine.low %v468, %v748
      %v753 = vcombine.low %v749, %v750
      %v755 = vunpack.c.l.s4 1966171168
      %v756 = vunpack.c.0.s8 %v755
      %v757 = vlaneseq
      %v758 = vshrl.u32 %v757, 7
      %v759 = vsub.s32 %v756, %v758
      %v760 = vrot.slane %v752, %v759
      %v762 = vunpack.c.l.s4 1966171168
      %v763 = vunpack.c.0.s8 %v762
      %v764 = vlaneseq
      %v765 = vshrl.u32 %v764, 7
      %v766 = vsub.s32 %v763, %v765
      %v767 = vrot.slane %v753, %v766
      %v769 = vunpack.c.l.s4 1966171168
      %v770 = vunpack.c.0.s8 %v769
      %v771 = vlaneseq
      %v772 = vshrl.u32 %v771, 7
      %v773 = vsub.s32 %v770, %v772
      %v774 = vrot.slane %v747, %v773
      %v775 = vcombine.low %v760, %v767
      %v777 = vunpack.c.l.s4 1966171168
      %v778 = vunpack.c.0.s8 %v777
      %v779 = vlaneseq
      %v780 = vshrl.u32 %v779, 7
      %v781 = vsub.s32 %v778, %v780
      %v782 = vrot.slane %v775, %v781
      %v784 = vunpack.c.l.s4 1966171168
      %v785 = vunpack.c.0.s8 %v784
      %v786 = vlaneseq
      %v787 = vshrl.u32 %v786, 7
      %v788 = vsub.s32 %v785, %v787
      %v789 = vrot.slane %v774, %v788
      %v790 = vcombine.low %v782, %v789
      %v808 = vunpack.c.l.b16 %v277
      %v809 = vunpack.c.l.b16 %v278
      %v810 = vunpack.c.l.b16 %v279
      %v811 = vunpack.c.l.b16 %v280
      %v812 = vunpack.c.l.b16 %v281
      %v813 = vunpack.c.l.b16 %v282
      %v814 = vunpack.c.l.b16 %v283
      %v815 = vunpack.c.l.b16 %v284
      %v816 = vunpack.c.l.b16 %v285
      %v817 = vunpack.c.l.b16 %v286
      %v818 = vunpack.c.l.b16 %v287
      %v819 = vunpack.c.l.b16 %v288
      %v820 = vunpack.c.l.b16 %v289
      %v821 = vunpack.c.l.b16 %v290
      %v822 = vunpack.c.l.b16 %v291
      %v823 = vunpack.c.l.b16 %v292
      %v824 = vpack.c.b16 %v809, %v808
      %v825 = vpack.c.b16 %v811, %v810
      %v826 = vpack.c.b16 %v813, %v812
      %v827 = vpack.c.b16 %v815, %v814
      %v828 = vpack.c.b16 %v817, %v816
      %v829 = vpack.c.b16 %v819, %v818
      %v830 = vpack.c.b16 %v821, %v820
      %v831 = vpack.c.b16 %v823, %v822
      %840 = vmatprep.subr.bf16.mxu0 0
      %841 = vmatpush1.bf16.msra.mxu0 %v824
      %842 = vmatprep.subr.bf16.mxu0 0
      %843 = vmatpush1.bf16.msra.mxu0 %v825
      %844 = vmatprep.subr.bf16.mxu0 0
      %845 = vmatpush1.bf16.msra.mxu0 %v826
      %846 = vmatprep.subr.bf16.mxu0 0
      %847 = vmatpush1.bf16.msra.mxu0 %v827
      %848 = vmatprep.subr.bf16.mxu0 0
      %849 = vmatpush1.bf16.msra.mxu0 %v828
      %850 = vmatprep.subr.bf16.mxu0 0
      %851 = vmatpush1.bf16.msra.mxu0 %v829
      %852 = vmatprep.subr.bf16.mxu0 0
      %853 = vmatpush1.bf16.msra.mxu0 %v830
      %854 = vmatprep.subr.bf16.mxu0 0
      %855 = vmatpush1.bf16.msra.mxu0 %v831
      %856 = vmatprep.subr.bf16.mxu0 0
      %857 = vmatpush1.bf16.msra.mxu0 0
      %858 = vmatprep.subr.bf16.mxu0 0
      %859 = vmatpush1.bf16.msra.mxu0 0
      %860 = vmatprep.subr.bf16.mxu0 0
      %861 = vmatpush1.bf16.msra.mxu0 0
      %862 = vmatprep.subr.bf16.mxu0 0
      %863 = vmatpush1.bf16.msra.mxu0 0
      %864 = vmatprep.subr.bf16.mxu0 0
      %865 = vmatpush1.bf16.msra.mxu0 0
      %866 = vmatprep.subr.bf16.mxu0 0
      %867 = vmatpush1.bf16.msra.mxu0 0
      %868 = vmatprep.subr.bf16.mxu0 0
      %869 = vmatpush1.bf16.msra.mxu0 0
      %870 = vmatprep.subr.bf16.mxu0 0
      %871 = vmatpush1.bf16.msra.mxu0 0
      %872 = vmatprep.mubr.bf16.mxu0 0
      %873 = vmatmul.mubr.bf16.gmra.mrb[0].mxu0 %v790
      %v874 = vpop.f32.mrb[0].mxu0
      %v875 = vadd.f32 0.0, %v874
      %v876 = vpop.f32.mrb[0].mxu0
      %v877 = vpop.f32.mrb[0].mxu0
      %v878 = vadd.f32 0.0, %v877
      %v879 = vpop.f32.mrb[0].mxu0
      %880 = vdwg.mxu0
      %v881 = vadd.f32 %v745, %v875
      %v882 = vadd.f32 %v746, %v878
      %v883 = vld [vmem:[%s2] sm:$0x1]
      %v885 = vlaneseq
      %v886 = vshrl.u32 %v885, 7
      %v887 = vsub.s32 0, %v886
      %v888 = vrot.slane %v883, %v887
      %v890 = vmul.f32 %v881, %v888
      %v891 = vmul.f32 %v882, %v888
      %v892 = vld [vmem:[%s3] sm:$0x1]
      %v894 = vlaneseq
      %v895 = vshrl.u32 %v894, 7
      %v896 = vsub.s32 0, %v895
      %v897 = vrot.slane %v892, %v896
      %v899 = vadd.f32 %v890, %v897
      %v900 = vadd.f32 %v891, %v897
      %v901 = vmul.f32 %v899, 0.2
      %v902 = vmul.f32 %v900, 0.2
      %v903 = vmax.f32 %v899, %v901
      %v904 = vmax.f32 %v900, %v902
      %v907 = vcombine.high %v903, %v903
      %v909 = vunpack.c.l.s4 1966171168
      %v910 = vunpack.c.0.s8 %v909
      %v911 = vlaneseq
      %v912 = vshrl.u32 %v911, 7
      %v913 = vsub.s32 %v910, %v912
      %v914 = vrot.slane %v903, %v913
      %v916 = vunpack.c.l.s4 1966171168
      %v917 = vunpack.c.0.s8 %v916
      %v918 = vlaneseq
      %v919 = vshrl.u32 %v918, 7
      %v920 = vsub.s32 %v917, %v919
      %v921 = vrot.slane %v907, %v920
      %v922 = vcombine.high %v914, %v914
      %v923 = vcombine.high %v921, %v921
      %v925 = vunpack.c.l.s4 1966171168
      %v926 = vunpack.c.0.s8 %v925
      %v927 = vlaneseq
      %v928 = vshrl.u32 %v927, 7
      %v929 = vsub.s32 %v926, %v928
      %v930 = vrot.slane %v914, %v929
      %v932 = vunpack.c.l.s4 1966171168
      %v933 = vunpack.c.0.s8 %v932
      %v934 = vlaneseq
      %v935 = vshrl.u32 %v934, 7
      %v936 = vsub.s32 %v933, %v935
      %v937 = vrot.slane %v921, %v936
      %v939 = vunpack.c.l.s4 1966171168
      %v940 = vunpack.c.0.s8 %v939
      %v941 = vlaneseq
      %v942 = vshrl.u32 %v941, 7
      %v943 = vsub.s32 %v940, %v942
      %v944 = vrot.slane %v922, %v943
      %v946 = vunpack.c.l.s4 1966171168
      %v947 = vunpack.c.0.s8 %v946
      %v948 = vlaneseq
      %v949 = vshrl.u32 %v948, 7
      %v950 = vsub.s32 %v947, %v949
      %v951 = vrot.slane %v923, %v950
      %v952 = vcombine.high %v930, %v930
      %v953 = vcombine.high %v937, %v937
      %v954 = vcombine.high %v944, %v944
      %v955 = vcombine.high %v951, %v951
      %v957 = vunpack.c.l.s4 1966171168
      %v958 = vunpack.c.0.s8 %v957
      %v959 = vlaneseq
      %v960 = vshrl.u32 %v959, 7
      %v961 = vsub.s32 %v958, %v960
      %v962 = vrot.slane %v904, %v961
      %v964 = vunpack.c.l.s4 1966171168
      %v965 = vunpack.c.0.s8 %v964
      %v966 = vlaneseq
      %v967 = vshrl.u32 %v966, 7
      %v968 = vsub.s32 %v965, %v967
      %v969 = vrot.slane %v962, %v968
      %v970 = vcombine.low %v930, %v944
      %v972 = vunpack.c.l.s4 1966171168
      %v973 = vunpack.c.0.s8 %v972
      %v974 = vlaneseq
      %v975 = vshrl.u32 %v974, 7
      %v976 = vsub.s32 %v973, %v975
      %v977 = vrot.slane %v970, %v976
      %v979 = vunpack.c.l.s4 1966171168
      %v980 = vunpack.c.0.s8 %v979
      %v981 = vlaneseq
      %v982 = vshrl.u32 %v981, 7
      %v983 = vsub.s32 %v980, %v982
      %v984 = vrot.slane %v952, %v983
      %v985 = vcombine.low %v977, %v984
      %v987 = vunpack.c.l.s4 1966171168
      %v988 = vunpack.c.0.s8 %v987
      %v989 = vlaneseq
      %v990 = vshrl.u32 %v989, 7
      %v991 = vsub.s32 %v988, %v990
      %v992 = vrot.slane %v985, %v991
      %v993 = vcombine.low %v954, %v937
      %v995 = vunpack.c.l.s4 1966171168
      %v996 = vunpack.c.0.s8 %v995
      %v997 = vlaneseq
      %v998 = vshrl.u32 %v997, 7
      %v999 = vsub.s32 %v996, %v998
      %v1000 = vrot.slane %v993, %v999
      %v1002 = vunpack.c.l.s4 1966171168
      %v1003 = vunpack.c.0.s8 %v1002
      %v1004 = vlaneseq
      %v1005 = vshrl.u32 %v1004, 7
      %v1006 = vsub.s32 %v1003, %v1005
      %v1007 = vrot.slane %v951, %v1006
      %v1008 = vcombine.low %v1000, %v1007
      %v1010 = vunpack.c.l.s4 1966171168
      %v1011 = vunpack.c.0.s8 %v1010
      %v1012 = vlaneseq
      %v1013 = vshrl.u32 %v1012, 7
      %v1014 = vsub.s32 %v1011, %v1013
      %v1015 = vrot.slane %v1008, %v1014
      %v1016 = vcombine.low %v953, %v955
      %v1018 = vunpack.c.l.s4 1966171168
      %v1019 = vunpack.c.0.s8 %v1018
      %v1020 = vlaneseq
      %v1021 = vshrl.u32 %v1020, 7
      %v1022 = vsub.s32 %v1019, %v1021
      %v1023 = vrot.slane %v1016, %v1022
      %v1025 = vunpack.c.l.s4 1966171168
      %v1026 = vunpack.c.0.s8 %v1025
      %v1027 = vlaneseq
      %v1028 = vshrl.u32 %v1027, 7
      %v1029 = vsub.s32 %v1026, %v1028
      %v1030 = vrot.slane %v969, %v1029
      %v1031 = vcombine.low %v1023, %v1030
      %v1033 = vunpack.c.l.s4 1966171168
      %v1034 = vunpack.c.0.s8 %v1033
      %v1035 = vlaneseq
      %v1036 = vshrl.u32 %v1035, 7
      %v1037 = vsub.s32 %v1034, %v1036
      %v1038 = vrot.slane %v1031, %v1037
      %v1042 = vpack.c.bf16 %v992, %v992
      %v1043 = vpack.c.bf16 %v1015, %v1015
      %v1044 = vpack.c.bf16 %v1038, %v1038
      %vm1045 = vcmask 517120
      %vm1046 = vsmask.f32 1280
      %vm1047 = vmand %vm1045, %vm1046
      %v1048 = vld [vmem:[%s219] sm:$0x3]
      %v1049 = vsel %vm1047, %v1042, %v1048
      %1050 = vst [vmem:[%s219] sm:$0x3] %v1049
      %v1051 = vld [vmem:[%s219 + $0x2] sm:$0x3]
      %v1052 = vsel %vm1047, %v1043, %v1051
      %1053 = vst [vmem:[%s219 + $0x2] sm:$0x3] %v1052
      %v1054 = vld [vmem:[%s219 + $0x4] sm:$0x3]
      %v1055 = vsel %vm1047, %v1044, %v1054
      %1056 = vst [vmem:[%s219 + $0x4] sm:$0x3] %v1055
      %s1057 = smul.u32 3, %s20
      %p1058 = scmp.lt.s32.totalorder %s19, 1
      %s1059 = scalar_select %p1058, %s19, 1
      %p1060 = scmp.lt.s32.totalorder %s1057, 2
      %s1061 = scalar_select %p1060, %s1057, 2
      %s1062 = smul.addr %s1059, 3
      %s1063 = sadd.s32 %s1061, %s1062
      %s1064 = smul.addr %s1063, 2
      %s1065 = scalar_lea.vmem %s4, %s1064
      // Predicated region
      $region37: #{discriminator_forward.6} parent=35 // pred_check
        %p1066 = pneg %p136
      $region38: #{discriminator_forward.6} parent=35 // pred_check_branch
        %1068 = sbr.rel (%p1066) target = $region40
      $region39: #{discriminator_forward.6} parent=35 // pred_region
        %s1069 = smul.u32 3, %s20
      $region40: #{discriminator_forward.6} parent=35 // pred_fallthru
        _
    $region36: #{discriminator_forward.6} parent=5 // pred_fallthru
      _
    %p1070 = scmp.le.s32.totalorder 2, %s10
    // Predicated region
    $region41: #{discriminator_forward.6} parent=5 // pred_check
      %p1071 = pneg %p1070
    $region42: #{discriminator_forward.6} parent=5 // pred_check_branch
      %1073 = sbr.rel (%p1071) target = $region44
    $region43: #{discriminator_forward.6} parent=5 // pred_region
      %s1074 = ssub.s32 %s10, 2
      // Predicated region
      $region45: #{discriminator_forward.6} parent=43 // pred_check
        %p1075 = pneg %p142
      $region46: #{discriminator_forward.6} parent=43 // pred_check_branch
        %1077 = sbr.rel (%p1075) target = $region48
      $region47: #{discriminator_forward.6} parent=43 // pred_region
        %s1078 = smul.u32 3, %s22
        %p1079 = scmp.lt.s32.totalorder %s21, 1
        %s1080 = scalar_select %p1079, %s21, 1
        %p1081 = scmp.lt.s32.totalorder %s1078, 2
        %s1082 = scalar_select %p1081, %s1078, 2
        %s1083 = smul.addr %s1080, 3
        %s1084 = sadd.s32 %s1082, %s1083
        %s1085 = smul.addr %s1084, 2
        %s1086 = scalar_lea.vmem %s4, %s1085
      $region48: #{discriminator_forward.6} parent=43 // pred_fallthru
        _
    $region44: #{discriminator_forward.6} parent=5 // pred_fallthru
      _
  $region6: #{discriminator_forward.6} parent=0 // loop_footer
    %s14 = sadd.s32 1, %s10
  $region7: #{discriminator_forward.6} parent=0 // loop_footer_branch
    %9 = sbr.rel target = $region3
  $region8: #{discriminator_forward.6} parent=0 // loop_exit
    _

// kernel: discriminator_forward.7
$region0: #{discriminator_forward.7}
  #allocation0 [shape = 'u32[]', space=smem, size = 0x4, offset = 0x4, fixed_abs, tag = 'smem constant byte address 0x4 - core index']
  #allocation1 [shape = 'u32[144,128]{1,0:T(1,128)}', space=vmem, size = 0x12000, scoped, tag = 'internal scratch']
  #allocation2 [shape = 'bf16[7,7,64]{2,1,0:T(8,128)(2,1)}', space=vmem, size = 0x3800, scoped, tag = 'scratch operand']
  #allocation3 [shape = 'bf16[8,8,128]{2,1,0:T(8,128)(2,1)}', space=vmem, size = 0x4000, scoped, tag = 'scratch operand']
  #allocation4 [shape = 'f32[1,1]{1,0:T(1,128)S(1)}', space=vmem, size = 0x200, scoped, tag = 'scoped memory for discriminator_forward.7']
  %s0 = inlined_call_operand.vmem [shape: bf16[2,3,3,64], index: 0, kind: input, shape index: {}]
  %s1 = inlined_call_operand.vmem [shape: bf16[1024,128], index: 1, kind: input, shape index: {}]
  %s2 = inlined_call_operand.vmem [shape: f32[1,128], index: 2, kind: input, shape index: {}]
  %s3 = inlined_call_operand.vmem [shape: f32[1,128], index: 3, kind: input, shape index: {}]
  %s4 = inlined_call_operand.vmem [shape: bf16[2048,128], index: 4, kind: input, shape index: {}]
  %s5 = inlined_call_operand.<no memory space> [shape: f32[1,1], index: 5, kind: input, shape index: {}]
  %s6 = inlined_call_operand.vmem [shape: f32[2,5,5,1], index: 6, kind: output, shape index: {}]
  %s7 = sld [smem:[#allocation0]]
  $region61: #{discriminator_forward.7} parent=0
    _
  %s9 = ssub.s32 1, %s7
  %s10 = scalar_select 0, %s9, %s7
  %v11 = vstv %s5
  %12 = vst [vmem:[#allocation4] sm:$0x1] %v11
  loop: start=0, step=1, limit=4
  $region2: #{discriminator_forward.7} parent=0 // loop_pre_header
    _
  $region3: #{discriminator_forward.7} parent=0 // loop_header
    %s14 = sphi 0, %s18
    %p15 = scmp.ge.s32.totalorder %s14, 4
    %s24 = sphi 0, %s26
    %s27 = sphi 0, %s24
    %s28 = sphi 0, %s27
    %s44 = sphi 0, %s28
    %s48 = sphi 0, %s48
    %s50 = sphi 0, %s48
    %s51 = sphi 0, %s50
    %s65 = sphi 0, %s51
    %s69 = sphi 0, %s69
    %s71 = sphi 0, %s69
    %s72 = sphi 0, %s71
    %s86 = sphi 0, %s72
    %s90 = sphi 0, %s90
    %s92 = sphi 0, %s90
    %s93 = sphi 0, %s92
    %s107 = sphi 0, %s93
    %s111 = sphi 0, %s111
    %s113 = sphi 0, %s111
    %s114 = sphi 0, %s113
    %s128 = sphi 0, %s114
    %s132 = sphi 0, %s132
    %s134 = sphi 0, %s132
    %s135 = sphi 0, %s134
    %s149 = sphi 0, %s135
    %s155 = sphi 0, %s157
    %s158 = sphi 0, %s155
    %s159 = sphi 0, %s158
    %s175 = sphi 0, %s159
  $region4: #{discriminator_forward.7} parent=0 // loop_header_branch
    %17 = sbr.rel (%p15) target = $region8
  $region5: #{discriminator_forward.7} parent=0 // loop_body
    %s19 = ssub.s32 %s14, 1
    %s20 = ssub.s32 %s14, 2
    %s21 = sadd.s32 %s14, 1
    %s22 = ssub.s32 %s14, %s21
    %p23 = scmp.eq.s32.totalorder %s22, 0
    %s25 = sadd.s32 %s24, 1
    %s26 = scalar_select %p23, %s24, %s25
    %p29 = pneg %p23
    %p30 = scmp.eq.s32.totalorder %s14, 1
    %p31 = por %p29, %p30
    %p32 = scmp.ne.s32.totalorder %s24, %s27
    %p33 = scmp.eq.s32.totalorder %s14, 0
    %p34 = por %p32, %p33
    %p35 = scmp.ne.s32.totalorder %s24, %s27
    %p36 = scmp.eq.s32.totalorder %s19, 1
    %p37 = por %p35, %p36
    %p38 = scmp.ne.s32.totalorder %s27, %s28
    %p39 = scmp.eq.s32.totalorder %s19, 0
    %p40 = por %p38, %p39
    %p41 = scmp.ne.s32.totalorder %s27, %s28
    %p42 = scmp.eq.s32.totalorder %s20, 1
    %p43 = por %p41, %p42
    %p45 = scmp.ne.s32.totalorder %s28, %s44
    %p46 = scmp.eq.s32.totalorder %s20, 0
    %p47 = por %p45, %p46
    %s49 = sadd.s32 %s48, 1
    %p52 = scmp.eq.s32.totalorder %s14, 1
    %p53 = scmp.ne.s32.totalorder %s48, %s50
    %p54 = scmp.eq.s32.totalorder %s14, 0
    %p55 = por %p53, %p54
    %p56 = scmp.ne.s32.totalorder %s48, %s50
    %p57 = scmp.eq.s32.totalorder %s19, 1
    %p58 = por %p56, %p57
    %p59 = scmp.ne.s32.totalorder %s50, %s51
    %p60 = scmp.eq.s32.totalorder %s19, 0
    %p61 = por %p59, %p60
    %p62 = scmp.ne.s32.totalorder %s50, %s51
    %p63 = scmp.eq.s32.totalorder %s20, 1
    %p64 = por %p62, %p63
    %p66 = scmp.ne.s32.totalorder %s51, %s65
    %p67 = scmp.eq.s32.totalorder %s20, 0
    %p68 = por %p66, %p67
    %s70 = sadd.s32 %s69, 1
    %p73 = scmp.eq.s32.totalorder %s14, 1
    %p74 = scmp.ne.s32.totalorder %s69, %s71
    %p75 = scmp.eq.s32.totalorder %s14, 0
    %p76 = por %p74, %p75
    %p77 = scmp.ne.s32.totalorder %s69, %s71
    %p78 = scmp.eq.s32.totalorder %s19, 1
    %p79 = por %p77, %p78
    %p80 = scmp.ne.s32.totalorder %s71, %s72
    %p81 = scmp.eq.s32.totalorder %s19, 0
    %p82 = por %p80, %p81
    %p83 = scmp.ne.s32.totalorder %s71, %s72
    %p84 = scmp.eq.s32.totalorder %s20, 1
    %p85 = por %p83, %p84
    %p87 = scmp.ne.s32.totalorder %s72, %s86
    %p88 = scmp.eq.s32.totalorder %s20, 0
    %p89 = por %p87, %p88
    %s91 = sadd.s32 %s90, 1
    %p94 = scmp.eq.s32.totalorder %s14, 1
    %p95 = scmp.ne.s32.totalorder %s90, %s92
    %p96 = scmp.eq.s32.totalorder %s14, 0
    %p97 = por %p95, %p96
    %p98 = scmp.ne.s32.totalorder %s90, %s92
    %p99 = scmp.eq.s32.totalorder %s19, 1
    %p100 = por %p98, %p99
    %p101 = scmp.ne.s32.totalorder %s92, %s93
    %p102 = scmp.eq.s32.totalorder %s19, 0
    %p103 = por %p101, %p102
    %p104 = scmp.ne.s32.totalorder %s92, %s93
    %p105 = scmp.eq.s32.totalorder %s20, 1
    %p106 = por %p104, %p105
    %p108 = scmp.ne.s32.totalorder %s93, %s107
    %p109 = scmp.eq.s32.totalorder %s20, 0
    %p110 = por %p108, %p109
    %s112 = sadd.s32 %s111, 1
    %p115 = scmp.eq.s32.totalorder %s14, 1
    %p116 = scmp.ne.s32.totalorder %s111, %s113
    %p117 = scmp.eq.s32.totalorder %s14, 0
    %p118 = por %p116, %p117
    %p119 = scmp.ne.s32.totalorder %s111, %s113
    %p120 = scmp.eq.s32.totalorder %s19, 1
    %p121 = por %p119, %p120
    %p122 = scmp.ne.s32.totalorder %s113, %s114
    %p123 = scmp.eq.s32.totalorder %s19, 0
    %p124 = por %p122, %p123
    %p125 = scmp.ne.s32.totalorder %s113, %s114
    %p126 = scmp.eq.s32.totalorder %s20, 1
    %p127 = por %p125, %p126
    %p129 = scmp.ne.s32.totalorder %s114, %s128
    %p130 = scmp.eq.s32.totalorder %s20, 0
    %p131 = por %p129, %p130
    %s133 = sadd.s32 %s132, 1
    %p136 = scmp.eq.s32.totalorder %s14, 1
    %p137 = scmp.ne.s32.totalorder %s132, %s134
    %p138 = scmp.eq.s32.totalorder %s14, 0
    %p139 = por %p137, %p138
    %p140 = scmp.ne.s32.totalorder %s132, %s134
    %p141 = scmp.eq.s32.totalorder %s19, 1
    %p142 = por %p140, %p141
    %p143 = scmp.ne.s32.totalorder %s134, %s135
    %p144 = scmp.eq.s32.totalorder %s19, 0
    %p145 = por %p143, %p144
    %p146 = scmp.ne.s32.totalorder %s134, %s135
    %p147 = scmp.eq.s32.totalorder %s20, 1
    %p148 = por %p146, %p147
    %p150 = scmp.ne.s32.totalorder %s135, %s149
    %p151 = scmp.eq.s32.totalorder %s20, 0
    %p152 = por %p150, %p151
    %s153 = ssub.s32 %s14, %s21
    %p154 = scmp.eq.s32.totalorder %s153, 0
    %s156 = sadd.s32 %s155, 1
    %s157 = scalar_select %p154, %s155, %s156
    %p160 = pneg %p154
    %p161 = scmp.eq.s32.totalorder %s14, 1
    %p162 = por %p160, %p161
    %p163 = scmp.ne.s32.totalorder %s155, %s158
    %p164 = scmp.eq.s32.totalorder %s14, 0
    %p165 = por %p163, %p164
    %p166 = scmp.ne.s32.totalorder %s155, %s158
    %p167 = scmp.eq.s32.totalorder %s19, 1
    %p168 = por %p166, %p167
    %p169 = scmp.ne.s32.totalorder %s158, %s159
    %p170 = scmp.eq.s32.totalorder %s19, 0
    %p171 = por %p169, %p170
    %p172 = scmp.ne.s32.totalorder %s158, %s159
    %p173 = scmp.eq.s32.totalorder %s20, 1
    %p174 = por %p172, %p173
    %p176 = scmp.ne.s32.totalorder %s159, %s175
    %p177 = scmp.eq.s32.totalorder %s20, 0
    %p178 = por %p176, %p177
    %p179 = scmp.le.s32.totalorder 1, %s14
    %p180 = scmp.lt.s32.totalorder %s14, 3
    %p181 = pnand %p179, %p180
    %p182 = pneg %p181
    // Predicated region
    $region9: #{discriminator_forward.7} parent=5 // pred_check
      _
    $region10: #{discriminator_forward.7} parent=5 // pred_check_branch
      %184 = sbr.rel (%p181) target = $region12
    $region11: #{discriminator_forward.7} parent=5 // pred_region
      %s185 = ssub.s32 %s14, 1
      // Predicated region
      $region13: #{discriminator_forward.7} parent=11 // pred_check
        %p186 = pneg %p61
      $region14: #{discriminator_forward.7} parent=11 // pred_check_branch
        %188 = sbr.rel (%p186) target = $region16
      $region15: #{discriminator_forward.7} parent=11 // pred_region
        _
      $region16: #{discriminator_forward.7} parent=11 // pred_fallthru
        _
      // Predicated region
      $region17: #{discriminator_forward.7} parent=11 // pred_check
        %p189 = pneg %p82
      $region18: #{discriminator_forward.7} parent=11 // pred_check_branch
        %191 = sbr.rel (%p189) target = $region20
      $region19: #{discriminator_forward.7} parent=11 // pred_region
        _
      $region20: #{discriminator_forward.7} parent=11 // pred_fallthru
        _
      // Predicated region
      $region21: #{discriminator_forward.7} parent=11 // pred_check
        %p192 = pneg %p103
      $region22: #{discriminator_forward.7} parent=11 // pred_check_branch
        %194 = sbr.rel (%p192) target = $region24
      $region23: #{discriminator_forward.7} parent=11 // pred_region
        _
      $region24: #{discriminator_forward.7} parent=11 // pred_fallthru
        _
      // Predicated region
      $region25: #{discriminator_forward.7} parent=11 // pred_check
        %p195 = pneg %p124
      $region26: #{discriminator_forward.7} parent=11 // pred_check_branch
        %197 = sbr.rel (%p195) target = $region28
      $region27: #{discriminator_forward.7} parent=11 // pred_region
        _
      $region28: #{discriminator_forward.7} parent=11 // pred_fallthru
        _
      // Predicated region
      $region29: #{discriminator_forward.7} parent=11 // pred_check
        %p198 = pneg %p145
      $region30: #{discriminator_forward.7} parent=11 // pred_check_branch
        %200 = sbr.rel (%p198) target = $region32
      $region31: #{discriminator_forward.7} parent=11 // pred_region
        _
      $region32: #{discriminator_forward.7} parent=11 // pred_fallthru
        _
    $region12: #{discriminator_forward.7} parent=5 // pred_fallthru
      _
    %p201 = scmp.lt.s32.totalorder %s14, 2
    // Predicated region
    $region33: #{discriminator_forward.7} parent=5 // pred_check
      %p202 = pneg %p201
    $region34: #{discriminator_forward.7} parent=5 // pred_check_branch
      %204 = sbr.rel (%p202) target = $region36
    $region35: #{discriminator_forward.7} parent=5 // pred_region
      // Predicated region
      $region37: #{discriminator_forward.7} parent=35 // pred_check
        %p205 = pneg %p34
      $region38: #{discriminator_forward.7} parent=35 // pred_check_branch
        %207 = sbr.rel (%p205) target = $region40
      $region39: #{discriminator_forward.7} parent=35 // pred_region
        %p208 = scmp.lt.s32.totalorder %s14, 1
        %s209 = scalar_select %p208, %s14, 1
        %s210 = smul.addr %s209, 3
        %s211 = smul.addr %s210, 2
        %s212 = scalar_lea.vmem %s0, %s211
      $region40: #{discriminator_forward.7} parent=35 // pred_fallthru
        _
    $region36: #{discriminator_forward.7} parent=5 // pred_fallthru
      _
    %p213 = scmp.le.s32.totalorder 1, %s14
    %p214 = scmp.lt.s32.totalorder %s14, 3
    %p215 = pnand %p213, %p214
    %p216 = pneg %p215
    // Predicated region
    $region41: #{discriminator_forward.7} parent=5 // pred_check
      _
    $region42: #{discriminator_forward.7} parent=5 // pred_check_branch
      %218 = sbr.rel (%p215) target = $region44
    $region43: #{discriminator_forward.7} parent=5 // pred_region
      %s219 = ssub.s32 %s14, 1
      %p220 = scmp.lt.s32.totalorder %s19, 1
      %s221 = scalar_select %p220, %s19, 1
      %s222 = smul.addr %s221, 3
      %s223 = smul.addr %s222, 2
      %s224 = scalar_lea.vmem %s0, %s223
      %p225 = pneg %p40
      %p226 = pneg %p37
      %p227 = pneg %p61
      %p228 = pneg %p58
      %p229 = pneg %p82
      %p230 = pneg %p79
      %p231 = pneg %p103
      %p232 = pneg %p100
      %p233 = pneg %p124
      %p234 = pneg %p121
      %p235 = pneg %p145
      %p236 = pneg %p142
      %p237 = pneg %p171
      %p238 = pneg %p168
      %p239 = scmp.lt.s32.totalorder %s19, 1
      %s240 = scalar_select %p239, %s19, 1
      %s241 = smul.addr %s240, 5
      %s242 = smul.addr %s241, 8
      %s243 = scalar_lea.vmem %s6, %s242
      %p244 = scmp.lt.s32.totalorder %s19, 1
      %s245 = scalar_select %p244, %s19, 1
      %s246 = smul.addr %s245, 3
      %s247 = smul.addr %s246, 2
      %s248 = scalar_lea.vmem %s0, %s247
      %p249 = scmp.lt.s32.totalorder %s19, 1
      %s250 = scalar_select %p249, %s19, 1
      %s251 = smul.addr %s250, 5
      %s252 = smul.addr %s251, 8
      %s253 = scalar_lea.vmem %s6, %s252
      %p255 = scmp.eq.s32.totalorder %s19, 0
      // Predicated region
      $region45: #{discriminator_forward.7} parent=43 // pred_check
        %p256 = pneg %p255
      $region46: #{discriminator_forward.7} parent=43 // pred_check_branch
        %258 = sbr.rel (%p256) target = $region48
      $region47: #{discriminator_forward.7} parent=43 // pred_region
        %vm259 = vcmask 519168
        %vm260 = vsmask.f32 3328
        %vm261 = vmand %vm259, %vm260
        %v262 = vld [vmem:[#allocation2] sm:$0xf]
        %v263 = vsel %vm261, 0, %v262
        %264 = vst [vmem:[#allocation2] sm:$0xf] %v263
        %v265 = vld [vmem:[#allocation2 + $0x4] sm:$0xf]
        %v266 = vsel %vm261, 0, %v265
        %267 = vst [vmem:[#allocation2 + $0x4] sm:$0xf] %v266
        %v268 = vld [vmem:[#allocation2 + $0x8] sm:$0xf]
        %v269 = vsel %vm261, 0, %v268
        %270 = vst [vmem:[#allocation2 + $0x8] sm:$0xf] %v269
        %v271 = vld [vmem:[#allocation2 + $0xc] sm:$0xf]
        %v272 = vsel %vm261, 0, %v271
        %273 = vst [vmem:[#allocation2 + $0xc] sm:$0xf] %v272
        %v274 = vld [vmem:[#allocation2 + $0x10] sm:$0xf]
        %v275 = vsel %vm261, 0, %v274
        %276 = vst [vmem:[#allocation2 + $0x10] sm:$0xf] %v275
        %v277 = vld [vmem:[#allocation2 + $0x14] sm:$0xf]
        %v278 = vsel %vm261, 0, %v277
        %279 = vst [vmem:[#allocation2 + $0x14] sm:$0xf] %v278
        %v280 = vld [vmem:[#allocation2 + $0x18] sm:$0xf]
        %v281 = vsel %vm261, 0, %v280
        %282 = vst [vmem:[#allocation2 + $0x18] sm:$0xf] %v281
        %283 = vst [vmem:[#allocation3] sm:$0xf] 0
        %284 = vst [vmem:[#allocation3 + $0x4] sm:$0xf] 0
        %285 = vst [vmem:[#allocation3 + $0x8] sm:$0xf] 0
        %286 = vst [vmem:[#allocation3 + $0xc] sm:$0xf] 0
        %287 = vst [vmem:[#allocation3 + $0x10] sm:$0xf] 0
        %288 = vst [vmem:[#allocation3 + $0x14] sm:$0xf] 0
        %289 = vst [vmem:[#allocation3 + $0x18] sm:$0xf] 0
        %290 = vst [vmem:[#allocation3 + $0x1c] sm:$0xf] 0
      $region48: #{discriminator_forward.7} parent=43 // pred_fallthru
        _
      %v291 = vld [vmem:[%s248] sm:$0x3]
      %v292 = vld [vmem:[%s248 + $0x2] sm:$0x3]
      %v293 = vld [vmem:[%s248 + $0x4] sm:$0x3]
      %v298 = vunpack.c.l.s4 1983009808
      %v299 = vunpack.c.0.s8 %v298
      %v300 = vlaneseq
      %v301 = vshrl.u32 %v300, 7
      %v302 = vsub.s32 %v299, %v301
      %v303 = vrot.slane %v291, %v302
      %v305 = vunpack.c.l.s4 1983009808
      %v306 = vunpack.c.0.s8 %v305
      %v307 = vlaneseq
      %v308 = vshrl.u32 %v307, 7
      %v309 = vsub.s32 %v306, %v308
      %v310 = vrot.slane %v292, %v309
      %v312 = vunpack.c.l.s4 1983009808
      %v313 = vunpack.c.0.s8 %v312
      %v314 = vlaneseq
      %v315 = vshrl.u32 %v314, 7
      %v316 = vsub.s32 %v313, %v315
      %v317 = vrot.slane %v293, %v316
      %v318 = vrot.slane %v303, 7
      %v319 = vrot.slane %v310, 7
      %v320 = vrot.slane %v317, 7
      %s324 = scalar_lea.vmem [#allocation2], 8
      %vm325 = vcmask 518145
      %vm326 = vsmask.f32 2304
      %vm327 = vmand %vm325, %vm326
      %v328 = vld [vmem:[%s324] sm:$0x6]
      %v329 = vsel %vm327, %v318, %v328
      %330 = vst [vmem:[%s324] sm:$0x6] %v329
      %v331 = vld [vmem:[%s324 + $0x4] sm:$0x6]
      %v332 = vsel %vm327, %v319, %v331
      %333 = vst [vmem:[%s324 + $0x4] sm:$0x6] %v332
      %v334 = vld [vmem:[%s324 + $0x8] sm:$0x6]
      %v335 = vsel %vm327, %v320, %v334
      %336 = vst [vmem:[%s324 + $0x8] sm:$0x6] %v335
      %v337 = vld [vmem:[#allocation2] sm:$0xf]
      %v338 = vld [vmem:[#allocation2 + $0x4] sm:$0xf]
      %v339 = vld [vmem:[#allocation2 + $0x8] sm:$0xf]
      %v340 = vld [vmem:[#allocation2 + $0xc] sm:$0xf]
      %v341 = vld [vmem:[#allocation2 + $0x10] sm:$0xf]
      %v342 = vld [vmem:[#allocation2 + $0x14] sm:$0xf]
      %v343 = vld [vmem:[#allocation2 + $0x18] sm:$0xf]
      %v344 = vld [vmem:[%s1] sm:$0xf]
      %v345 = vld [vmem:[%s1 + $0x4] sm:$0xf]
      %v346 = vld [vmem:[%s1 + $0x8] sm:$0xf]
      %v347 = vld [vmem:[%s1 + $0xc] sm:$0xf]
      %v348 = vld [vmem:[%s1 + $0x10] sm:$0xf]
      %v349 = vld [vmem:[%s1 + $0x14] sm:$0xf]
      %v350 = vld [vmem:[%s1 + $0x18] sm:$0xf]
      %v351 = vld [vmem:[%s1 + $0x1c] sm:$0xf]
      %v352 = vld [vmem:[%s1 + $0x20] sm:$0xf]
      %v353 = vld [vmem:[%s1 + $0x24] sm:$0xf]
      %v354 = vld [vmem:[%s1 + $0x28] sm:$0xf]
      %v355 = vld [vmem:[%s1 + $0x2c] sm:$0xf]
      %v356 = vld [vmem:[%s1 + $0x30] sm:$0xf]
      %v357 = vld [vmem:[%s1 + $0x34] sm:$0xf]
      %v358 = vld [vmem:[%s1 + $0x38] sm:$0xf]
      %v359 = vld [vmem:[%s1 + $0x3c] sm:$0xf]
      %v360 = vld [vmem:[%s1 + $0x40] sm:$0xf]
      %v361 = vld [vmem:[%s1 + $0x44] sm:$0xf]
      %v362 = vld [vmem:[%s1 + $0x48] sm:$0xf]
      %v363 = vld [vmem:[%s1 + $0x4c] sm:$0xf]
      %v364 = vld [vmem:[%s1 + $0x50] sm:$0xf]
      %v365 = vld [vmem:[%s1 + $0x54] sm:$0xf]
      %v366 = vld [vmem:[%s1 + $0x58] sm:$0xf]
      %v367 = vld [vmem:[%s1 + $0x5c] sm:$0xf]
      %v368 = vld [vmem:[%s1 + $0x60] sm:$0xf]
      %v369 = vld [vmem:[%s1 + $0x64] sm:$0xf]
      %v370 = vld [vmem:[%s1 + $0x68] sm:$0xf]
      %v371 = vld [vmem:[%s1 + $0x6c] sm:$0xf]
      %v372 = vld [vmem:[%s1 + $0x70] sm:$0xf]
      %v373 = vld [vmem:[%s1 + $0x74] sm:$0xf]
      %v374 = vld [vmem:[%s1 + $0x78] sm:$0xf]
      %v375 = vld [vmem:[%s1 + $0x7c] sm:$0xf]
      %v376 = vld [vmem:[%s1 + $0x80] sm:$0xf]
      %v377 = vld [vmem:[%s1 + $0x84] sm:$0xf]
      %v378 = vld [vmem:[%s1 + $0x88] sm:$0xf]
      %v379 = vld [vmem:[%s1 + $0x8c] sm:$0xf]
      %v380 = vld [vmem:[%s1 + $0x90] sm:$0xf]
      %v381 = vld [vmem:[%s1 + $0x94] sm:$0xf]
      %v382 = vld [vmem:[%s1 + $0x98] sm:$0xf]
      %v383 = vld [vmem:[%s1 + $0x9c] sm:$0xf]
      %v384 = vld [vmem:[%s1 + $0xa0] sm:$0xf]
      %v385 = vld [vmem:[%s1 + $0xa4] sm:$0xf]
      %v386 = vld [vmem:[%s1 + $0xa8] sm:$0xf]
      %v387 = vld [vmem:[%s1 + $0xac] sm:$0xf]
      %v388 = vld [vmem:[%s1 + $0xb0] sm:$0xf]
      %v389 = vld [vmem:[%s1 + $0xb4] sm:$0xf]
      %v390 = vld [vmem:[%s1 + $0xb8] sm:$0xf]
      %v391 = vld [vmem:[%s1 + $0xbc] sm:$0xf]
      %v392 = vld [vmem:[%s1 + $0xc0] sm:$0xf]
      %v393 = vld [vmem:[%s1 + $0xc4] sm:$0xf]
      %v394 = vld [vmem:[%s1 + $0xc8] sm:$0xf]
      %v395 = vld [vmem:[%s1 + $0xcc] sm:$0xf]
      %v396 = vld [vmem:[%s1 + $0xd0] sm:$0xf]
      %v397 = vld [vmem:[%s1 + $0xd4] sm:$0xf]
      %v398 = vld [vmem:[%s1 + $0xd8] sm:$0xf]
      %v399 = vld [vmem:[%s1 + $0xdc] sm:$0xf]
      %v400 = vld [vmem:[%s1 + $0xe0] sm:$0xf]
      %v401 = vld [vmem:[%s1 + $0xe4] sm:$0xf]
      %v402 = vld [vmem:[%s1 + $0xe8] sm:$0xf]
      %v403 = vld [vmem:[%s1 + $0xec] sm:$0xf]
      %v404 = vld [vmem:[%s1 + $0xf0] sm:$0xf]
      %v405 = vld [vmem:[%s1 + $0xf4] sm:$0xf]
      %v406 = vld [vmem:[%s1 + $0xf8] sm:$0xf]
      %v407 = vld [vmem:[%s1 + $0xfc] sm:$0xf]
      %v408 = vld [vmem:[%s1 + $0x100] sm:$0xf]
      %v409 = vld [vmem:[%s1 + $0x104] sm:$0xf]
      %v410 = vld [vmem:[%s1 + $0x108] sm:$0xf]
      %v411 = vld [vmem:[%s1 + $0x10c] sm:$0xf]
      %v412 = vld [vmem:[%s1 + $0x110] sm:$0xf]
      %v413 = vld [vmem:[%s1 + $0x114] sm:$0xf]
      %v414 = vld [vmem:[%s1 + $0x118] sm:$0xf]
      %v415 = vld [vmem:[%s1 + $0x11c] sm:$0xf]
      %v416 = vld [vmem:[%s1 + $0x120] sm:$0xf]
      %v417 = vld [vmem:[%s1 + $0x124] sm:$0xf]
      %v418 = vld [vmem:[%s1 + $0x128] sm:$0xf]
      %v419 = vld [vmem:[%s1 + $0x12c] sm:$0xf]
      %v420 = vld [vmem:[%s1 + $0x130] sm:$0xf]
      %v421 = vld [vmem:[%s1 + $0x134] sm:$0xf]
      %v422 = vld [vmem:[%s1 + $0x138] sm:$0xf]
      %v423 = vld [vmem:[%s1 + $0x13c] sm:$0xf]
      %v424 = vld [vmem:[%s1 + $0x140] sm:$0xf]
      %v425 = vld [vmem:[%s1 + $0x144] sm:$0xf]
      %v426 = vld [vmem:[%s1 + $0x148] sm:$0xf]
      %v427 = vld [vmem:[%s1 + $0x14c] sm:$0xf]
      %v428 = vld [vmem:[%s1 + $0x150] sm:$0xf]
      %v429 = vld [vmem:[%s1 + $0x154] sm:$0xf]
      %v430 = vld [vmem:[%s1 + $0x158] sm:$0xf]
      %v431 = vld [vmem:[%s1 + $0x15c] sm:$0xf]
      %v432 = vld [vmem:[%s1 + $0x160] sm:$0xf]
      %v433 = vld [vmem:[%s1 + $0x164] sm:$0xf]
      %v434 = vld [vmem:[%s1 + $0x168] sm:$0xf]
      %v435 = vld [vmem:[%s1 + $0x16c] sm:$0xf]
      %v436 = vld [vmem:[%s1 + $0x170] sm:$0xf]
      %v437 = vld [vmem:[%s1 + $0x174] sm:$0xf]
      %v438 = vld [vmem:[%s1 + $0x178] sm:$0xf]
      %v439 = vld [vmem:[%s1 + $0x17c] sm:$0xf]
      %v440 = vld [vmem:[%s1 + $0x180] sm:$0xf]
      %v441 = vld [vmem:[%s1 + $0x184] sm:$0xf]
      %v442 = vld [vmem:[%s1 + $0x188] sm:$0xf]
      %v443 = vld [vmem:[%s1 + $0x18c] sm:$0xf]
      %v444 = vld [vmem:[%s1 + $0x190] sm:$0xf]
      %v445 = vld [vmem:[%s1 + $0x194] sm:$0xf]
      %v446 = vld [vmem:[%s1 + $0x198] sm:$0xf]
      %v447 = vld [vmem:[%s1 + $0x19c] sm:$0xf]
      %v448 = vld [vmem:[%s1 + $0x1a0] sm:$0xf]
      %v449 = vld [vmem:[%s1 + $0x1a4] sm:$0xf]
      %v450 = vld [vmem:[%s1 + $0x1a8] sm:$0xf]
      %v451 = vld [vmem:[%s1 + $0x1ac] sm:$0xf]
      %v452 = vld [vmem:[%s1 + $0x1b0] sm:$0xf]
      %v453 = vld [vmem:[%s1 + $0x1b4] sm:$0xf]
      %v454 = vld [vmem:[%s1 + $0x1b8] sm:$0xf]
      %v455 = vld [vmem:[%s1 + $0x1bc] sm:$0xf]
      %v456 = vld [vmem:[%s1 + $0x1c0] sm:$0xf]
      %v457 = vld [vmem:[%s1 + $0x1c4] sm:$0xf]
      %v458 = vld [vmem:[%s1 + $0x1c8] sm:$0xf]
      %v459 = vld [vmem:[%s1 + $0x1cc] sm:$0xf]
      %v460 = vld [vmem:[%s1 + $0x1d0] sm:$0xf]
      %v461 = vld [vmem:[%s1 + $0x1d4] sm:$0xf]
      %v462 = vld [vmem:[%s1 + $0x1d8] sm:$0xf]
      %v463 = vld [vmem:[%s1 + $0x1dc] sm:$0xf]
      %v464 = vld [vmem:[%s1 + $0x1e0] sm:$0xf]
      %v465 = vld [vmem:[%s1 + $0x1e4] sm:$0xf]
      %v466 = vld [vmem:[%s1 + $0x1e8] sm:$0xf]
      %v467 = vld [vmem:[%s1 + $0x1ec] sm:$0xf]
      %v468 = vld [vmem:[%s1 + $0x1f0] sm:$0xf]
      %v469 = vld [vmem:[%s1 + $0x1f4] sm:$0xf]
      %v470 = vld [vmem:[%s1 + $0x1f8] sm:$0xf]
      %v471 = vld [vmem:[%s1 + $0x1fc] sm:$0xf]
      %v476 = vunpack.c.l.b16 %v337
      %v477 = vunpack.c.l.b16 %v338
      %v478 = vunpack.c.l.b16 %v339
      %v479 = vunpack.c.l.b16 %v340
      %v480 = vpack.c.b16 %v476, %v476
      %v481 = vpack.c.b16 %v477, %v477
      %v482 = vpack.c.b16 %v478, %v478
      %v483 = vpack.c.b16 %v479, %v479
      %v485 = vshrl.u32 %v480, 16
      %v487 = vshll.u32 %v480, 16
      %v489 = vrot.slane %v487, 1
      %v490 = vor.u32 %v485, %v489
      %v492 = vshrl.u32 %v481, 16
      %v494 = vshll.u32 %v481, 16
      %v496 = vrot.slane %v494, 1
      %v497 = vor.u32 %v492, %v496
      %v499 = vshrl.u32 %v482, 16
      %v501 = vshll.u32 %v482, 16
      %v503 = vrot.slane %v501, 1
      %v504 = vor.u32 %v499, %v503
      %v506 = vshrl.u32 %v483, 16
      %v508 = vshll.u32 %v483, 16
      %v510 = vrot.slane %v508, 1
      %v511 = vor.u32 %v506, %v510
      %512 = vrot.lane.b32.xlu0 %v490, 64
      %v513 = vpop.permute.xlu0 %512
      %514 = vrot.lane.b32.xlu0 %v497, 64
      %v515 = vpop.permute.xlu0 %514
      %516 = vrot.lane.b32.xlu0 %v504, 64
      %v517 = vpop.permute.xlu0 %516
      %518 = vrot.lane.b32.xlu0 %v511, 64
      %v519 = vpop.permute.xlu0 %518
      %v520 = vrot.slane %v480, 1
      %v521 = vrot.slane %v481, 1
      %v522 = vrot.slane %v482, 1
      %v523 = vrot.slane %v483, 1
      %v524 = vrot.slane %v485, 1
      %v525 = vrot.slane %v487, 2
      %v526 = vor.u32 %v524, %v525
      %v527 = vrot.slane %v492, 1
      %v528 = vrot.slane %v494, 2
      %v529 = vor.u32 %v527, %v528
      %v530 = vrot.slane %v499, 1
      %v531 = vrot.slane %v501, 2
      %v532 = vor.u32 %v530, %v531
      %v533 = vrot.slane %v506, 1
      %v534 = vrot.slane %v508, 2
      %v535 = vor.u32 %v533, %v534
      %536 = vrot.lane.b32.xlu0 %v526, 64
      %v537 = vpop.permute.xlu0 %536
      %538 = vrot.lane.b32.xlu0 %v529, 64
      %v539 = vpop.permute.xlu0 %538
      %540 = vrot.lane.b32.xlu0 %v532, 64
      %v541 = vpop.permute.xlu0 %540
      %542 = vrot.lane.b32.xlu0 %v535, 64
      %v543 = vpop.permute.xlu0 %542
      %v545 = vunpack.c.l.b16 %v341
      %v546 = vpack.c.b16 %v545, %v545
      %v548 = vshrl.u32 %v546, 16
      %v550 = vshll.u32 %v546, 16
      %v552 = vrot.slane %v550, 1
      %v553 = vor.u32 %v548, %v552
      %554 = vrot.lane.b32.xlu0 %v553, 64
      %v555 = vpop.permute.xlu0 %554
      %v556 = vrot.slane %v546, 1
      %v557 = vrot.slane %v548, 1
      %v558 = vrot.slane %v550, 2
      %v559 = vor.u32 %v557, %v558
      %560 = vrot.lane.b32.xlu0 %v559, 64
      %v561 = vpop.permute.xlu0 %560
      %v563 = vunpack.c.l.b16 %v342
      %v564 = vpack.c.b16 %v563, %v563
      %v566 = vshrl.u32 %v564, 16
      %v568 = vshll.u32 %v564, 16
      %v570 = vrot.slane %v568, 1
      %v571 = vor.u32 %v566, %v570
      %572 = vrot.lane.b32.xlu0 %v571, 64
      %v573 = vpop.permute.xlu0 %572
      %v574 = vrot.slane %v564, 1
      %v575 = vrot.slane %v566, 1
      %v576 = vrot.slane %v568, 2
      %v577 = vor.u32 %v575, %v576
      %578 = vrot.lane.b32.xlu0 %v577, 64
      %v579 = vpop.permute.xlu0 %578
      %v581 = vunpack.c.l.b16 %v343
      %v582 = vpack.c.b16 %v581, %v581
      %v584 = vshrl.u32 %v582, 16
      %v586 = vshll.u32 %v582, 16
      %v588 = vrot.slane %v586, 1
      %v589 = vor.u32 %v584, %v588
      %590 = vrot.lane.b32.xlu0 %v589, 64
      %v591 = vpop.permute.xlu0 %590
      %v592 = vrot.slane %v582, 1
      %v593 = vrot.slane %v584, 1
      %v594 = vrot.slane %v586, 2
      %v595 = vor.u32 %v593, %v594
      %596 = vrot.lane.b32.xlu0 %v595, 64
      %v597 = vpop.permute.xlu0 %596
      %vm598 = vcmask 523264
      %v601 = vsel %vm598, %v337, %v513
      %v604 = vsel %vm598, %v338, %v515
      %v607 = vsel %vm598, %v339, %v517
      %v610 = vsel %vm598, %v340, %v519
      %v613 = vsel %vm598, %v520, %v537
      %v616 = vsel %vm598, %v521, %v539
      %v619 = vsel %vm598, %v522, %v541
      %v622 = vsel %vm598, %v523, %v543
      %v625 = vsel %vm598, %v341, %v555
      %v628 = vsel %vm598, %v556, %v561
      %v631 = vsel %vm598, %v342, %v573
      %v634 = vsel %vm598, %v574, %v579
      %v637 = vsel %vm598, %v343, %v591
      %v640 = vsel %vm598, %v592, %v597
      %v655 = vcombine.low %v601, %v613
      %v656 = vcombine.low %v604, %v616
      %v658 = vunpack.c.l.s4 1983009808
      %v659 = vunpack.c.0.s8 %v658
      %v660 = vlaneseq
      %v661 = vshrl.u32 %v660, 7
      %v662 = vsub.s32 %v659, %v661
      %v663 = vrot.slane %v655, %v662
      %v665 = vunpack.c.l.s4 1983009808
      %v666 = vunpack.c.0.s8 %v665
      %v667 = vlaneseq
      %v668 = vshrl.u32 %v667, 7
      %v669 = vsub.s32 %v666, %v668
      %v670 = vrot.slane %v656, %v669
      %v671 = vcombine.low %v663, %v670
      %v672 = vcombine.low %v607, %v619
      %v673 = vcombine.low %v610, %v622
      %v675 = vunpack.c.l.s4 1983009808
      %v676 = vunpack.c.0.s8 %v675
      %v677 = vlaneseq
      %v678 = vshrl.u32 %v677, 7
      %v679 = vsub.s32 %v676, %v678
      %v680 = vrot.slane %v672, %v679
      %v682 = vunpack.c.l.s4 1983009808
      %v683 = vunpack.c.0.s8 %v682
      %v684 = vlaneseq
      %v685 = vshrl.u32 %v684, 7
      %v686 = vsub.s32 %v683, %v685
      %v687 = vrot.slane %v673, %v686
      %v688 = vcombine.low %v680, %v687
      %v689 = vcombine.low %v670, %v680
      %v690 = vcombine.low %v625, %v628
      %v692 = vunpack.c.l.s4 1983009808
      %v693 = vunpack.c.0.s8 %v692
      %v694 = vlaneseq
      %v695 = vshrl.u32 %v694, 7
      %v696 = vsub.s32 %v693, %v695
      %v697 = vrot.slane %v690, %v696
      %v698 = vcombine.low %v687, %v697
      %v699 = vcombine.low %v631, %v634
      %v701 = vunpack.c.l.s4 1983009808
      %v702 = vunpack.c.0.s8 %v701
      %v703 = vlaneseq
      %v704 = vshrl.u32 %v703, 7
      %v705 = vsub.s32 %v702, %v704
      %v706 = vrot.slane %v699, %v705
      %v707 = vcombine.low %v697, %v706
      %v708 = vcombine.low %v637, %v640
      %v710 = vunpack.c.l.s4 1983009808
      %v711 = vunpack.c.0.s8 %v710
      %v712 = vlaneseq
      %v713 = vshrl.u32 %v712, 7
      %v714 = vsub.s32 %v711, %v713
      %v715 = vrot.slane %v708, %v714
      %v716 = vcombine.low %v706, %v715
      %v717 = vcombine.low %v671, %v689
      %v718 = vcombine.high %v671, %v689
      %v719 = vcombine.low %v688, %v698
      %v720 = vcombine.high %v688, %v698
      %v722 = vunpack.c.l.s4 1983009808
      %v723 = vunpack.c.0.s8 %v722
      %v724 = vlaneseq
      %v725 = vshrl.u32 %v724, 7
      %v726 = vsub.s32 %v723, %v725
      %v727 = vrot.slane %v717, %v726
      %v729 = vunpack.c.l.s4 1983009808
      %v730 = vunpack.c.0.s8 %v729
      %v731 = vlaneseq
      %v732 = vshrl.u32 %v731, 7
      %v733 = vsub.s32 %v730, %v732
      %v734 = vrot.slane %v718, %v733
      %v736 = vunpack.c.l.s4 1983009808
      %v737 = vunpack.c.0.s8 %v736
      %v738 = vlaneseq
      %v739 = vshrl.u32 %v738, 7
      %v740 = vsub.s32 %v737, %v739
      %v741 = vrot.slane %v719, %v740
      %v743 = vunpack.c.l.s4 1983009808
      %v744 = vunpack.c.0.s8 %v743
      %v745 = vlaneseq
      %v746 = vshrl.u32 %v745, 7
      %v747 = vsub.s32 %v744, %v746
      %v748 = vrot.slane %v720, %v747
      %v749 = vcombine.low %v727, %v741
      %v750 = vcombine.high %v727, %v741
      %v751 = vcombine.low %v734, %v748
      %v752 = vcombine.high %v734, %v748
      %v753 = vcombine.low %v707, %v716
      %v754 = vcombine.high %v707, %v716
      %v756 = vunpack.c.l.s4 1983009808
      %v757 = vunpack.c.0.s8 %v756
      %v758 = vlaneseq
      %v759 = vshrl.u32 %v758, 7
      %v760 = vsub.s32 %v757, %v759
      %v761 = vrot.slane %v753, %v760
      %v763 = vunpack.c.l.s4 1983009808
      %v764 = vunpack.c.0.s8 %v763
      %v765 = vlaneseq
      %v766 = vshrl.u32 %v765, 7
      %v767 = vsub.s32 %v764, %v766
      %v768 = vrot.slane %v754, %v767
      %v769 = vcombine.low %v741, %v761
      %v770 = vcombine.high %v741, %v761
      %v771 = vcombine.low %v748, %v768
      %v772 = vcombine.high %v748, %v768
      %v909 = vunpack.c.l.b16 %v344
      %v910 = vunpack.c.l.b16 %v345
      %v911 = vunpack.c.l.b16 %v346
      %v912 = vunpack.c.l.b16 %v347
      %v913 = vunpack.c.l.b16 %v348
      %v914 = vunpack.c.l.b16 %v349
      %v915 = vunpack.c.l.b16 %v350
      %v916 = vunpack.c.l.b16 %v351
      %v917 = vunpack.c.l.b16 %v352
      %v918 = vunpack.c.l.b16 %v353
      %v919 = vunpack.c.l.b16 %v354
      %v920 = vunpack.c.l.b16 %v355
      %v921 = vunpack.c.l.b16 %v356
      %v922 = vunpack.c.l.b16 %v357
      %v923 = vunpack.c.l.b16 %v358
      %v924 = vunpack.c.l.b16 %v359
      %v925 = vunpack.c.l.b16 %v360
      %v926 = vunpack.c.l.b16 %v361
      %v927 = vunpack.c.l.b16 %v362
      %v928 = vunpack.c.l.b16 %v363
      %v929 = vunpack.c.l.b16 %v364
      %v930 = vunpack.c.l.b16 %v365
      %v931 = vunpack.c.l.b16 %v366
      %v932 = vunpack.c.l.b16 %v367
      %v933 = vunpack.c.l.b16 %v368
      %v934 = vunpack.c.l.b16 %v369
      %v935 = vunpack.c.l.b16 %v370
      %v936 = vunpack.c.l.b16 %v371
      %v937 = vunpack.c.l.b16 %v372
      %v938 = vunpack.c.l.b16 %v373
      %v939 = vunpack.c.l.b16 %v374
      %v940 = vunpack.c.l.b16 %v375
      %v941 = vunpack.c.l.b16 %v376
      %v942 = vunpack.c.l.b16 %v377
      %v943 = vunpack.c.l.b16 %v378
      %v944 = vunpack.c.l.b16 %v379
      %v945 = vunpack.c.l.b16 %v380
      %v946 = vunpack.c.l.b16 %v381
      %v947 = vunpack.c.l.b16 %v382
      %v948 = vunpack.c.l.b16 %v383
      %v949 = vunpack.c.l.b16 %v384
      %v950 = vunpack.c.l.b16 %v385
      %v951 = vunpack.c.l.b16 %v386
      %v952 = vunpack.c.l.b16 %v387
      %v953 = vunpack.c.l.b16 %v388
      %v954 = vunpack.c.l.b16 %v389
      %v955 = vunpack.c.l.b16 %v390
      %v956 = vunpack.c.l.b16 %v391
      %v957 = vunpack.c.l.b16 %v392
      %v958 = vunpack.c.l.b16 %v393
      %v959 = vunpack.c.l.b16 %v394
      %v960 = vunpack.c.l.b16 %v395
      %v961 = vunpack.c.l.b16 %v396
      %v962 = vunpack.c.l.b16 %v397
      %v963 = vunpack.c.l.b16 %v398
      %v964 = vunpack.c.l.b16 %v399
      %v965 = vunpack.c.l.b16 %v400
      %v966 = vunpack.c.l.b16 %v401
      %v967 = vunpack.c.l.b16 %v402
      %v968 = vunpack.c.l.b16 %v403
      %v969 = vunpack.c.l.b16 %v404
      %v970 = vunpack.c.l.b16 %v405
      %v971 = vunpack.c.l.b16 %v406
      %v972 = vunpack.c.l.b16 %v407
      %v973 = vunpack.c.l.b16 %v408
      %v974 = vunpack.c.l.b16 %v409
      %v975 = vunpack.c.l.b16 %v410
      %v976 = vunpack.c.l.b16 %v411
      %v977 = vunpack.c.l.b16 %v412
      %v978 = vunpack.c.l.b16 %v413
      %v979 = vunpack.c.l.b16 %v414
      %v980 = vunpack.c.l.b16 %v415
      %v981 = vunpack.c.l.b16 %v416
      %v982 = vunpack.c.l.b16 %v417
      %v983 = vunpack.c.l.b16 %v418
      %v984 = vunpack.c.l.b16 %v419
      %v985 = vunpack.c.l.b16 %v420
      %v986 = vunpack.c.l.b16 %v421
      %v987 = vunpack.c.l.b16 %v422
      %v988 = vunpack.c.l.b16 %v423
      %v989 = vunpack.c.l.b16 %v424
      %v990 = vunpack.c.l.b16 %v425
      %v991 = vunpack.c.l.b16 %v426
      %v992 = vunpack.c.l.b16 %v427
      %v993 = vunpack.c.l.b16 %v428
      %v994 = vunpack.c.l.b16 %v429
      %v995 = vunpack.c.l.b16 %v430
      %v996 = vunpack.c.l.b16 %v431
      %v997 = vunpack.c.l.b16 %v432
      %v998 = vunpack.c.l.b16 %v433
      %v999 = vunpack.c.l.b16 %v434
      %v1000 = vunpack.c.l.b16 %v435
      %v1001 = vunpack.c.l.b16 %v436
      %v1002 = vunpack.c.l.b16 %v437
      %v1003 = vunpack.c.l.b16 %v438
      %v1004 = vunpack.c.l.b16 %v439
      %v1005 = vunpack.c.l.b16 %v440
      %v1006 = vunpack.c.l.b16 %v441
      %v1007 = vunpack.c.l.b16 %v442
      %v1008 = vunpack.c.l.b16 %v443
      %v1009 = vunpack.c.l.b16 %v444
      %v1010 = vunpack.c.l.b16 %v445
      %v1011 = vunpack.c.l.b16 %v446
      %v1012 = vunpack.c.l.b16 %v447
      %v1013 = vunpack.c.l.b16 %v448
      %v1014 = vunpack.c.l.b16 %v449
      %v1015 = vunpack.c.l.b16 %v450
      %v1016 = vunpack.c.l.b16 %v451
      %v1017 = vunpack.c.l.b16 %v452
      %v1018 = vunpack.c.l.b16 %v453
      %v1019 = vunpack.c.l.b16 %v454
      %v1020 = vunpack.c.l.b16 %v455
      %v1021 = vunpack.c.l.b16 %v456
      %v1022 = vunpack.c.l.b16 %v457
      %v1023 = vunpack.c.l.b16 %v458
      %v1024 = vunpack.c.l.b16 %v459
      %v1025 = vunpack.c.l.b16 %v460
      %v1026 = vunpack.c.l.b16 %v461
      %v1027 = vunpack.c.l.b16 %v462
      %v1028 = vunpack.c.l.b16 %v463
      %v1029 = vunpack.c.l.b16 %v464
      %v1030 = vunpack.c.l.b16 %v465
      %v1031 = vunpack.c.l.b16 %v466
      %v1032 = vunpack.c.l.b16 %v467
      %v1033 = vunpack.c.l.b16 %v468
      %v1034 = vunpack.c.l.b16 %v469
      %v1035 = vunpack.c.l.b16 %v470
      %v1036 = vunpack.c.l.b16 %v471
      %v1037 = vpack.c.b16 %v910, %v909
      %v1038 = vpack.c.b16 %v912, %v911
      %v1039 = vpack.c.b16 %v914, %v913
      %v1040 = vpack.c.b16 %v916, %v915
      %v1041 = vpack.c.b16 %v918, %v917
      %v1042 = vpack.c.b16 %v920, %v919
      %v1043 = vpack.c.b16 %v922, %v921
      %v1044 = vpack.c.b16 %v924, %v923
      %v1045 = vpack.c.b16 %v926, %v925
      %v1046 = vpack.c.b16 %v928, %v927
      %v1047 = vpack.c.b16 %v930, %v929
      %v1048 = vpack.c.b16 %v932, %v931
      %v1049 = vpack.c.b16 %v934, %v933
      %v1050 = vpack.c.b16 %v936, %v935
      %v1051 = vpack.c.b16 %v938, %v937
      %v1052 = vpack.c.b16 %v940, %v939
      %v1053 = vpack.c.b16 %v942, %v941
      %v1054 = vpack.c.b16 %v944, %v943
      %v1055 = vpack.c.b16 %v946, %v945
      %v1056 = vpack.c.b16 %v948, %v947
      %v1057 = vpack.c.b16 %v950, %v949
      %v1058 = vpack.c.b16 %v952, %v951
      %v1059 = vpack.c.b16 %v954, %v953
      %v1060 = vpack.c.b16 %v956, %v955
      %v1061 = vpack.c.b16 %v958, %v957
      %v1062 = vpack.c.b16 %v960, %v959
      %v1063 = vpack.c.b16 %v962, %v961
      %v1064 = vpack.c.b16 %v964, %v963
      %v1065 = vpack.c.b16 %v966, %v965
      %v1066 = vpack.c.b16 %v968, %v967
      %v1067 = vpack.c.b16 %v970, %v969
      %v1068 = vpack.c.b16 %v972, %v971
      %v1069 = vpack.c.b16 %v974, %v973
      %v1070 = vpack.c.b16 %v976, %v975
      %v1071 = vpack.c.b16 %v978, %v977
      %v1072 = vpack.c.b16 %v980, %v979
      %v1073 = vpack.c.b16 %v982, %v981
      %v1074 = vpack.c.b16 %v984, %v983
      %v1075 = vpack.c.b16 %v986, %v985
      %v1076 = vpack.c.b16 %v988, %v987
      %v1077 = vpack.c.b16 %v990, %v989
      %v1078 = vpack.c.b16 %v992, %v991
      %v1079 = vpack.c.b16 %v994, %v993
      %v1080 = vpack.c.b16 %v996, %v995
      %v1081 = vpack.c.b16 %v998, %v997
      %v1082 = vpack.c.b16 %v1000, %v999
      %v1083 = vpack.c.b16 %v1002, %v1001
      %v1084 = vpack.c.b16 %v1004, %v1003
      %v1085 = vpack.c.b16 %v1006, %v1005
      %v1086 = vpack.c.b16 %v1008, %v1007
      %v1087 = vpack.c.b16 %v1010, %v1009
      %v1088 = vpack.c.b16 %v1012, %v1011
      %v1089 = vpack.c.b16 %v1014, %v1013
      %v1090 = vpack.c.b16 %v1016, %v1015
      %v1091 = vpack.c.b16 %v1018, %v1017
      %v1092 = vpack.c.b16 %v1020, %v1019
      %v1093 = vpack.c.b16 %v1022, %v1021
      %v1094 = vpack.c.b16 %v1024, %v1023
      %v1095 = vpack.c.b16 %v1026, %v1025
      %v1096 = vpack.c.b16 %v1028, %v1027
      %v1097 = vpack.c.b16 %v1030, %v1029
      %v1098 = vpack.c.b16 %v1032, %v1031
      %v1099 = vpack.c.b16 %v1034, %v1033
      %v1100 = vpack.c.b16 %v1036, %v1035
      %1165 = vmatprep.subr.bf16.mxu0 0
      %1166 = vmatpush1.bf16.msra.mxu0 %v1037
      %1167 = vmatprep.subr.bf16.mxu0 0
      %1168 = vmatpush1.bf16.msra.mxu0 %v1038
      %1169 = vmatprep.subr.bf16.mxu0 0
      %1170 = vmatpush1.bf16.msra.mxu0 %v1039
      %1171 = vmatprep.subr.bf16.mxu0 0
      %1172 = vmatpush1.bf16.msra.mxu0 %v1040
      %1173 = vmatprep.subr.bf16.mxu0 0
      %1174 = vmatpush1.bf16.msra.mxu0 %v1041
      %1175 = vmatprep.subr.bf16.mxu0 0
      %1176 = vmatpush1.bf16.msra.mxu0 %v1042
      %1177 = vmatprep.subr.bf16.mxu0 0
      %1178 = vmatpush1.bf16.msra.mxu0 %v1043
      %1179 = vmatprep.subr.bf16.mxu0 0
      %1180 = vmatpush1.bf16.msra.mxu0 %v1044
      %1181 = vmatprep.subr.bf16.mxu0 0
      %1182 = vmatpush1.bf16.msra.mxu0 %v1045
      %1183 = vmatprep.subr.bf16.mxu0 0
      %1184 = vmatpush1.bf16.msra.mxu0 %v1046
      %1185 = vmatprep.subr.bf16.mxu0 0
      %1186 = vmatpush1.bf16.msra.mxu0 %v1047
      %1187 = vmatprep.subr.bf16.mxu0 0
      %1188 = vmatpush1.bf16.msra.mxu0 %v1048
      %1189 = vmatprep.subr.bf16.mxu0 0
      %1190 = vmatpush1.bf16.msra.mxu0 %v1049
      %1191 = vmatprep.subr.bf16.mxu0 0
      %1192 = vmatpush1.bf16.msra.mxu0 %v1050
      %1193 = vmatprep.subr.bf16.mxu0 0
      %1194 = vmatpush1.bf16.msra.mxu0 %v1051
      %1195 = vmatprep.subr.bf16.mxu0 0
      %1196 = vmatpush1.bf16.msra.mxu0 %v1052
      %1197 = vmatprep.mubr.bf16.mxu0 %v750
      %1198 = vmatmul.mubr.bf16.gmra.mrb[0].mxu0 %v749
      %v1199 = vpop.f32.mrb[0].mxu0
      %v1200 = vadd.f32 0.0, %v1199
      %v1201 = vpop.f32.mrb[0].mxu0
      %v1202 = vpop.f32.mrb[0].mxu0
      %v1203 = vadd.f32 0.0, %v1202
      %v1204 = vpop.f32.mrb[0].mxu0
      %1205 = vdwg.mxu0
      %1206 = vmatprep.subr.bf16.mxu0 0
      %1207 = vmatpush1.bf16.msra.mxu0 %v1053
      %1208 = vmatprep.subr.bf16.mxu0 0
      %1209 = vmatpush1.bf16.msra.mxu0 %v1054
      %1210 = vmatprep.subr.bf16.mxu0 0
      %1211 = vmatpush1.bf16.msra.mxu0 %v1055
      %1212 = vmatprep.subr.bf16.mxu0 0
      %1213 = vmatpush1.bf16.msra.mxu0 %v1056
      %1214 = vmatprep.subr.bf16.mxu0 0
      %1215 = vmatpush1.bf16.msra.mxu0 %v1057
      %1216 = vmatprep.subr.bf16.mxu0 0
      %1217 = vmatpush1.bf16.msra.mxu0 %v1058
      %1218 = vmatprep.subr.bf16.mxu0 0
      %1219 = vmatpush1.bf16.msra.mxu0 %v1059
      %1220 = vmatprep.subr.bf16.mxu0 0
      %1221 = vmatpush1.bf16.msra.mxu0 %v1060
      %1222 = vmatprep.subr.bf16.mxu0 0
      %1223 = vmatpush1.bf16.msra.mxu0 %v1061
      %1224 = vmatprep.subr.bf16.mxu0 0
      %1225 = vmatpush1.bf16.msra.mxu0 %v1062
      %1226 = vmatprep.subr.bf16.mxu0 0
      %1227 = vmatpush1.bf16.msra.mxu0 %v1063
      %1228 = vmatprep.subr.bf16.mxu0 0
      %1229 = vmatpush1.bf16.msra.mxu0 %v1064
      %1230 = vmatprep.subr.bf16.mxu0 0
      %1231 = vmatpush1.bf16.msra.mxu0 %v1065
      %1232 = vmatprep.subr.bf16.mxu0 0
      %1233 = vmatpush1.bf16.msra.mxu0 %v1066
      %1234 = vmatprep.subr.bf16.mxu0 0
      %1235 = vmatpush1.bf16.msra.mxu0 %v1067
      %1236 = vmatprep.subr.bf16.mxu0 0
      %1237 = vmatpush1.bf16.msra.mxu0 %v1068
      %1238 = vmatprep.mubr.bf16.mxu0 %v752
      %1239 = vmatmul.mubr.bf16.gmra.mrb[0].mxu0 %v751
      %v1240 = vpop.f32.mrb[0].mxu0
      %v1241 = vadd.f32 %v1200, %v1240
      %v1242 = vpop.f32.mrb[0].mxu0
      %v1243 = vpop.f32.mrb[0].mxu0
      %v1244 = vadd.f32 %v1203, %v1243
      %v1245 = vpop.f32.mrb[0].mxu0
      %1246 = vdwg.mxu0
      %1247 = vmatprep.subr.bf16.mxu0 0
      %1248 = vmatpush1.bf16.msra.mxu0 %v1069
      %1249 = vmatprep.subr.bf16.mxu0 0
      %1250 = vmatpush1.bf16.msra.mxu0 %v1070
      %1251 = vmatprep.subr.bf16.mxu0 0
      %1252 = vmatpush1.bf16.msra.mxu0 %v1071
      %1253 = vmatprep.subr.bf16.mxu0 0
      %1254 = vmatpush1.bf16.msra.mxu0 %v1072
      %1255 = vmatprep.subr.bf16.mxu0 0
      %1256 = vmatpush1.bf16.msra.mxu0 %v1073
      %1257 = vmatprep.subr.bf16.mxu0 0
      %1258 = vmatpush1.bf16.msra.mxu0 %v1074
      %1259 = vmatprep.subr.bf16.mxu0 0
      %1260 = vmatpush1.bf16.msra.mxu0 %v1075
      %1261 = vmatprep.subr.bf16.mxu0 0
      %1262 = vmatpush1.bf16.msra.mxu0 %v1076
      %1263 = vmatprep.subr.bf16.mxu0 0
      %1264 = vmatpush1.bf16.msra.mxu0 %v1077
      %1265 = vmatprep.subr.bf16.mxu0 0
      %1266 = vmatpush1.bf16.msra.mxu0 %v1078
      %1267 = vmatprep.subr.bf16.mxu0 0
      %1268 = vmatpush1.bf16.msra.mxu0 %v1079
      %1269 = vmatprep.subr.bf16.mxu0 0
      %1270 = vmatpush1.bf16.msra.mxu0 %v1080
      %1271 = vmatprep.subr.bf16.mxu0 0
      %1272 = vmatpush1.bf16.msra.mxu0 %v1081
      %1273 = vmatprep.subr.bf16.mxu0 0
      %1274 = vmatpush1.bf16.msra.mxu0 %v1082
      %1275 = vmatprep.subr.bf16.mxu0 0
      %1276 = vmatpush1.bf16.msra.mxu0 %v1083
      %1277 = vmatprep.subr.bf16.mxu0 0
      %1278 = vmatpush1.bf16.msra.mxu0 %v1084
      %1279 = vmatprep.mubr.bf16.mxu0 %v770
      %1280 = vmatmul.mubr.bf16.gmra.mrb[0].mxu0 %v769
      %v1281 = vpop.f32.mrb[0].mxu0
      %v1282 = vadd.f32 %v1241, %v1281
      %v1283 = vpop.f32.mrb[0].mxu0
      %v1284 = vpop.f32.mrb[0].mxu0
      %v1285 = vadd.f32 %v1244, %v1284
      %v1286 = vpop.f32.mrb[0].mxu0
      %1287 = vdwg.mxu0
      %1288 = vmatprep.subr.bf16.mxu0 0
      %1289 = vmatpush1.bf16.msra.mxu0 %v1085
      %1290 = vmatprep.subr.bf16.mxu0 0
      %1291 = vmatpush1.bf16.msra.mxu0 %v1086
      %1292 = vmatprep.subr.bf16.mxu0 0
      %1293 = vmatpush1.bf16.msra.mxu0 %v1087
      %1294 = vmatprep.subr.bf16.mxu0 0
      %1295 = vmatpush1.bf16.msra.mxu0 %v1088
      %1296 = vmatprep.subr.bf16.mxu0 0
      %1297 = vmatpush1.bf16.msra.mxu0 %v1089
      %1298 = vmatprep.subr.bf16.mxu0 0
      %1299 = vmatpush1.bf16.msra.mxu0 %v1090
      %1300 = vmatprep.subr.bf16.mxu0 0
      %1301 = vmatpush1.bf16.msra.mxu0 %v1091
      %1302 = vmatprep.subr.bf16.mxu0 0
      %1303 = vmatpush1.bf16.msra.mxu0 %v1092
      %1304 = vmatprep.subr.bf16.mxu0 0
      %1305 = vmatpush1.bf16.msra.mxu0 %v1093
      %1306 = vmatprep.subr.bf16.mxu0 0
      %1307 = vmatpush1.bf16.msra.mxu0 %v1094
      %1308 = vmatprep.subr.bf16.mxu0 0
      %1309 = vmatpush1.bf16.msra.mxu0 %v1095
      %1310 = vmatprep.subr.bf16.mxu0 0
      %1311 = vmatpush1.bf16.msra.mxu0 %v1096
      %1312 = vmatprep.subr.bf16.mxu0 0
      %1313 = vmatpush1.bf16.msra.mxu0 %v1097
      %1314 = vmatprep.subr.bf16.mxu0 0
      %1315 = vmatpush1.bf16.msra.mxu0 %v1098
      %1316 = vmatprep.subr.bf16.mxu0 0
      %1317 = vmatpush1.bf16.msra.mxu0 %v1099
      %1318 = vmatprep.subr.bf16.mxu0 0
      %1319 = vmatpush1.bf16.msra.mxu0 %v1100
      %1320 = vmatprep.mubr.bf16.mxu0 %v772
      %1321 = vmatmul.mubr.bf16.gmra.mrb[0].mxu0 %v771
      %v1322 = vpop.f32.mrb[0].mxu0
      %v1323 = vadd.f32 %v1282, %v1322
      %v1324 = vpop.f32.mrb[0].mxu0
      %v1325 = vpop.f32.mrb[0].mxu0
      %v1326 = vadd.f32 %v1285, %v1325
      %v1327 = vpop.f32.mrb[0].mxu0
      %1328 = vdwg.mxu0
      %v1329 = vld [vmem:[%s2] sm:$0x1]
      %v1331 = vlaneseq
      %v1332 = vshrl.u32 %v1331, 7
      %v1333 = vsub.s32 0, %v1332
      %v1334 = vrot.slane %v1329, %v1333
      %v1336 = vmul.f32 %v1323, %v1334
      %v1337 = vmul.f32 %v1326, %v1334
      %v1338 = vld [vmem:[%s3] sm:$0x1]
      %v1340 = vlaneseq
      %v1341 = vshrl.u32 %v1340, 7
      %v1342 = vsub.s32 0, %v1341
      %v1343 = vrot.slane %v1338, %v1342
      %v1345 = vadd.f32 %v1336, %v1343
      %v1346 = vadd.f32 %v1337, %v1343
      %v1347 = vmul.f32 %v1345, 0.2
      %v1348 = vmul.f32 %v1346, 0.2
      %v1349 = vmax.f32 %v1345, %v1347
      %v1350 = vmax.f32 %v1346, %v1348
      %v1353 = vcombine.high %v1349, %v1349
      %v1354 = vcombine.high %v1350, %v1350
      %v1357 = vpack.c.bf16 %v1349, %v1349
      %v1358 = vpack.c.bf16 %v1353, %v1353
      %v1359 = vpack.c.bf16 %v1350, %v1350
      %v1360 = vpack.c.bf16 %v1354, %v1354
      %v1365 = vunpack.c.l.b16 %v1357
      %v1366 = vunpack.c.l.b16 %v1358
      %v1367 = vunpack.c.l.b16 %v1359
      %v1368 = vunpack.c.l.b16 %v1360
      %v1369 = vpack.c.b16 %v1365, %v1365
      %v1370 = vpack.c.b16 %v1366, %v1366
      %v1371 = vpack.c.b16 %v1367, %v1367
      %v1372 = vpack.c.b16 %v1368, %v1368
      %v1373 = vrot.slane %v1369, 7
      %v1374 = vrot.slane %v1370, 7
      %v1375 = vrot.slane %v1371, 7
      %v1376 = vrot.slane %v1372, 7
      %s1381 = scalar_lea.vmem [#allocation3], 8
      %1382 = vst [vmem:[%s1381] sm:$0x6] %v1373
      %1383 = vst [vmem:[%s1381 + $0x4] sm:$0x6] %v1374
      %1384 = vst [vmem:[%s1381 + $0x8] sm:$0x6] %v1375
      %1385 = vst [vmem:[%s1381 + $0xc] sm:$0x6] %v1376
      %v1386 = vld [vmem:[#allocation3] sm:$0xf]
      %v1387 = vld [vmem:[#allocation3 + $0x4] sm:$0xf]
      %v1388 = vld [vmem:[#allocation3 + $0x8] sm:$0xf]
      %v1389 = vld [vmem:[#allocation3 + $0xc] sm:$0xf]
      %v1390 = vld [vmem:[#allocation3 + $0x10] sm:$0xf]
      %v1391 = vld [vmem:[#allocation3 + $0x14] sm:$0xf]
      %v1392 = vld [vmem:[#allocation3 + $0x18] sm:$0xf]
      %v1393 = vld [vmem:[#allocation3 + $0x1c] sm:$0xf]
      %v1394 = vld [vmem:[%s4] sm:$0xf]
      %v1395 = vld [vmem:[%s4 + $0x4] sm:$0xf]
      %v1396 = vld [vmem:[%s4 + $0x8] sm:$0xf]
      %v1397 = vld [vmem:[%s4 + $0xc] sm:$0xf]
      %v1398 = vld [vmem:[%s4 + $0x10] sm:$0xf]
      %v1399 = vld [vmem:[%s4 + $0x14] sm:$0xf]
      %v1400 = vld [vmem:[%s4 + $0x18] sm:$0xf]
      %v1401 = vld [vmem:[%s4 + $0x1c] sm:$0xf]
      %v1402 = vld [vmem:[%s4 + $0x20] sm:$0xf]
      %v1403 = vld [vmem:[%s4 + $0x24] sm:$0xf]
      %v1404 = vld [vmem:[%s4 + $0x28] sm:$0xf]
      %v1405 = vld [vmem:[%s4 + $0x2c] sm:$0xf]
      %v1406 = vld [vmem:[%s4 + $0x30] sm:$0xf]
      %v1407 = vld [vmem:[%s4 + $0x34] sm:$0xf]
      %v1408 = vld [vmem:[%s4 + $0x38] sm:$0xf]
      %v1409 = vld [vmem:[%s4 + $0x3c] sm:$0xf]
      %v1410 = vld [vmem:[%s4 + $0x40] sm:$0xf]
      %v1411 = vld [vmem:[%s4 + $0x44] sm:$0xf]
      %v1412 = vld [vmem:[%s4 + $0x48] sm:$0xf]
      %v1413 = vld [vmem:[%s4 + $0x4c] sm:$0xf]
      %v1414 = vld [vmem:[%s4 + $0x50] sm:$0xf]
      %v1415 = vld [vmem:[%s4 + $0x54] sm:$0xf]
      %v1416 = vld [vmem:[%s4 + $0x58] sm:$0xf]
      %v1417 = vld [vmem:[%s4 + $0x5c] sm:$0xf]
      %v1418 = vld [vmem:[%s4 + $0x60] sm:$0xf]
      %v1419 = vld [vmem:[%s4 + $0x64] sm:$0xf]
      %v1420 = vld [vmem:[%s4 + $0x68] sm:$0xf]
      %v1421 = vld [vmem:[%s4 + $0x6c] sm:$0xf]
      %v1422 = vld [vmem:[%s4 + $0x70] sm:$0xf]
      %v1423 = vld [vmem:[%s4 + $0x74] sm:$0xf]
      %v1424 = vld [vmem:[%s4 + $0x78] sm:$0xf]
      %v1425 = vld [vmem:[%s4 + $0x7c] sm:$0xf]
      %v1426 = vld [vmem:[%s4 + $0x80] sm:$0xf]
      %v1427 = vld [vmem:[%s4 + $0x84] sm:$0xf]
      %v1428 = vld [vmem:[%s4 + $0x88] sm:$0xf]
      %v1429 = vld [vmem:[%s4 + $0x8c] sm:$0xf]
      %v1430 = vld [vmem:[%s4 + $0x90] sm:$0xf]
      %v1431 = vld [vmem:[%s4 + $0x94] sm:$0xf]
      %v1432 = vld [vmem:[%s4 + $0x98] sm:$0xf]
      %v1433 = vld [vmem:[%s4 + $0x9c] sm:$0xf]
      %v1434 = vld [vmem:[%s4 + $0xa0] sm:$0xf]
      %v1435 = vld [vmem:[%s4 + $0xa4] sm:$0xf]
      %v1436 = vld [vmem:[%s4 + $0xa8] sm:$0xf]
      %v1437 = vld [vmem:[%s4 + $0xac] sm:$0xf]
      %v1438 = vld [vmem:[%s4 + $0xb0] sm:$0xf]
      %v1439 = vld [vmem:[%s4 + $0xb4] sm:$0xf]
      %v1440 = vld [vmem:[%s4 + $0xb8] sm:$0xf]
      %v1441 = vld [vmem:[%s4 + $0xbc] sm:$0xf]
      %v1442 = vld [vmem:[%s4 + $0xc0] sm:$0xf]
      %v1443 = vld [vmem:[%s4 + $0xc4] sm:$0xf]
      %v1444 = vld [vmem:[%s4 + $0xc8] sm:$0xf]
      %v1445 = vld [vmem:[%s4 + $0xcc] sm:$0xf]
      %v1446 = vld [vmem:[%s4 + $0xd0] sm:$0xf]
      %v1447 = vld [vmem:[%s4 + $0xd4] sm:$0xf]
      %v1448 = vld [vmem:[%s4 + $0xd8] sm:$0xf]
      %v1449 = vld [vmem:[%s4 + $0xdc] sm:$0xf]
      %v1450 = vld [vmem:[%s4 + $0xe0] sm:$0xf]
      %v1451 = vld [vmem:[%s4 + $0xe4] sm:$0xf]
      %v1452 = vld [vmem:[%s4 + $0xe8] sm:$0xf]
      %v1453 = vld [vmem:[%s4 + $0xec] sm:$0xf]
      %v1454 = vld [vmem:[%s4 + $0xf0] sm:$0xf]
      %v1455 = vld [vmem:[%s4 + $0xf4] sm:$0xf]
      %v1456 = vld [vmem:[%s4 + $0xf8] sm:$0xf]
      %v1457 = vld [vmem:[%s4 + $0xfc] sm:$0xf]
      %v1458 = vld [vmem:[%s4 + $0x100] sm:$0xf]
      %v1459 = vld [vmem:[%s4 + $0x104] sm:$0xf]
      %v1460 = vld [vmem:[%s4 + $0x108] sm:$0xf]
      %v1461 = vld [vmem:[%s4 + $0x10c] sm:$0xf]
      %v1462 = vld [vmem:[%s4 + $0x110] sm:$0xf]
      %v1463 = vld [vmem:[%s4 + $0x114] sm:$0xf]
      %v1464 = vld [vmem:[%s4 + $0x118] sm:$0xf]
      %v1465 = vld [vmem:[%s4 + $0x11c] sm:$0xf]
      %v1466 = vld [vmem:[%s4 + $0x120] sm:$0xf]
      %v1467 = vld [vmem:[%s4 + $0x124] sm:$0xf]
      %v1468 = vld [vmem:[%s4 + $0x128] sm:$0xf]
      %v1469 = vld [vmem:[%s4 + $0x12c] sm:$0xf]
      %v1470 = vld [vmem:[%s4 + $0x130] sm:$0xf]
      %v1471 = vld [vmem:[%s4 + $0x134] sm:$0xf]
      %v1472 = vld [vmem:[%s4 + $0x138] sm:$0xf]
      %v1473 = vld [vmem:[%s4 + $0x13c] sm:$0xf]
      %v1474 = vld [vmem:[%s4 + $0x140] sm:$0xf]
      %v1475 = vld [vmem:[%s4 + $0x144] sm:$0xf]
      %v1476 = vld [vmem:[%s4 + $0x148] sm:$0xf]
      %v1477 = vld [vmem:[%s4 + $0x14c] sm:$0xf]
      %v1478 = vld [vmem:[%s4 + $0x150] sm:$0xf]
      %v1479 = vld [vmem:[%s4 + $0x154] sm:$0xf]
      %v1480 = vld [vmem:[%s4 + $0x158] sm:$0xf]
      %v1481 = vld [vmem:[%s4 + $0x15c] sm:$0xf]
      %v1482 = vld [vmem:[%s4 + $0x160] sm:$0xf]
      %v1483 = vld [vmem:[%s4 + $0x164] sm:$0xf]
      %v1484 = vld [vmem:[%s4 + $0x168] sm:$0xf]
      %v1485 = vld [vmem:[%s4 + $0x16c] sm:$0xf]
      %v1486 = vld [vmem:[%s4 + $0x170] sm:$0xf]
      %v1487 = vld [vmem:[%s4 + $0x174] sm:$0xf]
      %v1488 = vld [vmem:[%s4 + $0x178] sm:$0xf]
      %v1489 = vld [vmem:[%s4 + $0x17c] sm:$0xf]
      %v1490 = vld [vmem:[%s4 + $0x180] sm:$0xf]
      %v1491 = vld [vmem:[%s4 + $0x184] sm:$0xf]
      %v1492 = vld [vmem:[%s4 + $0x188] sm:$0xf]
      %v1493 = vld [vmem:[%s4 + $0x18c] sm:$0xf]
      %v1494 = vld [vmem:[%s4 + $0x190] sm:$0xf]
      %v1495 = vld [vmem:[%s4 + $0x194] sm:$0xf]
      %v1496 = vld [vmem:[%s4 + $0x198] sm:$0xf]
      %v1497 = vld [vmem:[%s4 + $0x19c] sm:$0xf]
      %v1498 = vld [vmem:[%s4 + $0x1a0] sm:$0xf]
      %v1499 = vld [vmem:[%s4 + $0x1a4] sm:$0xf]
      %v1500 = vld [vmem:[%s4 + $0x1a8] sm:$0xf]
      %v1501 = vld [vmem:[%s4 + $0x1ac] sm:$0xf]
      %v1502 = vld [vmem:[%s4 + $0x1b0] sm:$0xf]
      %v1503 = vld [vmem:[%s4 + $0x1b4] sm:$0xf]
      %v1504 = vld [vmem:[%s4 + $0x1b8] sm:$0xf]
      %v1505 = vld [vmem:[%s4 + $0x1bc] sm:$0xf]
      %v1506 = vld [vmem:[%s4 + $0x1c0] sm:$0xf]
      %v1507 = vld [vmem:[%s4 + $0x1c4] sm:$0xf]
      %v1508 = vld [vmem:[%s4 + $0x1c8] sm:$0xf]
      %v1509 = vld [vmem:[%s4 + $0x1cc] sm:$0xf]
      %v1510 = vld [vmem:[%s4 + $0x1d0] sm:$0xf]
      %v1511 = vld [vmem:[%s4 + $0x1d4] sm:$0xf]
      %v1512 = vld [vmem:[%s4 + $0x1d8] sm:$0xf]
      %v1513 = vld [vmem:[%s4 + $0x1dc] sm:$0xf]
      %v1514 = vld [vmem:[%s4 + $0x1e0] sm:$0xf]
      %v1515 = vld [vmem:[%s4 + $0x1e4] sm:$0xf]
      %v1516 = vld [vmem:[%s4 + $0x1e8] sm:$0xf]
      %v1517 = vld [vmem:[%s4 + $0x1ec] sm:$0xf]
      %v1518 = vld [vmem:[%s4 + $0x1f0] sm:$0xf]
      %v1519 = vld [vmem:[%s4 + $0x1f4] sm:$0xf]
      %v1520 = vld [vmem:[%s4 + $0x1f8] sm:$0xf]
      %v1521 = vld [vmem:[%s4 + $0x1fc] sm:$0xf]
      %v1522 = vld [vmem:[%s4 + $0x200] sm:$0xf]
      %v1523 = vld [vmem:[%s4 + $0x204] sm:$0xf]
      %v1524 = vld [vmem:[%s4 + $0x208] sm:$0xf]
      %v1525 = vld [vmem:[%s4 + $0x20c] sm:$0xf]
      %v1526 = vld [vmem:[%s4 + $0x210] sm:$0xf]
      %v1527 = vld [vmem:[%s4 + $0x214] sm:$0xf]
      %v1528 = vld [vmem:[%s4 + $0x218] sm:$0xf]
      %v1529 = vld [vmem:[%s4 + $0x21c] sm:$0xf]
      %v1530 = vld [vmem:[%s4 + $0x220] sm:$0xf]
      %v1531 = vld [vmem:[%s4 + $0x224] sm:$0xf]
      %v1532 = vld [vmem:[%s4 + $0x228] sm:$0xf]
      %v1533 = vld [vmem:[%s4 + $0x22c] sm:$0xf]
      %v1534 = vld [vmem:[%s4 + $0x230] sm:$0xf]
      %v1535 = vld [vmem:[%s4 + $0x234] sm:$0xf]
      %v1536 = vld [vmem:[%s4 + $0x238] sm:$0xf]
      %v1537 = vld [vmem:[%s4 + $0x23c] sm:$0xf]
      %v1538 = vld [vmem:[%s4 + $0x240] sm:$0xf]
      %v1539 = vld [vmem:[%s4 + $0x244] sm:$0xf]
      %v1540 = vld [vmem:[%s4 + $0x248] sm:$0xf]
      %v1541 = vld [vmem:[%s4 + $0x24c] sm:$0xf]
      %v1542 = vld [vmem:[%s4 + $0x250] sm:$0xf]
      %v1543 = vld [vmem:[%s4 + $0x254] sm:$0xf]
      %v1544 = vld [vmem:[%s4 + $0x258] sm:$0xf]
      %v1545 = vld [vmem:[%s4 + $0x25c] sm:$0xf]
      %v1546 = vld [vmem:[%s4 + $0x260] sm:$0xf]
      %v1547 = vld [vmem:[%s4 + $0x264] sm:$0xf]
      %v1548 = vld [vmem:[%s4 + $0x268] sm:$0xf]
      %v1549 = vld [vmem:[%s4 + $0x26c] sm:$0xf]
      %v1550 = vld [vmem:[%s4 + $0x270] sm:$0xf]
      %v1551 = vld [vmem:[%s4 + $0x274] sm:$0xf]
      %v1552 = vld [vmem:[%s4 + $0x278] sm:$0xf]
      %v1553 = vld [vmem:[%s4 + $0x27c] sm:$0xf]
      %v1554 = vld [vmem:[%s4 + $0x280] sm:$0xf]
      %v1555 = vld [vmem:[%s4 + $0x284] sm:$0xf]
      %v1556 = vld [vmem:[%s4 + $0x288] sm:$0xf]
      %v1557 = vld [vmem:[%s4 + $0x28c] sm:$0xf]
      %v1558 = vld [vmem:[%s4 + $0x290] sm:$0xf]
      %v1559 = vld [vmem:[%s4 + $0x294] sm:$0xf]
      %v1560 = vld [vmem:[%s4 + $0x298] sm:$0xf]
      %v1561 = vld [vmem:[%s4 + $0x29c] sm:$0xf]
      %v1562 = vld [vmem:[%s4 + $0x2a0] sm:$0xf]
      %v1563 = vld [vmem:[%s4 + $0x2a4] sm:$0xf]
      %v1564 = vld [vmem:[%s4 + $0x2a8] sm:$0xf]
      %v1565 = vld [vmem:[%s4 + $0x2ac] sm:$0xf]
      %v1566 = vld [vmem:[%s4 + $0x2b0] sm:$0xf]
      %v1567 = vld [vmem:[%s4 + $0x2b4] sm:$0xf]
      %v1568 = vld [vmem:[%s4 + $0x2b8] sm:$0xf]
      %v1569 = vld [vmem:[%s4 + $0x2bc] sm:$0xf]
      %v1570 = vld [vmem:[%s4 + $0x2c0] sm:$0xf]
      %v1571 = vld [vmem:[%s4 + $0x2c4] sm:$0xf]
      %v1572 = vld [vmem:[%s4 + $0x2c8] sm:$0xf]
      %v1573 = vld [vmem:[%s4 + $0x2cc] sm:$0xf]
      %v1574 = vld [vmem:[%s4 + $0x2d0] sm:$0xf]
      %v1575 = vld [vmem:[%s4 + $0x2d4] sm:$0xf]
      %v1576 = vld [vmem:[%s4 + $0x2d8] sm:$0xf]
      %v1577 = vld [vmem:[%s4 + $0x2dc] sm:$0xf]
      %v1578 = vld [vmem:[%s4 + $0x2e0] sm:$0xf]
      %v1579 = vld [vmem:[%s4 + $0x2e4] sm:$0xf]
      %v1580 = vld [vmem:[%s4 + $0x2e8] sm:$0xf]
      %v1581 = vld [vmem:[%s4 + $0x2ec] sm:$0xf]
      %v1582 = vld [vmem:[%s4 + $0x2f0] sm:$0xf]
      %v1583 = vld [vmem:[%s4 + $0x2f4] sm:$0xf]
      %v1584 = vld [vmem:[%s4 + $0x2f8] sm:$0xf]
      %v1585 = vld [vmem:[%s4 + $0x2fc] sm:$0xf]
      %v1586 = vld [vmem:[%s4 + $0x300] sm:$0xf]
      %v1587 = vld [vmem:[%s4 + $0x304] sm:$0xf]
      %v1588 = vld [vmem:[%s4 + $0x308] sm:$0xf]
      %v1589 = vld [vmem:[%s4 + $0x30c] sm:$0xf]
      %v1590 = vld [vmem:[%s4 + $0x310] sm:$0xf]
      %v1591 = vld [vmem:[%s4 + $0x314] sm:$0xf]
      %v1592 = vld [vmem:[%s4 + $0x318] sm:$0xf]
      %v1593 = vld [vmem:[%s4 + $0x31c] sm:$0xf]
      %v1594 = vld [vmem:[%s4 + $0x320] sm:$0xf]
      %v1595 = vld [vmem:[%s4 + $0x324] sm:$0xf]
      %v1596 = vld [vmem:[%s4 + $0x328] sm:$0xf]
      %v1597 = vld [vmem:[%s4 + $0x32c] sm:$0xf]
      %v1598 = vld [vmem:[%s4 + $0x330] sm:$0xf]
      %v1599 = vld [vmem:[%s4 + $0x334] sm:$0xf]
      %v1600 = vld [vmem:[%s4 + $0x338] sm:$0xf]
      %v1601 = vld [vmem:[%s4 + $0x33c] sm:$0xf]
      %v1602 = vld [vmem:[%s4 + $0x340] sm:$0xf]
      %v1603 = vld [vmem:[%s4 + $0x344] sm:$0xf]
      %v1604 = vld [vmem:[%s4 + $0x348] sm:$0xf]
      %v1605 = vld [vmem:[%s4 + $0x34c] sm:$0xf]
      %v1606 = vld [vmem:[%s4 + $0x350] sm:$0xf]
      %v1607 = vld [vmem:[%s4 + $0x354] sm:$0xf]
      %v1608 = vld [vmem:[%s4 + $0x358] sm:$0xf]
      %v1609 = vld [vmem:[%s4 + $0x35c] sm:$0xf]
      %v1610 = vld [vmem:[%s4 + $0x360] sm:$0xf]
      %v1611 = vld [vmem:[%s4 + $0x364] sm:$0xf]
      %v1612 = vld [vmem:[%s4 + $0x368] sm:$0xf]
      %v1613 = vld [vmem:[%s4 + $0x36c] sm:$0xf]
      %v1614 = vld [vmem:[%s4 + $0x370] sm:$0xf]
      %v1615 = vld [vmem:[%s4 + $0x374] sm:$0xf]
      %v1616 = vld [vmem:[%s4 + $0x378] sm:$0xf]
      %v1617 = vld [vmem:[%s4 + $0x37c] sm:$0xf]
      %v1618 = vld [vmem:[%s4 + $0x380] sm:$0xf]
      %v1619 = vld [vmem:[%s4 + $0x384] sm:$0xf]
      %v1620 = vld [vmem:[%s4 + $0x388] sm:$0xf]
      %v1621 = vld [vmem:[%s4 + $0x38c] sm:$0xf]
      %v1622 = vld [vmem:[%s4 + $0x390] sm:$0xf]
      %v1623 = vld [vmem:[%s4 + $0x394] sm:$0xf]
      %v1624 = vld [vmem:[%s4 + $0x398] sm:$0xf]
      %v1625 = vld [vmem:[%s4 + $0x39c] sm:$0xf]
      %v1626 = vld [vmem:[%s4 + $0x3a0] sm:$0xf]
      %v1627 = vld [vmem:[%s4 + $0x3a4] sm:$0xf]
      %v1628 = vld [vmem:[%s4 + $0x3a8] sm:$0xf]
      %v1629 = vld [vmem:[%s4 + $0x3ac] sm:$0xf]
      %v1630 = vld [vmem:[%s4 + $0x3b0] sm:$0xf]
      %v1631 = vld [vmem:[%s4 + $0x3b4] sm:$0xf]
      %v1632 = vld [vmem:[%s4 + $0x3b8] sm:$0xf]
      %v1633 = vld [vmem:[%s4 + $0x3bc] sm:$0xf]
      %v1634 = vld [vmem:[%s4 + $0x3c0] sm:$0xf]
      %v1635 = vld [vmem:[%s4 + $0x3c4] sm:$0xf]
      %v1636 = vld [vmem:[%s4 + $0x3c8] sm:$0xf]
      %v1637 = vld [vmem:[%s4 + $0x3cc] sm:$0xf]
      %v1638 = vld [vmem:[%s4 + $0x3d0] sm:$0xf]
      %v1639 = vld [vmem:[%s4 + $0x3d4] sm:$0xf]
      %v1640 = vld [vmem:[%s4 + $0x3d8] sm:$0xf]
      %v1641 = vld [vmem:[%s4 + $0x3dc] sm:$0xf]
      %v1642 = vld [vmem:[%s4 + $0x3e0] sm:$0xf]
      %v1643 = vld [vmem:[%s4 + $0x3e4] sm:$0xf]
      %v1644 = vld [vmem:[%s4 + $0x3e8] sm:$0xf]
      %v1645 = vld [vmem:[%s4 + $0x3ec] sm:$0xf]
      %v1646 = vld [vmem:[%s4 + $0x3f0] sm:$0xf]
      %v1647 = vld [vmem:[%s4 + $0x3f4] sm:$0xf]
      %v1648 = vld [vmem:[%s4 + $0x3f8] sm:$0xf]
      %v1649 = vld [vmem:[%s4 + $0x3fc] sm:$0xf]
      %v1656 = vunpack.c.l.s4 1966171168
      %v1657 = vunpack.c.0.s8 %v1656
      %v1658 = vlaneseq
      %v1659 = vshrl.u32 %v1658, 7
      %v1660 = vsub.s32 %v1657, %v1659
      %v1661 = vrot.slane %v1386, %v1660
      %v1662 = vcombine.high %v1661, %v1661
      %v1664 = vunpack.c.l.s4 1966171168
      %v1665 = vunpack.c.0.s8 %v1664
      %v1666 = vlaneseq
      %v1667 = vshrl.u32 %v1666, 7
      %v1668 = vsub.s32 %v1665, %v1667
      %v1669 = vrot.slane %v1661, %v1668
      %v1671 = vunpack.c.l.s4 1966171168
      %v1672 = vunpack.c.0.s8 %v1671
      %v1673 = vlaneseq
      %v1674 = vshrl.u32 %v1673, 7
      %v1675 = vsub.s32 %v1672, %v1674
      %v1676 = vrot.slane %v1662, %v1675
      %v1677 = vcombine.high %v1669, %v1669
      %v1679 = vunpack.c.l.s4 1966171168
      %v1680 = vunpack.c.0.s8 %v1679
      %v1681 = vlaneseq
      %v1682 = vshrl.u32 %v1681, 7
      %v1683 = vsub.s32 %v1680, %v1682
      %v1684 = vrot.slane %v1387, %v1683
      %v1685 = vcombine.high %v1684, %v1684
      %v1687 = vunpack.c.l.s4 1966171168
      %v1688 = vunpack.c.0.s8 %v1687
      %v1689 = vlaneseq
      %v1690 = vshrl.u32 %v1689, 7
      %v1691 = vsub.s32 %v1688, %v1690
      %v1692 = vrot.slane %v1684, %v1691
      %v1694 = vunpack.c.l.s4 1966171168
      %v1695 = vunpack.c.0.s8 %v1694
      %v1696 = vlaneseq
      %v1697 = vshrl.u32 %v1696, 7
      %v1698 = vsub.s32 %v1695, %v1697
      %v1699 = vrot.slane %v1685, %v1698
      %v1700 = vcombine.high %v1692, %v1692
      %v1702 = vunpack.c.l.s4 1966171168
      %v1703 = vunpack.c.0.s8 %v1702
      %v1704 = vlaneseq
      %v1705 = vshrl.u32 %v1704, 7
      %v1706 = vsub.s32 %v1703, %v1705
      %v1707 = vrot.slane %v1388, %v1706
      %v1708 = vcombine.high %v1707, %v1707
      %v1710 = vunpack.c.l.s4 1966171168
      %v1711 = vunpack.c.0.s8 %v1710
      %v1712 = vlaneseq
      %v1713 = vshrl.u32 %v1712, 7
      %v1714 = vsub.s32 %v1711, %v1713
      %v1715 = vrot.slane %v1707, %v1714
      %v1717 = vunpack.c.l.s4 1966171168
      %v1718 = vunpack.c.0.s8 %v1717
      %v1719 = vlaneseq
      %v1720 = vshrl.u32 %v1719, 7
      %v1721 = vsub.s32 %v1718, %v1720
      %v1722 = vrot.slane %v1708, %v1721
      %v1723 = vcombine.high %v1715, %v1715
      %v1725 = vunpack.c.l.s4 1966171168
      %v1726 = vunpack.c.0.s8 %v1725
      %v1727 = vlaneseq
      %v1728 = vshrl.u32 %v1727, 7
      %v1729 = vsub.s32 %v1726, %v1728
      %v1730 = vrot.slane %v1389, %v1729
      %v1731 = vcombine.high %v1730, %v1730
      %v1733 = vunpack.c.l.s4 1966171168
      %v1734 = vunpack.c.0.s8 %v1733
      %v1735 = vlaneseq
      %v1736 = vshrl.u32 %v1735, 7
      %v1737 = vsub.s32 %v1734, %v1736
      %v1738 = vrot.slane %v1730, %v1737
      %v1740 = vunpack.c.l.s4 1966171168
      %v1741 = vunpack.c.0.s8 %v1740
      %v1742 = vlaneseq
      %v1743 = vshrl.u32 %v1742, 7
      %v1744 = vsub.s32 %v1741, %v1743
      %v1745 = vrot.slane %v1731, %v1744
      %v1746 = vcombine.high %v1738, %v1738
      %v1748 = vunpack.c.l.s4 1966171168
      %v1749 = vunpack.c.0.s8 %v1748
      %v1750 = vlaneseq
      %v1751 = vshrl.u32 %v1750, 7
      %v1752 = vsub.s32 %v1749, %v1751
      %v1753 = vrot.slane %v1390, %v1752
      %v1754 = vcombine.high %v1753, %v1753
      %v1756 = vunpack.c.l.s4 1966171168
      %v1757 = vunpack.c.0.s8 %v1756
      %v1758 = vlaneseq
      %v1759 = vshrl.u32 %v1758, 7
      %v1760 = vsub.s32 %v1757, %v1759
      %v1761 = vrot.slane %v1753, %v1760
      %v1763 = vunpack.c.l.s4 1966171168
      %v1764 = vunpack.c.0.s8 %v1763
      %v1765 = vlaneseq
      %v1766 = vshrl.u32 %v1765, 7
      %v1767 = vsub.s32 %v1764, %v1766
      %v1768 = vrot.slane %v1754, %v1767
      %v1769 = vcombine.high %v1761, %v1761
      %v1770 = vunpack.i.l.s16 %v1669
      %v1771 = vunpack.i.h.s16 %v1669
      %v1772 = vunpack.i.l.s16 %v1676
      %v1773 = vunpack.i.h.s16 %v1676
      %v1774 = vunpack.i.l.s16 %v1677
      %v1775 = vunpack.i.l.s16 %v1692
      %v1776 = vunpack.i.h.s16 %v1692
      %v1777 = vunpack.i.l.s16 %v1699
      %v1778 = vunpack.i.h.s16 %v1699
      %v1779 = vunpack.i.l.s16 %v1700
      %v1780 = vunpack.i.l.s16 %v1715
      %v1781 = vunpack.i.h.s16 %v1715
      %v1782 = vunpack.i.l.s16 %v1722
      %v1783 = vunpack.i.h.s16 %v1722
      %v1784 = vunpack.i.l.s16 %v1723
      %v1785 = vunpack.i.l.s16 %v1738
      %v1786 = vunpack.i.h.s16 %v1738
      %v1787 = vunpack.i.l.s16 %v1745
      %v1788 = vunpack.i.h.s16 %v1745
      %v1789 = vunpack.i.l.s16 %v1746
      %v1790 = vunpack.i.l.s16 %v1761
      %v1791 = vunpack.i.h.s16 %v1761
      %v1792 = vunpack.i.l.s16 %v1768
      %v1793 = vunpack.i.h.s16 %v1768
      %v1794 = vunpack.i.l.s16 %v1769
      %v1795 = vunpack.i.h.s16 %v1677
      %v1796 = vunpack.i.h.s16 %v1700
      %v1797 = vunpack.i.h.s16 %v1723
      %v1798 = vunpack.i.h.s16 %v1746
      %v1799 = vunpack.i.h.s16 %v1769
      %v1800 = vpack.i.b16 %v1772, %v1771
      %v1801 = vpack.i.b16 %v1774, %v1773
      %v1802 = vpack.i.b16 %v1776, %v1795
      %v1803 = vpack.i.b16 %v1778, %v1777
      %v1804 = vpack.i.b16 %v1796, %v1779
      %v1805 = vpack.i.b16 %v1782, %v1781
      %v1806 = vpack.i.b16 %v1784, %v1783
      %v1807 = vpack.i.b16 %v1786, %v1797
      %v1808 = vpack.i.b16 %v1788, %v1787
      %v1809 = vpack.i.b16 %v1798, %v1789
      %v1810 = vpack.i.b16 %v1792, %v1791
      %v1811 = vpack.i.b16 %v1794, %v1793
      %v1813 = vcombine.low %v1800, %v1801
      %v1814 = vcombine.low %v1802, %v1803
      %v1815 = vcombine.low %v1804, %v1805
      %v1816 = vcombine.low %v1806, %v1807
      %v1818 = vunpack.c.l.s4 1966171168
      %v1819 = vunpack.c.0.s8 %v1818
      %v1820 = vlaneseq
      %v1821 = vshrl.u32 %v1820, 7
      %v1822 = vsub.s32 %v1819, %v1821
      %v1823 = vrot.slane %v1813, %v1822
      %v1825 = vunpack.c.l.s4 1966171168
      %v1826 = vunpack.c.0.s8 %v1825
      %v1827 = vlaneseq
      %v1828 = vshrl.u32 %v1827, 7
      %v1829 = vsub.s32 %v1826, %v1828
      %v1830 = vrot.slane %v1814, %v1829
      %v1832 = vunpack.c.l.s4 1966171168
      %v1833 = vunpack.c.0.s8 %v1832
      %v1834 = vlaneseq
      %v1835 = vshrl.u32 %v1834, 7
      %v1836 = vsub.s32 %v1833, %v1835
      %v1837 = vrot.slane %v1815, %v1836
      %v1839 = vunpack.c.l.s4 1966171168
      %v1840 = vunpack.c.0.s8 %v1839
      %v1841 = vlaneseq
      %v1842 = vshrl.u32 %v1841, 7
      %v1843 = vsub.s32 %v1840, %v1842
      %v1844 = vrot.slane %v1816, %v1843
      %v1845 = vcombine.low %v1823, %v1830
      %v1846 = vcombine.low %v1837, %v1844
      %v1848 = vunpack.c.l.s4 1966171168
      %v1849 = vunpack.c.0.s8 %v1848
      %v1850 = vlaneseq
      %v1851 = vshrl.u32 %v1850, 7
      %v1852 = vsub.s32 %v1849, %v1851
      %v1853 = vrot.slane %v1845, %v1852
      %v1855 = vunpack.c.l.s4 1966171168
      %v1856 = vunpack.c.0.s8 %v1855
      %v1857 = vlaneseq
      %v1858 = vshrl.u32 %v1857, 7
      %v1859 = vsub.s32 %v1856, %v1858
      %v1860 = vrot.slane %v1846, %v1859
      %v1861 = vcombine.low %v1853, %v1860
      %v1862 = vcombine.low %v1808, %v1809
      %v1863 = vcombine.low %v1810, %v1811
      %v1865 = vunpack.c.l.s4 1966171168
      %v1866 = vunpack.c.0.s8 %v1865
      %v1867 = vlaneseq
      %v1868 = vshrl.u32 %v1867, 7
      %v1869 = vsub.s32 %v1866, %v1868
      %v1870 = vrot.slane %v1862, %v1869
      %v1872 = vunpack.c.l.s4 1966171168
      %v1873 = vunpack.c.0.s8 %v1872
      %v1874 = vlaneseq
      %v1875 = vshrl.u32 %v1874, 7
      %v1876 = vsub.s32 %v1873, %v1875
      %v1877 = vrot.slane %v1863, %v1876
      %v1879 = vunpack.c.l.s4 1966171168
      %v1880 = vunpack.c.0.s8 %v1879
      %v1881 = vlaneseq
      %v1882 = vshrl.u32 %v1881, 7
      %v1883 = vsub.s32 %v1880, %v1882
      %v1884 = vrot.slane %v1799, %v1883
      %v1885 = vcombine.low %v1870, %v1877
      %v1887 = vunpack.c.l.s4 1966171168
      %v1888 = vunpack.c.0.s8 %v1887
      %v1889 = vlaneseq
      %v1890 = vshrl.u32 %v1889, 7
      %v1891 = vsub.s32 %v1888, %v1890
      %v1892 = vrot.slane %v1885, %v1891
      %v1894 = vunpack.c.l.s4 1966171168
      %v1895 = vunpack.c.0.s8 %v1894
      %v1896 = vlaneseq
      %v1897 = vshrl.u32 %v1896, 7
      %v1898 = vsub.s32 %v1895, %v1897
      %v1899 = vrot.slane %v1884, %v1898
      %v1900 = vcombine.low %v1892, %v1899
      %v1919 = vunpack.c.l.b16 %v1410
      %v1920 = vunpack.c.l.b16 %v1411
      %v1921 = vunpack.c.l.b16 %v1412
      %v1922 = vunpack.c.l.b16 %v1413
      %v1923 = vunpack.c.l.b16 %v1414
      %v1924 = vunpack.c.l.b16 %v1415
      %v1925 = vunpack.c.l.b16 %v1416
      %v1926 = vunpack.c.l.b16 %v1417
      %v1927 = vunpack.c.l.b16 %v1418
      %v1928 = vunpack.c.l.b16 %v1419
      %v1929 = vunpack.c.l.b16 %v1420
      %v1930 = vunpack.c.l.b16 %v1421
      %v1931 = vunpack.c.l.b16 %v1422
      %v1932 = vunpack.c.l.b16 %v1423
      %v1933 = vunpack.c.l.b16 %v1424
      %v1934 = vunpack.c.l.b16 %v1425
      %v1935 = vpack.c.b16 %v1920, %v1919
      %v1936 = vpack.c.b16 %v1922, %v1921
      %v1937 = vpack.c.b16 %v1924, %v1923
      %v1938 = vpack.c.b16 %v1926, %v1925
      %v1939 = vpack.c.b16 %v1928, %v1927
      %v1940 = vpack.c.b16 %v1930, %v1929
      %v1941 = vpack.c.b16 %v1932, %v1931
      %v1942 = vpack.c.b16 %v1934, %v1933
      %1951 = vmatprep.subr.bf16.mxu0 0
      %1952 = vmatpush1.bf16.msra.mxu0 %v1935
      %1953 = vmatprep.subr.bf16.mxu0 0
      %1954 = vmatpush1.bf16.msra.mxu0 %v1936
      %1955 = vmatprep.subr.bf16.mxu0 0
      %1956 = vmatpush1.bf16.msra.mxu0 %v1937
      %1957 = vmatprep.subr.bf16.mxu0 0
      %1958 = vmatpush1.bf16.msra.mxu0 %v1938
      %1959 = vmatprep.subr.bf16.mxu0 0
      %1960 = vmatpush1.bf16.msra.mxu0 %v1939
      %1961 = vmatprep.subr.bf16.mxu0 0
      %1962 = vmatpush1.bf16.msra.mxu0 %v1940
      %1963 = vmatprep.subr.bf16.mxu0 0
      %1964 = vmatpush1.bf16.msra.mxu0 %v1941
      %1965 = vmatprep.subr.bf16.mxu0 0
      %1966 = vmatpush1.bf16.msra.mxu0 %v1942
      %1967 = vmatprep.subr.bf16.mxu0 0
      %1968 = vmatpush1.bf16.msra.mxu0 0
      %1969 = vmatprep.subr.bf16.mxu0 0
      %1970 = vmatpush1.bf16.msra.mxu0 0
      %1971 = vmatprep.subr.bf16.mxu0 0
      %1972 = vmatpush1.bf16.msra.mxu0 0
      %1973 = vmatprep.subr.bf16.mxu0 0
      %1974 = vmatpush1.bf16.msra.mxu0 0
      %1975 = vmatprep.subr.bf16.mxu0 0
      %1976 = vmatpush1.bf16.msra.mxu0 0
      %1977 = vmatprep.subr.bf16.mxu0 0
      %1978 = vmatpush1.bf16.msra.mxu0 0
      %1979 = vmatprep.subr.bf16.mxu0 0
      %1980 = vmatpush1.bf16.msra.mxu0 0
      %1981 = vmatprep.subr.bf16.mxu0 0
      %1982 = vmatpush1.bf16.msra.mxu0 0
      %1983 = vmatprep.mubr.bf16.mxu0 0
      %1984 = vmatmul.mubr.bf16.gmra.mrb[0].mxu0 %v1861
      %v1985 = vpop.f32.mrb[0].mxu0
      %v1986 = vadd.f32 0.0, %v1985
      %v1987 = vpop.f32.mrb[0].mxu0
      %v1988 = vpop.f32.mrb[0].mxu0
      %v1989 = vadd.f32 0.0, %v1988
      %v1990 = vpop.f32.mrb[0].mxu0
      %1991 = vmatprep.mubr.bf16.mxu0 0
      %1992 = vmatmul.mubr.bf16.gmra.mrb[0].mxu0 %v1900
      %v1993 = vpop.f32.mrb[0].mxu0
      %v1994 = vadd.f32 0.0, %v1993
      %v1995 = vpop.f32.mrb[0].mxu0
      %v1996 = vpop.f32.mrb[0].mxu0
      %v1997 = vadd.f32 0.0, %v1996
      %v1998 = vpop.f32.mrb[0].mxu0
      %1999 = vdwg.mxu0
      %v2000 = vpack.i.b16 %v1771, %v1770
      %v2001 = vpack.i.b16 %v1773, %v1772
      %v2002 = vpack.i.b16 %v1775, %v1774
      %v2003 = vpack.i.b16 %v1777, %v1776
      %v2004 = vpack.i.b16 %v1779, %v1778
      %v2005 = vpack.i.b16 %v1781, %v1780
      %v2006 = vpack.i.b16 %v1783, %v1782
      %v2007 = vpack.i.b16 %v1785, %v1784
      %v2008 = vpack.i.b16 %v1787, %v1786
      %v2009 = vpack.i.b16 %v1789, %v1788
      %v2010 = vpack.i.b16 %v1791, %v1790
      %v2011 = vpack.i.b16 %v1793, %v1792
      %v2013 = vcombine.low %v2000, %v2001
      %v2014 = vcombine.low %v2002, %v2003
      %v2015 = vcombine.low %v2004, %v2005
      %v2016 = vcombine.low %v2006, %v2007
      %v2018 = vunpack.c.l.s4 1966171168
      %v2019 = vunpack.c.0.s8 %v2018
      %v2020 = vlaneseq
      %v2021 = vshrl.u32 %v2020, 7
      %v2022 = vsub.s32 %v2019, %v2021
      %v2023 = vrot.slane %v2013, %v2022
      %v2025 = vunpack.c.l.s4 1966171168
      %v2026 = vunpack.c.0.s8 %v2025
      %v2027 = vlaneseq
      %v2028 = vshrl.u32 %v2027, 7
      %v2029 = vsub.s32 %v2026, %v2028
      %v2030 = vrot.slane %v2014, %v2029
      %v2032 = vunpack.c.l.s4 1966171168
      %v2033 = vunpack.c.0.s8 %v2032
      %v2034 = vlaneseq
      %v2035 = vshrl.u32 %v2034, 7
      %v2036 = vsub.s32 %v2033, %v2035
      %v2037 = vrot.slane %v2015, %v2036
      %v2039 = vunpack.c.l.s4 1966171168
      %v2040 = vunpack.c.0.s8 %v2039
      %v2041 = vlaneseq
      %v2042 = vshrl.u32 %v2041, 7
      %v2043 = vsub.s32 %v2040, %v2042
      %v2044 = vrot.slane %v2016, %v2043
      %v2045 = vcombine.low %v2023, %v2030
      %v2046 = vcombine.low %v2037, %v2044
      %v2048 = vunpack.c.l.s4 1966171168
      %v2049 = vunpack.c.0.s8 %v2048
      %v2050 = vlaneseq
      %v2051 = vshrl.u32 %v2050, 7
      %v2052 = vsub.s32 %v2049, %v2051
      %v2053 = vrot.slane %v2045, %v2052
      %v2055 = vunpack.c.l.s4 1966171168
      %v2056 = vunpack.c.0.s8 %v2055
      %v2057 = vlaneseq
      %v2058 = vshrl.u32 %v2057, 7
      %v2059 = vsub.s32 %v2056, %v2058
      %v2060 = vrot.slane %v2046, %v2059
      %v2061 = vcombine.low %v2053, %v2060
      %v2062 = vcombine.low %v2008, %v2009
      %v2063 = vcombine.low %v2010, %v2011
      %v2065 = vunpack.c.l.s4 1966171168
      %v2066 = vunpack.c.0.s8 %v2065
      %v2067 = vlaneseq
      %v2068 = vshrl.u32 %v2067, 7
      %v2069 = vsub.s32 %v2066, %v2068
      %v2070 = vrot.slane %v2062, %v2069
      %v2072 = vunpack.c.l.s4 1966171168
      %v2073 = vunpack.c.0.s8 %v2072
      %v2074 = vlaneseq
      %v2075 = vshrl.u32 %v2074, 7
      %v2076 = vsub.s32 %v2073, %v2075
      %v2077 = vrot.slane %v2063, %v2076
      %v2079 = vunpack.c.l.s4 1966171168
      %v2080 = vunpack.c.0.s8 %v2079
      %v2081 = vlaneseq
      %v2082 = vshrl.u32 %v2081, 7
      %v2083 = vsub.s32 %v2080, %v2082
      %v2084 = vrot.slane %v1794, %v2083
      %v2085 = vcombine.low %v2070, %v2077
      %v2087 = vunpack.c.l.s4 1966171168
      %v2088 = vunpack.c.0.s8 %v2087
      %v2089 = vlaneseq
      %v2090 = vshrl.u32 %v2089, 7
      %v2091 = vsub.s32 %v2088, %v2090
      %v2092 = vrot.slane %v2085, %v2091
      %v2094 = vunpack.c.l.s4 1966171168
      %v2095 = vunpack.c.0.s8 %v2094
      %v2096 = vlaneseq
      %v2097 = vshrl.u32 %v2096, 7
      %v2098 = vsub.s32 %v2095, %v2097
      %v2099 = vrot.slane %v2084, %v2098
      %v2100 = vcombine.low %v2092, %v2099
      %v2119 = vunpack.c.l.b16 %v1394
      %v2120 = vunpack.c.l.b16 %v1395
      %v2121 = vunpack.c.l.b16 %v1396
      %v2122 = vunpack.c.l.b16 %v1397
      %v2123 = vunpack.c.l.b16 %v1398
      %v2124 = vunpack.c.l.b16 %v1399
      %v2125 = vunpack.c.l.b16 %v1400
      %v2126 = vunpack.c.l.b16 %v1401
      %v2127 = vunpack.c.l.b16 %v1402
      %v2128 = vunpack.c.l.b16 %v1403
      %v2129 = vunpack.c.l.b16 %v1404
      %v2130 = vunpack.c.l.b16 %v1405
      %v2131 = vunpack.c.l.b16 %v1406
      %v2132 = vunpack.c.l.b16 %v1407
      %v2133 = vunpack.c.l.b16 %v1408
      %v2134 = vunpack.c.l.b16 %v1409
      %v2135 = vpack.c.b16 %v2120, %v2119
      %v2136 = vpack.c.b16 %v2122, %v2121
      %v2137 = vpack.c.b16 %v2124, %v2123
      %v2138 = vpack.c.b16 %v2126, %v2125
      %v2139 = vpack.c.b16 %v2128, %v2127
      %v2140 = vpack.c.b16 %v2130, %v2129
      %v2141 = vpack.c.b16 %v2132, %v2131
      %v2142 = vpack.c.b16 %v2134, %v2133
      %2151 = vmatprep.subr.bf16.mxu0 0
      %2152 = vmatpush1.bf16.msra.mxu0 %v2135
      %2153 = vmatprep.subr.bf16.mxu0 0
      %2154 = vmatpush1.bf16.msra.mxu0 %v2136
      %2155 = vmatprep.subr.bf16.mxu0 0
      %2156 = vmatpush1.bf16.msra.mxu0 %v2137
      %2157 = vmatprep.subr.bf16.mxu0 0
      %2158 = vmatpush1.bf16.msra.mxu0 %v2138
      %2159 = vmatprep.subr.bf16.mxu0 0
      %2160 = vmatpush1.bf16.msra.mxu0 %v2139
      %2161 = vmatprep.subr.bf16.mxu0 0
      %2162 = vmatpush1.bf16.msra.mxu0 %v2140
      %2163 = vmatprep.subr.bf16.mxu0 0
      %2164 = vmatpush1.bf16.msra.mxu0 %v2141
      %2165 = vmatprep.subr.bf16.mxu0 0
      %2166 = vmatpush1.bf16.msra.mxu0 %v2142
      %2167 = vmatprep.subr.bf16.mxu0 0
      %2168 = vmatpush1.bf16.msra.mxu0 0
      %2169 = vmatprep.subr.bf16.mxu0 0
      %2170 = vmatpush1.bf16.msra.mxu0 0
      %2171 = vmatprep.subr.bf16.mxu0 0
      %2172 = vmatpush1.bf16.msra.mxu0 0
      %2173 = vmatprep.subr.bf16.mxu0 0
      %2174 = vmatpush1.bf16.msra.mxu0 0
      %2175 = vmatprep.subr.bf16.mxu0 0
      %2176 = vmatpush1.bf16.msra.mxu0 0
      %2177 = vmatprep.subr.bf16.mxu0 0
      %2178 = vmatpush1.bf16.msra.mxu0 0
      %2179 = vmatprep.subr.bf16.mxu0 0
      %2180 = vmatpush1.bf16.msra.mxu0 0
      %2181 = vmatprep.subr.bf16.mxu0 0
      %2182 = vmatpush1.bf16.msra.mxu0 0
      %2183 = vmatprep.mubr.bf16.mxu0 0
      %2184 = vmatmul.mubr.bf16.gmra.mrb[0].mxu0 %v2061
      %v2185 = vpop.f32.mrb[0].mxu0
      %v2186 = vadd.f32 %v1986, %v2185
      %v2187 = vpop.f32.mrb[0].mxu0
      %v2188 = vpop.f32.mrb[0].mxu0
      %v2189 = vadd.f32 %v1989, %v2188
      %v2190 = vpop.f32.mrb[0].mxu0
      %2191 = vmatprep.mubr.bf16.mxu0 0
      %2192 = vmatmul.mubr.bf16.gmra.mrb[0].mxu0 %v2100
      %v2193 = vpop.f32.mrb[0].mxu0
      %v2194 = vadd.f32 %v1994, %v2193
      %v2195 = vpop.f32.mrb[0].mxu0
      %v2196 = vpop.f32.mrb[0].mxu0
      %v2197 = vadd.f32 %v1997, %v2196
      %v2198 = vpop.f32.mrb[0].mxu0
      %2199 = vdwg.mxu0
      %v2200 = vcombine.high %v1676, %v1676
      %v2201 = vcombine.high %v1699, %v1699
      %v2202 = vcombine.high %v1722, %v1722
      %v2203 = vcombine.high %v1745, %v1745
      %v2204 = vcombine.high %v1768, %v1768
      %v2205 = vunpack.i.l.s16 %v2200
      %v2206 = vunpack.i.l.s16 %v2201
      %v2207 = vunpack.i.l.s16 %v2202
      %v2208 = vunpack.i.l.s16 %v2203
      %v2209 = vunpack.i.l.s16 %v2204
      %v2210 = vpack.i.b16 %v1795, %v1774
      %v2211 = vpack.i.b16 %v1777, %v2205
      %v2212 = vpack.i.b16 %v2206, %v1796
      %v2213 = vpack.i.b16 %v1797, %v1784
      %v2214 = vpack.i.b16 %v1787, %v2207
      %v2215 = vpack.i.b16 %v2208, %v1798
      %v2216 = vpack.i.b16 %v1799, %v1794
      %v2218 = vcombine.low %v2001, %v2210
      %v2219 = vcombine.low %v2211, %v2004
      %v2220 = vcombine.low %v2212, %v2006
      %v2221 = vcombine.low %v2213, %v2214
      %v2223 = vunpack.c.l.s4 1966171168
      %v2224 = vunpack.c.0.s8 %v2223
      %v2225 = vlaneseq
      %v2226 = vshrl.u32 %v2225, 7
      %v2227 = vsub.s32 %v2224, %v2226
      %v2228 = vrot.slane %v2218, %v2227
      %v2230 = vunpack.c.l.s4 1966171168
      %v2231 = vunpack.c.0.s8 %v2230
      %v2232 = vlaneseq
      %v2233 = vshrl.u32 %v2232, 7
      %v2234 = vsub.s32 %v2231, %v2233
      %v2235 = vrot.slane %v2219, %v2234
      %v2237 = vunpack.c.l.s4 1966171168
      %v2238 = vunpack.c.0.s8 %v2237
      %v2239 = vlaneseq
      %v2240 = vshrl.u32 %v2239, 7
      %v2241 = vsub.s32 %v2238, %v2240
      %v2242 = vrot.slane %v2220, %v2241
      %v2244 = vunpack.c.l.s4 1966171168
      %v2245 = vunpack.c.0.s8 %v2244
      %v2246 = vlaneseq
      %v2247 = vshrl.u32 %v2246, 7
      %v2248 = vsub.s32 %v2245, %v2247
      %v2249 = vrot.slane %v2221, %v2248
      %v2250 = vcombine.low %v2228, %v2235
      %v2251 = vcombine.low %v2242, %v2249
      %v2253 = vunpack.c.l.s4 1966171168
      %v2254 = vunpack.c.0.s8 %v2253
      %v2255 = vlaneseq
      %v2256 = vshrl.u32 %v2255, 7
      %v2257 = vsub.s32 %v2254, %v2256
      %v2258 = vrot.slane %v2250, %v2257
      %v2260 = vunpack.c.l.s4 1966171168
      %v2261 = vunpack.c.0.s8 %v2260
      %v2262 = vlaneseq
      %v2263 = vshrl.u32 %v2262, 7
      %v2264 = vsub.s32 %v2261, %v2263
      %v2265 = vrot.slane %v2251, %v2264
      %v2266 = vcombine.low %v2258, %v2265
      %v2267 = vcombine.low %v2009, %v2215
      %v2268 = vcombine.low %v2011, %v2216
      %v2270 = vunpack.c.l.s4 1966171168
      %v2271 = vunpack.c.0.s8 %v2270
      %v2272 = vlaneseq
      %v2273 = vshrl.u32 %v2272, 7
      %v2274 = vsub.s32 %v2271, %v2273
      %v2275 = vrot.slane %v2267, %v2274
      %v2277 = vunpack.c.l.s4 1966171168
      %v2278 = vunpack.c.0.s8 %v2277
      %v2279 = vlaneseq
      %v2280 = vshrl.u32 %v2279, 7
      %v2281 = vsub.s32 %v2278, %v2280
      %v2282 = vrot.slane %v2268, %v2281
      %v2284 = vunpack.c.l.s4 1966171168
      %v2285 = vunpack.c.0.s8 %v2284
      %v2286 = vlaneseq
      %v2287 = vshrl.u32 %v2286, 7
      %v2288 = vsub.s32 %v2285, %v2287
      %v2289 = vrot.slane %v2209, %v2288
      %v2290 = vcombine.low %v2275, %v2282
      %v2292 = vunpack.c.l.s4 1966171168
      %v2293 = vunpack.c.0.s8 %v2292
      %v2294 = vlaneseq
      %v2295 = vshrl.u32 %v2294, 7
      %v2296 = vsub.s32 %v2293, %v2295
      %v2297 = vrot.slane %v2290, %v2296
      %v2299 = vunpack.c.l.s4 1966171168
      %v2300 = vunpack.c.0.s8 %v2299
      %v2301 = vlaneseq
      %v2302 = vshrl.u32 %v2301, 7
      %v2303 = vsub.s32 %v2300, %v2302
      %v2304 = vrot.slane %v2289, %v2303
      %v2305 = vcombine.low %v2297, %v2304
      %v2324 = vunpack.c.l.b16 %v1426
      %v2325 = vunpack.c.l.b16 %v1427
      %v2326 = vunpack.c.l.b16 %v1428
      %v2327 = vunpack.c.l.b16 %v1429
      %v2328 = vunpack.c.l.b16 %v1430
      %v2329 = vunpack.c.l.b16 %v1431
      %v2330 = vunpack.c.l.b16 %v1432
      %v2331 = vunpack.c.l.b16 %v1433
      %v2332 = vunpack.c.l.b16 %v1434
      %v2333 = vunpack.c.l.b16 %v1435
      %v2334 = vunpack.c.l.b16 %v1436
      %v2335 = vunpack.c.l.b16 %v1437
      %v2336 = vunpack.c.l.b16 %v1438
      %v2337 = vunpack.c.l.b16 %v1439
      %v2338 = vunpack.c.l.b16 %v1440
      %v2339 = vunpack.c.l.b16 %v1441
      %v2340 = vpack.c.b16 %v2325, %v2324
      %v2341 = vpack.c.b16 %v2327, %v2326
      %v2342 = vpack.c.b16 %v2329, %v2328
      %v2343 = vpack.c.b16 %v2331, %v2330
      %v2344 = vpack.c.b16 %v2333, %v2332
      %v2345 = vpack.c.b16 %v2335, %v2334
      %v2346 = vpack.c.b16 %v2337, %v2336
      %v2347 = vpack.c.b16 %v2339, %v2338
      %2356 = vmatprep.subr.bf16.mxu0 0
      %2357 = vmatpush1.bf16.msra.mxu0 %v2340
      %2358 = vmatprep.subr.bf16.mxu0 0
      %2359 = vmatpush1.bf16.msra.mxu0 %v2341
      %2360 = vmatprep.subr.bf16.mxu0 0
      %2361 = vmatpush1.bf16.msra.mxu0 %v2342
      %2362 = vmatprep.subr.bf16.mxu0 0
      %2363 = vmatpush1.bf16.msra.mxu0 %v2343
      %2364 = vmatprep.subr.bf16.mxu0 0
      %2365 = vmatpush1.bf16.msra.mxu0 %v2344
      %2366 = vmatprep.subr.bf16.mxu0 0
      %2367 = vmatpush1.bf16.msra.mxu0 %v2345
      %2368 = vmatprep.subr.bf16.mxu0 0
      %2369 = vmatpush1.bf16.msra.mxu0 %v2346
      %2370 = vmatprep.subr.bf16.mxu0 0
      %2371 = vmatpush1.bf16.msra.mxu0 %v2347
      %2372 = vmatprep.subr.bf16.mxu0 0
      %2373 = vmatpush1.bf16.msra.mxu0 0
      %2374 = vmatprep.subr.bf16.mxu0 0
      %2375 = vmatpush1.bf16.msra.mxu0 0
      %2376 = vmatprep.subr.bf16.mxu0 0
      %2377 = vmatpush1.bf16.msra.mxu0 0
      %2378 = vmatprep.subr.bf16.mxu0 0
      %2379 = vmatpush1.bf16.msra.mxu0 0
      %2380 = vmatprep.subr.bf16.mxu0 0
      %2381 = vmatpush1.bf16.msra.mxu0 0
      %2382 = vmatprep.subr.bf16.mxu0 0
      %2383 = vmatpush1.bf16.msra.mxu0 0
      %2384 = vmatprep.subr.bf16.mxu0 0
      %2385 = vmatpush1.bf16.msra.mxu0 0
      %2386 = vmatprep.subr.bf16.mxu0 0
      %2387 = vmatpush1.bf16.msra.mxu0 0
      %2388 = vmatprep.mubr.bf16.mxu0 0
      %2389 = vmatmul.mubr.bf16.gmra.mrb[0].mxu0 %v2266
      %v2390 = vpop.f32.mrb[0].mxu0
      %v2391 = vadd.f32 0.0, %v2390
      %v2392 = vpop.f32.mrb[0].mxu0
      %v2393 = vpop.f32.mrb[0].mxu0
      %v2394 = vadd.f32 0.0, %v2393
      %v2395 = vpop.f32.mrb[0].mxu0
      %2396 = vmatprep.mubr.bf16.mxu0 0
      %2397 = vmatmul.mubr.bf16.gmra.mrb[0].mxu0 %v2305
      %v2398 = vpop.f32.mrb[0].mxu0
      %v2399 = vadd.f32 0.0, %v2398
      %v2400 = vpop.f32.mrb[0].mxu0
      %v2401 = vpop.f32.mrb[0].mxu0
      %v2402 = vadd.f32 0.0, %v2401
      %v2403 = vpop.f32.mrb[0].mxu0
      %2404 = vdwg.mxu0
      %v2405 = vadd.f32 %v2186, %v2391
      %v2406 = vadd.f32 %v2189, %v2394
      %v2407 = vadd.f32 %v2194, %v2399
      %v2408 = vadd.f32 %v2197, %v2402
      %v2409 = vunpack.i.h.s16 %v2200
      %v2410 = vunpack.i.h.s16 %v2201
      %v2411 = vunpack.i.h.s16 %v2202
      %v2412 = vunpack.i.h.s16 %v2203
      %v2413 = vunpack.i.h.s16 %v2204
      %v2414 = vpack.i.b16 %v2205, %v1795
      %v2415 = vpack.i.b16 %v1778, %v2409
      %v2416 = vpack.i.b16 %v2410, %v2206
      %v2417 = vpack.i.b16 %v2207, %v1797
      %v2418 = vpack.i.b16 %v1788, %v2411
      %v2419 = vpack.i.b16 %v2412, %v2208
      %v2420 = vpack.i.b16 %v2209, %v1799
      %v2422 = vcombine.low %v1801, %v2414
      %v2423 = vcombine.low %v2415, %v1804
      %v2424 = vcombine.low %v2416, %v1806
      %v2425 = vcombine.low %v2417, %v2418
      %v2427 = vunpack.c.l.s4 1966171168
      %v2428 = vunpack.c.0.s8 %v2427
      %v2429 = vlaneseq
      %v2430 = vshrl.u32 %v2429, 7
      %v2431 = vsub.s32 %v2428, %v2430
      %v2432 = vrot.slane %v2422, %v2431
      %v2434 = vunpack.c.l.s4 1966171168
      %v2435 = vunpack.c.0.s8 %v2434
      %v2436 = vlaneseq
      %v2437 = vshrl.u32 %v2436, 7
      %v2438 = vsub.s32 %v2435, %v2437
      %v2439 = vrot.slane %v2423, %v2438
      %v2441 = vunpack.c.l.s4 1966171168
      %v2442 = vunpack.c.0.s8 %v2441
      %v2443 = vlaneseq
      %v2444 = vshrl.u32 %v2443, 7
      %v2445 = vsub.s32 %v2442, %v2444
      %v2446 = vrot.slane %v2424, %v2445
      %v2448 = vunpack.c.l.s4 1966171168
      %v2449 = vunpack.c.0.s8 %v2448
      %v2450 = vlaneseq
      %v2451 = vshrl.u32 %v2450, 7
      %v2452 = vsub.s32 %v2449, %v2451
      %v2453 = vrot.slane %v2425, %v2452
      %v2454 = vcombine.low %v2432, %v2439
      %v2455 = vcombine.low %v2446, %v2453
      %v2457 = vunpack.c.l.s4 1966171168
      %v2458 = vunpack.c.0.s8 %v2457
      %v2459 = vlaneseq
      %v2460 = vshrl.u32 %v2459, 7
      %v2461 = vsub.s32 %v2458, %v2460
      %v2462 = vrot.slane %v2454, %v2461
      %v2464 = vunpack.c.l.s4 1966171168
      %v2465 = vunpack.c.0.s8 %v2464
      %v2466 = vlaneseq
      %v2467 = vshrl.u32 %v2466, 7
      %v2468 = vsub.s32 %v2465, %v2467
      %v2469 = vrot.slane %v2455, %v2468
      %v2470 = vcombine.low %v2462, %v2469
      %v2471 = vcombine.low %v1809, %v2419
      %v2472 = vcombine.low %v1811, %v2420
      %v2474 = vunpack.c.l.s4 1966171168
      %v2475 = vunpack.c.0.s8 %v2474
      %v2476 = vlaneseq
      %v2477 = vshrl.u32 %v2476, 7
      %v2478 = vsub.s32 %v2475, %v2477
      %v2479 = vrot.slane %v2471, %v2478
      %v2481 = vunpack.c.l.s4 1966171168
      %v2482 = vunpack.c.0.s8 %v2481
      %v2483 = vlaneseq
      %v2484 = vshrl.u32 %v2483, 7
      %v2485 = vsub.s32 %v2482, %v2484
      %v2486 = vrot.slane %v2472, %v2485
      %v2488 = vunpack.c.l.s4 1966171168
      %v2489 = vunpack.c.0.s8 %v2488
      %v2490 = vlaneseq
      %v2491 = vshrl.u32 %v2490, 7
      %v2492 = vsub.s32 %v2489, %v2491
      %v2493 = vrot.slane %v2413, %v2492
      %v2494 = vcombine.low %v2479, %v2486
      %v2496 = vunpack.c.l.s4 1966171168
      %v2497 = vunpack.c.0.s8 %v2496
      %v2498 = vlaneseq
      %v2499 = vshrl.u32 %v2498, 7
      %v2500 = vsub.s32 %v2497, %v2499
      %v2501 = vrot.slane %v2494, %v2500
      %v2503 = vunpack.c.l.s4 1966171168
      %v2504 = vunpack.c.0.s8 %v2503
      %v2505 = vlaneseq
      %v2506 = vshrl.u32 %v2505, 7
      %v2507 = vsub.s32 %v2504, %v2506
      %v2508 = vrot.slane %v2493, %v2507
      %v2509 = vcombine.low %v2501, %v2508
      %v2528 = vunpack.c.l.b16 %v1442
      %v2529 = vunpack.c.l.b16 %v1443
      %v2530 = vunpack.c.l.b16 %v1444
      %v2531 = vunpack.c.l.b16 %v1445
      %v2532 = vunpack.c.l.b16 %v1446
      %v2533 = vunpack.c.l.b16 %v1447
      %v2534 = vunpack.c.l.b16 %v1448
      %v2535 = vunpack.c.l.b16 %v1449
      %v2536 = vunpack.c.l.b16 %v1450
      %v2537 = vunpack.c.l.b16 %v1451
      %v2538 = vunpack.c.l.b16 %v1452
      %v2539 = vunpack.c.l.b16 %v1453
      %v2540 = vunpack.c.l.b16 %v1454
      %v2541 = vunpack.c.l.b16 %v1455
      %v2542 = vunpack.c.l.b16 %v1456
      %v2543 = vunpack.c.l.b16 %v1457
      %v2544 = vpack.c.b16 %v2529, %v2528
      %v2545 = vpack.c.b16 %v2531, %v2530
      %v2546 = vpack.c.b16 %v2533, %v2532
      %v2547 = vpack.c.b16 %v2535, %v2534
      %v2548 = vpack.c.b16 %v2537, %v2536
      %v2549 = vpack.c.b16 %v2539, %v2538
      %v2550 = vpack.c.b16 %v2541, %v2540
      %v2551 = vpack.c.b16 %v2543, %v2542
      %2560 = vmatprep.subr.bf16.mxu0 0
      %2561 = vmatpush1.bf16.msra.mxu0 %v2544
      %2562 = vmatprep.subr.bf16.mxu0 0
      %2563 = vmatpush1.bf16.msra.mxu0 %v2545
      %2564 = vmatprep.subr.bf16.mxu0 0
      %2565 = vmatpush1.bf16.msra.mxu0 %v2546
      %2566 = vmatprep.subr.bf16.mxu0 0
      %2567 = vmatpush1.bf16.msra.mxu0 %v2547
      %2568 = vmatprep.subr.bf16.mxu0 0
      %2569 = vmatpush1.bf16.msra.mxu0 %v2548
      %2570 = vmatprep.subr.bf16.mxu0 0
      %2571 = vmatpush1.bf16.msra.mxu0 %v2549
      %2572 = vmatprep.subr.bf16.mxu0 0
      %2573 = vmatpush1.bf16.msra.mxu0 %v2550
      %2574 = vmatprep.subr.bf16.mxu0 0
      %2575 = vmatpush1.bf16.msra.mxu0 %v2551
      %2576 = vmatprep.subr.bf16.mxu0 0
      %2577 = vmatpush1.bf16.msra.mxu0 0
      %2578 = vmatprep.subr.bf16.mxu0 0
      %2579 = vmatpush1.bf16.msra.mxu0 0
      %2580 = vmatprep.subr.bf16.mxu0 0
      %2581 = vmatpush1.bf16.msra.mxu0 0
      %2582 = vmatprep.subr.bf16.mxu0 0
      %2583 = vmatpush1.bf16.msra.mxu0 0
      %2584 = vmatprep.subr.bf16.mxu0 0
      %2585 = vmatpush1.bf16.msra.mxu0 0
      %2586 = vmatprep.subr.bf16.mxu0 0
      %2587 = vmatpush1.bf16.msra.mxu0 0
      %2588 = vmatprep.subr.bf16.mxu0 0
      %2589 = vmatpush1.bf16.msra.mxu0 0
      %2590 = vmatprep.subr.bf16.mxu0 0
      %2591 = vmatpush1.bf16.msra.mxu0 0
      %2592 = vmatprep.mubr.bf16.mxu0 0
      %2593 = vmatmul.mubr.bf16.gmra.mrb[0].mxu0 %v2470
      %v2594 = vpop.f32.mrb[0].mxu0
      %v2595 = vadd.f32 0.0, %v2594
      %v2596 = vpop.f32.mrb[0].mxu0
      %v2597 = vpop.f32.mrb[0].mxu0
      %v2598 = vadd.f32 0.0, %v2597
      %v2599 = vpop.f32.mrb[0].mxu0
      %2600 = vmatprep.mubr.bf16.mxu0 0
      %2601 = vmatmul.mubr.bf16.gmra.mrb[0].mxu0 %v2509
      %v2602 = vpop.f32.mrb[0].mxu0
      %v2603 = vadd.f32 0.0, %v2602
      %v2604 = vpop.f32.mrb[0].mxu0
      %v2605 = vpop.f32.mrb[0].mxu0
      %v2606 = vadd.f32 0.0, %v2605
      %v2607 = vpop.f32.mrb[0].mxu0
      %2608 = vdwg.mxu0
      %v2609 = vadd.f32 %v2405, %v2595
      %v2610 = vadd.f32 %v2406, %v2598
      %v2611 = vadd.f32 %v2407, %v2603
      %v2612 = vadd.f32 %v2408, %v2606
      %v2615 = vunpack.c.l.s4 1966171168
      %v2616 = vunpack.c.0.s8 %v2615
      %v2617 = vlaneseq
      %v2618 = vshrl.u32 %v2617, 7
      %v2619 = vsub.s32 %v2616, %v2618
      %v2620 = vrot.slane %v1391, %v2619
      %v2621 = vcombine.high %v2620, %v2620
      %v2623 = vunpack.c.l.s4 1966171168
      %v2624 = vunpack.c.0.s8 %v2623
      %v2625 = vlaneseq
      %v2626 = vshrl.u32 %v2625, 7
      %v2627 = vsub.s32 %v2624, %v2626
      %v2628 = vrot.slane %v2620, %v2627
      %v2630 = vunpack.c.l.s4 1966171168
      %v2631 = vunpack.c.0.s8 %v2630
      %v2632 = vlaneseq
      %v2633 = vshrl.u32 %v2632, 7
      %v2634 = vsub.s32 %v2631, %v2633
      %v2635 = vrot.slane %v2621, %v2634
      %v2636 = vcombine.high %v2628, %v2628
      %v2637 = vunpack.i.l.s16 %v2628
      %v2638 = vunpack.i.h.s16 %v2628
      %v2639 = vunpack.i.l.s16 %v2635
      %v2640 = vunpack.i.h.s16 %v2635
      %v2641 = vunpack.i.l.s16 %v2636
      %v2642 = vpack.i.b16 %v1776, %v1775
      %v2643 = vpack.i.b16 %v1780, %v1779
      %v2644 = vpack.i.b16 %v1786, %v1785
      %v2645 = vpack.i.b16 %v1790, %v1789
      %v2646 = vpack.i.b16 %v2638, %v2637
      %v2647 = vpack.i.b16 %v2640, %v2639
      %v2649 = vcombine.low %v2642, %v1803
      %v2650 = vcombine.low %v2643, %v1805
      %v2651 = vcombine.low %v1806, %v2644
      %v2652 = vcombine.low %v1808, %v2645
      %v2654 = vunpack.c.l.s4 1966171168
      %v2655 = vunpack.c.0.s8 %v2654
      %v2656 = vlaneseq
      %v2657 = vshrl.u32 %v2656, 7
      %v2658 = vsub.s32 %v2655, %v2657
      %v2659 = vrot.slane %v2649, %v2658
      %v2661 = vunpack.c.l.s4 1966171168
      %v2662 = vunpack.c.0.s8 %v2661
      %v2663 = vlaneseq
      %v2664 = vshrl.u32 %v2663, 7
      %v2665 = vsub.s32 %v2662, %v2664
      %v2666 = vrot.slane %v2650, %v2665
      %v2668 = vunpack.c.l.s4 1966171168
      %v2669 = vunpack.c.0.s8 %v2668
      %v2670 = vlaneseq
      %v2671 = vshrl.u32 %v2670, 7
      %v2672 = vsub.s32 %v2669, %v2671
      %v2673 = vrot.slane %v2651, %v2672
      %v2675 = vunpack.c.l.s4 1966171168
      %v2676 = vunpack.c.0.s8 %v2675
      %v2677 = vlaneseq
      %v2678 = vshrl.u32 %v2677, 7
      %v2679 = vsub.s32 %v2676, %v2678
      %v2680 = vrot.slane %v2652, %v2679
      %v2681 = vcombine.low %v2659, %v2666
      %v2682 = vcombine.low %v2673, %v2680
      %v2684 = vunpack.c.l.s4 1966171168
      %v2685 = vunpack.c.0.s8 %v2684
      %v2686 = vlaneseq
      %v2687 = vshrl.u32 %v2686, 7
      %v2688 = vsub.s32 %v2685, %v2687
      %v2689 = vrot.slane %v2681, %v2688
      %v2691 = vunpack.c.l.s4 1966171168
      %v2692 = vunpack.c.0.s8 %v2691
      %v2693 = vlaneseq
      %v2694 = vshrl.u32 %v2693, 7
      %v2695 = vsub.s32 %v2692, %v2694
      %v2696 = vrot.slane %v2682, %v2695
      %v2697 = vcombine.low %v2689, %v2696
      %v2698 = vcombine.low %v2646, %v2647
      %v2700 = vunpack.c.l.s4 1966171168
      %v2701 = vunpack.c.0.s8 %v2700
      %v2702 = vlaneseq
      %v2703 = vshrl.u32 %v2702, 7
      %v2704 = vsub.s32 %v2701, %v2703
      %v2705 = vrot.slane %v2698, %v2704
      %v2707 = vunpack.c.l.s4 1966171168
      %v2708 = vunpack.c.0.s8 %v2707
      %v2709 = vlaneseq
      %v2710 = vshrl.u32 %v2709, 7
      %v2711 = vsub.s32 %v2708, %v2710
      %v2712 = vrot.slane %v2641, %v2711
      %v2713 = vcombine.low %v1877, %v2705
      %v2715 = vunpack.c.l.s4 1966171168
      %v2716 = vunpack.c.0.s8 %v2715
      %v2717 = vlaneseq
      %v2718 = vshrl.u32 %v2717, 7
      %v2719 = vsub.s32 %v2716, %v2718
      %v2720 = vrot.slane %v2713, %v2719
      %v2722 = vunpack.c.l.s4 1966171168
      %v2723 = vunpack.c.0.s8 %v2722
      %v2724 = vlaneseq
      %v2725 = vshrl.u32 %v2724, 7
      %v2726 = vsub.s32 %v2723, %v2725
      %v2727 = vrot.slane %v2712, %v2726
      %v2728 = vcombine.low %v2720, %v2727
      %v2747 = vunpack.c.l.b16 %v1458
      %v2748 = vunpack.c.l.b16 %v1459
      %v2749 = vunpack.c.l.b16 %v1460
      %v2750 = vunpack.c.l.b16 %v1461
      %v2751 = vunpack.c.l.b16 %v1462
      %v2752 = vunpack.c.l.b16 %v1463
      %v2753 = vunpack.c.l.b16 %v1464
      %v2754 = vunpack.c.l.b16 %v1465
      %v2755 = vunpack.c.l.b16 %v1466
      %v2756 = vunpack.c.l.b16 %v1467
      %v2757 = vunpack.c.l.b16 %v1468
      %v2758 = vunpack.c.l.b16 %v1469
      %v2759 = vunpack.c.l.b16 %v1470
      %v2760 = vunpack.c.l.b16 %v1471
      %v2761 = vunpack.c.l.b16 %v1472
      %v2762 = vunpack.c.l.b16 %v1473
      %v2763 = vpack.c.b16 %v2748, %v2747
      %v2764 = vpack.c.b16 %v2750, %v2749
      %v2765 = vpack.c.b16 %v2752, %v2751
      %v2766 = vpack.c.b16 %v2754, %v2753
      %v2767 = vpack.c.b16 %v2756, %v2755
      %v2768 = vpack.c.b16 %v2758, %v2757
      %v2769 = vpack.c.b16 %v2760, %v2759
      %v2770 = vpack.c.b16 %v2762, %v2761
      %2779 = vmatprep.subr.bf16.mxu0 0
      %2780 = vmatpush1.bf16.msra.mxu0 %v2763
      %2781 = vmatprep.subr.bf16.mxu0 0
      %2782 = vmatpush1.bf16.msra.mxu0 %v2764
      %2783 = vmatprep.subr.bf16.mxu0 0
      %2784 = vmatpush1.bf16.msra.mxu0 %v2765
      %2785 = vmatprep.subr.bf16.mxu0 0
      %2786 = vmatpush1.bf16.msra.mxu0 %v2766
      %2787 = vmatprep.subr.bf16.mxu0 0
      %2788 = vmatpush1.bf16.msra.mxu0 %v2767
      %2789 = vmatprep.subr.bf16.mxu0 0
      %2790 = vmatpush1.bf16.msra.mxu0 %v2768
      %2791 = vmatprep.subr.bf16.mxu0 0
      %2792 = vmatpush1.bf16.msra.mxu0 %v2769
      %2793 = vmatprep.subr.bf16.mxu0 0
      %2794 = vmatpush1.bf16.msra.mxu0 %v2770
      %2795 = vmatprep.subr.bf16.mxu0 0
      %2796 = vmatpush1.bf16.msra.mxu0 0
      %2797 = vmatprep.subr.bf16.mxu0 0
      %2798 = vmatpush1.bf16.msra.mxu0 0
      %2799 = vmatprep.subr.bf16.mxu0 0
      %2800 = vmatpush1.bf16.msra.mxu0 0
      %2801 = vmatprep.subr.bf16.mxu0 0
      %2802 = vmatpush1.bf16.msra.mxu0 0
      %2803 = vmatprep.subr.bf16.mxu0 0
      %2804 = vmatpush1.bf16.msra.mxu0 0
      %2805 = vmatprep.subr.bf16.mxu0 0
      %2806 = vmatpush1.bf16.msra.mxu0 0
      %2807 = vmatprep.subr.bf16.mxu0 0
      %2808 = vmatpush1.bf16.msra.mxu0 0
      %2809 = vmatprep.subr.bf16.mxu0 0
      %2810 = vmatpush1.bf16.msra.mxu0 0
      %2811 = vmatprep.mubr.bf16.mxu0 0
      %2812 = vmatmul.mubr.bf16.gmra.mrb[0].mxu0 %v2697
      %v2813 = vpop.f32.mrb[0].mxu0
      %v2814 = vadd.f32 0.0, %v2813
      %v2815 = vpop.f32.mrb[0].mxu0
      %v2816 = vpop.f32.mrb[0].mxu0
      %v2817 = vadd.f32 0.0, %v2816
      %v2818 = vpop.f32.mrb[0].mxu0
      %2819 = vmatprep.mubr.bf16.mxu0 0
      %2820 = vmatmul.mubr.bf16.gmra.mrb[0].mxu0 %v2728
      %v2821 = vpop.f32.mrb[0].mxu0
      %v2822 = vadd.f32 0.0, %v2821
      %v2823 = vpop.f32.mrb[0].mxu0
      %v2824 = vpop.f32.mrb[0].mxu0
      %v2825 = vadd.f32 0.0, %v2824
      %v2826 = vpop.f32.mrb[0].mxu0
      %2827 = vdwg.mxu0
      %v2828 = vadd.f32 %v2609, %v2814
      %v2829 = vadd.f32 %v2610, %v2817
      %v2830 = vadd.f32 %v2611, %v2822
      %v2831 = vadd.f32 %v2612, %v2825
      %v2832 = vunpack.i.h.s16 %v2636
      %v2833 = vpack.i.b16 %v1781, %v1796
      %v2834 = vpack.i.b16 %v1791, %v1798
      %v2835 = vpack.i.b16 %v2639, %v2638
      %v2836 = vpack.i.b16 %v2641, %v2640
      %v2838 = vcombine.low %v2003, %v2004
      %v2839 = vcombine.low %v2833, %v2006
      %v2840 = vcombine.low %v2213, %v2008
      %v2841 = vcombine.low %v2009, %v2834
      %v2843 = vunpack.c.l.s4 1966171168
      %v2844 = vunpack.c.0.s8 %v2843
      %v2845 = vlaneseq
      %v2846 = vshrl.u32 %v2845, 7
      %v2847 = vsub.s32 %v2844, %v2846
      %v2848 = vrot.slane %v2838, %v2847
      %v2850 = vunpack.c.l.s4 1966171168
      %v2851 = vunpack.c.0.s8 %v2850
      %v2852 = vlaneseq
      %v2853 = vshrl.u32 %v2852, 7
      %v2854 = vsub.s32 %v2851, %v2853
      %v2855 = vrot.slane %v2839, %v2854
      %v2857 = vunpack.c.l.s4 1966171168
      %v2858 = vunpack.c.0.s8 %v2857
      %v2859 = vlaneseq
      %v2860 = vshrl.u32 %v2859, 7
      %v2861 = vsub.s32 %v2858, %v2860
      %v2862 = vrot.slane %v2840, %v2861
      %v2864 = vunpack.c.l.s4 1966171168
      %v2865 = vunpack.c.0.s8 %v2864
      %v2866 = vlaneseq
      %v2867 = vshrl.u32 %v2866, 7
      %v2868 = vsub.s32 %v2865, %v2867
      %v2869 = vrot.slane %v2841, %v2868
      %v2870 = vcombine.low %v2848, %v2855
      %v2871 = vcombine.low %v2862, %v2869
      %v2873 = vunpack.c.l.s4 1966171168
      %v2874 = vunpack.c.0.s8 %v2873
      %v2875 = vlaneseq
      %v2876 = vshrl.u32 %v2875, 7
      %v2877 = vsub.s32 %v2874, %v2876
      %v2878 = vrot.slane %v2870, %v2877
      %v2880 = vunpack.c.l.s4 1966171168
      %v2881 = vunpack.c.0.s8 %v2880
      %v2882 = vlaneseq
      %v2883 = vshrl.u32 %v2882, 7
      %v2884 = vsub.s32 %v2881, %v2883
      %v2885 = vrot.slane %v2871, %v2884
      %v2886 = vcombine.low %v2878, %v2885
      %v2887 = vcombine.low %v2835, %v2836
      %v2889 = vunpack.c.l.s4 1966171168
      %v2890 = vunpack.c.0.s8 %v2889
      %v2891 = vlaneseq
      %v2892 = vshrl.u32 %v2891, 7
      %v2893 = vsub.s32 %v2890, %v2892
      %v2894 = vrot.slane %v2887, %v2893
      %v2896 = vunpack.c.l.s4 1966171168
      %v2897 = vunpack.c.0.s8 %v2896
      %v2898 = vlaneseq
      %v2899 = vshrl.u32 %v2898, 7
      %v2900 = vsub.s32 %v2897, %v2899
      %v2901 = vrot.slane %v2832, %v2900
      %v2902 = vcombine.low %v2282, %v2894
      %v2904 = vunpack.c.l.s4 1966171168
      %v2905 = vunpack.c.0.s8 %v2904
      %v2906 = vlaneseq
      %v2907 = vshrl.u32 %v2906, 7
      %v2908 = vsub.s32 %v2905, %v2907
      %v2909 = vrot.slane %v2902, %v2908
      %v2911 = vunpack.c.l.s4 1966171168
      %v2912 = vunpack.c.0.s8 %v2911
      %v2913 = vlaneseq
      %v2914 = vshrl.u32 %v2913, 7
      %v2915 = vsub.s32 %v2912, %v2914
      %v2916 = vrot.slane %v2901, %v2915
      %v2917 = vcombine.low %v2909, %v2916
      %v2936 = vunpack.c.l.b16 %v1474
      %v2937 = vunpack.c.l.b16 %v1475
      %v2938 = vunpack.c.l.b16 %v1476
      %v2939 = vunpack.c.l.b16 %v1477
      %v2940 = vunpack.c.l.b16 %v1478
      %v2941 = vunpack.c.l.b16 %v1479
      %v2942 = vunpack.c.l.b16 %v1480
      %v2943 = vunpack.c.l.b16 %v1481
      %v2944 = vunpack.c.l.b16 %v1482
      %v2945 = vunpack.c.l.b16 %v1483
      %v2946 = vunpack.c.l.b16 %v1484
      %v2947 = vunpack.c.l.b16 %v1485
      %v2948 = vunpack.c.l.b16 %v1486
      %v2949 = vunpack.c.l.b16 %v1487
      %v2950 = vunpack.c.l.b16 %v1488
      %v2951 = vunpack.c.l.b16 %v1489
      %v2952 = vpack.c.b16 %v2937, %v2936
      %v2953 = vpack.c.b16 %v2939, %v2938
      %v2954 = vpack.c.b16 %v2941, %v2940
      %v2955 = vpack.c.b16 %v2943, %v2942
      %v2956 = vpack.c.b16 %v2945, %v2944
      %v2957 = vpack.c.b16 %v2947, %v2946
      %v2958 = vpack.c.b16 %v2949, %v2948
      %v2959 = vpack.c.b16 %v2951, %v2950
      %2968 = vmatprep.subr.bf16.mxu0 0
      %2969 = vmatpush1.bf16.msra.mxu0 %v2952
      %2970 = vmatprep.subr.bf16.mxu0 0
      %2971 = vmatpush1.bf16.msra.mxu0 %v2953
      %2972 = vmatprep.subr.bf16.mxu0 0
      %2973 = vmatpush1.bf16.msra.mxu0 %v2954
      %2974 = vmatprep.subr.bf16.mxu0 0
      %2975 = vmatpush1.bf16.msra.mxu0 %v2955
      %2976 = vmatprep.subr.bf16.mxu0 0
      %2977 = vmatpush1.bf16.msra.mxu0 %v2956
      %2978 = vmatprep.subr.bf16.mxu0 0
      %2979 = vmatpush1.bf16.msra.mxu0 %v2957
      %2980 = vmatprep.subr.bf16.mxu0 0
      %2981 = vmatpush1.bf16.msra.mxu0 %v2958
      %2982 = vmatprep.subr.bf16.mxu0 0
      %2983 = vmatpush1.bf16.msra.mxu0 %v2959
      %2984 = vmatprep.subr.bf16.mxu0 0
      %2985 = vmatpush1.bf16.msra.mxu0 0
      %2986 = vmatprep.subr.bf16.mxu0 0
      %2987 = vmatpush1.bf16.msra.mxu0 0
      %2988 = vmatprep.subr.bf16.mxu0 0
      %2989 = vmatpush1.bf16.msra.mxu0 0
      %2990 = vmatprep.subr.bf16.mxu0 0
      %2991 = vmatpush1.bf16.msra.mxu0 0
      %2992 = vmatprep.subr.bf16.mxu0 0
      %2993 = vmatpush1.bf16.msra.mxu0 0
      %2994 = vmatprep.subr.bf16.mxu0 0
      %2995 = vmatpush1.bf16.msra.mxu0 0
      %2996 = vmatprep.subr.bf16.mxu0 0
      %2997 = vmatpush1.bf16.msra.mxu0 0
      %2998 = vmatprep.subr.bf16.mxu0 0
      %2999 = vmatpush1.bf16.msra.mxu0 0
      %3000 = vmatprep.mubr.bf16.mxu0 0
      %3001 = vmatmul.mubr.bf16.gmra.mrb[0].mxu0 %v2886
      %v3002 = vpop.f32.mrb[0].mxu0
      %v3003 = vadd.f32 0.0, %v3002
      %v3004 = vpop.f32.mrb[0].mxu0
      %v3005 = vpop.f32.mrb[0].mxu0
      %v3006 = vadd.f32 0.0, %v3005
      %v3007 = vpop.f32.mrb[0].mxu0
      %3008 = vmatprep.mubr.bf16.mxu0 0
      %3009 = vmatmul.mubr.bf16.gmra.mrb[0].mxu0 %v2917
      %v3010 = vpop.f32.mrb[0].mxu0
      %v3011 = vadd.f32 0.0, %v3010
      %v3012 = vpop.f32.mrb[0].mxu0
      %v3013 = vpop.f32.mrb[0].mxu0
      %v3014 = vadd.f32 0.0, %v3013
      %v3015 = vpop.f32.mrb[0].mxu0
      %3016 = vdwg.mxu0
      %v3017 = vadd.f32 %v2828, %v3003
      %v3018 = vadd.f32 %v2829, %v3006
      %v3019 = vadd.f32 %v2830, %v3011
      %v3020 = vadd.f32 %v2831, %v3014
      %v3021 = vcombine.high %v2635, %v2635
      %v3022 = vunpack.i.l.s16 %v3021
      %v3023 = vpack.i.b16 %v1782, %v2206
      %v3024 = vpack.i.b16 %v1792, %v2208
      %v3025 = vpack.i.b16 %v2832, %v2641
      %v3027 = vcombine.low %v1803, %v1804
      %v3028 = vcombine.low %v3023, %v1806
      %v3029 = vcombine.low %v2417, %v1808
      %v3030 = vcombine.low %v1809, %v3024
      %v3032 = vunpack.c.l.s4 1966171168
      %v3033 = vunpack.c.0.s8 %v3032
      %v3034 = vlaneseq
      %v3035 = vshrl.u32 %v3034, 7
      %v3036 = vsub.s32 %v3033, %v3035
      %v3037 = vrot.slane %v3027, %v3036
      %v3039 = vunpack.c.l.s4 1966171168
      %v3040 = vunpack.c.0.s8 %v3039
      %v3041 = vlaneseq
      %v3042 = vshrl.u32 %v3041, 7
      %v3043 = vsub.s32 %v3040, %v3042
      %v3044 = vrot.slane %v3028, %v3043
      %v3046 = vunpack.c.l.s4 1966171168
      %v3047 = vunpack.c.0.s8 %v3046
      %v3048 = vlaneseq
      %v3049 = vshrl.u32 %v3048, 7
      %v3050 = vsub.s32 %v3047, %v3049
      %v3051 = vrot.slane %v3029, %v3050
      %v3053 = vunpack.c.l.s4 1966171168
      %v3054 = vunpack.c.0.s8 %v3053
      %v3055 = vlaneseq
      %v3056 = vshrl.u32 %v3055, 7
      %v3057 = vsub.s32 %v3054, %v3056
      %v3058 = vrot.slane %v3030, %v3057
      %v3059 = vcombine.low %v3037, %v3044
      %v3060 = vcombine.low %v3051, %v3058
      %v3062 = vunpack.c.l.s4 1966171168
      %v3063 = vunpack.c.0.s8 %v3062
      %v3064 = vlaneseq
      %v3065 = vshrl.u32 %v3064, 7
      %v3066 = vsub.s32 %v3063, %v3065
      %v3067 = vrot.slane %v3059, %v3066
      %v3069 = vunpack.c.l.s4 1966171168
      %v3070 = vunpack.c.0.s8 %v3069
      %v3071 = vlaneseq
      %v3072 = vshrl.u32 %v3071, 7
      %v3073 = vsub.s32 %v3070, %v3072
      %v3074 = vrot.slane %v3060, %v3073
      %v3075 = vcombine.low %v3067, %v3074
      %v3076 = vcombine.low %v2647, %v3025
      %v3078 = vunpack.c.l.s4 1966171168
      %v3079 = vunpack.c.0.s8 %v3078
      %v3080 = vlaneseq
      %v3081 = vshrl.u32 %v3080, 7
      %v3082 = vsub.s32 %v3079, %v3081
      %v3083 = vrot.slane %v3076, %v3082
      %v3085 = vunpack.c.l.s4 1966171168
      %v3086 = vunpack.c.0.s8 %v3085
      %v3087 = vlaneseq
      %v3088 = vshrl.u32 %v3087, 7
      %v3089 = vsub.s32 %v3086, %v3088
      %v3090 = vrot.slane %v3022, %v3089
      %v3091 = vcombine.low %v2486, %v3083
      %v3093 = vunpack.c.l.s4 1966171168
      %v3094 = vunpack.c.0.s8 %v3093
      %v3095 = vlaneseq
      %v3096 = vshrl.u32 %v3095, 7
      %v3097 = vsub.s32 %v3094, %v3096
      %v3098 = vrot.slane %v3091, %v3097
      %v3100 = vunpack.c.l.s4 1966171168
      %v3101 = vunpack.c.0.s8 %v3100
      %v3102 = vlaneseq
      %v3103 = vshrl.u32 %v3102, 7
      %v3104 = vsub.s32 %v3101, %v3103
      %v3105 = vrot.slane %v3090, %v3104
      %v3106 = vcombine.low %v3098, %v3105
      %v3125 = vunpack.c.l.b16 %v1490
      %v3126 = vunpack.c.l.b16 %v1491
      %v3127 = vunpack.c.l.b16 %v1492
      %v3128 = vunpack.c.l.b16 %v1493
      %v3129 = vunpack.c.l.b16 %v1494
      %v3130 = vunpack.c.l.b16 %v1495
      %v3131 = vunpack.c.l.b16 %v1496
      %v3132 = vunpack.c.l.b16 %v1497
      %v3133 = vunpack.c.l.b16 %v1498
      %v3134 = vunpack.c.l.b16 %v1499
      %v3135 = vunpack.c.l.b16 %v1500
      %v3136 = vunpack.c.l.b16 %v1501
      %v3137 = vunpack.c.l.b16 %v1502
      %v3138 = vunpack.c.l.b16 %v1503
      %v3139 = vunpack.c.l.b16 %v1504
      %v3140 = vunpack.c.l.b16 %v1505
      %v3141 = vpack.c.b16 %v3126, %v3125
      %v3142 = vpack.c.b16 %v3128, %v3127
      %v3143 = vpack.c.b16 %v3130, %v3129
      %v3144 = vpack.c.b16 %v3132, %v3131
      %v3145 = vpack.c.b16 %v3134, %v3133
      %v3146 = vpack.c.b16 %v3136, %v3135
      %v3147 = vpack.c.b16 %v3138, %v3137
      %v3148 = vpack.c.b16 %v3140, %v3139
      %3157 = vmatprep.subr.bf16.mxu0 0
      %3158 = vmatpush1.bf16.msra.mxu0 %v3141
      %3159 = vmatprep.subr.bf16.mxu0 0
      %3160 = vmatpush1.bf16.msra.mxu0 %v3142
      %3161 = vmatprep.subr.bf16.mxu0 0
      %3162 = vmatpush1.bf16.msra.mxu0 %v3143
      %3163 = vmatprep.subr.bf16.mxu0 0
      %3164 = vmatpush1.bf16.msra.mxu0 %v3144
      %3165 = vmatprep.subr.bf16.mxu0 0
      %3166 = vmatpush1.bf16.msra.mxu0 %v3145
      %3167 = vmatprep.subr.bf16.mxu0 0
      %3168 = vmatpush1.bf16.msra.mxu0 %v3146
      %3169 = vmatprep.subr.bf16.mxu0 0
      %3170 = vmatpush1.bf16.msra.mxu0 %v3147
      %3171 = vmatprep.subr.bf16.mxu0 0
      %3172 = vmatpush1.bf16.msra.mxu0 %v3148
      %3173 = vmatprep.subr.bf16.mxu0 0
      %3174 = vmatpush1.bf16.msra.mxu0 0
      %3175 = vmatprep.subr.bf16.mxu0 0
      %3176 = vmatpush1.bf16.msra.mxu0 0
      %3177 = vmatprep.subr.bf16.mxu0 0
      %3178 = vmatpush1.bf16.msra.mxu0 0
      %3179 = vmatprep.subr.bf16.mxu0 0
      %3180 = vmatpush1.bf16.msra.mxu0 0
      %3181 = vmatprep.subr.bf16.mxu0 0
      %3182 = vmatpush1.bf16.msra.mxu0 0
      %3183 = vmatprep.subr.bf16.mxu0 0
      %3184 = vmatpush1.bf16.msra.mxu0 0
      %3185 = vmatprep.subr.bf16.mxu0 0
      %3186 = vmatpush1.bf16.msra.mxu0 0
      %3187 = vmatprep.subr.bf16.mxu0 0
      %3188 = vmatpush1.bf16.msra.mxu0 0
      %3189 = vmatprep.mubr.bf16.mxu0 0
      %3190 = vmatmul.mubr.bf16.gmra.mrb[0].mxu0 %v3075
      %v3191 = vpop.f32.mrb[0].mxu0
      %v3192 = vadd.f32 0.0, %v3191
      %v3193 = vpop.f32.mrb[0].mxu0
      %v3194 = vpop.f32.mrb[0].mxu0
      %v3195 = vadd.f32 0.0, %v3194
      %v3196 = vpop.f32.mrb[0].mxu0
      %3197 = vmatprep.mubr.bf16.mxu0 0
      %3198 = vmatmul.mubr.bf16.gmra.mrb[0].mxu0 %v3106
      %v3199 = vpop.f32.mrb[0].mxu0
      %v3200 = vadd.f32 0.0, %v3199
      %v3201 = vpop.f32.mrb[0].mxu0
      %v3202 = vpop.f32.mrb[0].mxu0
      %v3203 = vadd.f32 0.0, %v3202
      %v3204 = vpop.f32.mrb[0].mxu0
      %3205 = vdwg.mxu0
      %v3206 = vadd.f32 %v3017, %v3192
      %v3207 = vadd.f32 %v3018, %v3195
      %v3208 = vadd.f32 %v3019, %v3200
      %v3209 = vadd.f32 %v3020, %v3203
      %v3210 = vunpack.i.h.s16 %v3021
      %v3211 = vpack.i.b16 %v1783, %v2410
      %v3212 = vpack.i.b16 %v2411, %v2207
      %v3213 = vpack.i.b16 %v1793, %v2412
      %v3214 = vpack.i.b16 %v2413, %v2209
      %v3215 = vpack.i.b16 %v3022, %v2832
      %v3217 = vcombine.low %v2004, %v2212
      %v3218 = vcombine.low %v3211, %v2213
      %v3219 = vcombine.low %v3212, %v2009
      %v3220 = vcombine.low %v2215, %v3213
      %v3222 = vunpack.c.l.s4 1966171168
      %v3223 = vunpack.c.0.s8 %v3222
      %v3224 = vlaneseq
      %v3225 = vshrl.u32 %v3224, 7
      %v3226 = vsub.s32 %v3223, %v3225
      %v3227 = vrot.slane %v3217, %v3226
      %v3229 = vunpack.c.l.s4 1966171168
      %v3230 = vunpack.c.0.s8 %v3229
      %v3231 = vlaneseq
      %v3232 = vshrl.u32 %v3231, 7
      %v3233 = vsub.s32 %v3230, %v3232
      %v3234 = vrot.slane %v3218, %v3233
      %v3236 = vunpack.c.l.s4 1966171168
      %v3237 = vunpack.c.0.s8 %v3236
      %v3238 = vlaneseq
      %v3239 = vshrl.u32 %v3238, 7
      %v3240 = vsub.s32 %v3237, %v3239
      %v3241 = vrot.slane %v3219, %v3240
      %v3243 = vunpack.c.l.s4 1966171168
      %v3244 = vunpack.c.0.s8 %v3243
      %v3245 = vlaneseq
      %v3246 = vshrl.u32 %v3245, 7
      %v3247 = vsub.s32 %v3244, %v3246
      %v3248 = vrot.slane %v3220, %v3247
      %v3249 = vcombine.low %v3227, %v3234
      %v3250 = vcombine.low %v3241, %v3248
      %v3252 = vunpack.c.l.s4 1966171168
      %v3253 = vunpack.c.0.s8 %v3252
      %v3254 = vlaneseq
      %v3255 = vshrl.u32 %v3254, 7
      %v3256 = vsub.s32 %v3253, %v3255
      %v3257 = vrot.slane %v3249, %v3256
      %v3259 = vunpack.c.l.s4 1966171168
      %v3260 = vunpack.c.0.s8 %v3259
      %v3261 = vlaneseq
      %v3262 = vshrl.u32 %v3261, 7
      %v3263 = vsub.s32 %v3260, %v3262
      %v3264 = vrot.slane %v3250, %v3263
      %v3265 = vcombine.low %v3257, %v3264
      %v3266 = vcombine.low %v2216, %v3214
      %v3267 = vcombine.low %v2836, %v3215
      %v3269 = vunpack.c.l.s4 1966171168
      %v3270 = vunpack.c.0.s8 %v3269
      %v3271 = vlaneseq
      %v3272 = vshrl.u32 %v3271, 7
      %v3273 = vsub.s32 %v3270, %v3272
      %v3274 = vrot.slane %v3266, %v3273
      %v3276 = vunpack.c.l.s4 1966171168
      %v3277 = vunpack.c.0.s8 %v3276
      %v3278 = vlaneseq
      %v3279 = vshrl.u32 %v3278, 7
      %v3280 = vsub.s32 %v3277, %v3279
      %v3281 = vrot.slane %v3267, %v3280
      %v3283 = vunpack.c.l.s4 1966171168
      %v3284 = vunpack.c.0.s8 %v3283
      %v3285 = vlaneseq
      %v3286 = vshrl.u32 %v3285, 7
      %v3287 = vsub.s32 %v3284, %v3286
      %v3288 = vrot.slane %v3210, %v3287
      %v3289 = vcombine.low %v3274, %v3281
      %v3291 = vunpack.c.l.s4 1966171168
      %v3292 = vunpack.c.0.s8 %v3291
      %v3293 = vlaneseq
      %v3294 = vshrl.u32 %v3293, 7
      %v3295 = vsub.s32 %v3292, %v3294
      %v3296 = vrot.slane %v3289, %v3295
      %v3298 = vunpack.c.l.s4 1966171168
      %v3299 = vunpack.c.0.s8 %v3298
      %v3300 = vlaneseq
      %v3301 = vshrl.u32 %v3300, 7
      %v3302 = vsub.s32 %v3299, %v3301
      %v3303 = vrot.slane %v3288, %v3302
      %v3304 = vcombine.low %v3296, %v3303
      %v3323 = vunpack.c.l.b16 %v1506
      %v3324 = vunpack.c.l.b16 %v1507
      %v3325 = vunpack.c.l.b16 %v1508
      %v3326 = vunpack.c.l.b16 %v1509
      %v3327 = vunpack.c.l.b16 %v1510
      %v3328 = vunpack.c.l.b16 %v1511
      %v3329 = vunpack.c.l.b16 %v1512
      %v3330 = vunpack.c.l.b16 %v1513
      %v3331 = vunpack.c.l.b16 %v1514
      %v3332 = vunpack.c.l.b16 %v1515
      %v3333 = vunpack.c.l.b16 %v1516
      %v3334 = vunpack.c.l.b16 %v1517
      %v3335 = vunpack.c.l.b16 %v1518
      %v3336 = vunpack.c.l.b16 %v1519
      %v3337 = vunpack.c.l.b16 %v1520
      %v3338 = vunpack.c.l.b16 %v1521
      %v3339 = vpack.c.b16 %v3324, %v3323
      %v3340 = vpack.c.b16 %v3326, %v3325
      %v3341 = vpack.c.b16 %v3328, %v3327
      %v3342 = vpack.c.b16 %v3330, %v3329
      %v3343 = vpack.c.b16 %v3332, %v3331
      %v3344 = vpack.c.b16 %v3334, %v3333
      %v3345 = vpack.c.b16 %v3336, %v3335
      %v3346 = vpack.c.b16 %v3338, %v3337
      %3355 = vmatprep.subr.bf16.mxu0 0
      %3356 = vmatpush1.bf16.msra.mxu0 %v3339
      %3357 = vmatprep.subr.bf16.mxu0 0
      %3358 = vmatpush1.bf16.msra.mxu0 %v3340
      %3359 = vmatprep.subr.bf16.mxu0 0
      %3360 = vmatpush1.bf16.msra.mxu0 %v3341
      %3361 = vmatprep.subr.bf16.mxu0 0
      %3362 = vmatpush1.bf16.msra.mxu0 %v3342
      %3363 = vmatprep.subr.bf16.mxu0 0
      %3364 = vmatpush1.bf16.msra.mxu0 %v3343
      %3365 = vmatprep.subr.bf16.mxu0 0
      %3366 = vmatpush1.bf16.msra.mxu0 %v3344
      %3367 = vmatprep.subr.bf16.mxu0 0
      %3368 = vmatpush1.bf16.msra.mxu0 %v3345
      %3369 = vmatprep.subr.bf16.mxu0 0
      %3370 = vmatpush1.bf16.msra.mxu0 %v3346
      %3371 = vmatprep.subr.bf16.mxu0 0
      %3372 = vmatpush1.bf16.msra.mxu0 0
      %3373 = vmatprep.subr.bf16.mxu0 0
      %3374 = vmatpush1.bf16.msra.mxu0 0
      %3375 = vmatprep.subr.bf16.mxu0 0
      %3376 = vmatpush1.bf16.msra.mxu0 0
      %3377 = vmatprep.subr.bf16.mxu0 0
      %3378 = vmatpush1.bf16.msra.mxu0 0
      %3379 = vmatprep.subr.bf16.mxu0 0
      %3380 = vmatpush1.bf16.msra.mxu0 0
      %3381 = vmatprep.subr.bf16.mxu0 0
      %3382 = vmatpush1.bf16.msra.mxu0 0
      %3383 = vmatprep.subr.bf16.mxu0 0
      %3384 = vmatpush1.bf16.msra.mxu0 0
      %3385 = vmatprep.subr.bf16.mxu0 0
      %3386 = vmatpush1.bf16.msra.mxu0 0
      %3387 = vmatprep.mubr.bf16.mxu0 0
      %3388 = vmatmul.mubr.bf16.gmra.mrb[0].mxu0 %v3265
      %v3389 = vpop.f32.mrb[0].mxu0
      %v3390 = vadd.f32 0.0, %v3389
      %v3391 = vpop.f32.mrb[0].mxu0
      %v3392 = vpop.f32.mrb[0].mxu0
      %v3393 = vadd.f32 0.0, %v3392
      %v3394 = vpop.f32.mrb[0].mxu0
      %3395 = vmatprep.mubr.bf16.mxu0 0
      %3396 = vmatmul.mubr.bf16.gmra.mrb[0].mxu0 %v3304
      %v3397 = vpop.f32.mrb[0].mxu0
      %v3398 = vadd.f32 0.0, %v3397
      %v3399 = vpop.f32.mrb[0].mxu0
      %v3400 = vpop.f32.mrb[0].mxu0
      %v3401 = vadd.f32 0.0, %v3400
      %v3402 = vpop.f32.mrb[0].mxu0
      %3403 = vdwg.mxu0
      %v3404 = vadd.f32 %v3206, %v3390
      %v3405 = vadd.f32 %v3207, %v3393
      %v3406 = vadd.f32 %v3208, %v3398
      %v3407 = vadd.f32 %v3209, %v3401
      %v3410 = vunpack.c.l.s4 1966171168
      %v3411 = vunpack.c.0.s8 %v3410
      %v3412 = vlaneseq
      %v3413 = vshrl.u32 %v3412, 7
      %v3414 = vsub.s32 %v3411, %v3413
      %v3415 = vrot.slane %v1392, %v3414
      %v3416 = vcombine.high %v3415, %v3415
      %v3418 = vunpack.c.l.s4 1966171168
      %v3419 = vunpack.c.0.s8 %v3418
      %v3420 = vlaneseq
      %v3421 = vshrl.u32 %v3420, 7
      %v3422 = vsub.s32 %v3419, %v3421
      %v3423 = vrot.slane %v3415, %v3422
      %v3425 = vunpack.c.l.s4 1966171168
      %v3426 = vunpack.c.0.s8 %v3425
      %v3427 = vlaneseq
      %v3428 = vshrl.u32 %v3427, 7
      %v3429 = vsub.s32 %v3426, %v3428
      %v3430 = vrot.slane %v3416, %v3429
      %v3431 = vcombine.high %v3423, %v3423
      %v3432 = vunpack.i.l.s16 %v3423
      %v3433 = vunpack.i.h.s16 %v3423
      %v3434 = vunpack.i.l.s16 %v3430
      %v3435 = vunpack.i.h.s16 %v3430
      %v3436 = vunpack.i.l.s16 %v3431
      %v3437 = vpack.i.b16 %v2637, %v1794
      %v3438 = vpack.i.b16 %v3433, %v3432
      %v3439 = vpack.i.b16 %v3435, %v3434
      %v3441 = vcombine.low %v2005, %v2006
      %v3442 = vcombine.low %v2007, %v2008
      %v3443 = vcombine.low %v2009, %v2010
      %v3444 = vcombine.low %v2011, %v3437
      %v3446 = vunpack.c.l.s4 1966171168
      %v3447 = vunpack.c.0.s8 %v3446
      %v3448 = vlaneseq
      %v3449 = vshrl.u32 %v3448, 7
      %v3450 = vsub.s32 %v3447, %v3449
      %v3451 = vrot.slane %v3441, %v3450
      %v3453 = vunpack.c.l.s4 1966171168
      %v3454 = vunpack.c.0.s8 %v3453
      %v3455 = vlaneseq
      %v3456 = vshrl.u32 %v3455, 7
      %v3457 = vsub.s32 %v3454, %v3456
      %v3458 = vrot.slane %v3442, %v3457
      %v3460 = vunpack.c.l.s4 1966171168
      %v3461 = vunpack.c.0.s8 %v3460
      %v3462 = vlaneseq
      %v3463 = vshrl.u32 %v3462, 7
      %v3464 = vsub.s32 %v3461, %v3463
      %v3465 = vrot.slane %v3443, %v3464
      %v3467 = vunpack.c.l.s4 1966171168
      %v3468 = vunpack.c.0.s8 %v3467
      %v3469 = vlaneseq
      %v3470 = vshrl.u32 %v3469, 7
      %v3471 = vsub.s32 %v3468, %v3470
      %v3472 = vrot.slane %v3444, %v3471
      %v3473 = vcombine.low %v3451, %v3458
      %v3474 = vcombine.low %v3465, %v3472
      %v3476 = vunpack.c.l.s4 1966171168
      %v3477 = vunpack.c.0.s8 %v3476
      %v3478 = vlaneseq
      %v3479 = vshrl.u32 %v3478, 7
      %v3480 = vsub.s32 %v3477, %v3479
      %v3481 = vrot.slane %v3473, %v3480
      %v3483 = vunpack.c.l.s4 1966171168
      %v3484 = vunpack.c.0.s8 %v3483
      %v3485 = vlaneseq
      %v3486 = vshrl.u32 %v3485, 7
      %v3487 = vsub.s32 %v3484, %v3486
      %v3488 = vrot.slane %v3474, %v3487
      %v3489 = vcombine.low %v3481, %v3488
      %v3490 = vcombine.low %v3438, %v3439
      %v3492 = vunpack.c.l.s4 1966171168
      %v3493 = vunpack.c.0.s8 %v3492
      %v3494 = vlaneseq
      %v3495 = vshrl.u32 %v3494, 7
      %v3496 = vsub.s32 %v3493, %v3495
      %v3497 = vrot.slane %v3490, %v3496
      %v3499 = vunpack.c.l.s4 1966171168
      %v3500 = vunpack.c.0.s8 %v3499
      %v3501 = vlaneseq
      %v3502 = vshrl.u32 %v3501, 7
      %v3503 = vsub.s32 %v3500, %v3502
      %v3504 = vrot.slane %v3436, %v3503
      %v3505 = vcombine.low %v2894, %v3497
      %v3507 = vunpack.c.l.s4 1966171168
      %v3508 = vunpack.c.0.s8 %v3507
      %v3509 = vlaneseq
      %v3510 = vshrl.u32 %v3509, 7
      %v3511 = vsub.s32 %v3508, %v3510
      %v3512 = vrot.slane %v3505, %v3511
      %v3514 = vunpack.c.l.s4 1966171168
      %v3515 = vunpack.c.0.s8 %v3514
      %v3516 = vlaneseq
      %v3517 = vshrl.u32 %v3516, 7
      %v3518 = vsub.s32 %v3515, %v3517
      %v3519 = vrot.slane %v3504, %v3518
      %v3520 = vcombine.low %v3512, %v3519
      %v3539 = vunpack.c.l.b16 %v1522
      %v3540 = vunpack.c.l.b16 %v1523
      %v3541 = vunpack.c.l.b16 %v1524
      %v3542 = vunpack.c.l.b16 %v1525
      %v3543 = vunpack.c.l.b16 %v1526
      %v3544 = vunpack.c.l.b16 %v1527
      %v3545 = vunpack.c.l.b16 %v1528
      %v3546 = vunpack.c.l.b16 %v1529
      %v3547 = vunpack.c.l.b16 %v1530
      %v3548 = vunpack.c.l.b16 %v1531
      %v3549 = vunpack.c.l.b16 %v1532
      %v3550 = vunpack.c.l.b16 %v1533
      %v3551 = vunpack.c.l.b16 %v1534
      %v3552 = vunpack.c.l.b16 %v1535
      %v3553 = vunpack.c.l.b16 %v1536
      %v3554 = vunpack.c.l.b16 %v1537
      %v3555 = vpack.c.b16 %v3540, %v3539
      %v3556 = vpack.c.b16 %v3542, %v3541
      %v3557 = vpack.c.b16 %v3544, %v3543
      %v3558 = vpack.c.b16 %v3546, %v3545
      %v3559 = vpack.c.b16 %v3548, %v3547
      %v3560 = vpack.c.b16 %v3550, %v3549
      %v3561 = vpack.c.b16 %v3552, %v3551
      %v3562 = vpack.c.b16 %v3554, %v3553
      %3571 = vmatprep.subr.bf16.mxu0 0
      %3572 = vmatpush1.bf16.msra.mxu0 %v3555
      %3573 = vmatprep.subr.bf16.mxu0 0
      %3574 = vmatpush1.bf16.msra.mxu0 %v3556
      %3575 = vmatprep.subr.bf16.mxu0 0
      %3576 = vmatpush1.bf16.msra.mxu0 %v3557
      %3577 = vmatprep.subr.bf16.mxu0 0
      %3578 = vmatpush1.bf16.msra.mxu0 %v3558
      %3579 = vmatprep.subr.bf16.mxu0 0
      %3580 = vmatpush1.bf16.msra.mxu0 %v3559
      %3581 = vmatprep.subr.bf16.mxu0 0
      %3582 = vmatpush1.bf16.msra.mxu0 %v3560
      %3583 = vmatprep.subr.bf16.mxu0 0
      %3584 = vmatpush1.bf16.msra.mxu0 %v3561
      %3585 = vmatprep.subr.bf16.mxu0 0
      %3586 = vmatpush1.bf16.msra.mxu0 %v3562
      %3587 = vmatprep.subr.bf16.mxu0 0
      %3588 = vmatpush1.bf16.msra.mxu0 0
      %3589 = vmatprep.subr.bf16.mxu0 0
      %3590 = vmatpush1.bf16.msra.mxu0 0
      %3591 = vmatprep.subr.bf16.mxu0 0
      %3592 = vmatpush1.bf16.msra.mxu0 0
      %3593 = vmatprep.subr.bf16.mxu0 0
      %3594 = vmatpush1.bf16.msra.mxu0 0
      %3595 = vmatprep.subr.bf16.mxu0 0
      %3596 = vmatpush1.bf16.msra.mxu0 0
      %3597 = vmatprep.subr.bf16.mxu0 0
      %3598 = vmatpush1.bf16.msra.mxu0 0
      %3599 = vmatprep.subr.bf16.mxu0 0
      %3600 = vmatpush1.bf16.msra.mxu0 0
      %3601 = vmatprep.subr.bf16.mxu0 0
      %3602 = vmatpush1.bf16.msra.mxu0 0
      %3603 = vmatprep.mubr.bf16.mxu0 0
      %3604 = vmatmul.mubr.bf16.gmra.mrb[0].mxu0 %v3489
      %v3605 = vpop.f32.mrb[0].mxu0
      %v3606 = vadd.f32 0.0, %v3605
      %v3607 = vpop.f32.mrb[0].mxu0
      %v3608 = vpop.f32.mrb[0].mxu0
      %v3609 = vadd.f32 0.0, %v3608
      %v3610 = vpop.f32.mrb[0].mxu0
      %3611 = vmatprep.mubr.bf16.mxu0 0
      %3612 = vmatmul.mubr.bf16.gmra.mrb[0].mxu0 %v3520
      %v3613 = vpop.f32.mrb[0].mxu0
      %v3614 = vadd.f32 0.0, %v3613
      %v3615 = vpop.f32.mrb[0].mxu0
      %v3616 = vpop.f32.mrb[0].mxu0
      %v3617 = vadd.f32 0.0, %v3616
      %v3618 = vpop.f32.mrb[0].mxu0
      %3619 = vdwg.mxu0
      %v3620 = vadd.f32 %v3404, %v3606
      %v3621 = vadd.f32 %v3405, %v3609
      %v3622 = vadd.f32 %v3406, %v3614
      %v3623 = vadd.f32 %v3407, %v3617
      %v3624 = vunpack.i.h.s16 %v3431
      %v3625 = vpack.i.b16 %v2638, %v1799
      %v3626 = vpack.i.b16 %v3434, %v3433
      %v3627 = vpack.i.b16 %v3436, %v3435
      %v3629 = vcombine.low %v1805, %v1806
      %v3630 = vcombine.low %v1807, %v1808
      %v3631 = vcombine.low %v1809, %v1810
      %v3632 = vcombine.low %v1811, %v3625
      %v3634 = vunpack.c.l.s4 1966171168
      %v3635 = vunpack.c.0.s8 %v3634
      %v3636 = vlaneseq
      %v3637 = vshrl.u32 %v3636, 7
      %v3638 = vsub.s32 %v3635, %v3637
      %v3639 = vrot.slane %v3629, %v3638
      %v3641 = vunpack.c.l.s4 1966171168
      %v3642 = vunpack.c.0.s8 %v3641
      %v3643 = vlaneseq
      %v3644 = vshrl.u32 %v3643, 7
      %v3645 = vsub.s32 %v3642, %v3644
      %v3646 = vrot.slane %v3630, %v3645
      %v3648 = vunpack.c.l.s4 1966171168
      %v3649 = vunpack.c.0.s8 %v3648
      %v3650 = vlaneseq
      %v3651 = vshrl.u32 %v3650, 7
      %v3652 = vsub.s32 %v3649, %v3651
      %v3653 = vrot.slane %v3631, %v3652
      %v3655 = vunpack.c.l.s4 1966171168
      %v3656 = vunpack.c.0.s8 %v3655
      %v3657 = vlaneseq
      %v3658 = vshrl.u32 %v3657, 7
      %v3659 = vsub.s32 %v3656, %v3658
      %v3660 = vrot.slane %v3632, %v3659
      %v3661 = vcombine.low %v3639, %v3646
      %v3662 = vcombine.low %v3653, %v3660
      %v3664 = vunpack.c.l.s4 1966171168
      %v3665 = vunpack.c.0.s8 %v3664
      %v3666 = vlaneseq
      %v3667 = vshrl.u32 %v3666, 7
      %v3668 = vsub.s32 %v3665, %v3667
      %v3669 = vrot.slane %v3661, %v3668
      %v3671 = vunpack.c.l.s4 1966171168
      %v3672 = vunpack.c.0.s8 %v3671
      %v3673 = vlaneseq
      %v3674 = vshrl.u32 %v3673, 7
      %v3675 = vsub.s32 %v3672, %v3674
      %v3676 = vrot.slane %v3662, %v3675
      %v3677 = vcombine.low %v3669, %v3676
      %v3678 = vcombine.low %v3626, %v3627
      %v3680 = vunpack.c.l.s4 1966171168
      %v3681 = vunpack.c.0.s8 %v3680
      %v3682 = vlaneseq
      %v3683 = vshrl.u32 %v3682, 7
      %v3684 = vsub.s32 %v3681, %v3683
      %v3685 = vrot.slane %v3678, %v3684
      %v3687 = vunpack.c.l.s4 1966171168
      %v3688 = vunpack.c.0.s8 %v3687
      %v3689 = vlaneseq
      %v3690 = vshrl.u32 %v3689, 7
      %v3691 = vsub.s32 %v3688, %v3690
      %v3692 = vrot.slane %v3624, %v3691
      %v3693 = vcombine.low %v3083, %v3685
      %v3695 = vunpack.c.l.s4 1966171168
      %v3696 = vunpack.c.0.s8 %v3695
      %v3697 = vlaneseq
      %v3698 = vshrl.u32 %v3697, 7
      %v3699 = vsub.s32 %v3696, %v3698
      %v3700 = vrot.slane %v3693, %v3699
      %v3702 = vunpack.c.l.s4 1966171168
      %v3703 = vunpack.c.0.s8 %v3702
      %v3704 = vlaneseq
      %v3705 = vshrl.u32 %v3704, 7
      %v3706 = vsub.s32 %v3703, %v3705
      %v3707 = vrot.slane %v3692, %v3706
      %v3708 = vcombine.low %v3700, %v3707
      %v3727 = vunpack.c.l.b16 %v1538
      %v3728 = vunpack.c.l.b16 %v1539
      %v3729 = vunpack.c.l.b16 %v1540
      %v3730 = vunpack.c.l.b16 %v1541
      %v3731 = vunpack.c.l.b16 %v1542
      %v3732 = vunpack.c.l.b16 %v1543
      %v3733 = vunpack.c.l.b16 %v1544
      %v3734 = vunpack.c.l.b16 %v1545
      %v3735 = vunpack.c.l.b16 %v1546
      %v3736 = vunpack.c.l.b16 %v1547
      %v3737 = vunpack.c.l.b16 %v1548
      %v3738 = vunpack.c.l.b16 %v1549
      %v3739 = vunpack.c.l.b16 %v1550
      %v3740 = vunpack.c.l.b16 %v1551
      %v3741 = vunpack.c.l.b16 %v1552
      %v3742 = vunpack.c.l.b16 %v1553
      %v3743 = vpack.c.b16 %v3728, %v3727
      %v3744 = vpack.c.b16 %v3730, %v3729
      %v3745 = vpack.c.b16 %v3732, %v3731
      %v3746 = vpack.c.b16 %v3734, %v3733
      %v3747 = vpack.c.b16 %v3736, %v3735
      %v3748 = vpack.c.b16 %v3738, %v3737
      %v3749 = vpack.c.b16 %v3740, %v3739
      %v3750 = vpack.c.b16 %v3742, %v3741
      %3759 = vmatprep.subr.bf16.mxu0 0
      %3760 = vmatpush1.bf16.msra.mxu0 %v3743
      %3761 = vmatprep.subr.bf16.mxu0 0
      %3762 = vmatpush1.bf16.msra.mxu0 %v3744
      %3763 = vmatprep.subr.bf16.mxu0 0
      %3764 = vmatpush1.bf16.msra.mxu0 %v3745
      %3765 = vmatprep.subr.bf16.mxu0 0
      %3766 = vmatpush1.bf16.msra.mxu0 %v3746
      %3767 = vmatprep.subr.bf16.mxu0 0
      %3768 = vmatpush1.bf16.msra.mxu0 %v3747
      %3769 = vmatprep.subr.bf16.mxu0 0
      %3770 = vmatpush1.bf16.msra.mxu0 %v3748
      %3771 = vmatprep.subr.bf16.mxu0 0
      %3772 = vmatpush1.bf16.msra.mxu0 %v3749
      %3773 = vmatprep.subr.bf16.mxu0 0
      %3774 = vmatpush1.bf16.msra.mxu0 %v3750
      %3775 = vmatprep.subr.bf16.mxu0 0
      %3776 = vmatpush1.bf16.msra.mxu0 0
      %3777 = vmatprep.subr.bf16.mxu0 0
      %3778 = vmatpush1.bf16.msra.mxu0 0
      %3779 = vmatprep.subr.bf16.mxu0 0
      %3780 = vmatpush1.bf16.msra.mxu0 0
      %3781 = vmatprep.subr.bf16.mxu0 0
      %3782 = vmatpush1.bf16.msra.mxu0 0
      %3783 = vmatprep.subr.bf16.mxu0 0
      %3784 = vmatpush1.bf16.msra.mxu0 0
      %3785 = vmatprep.subr.bf16.mxu0 0
      %3786 = vmatpush1.bf16.msra.mxu0 0
      %3787 = vmatprep.subr.bf16.mxu0 0
      %3788 = vmatpush1.bf16.msra.mxu0 0
      %3789 = vmatprep.subr.bf16.mxu0 0
      %3790 = vmatpush1.bf16.msra.mxu0 0
      %3791 = vmatprep.mubr.bf16.mxu0 0
      %3792 = vmatmul.mubr.bf16.gmra.mrb[0].mxu0 %v3677
      %v3793 = vpop.f32.mrb[0].mxu0
      %v3794 = vadd.f32 0.0, %v3793
      %v3795 = vpop.f32.mrb[0].mxu0
      %v3796 = vpop.f32.mrb[0].mxu0
      %v3797 = vadd.f32 0.0, %v3796
      %v3798 = vpop.f32.mrb[0].mxu0
      %3799 = vmatprep.mubr.bf16.mxu0 0
      %3800 = vmatmul.mubr.bf16.gmra.mrb[0].mxu0 %v3708
      %v3801 = vpop.f32.mrb[0].mxu0
      %v3802 = vadd.f32 0.0, %v3801
      %v3803 = vpop.f32.mrb[0].mxu0
      %v3804 = vpop.f32.mrb[0].mxu0
      %v3805 = vadd.f32 0.0, %v3804
      %v3806 = vpop.f32.mrb[0].mxu0
      %3807 = vdwg.mxu0
      %v3808 = vadd.f32 %v3620, %v3794
      %v3809 = vadd.f32 %v3621, %v3797
      %v3810 = vadd.f32 %v3622, %v3802
      %v3811 = vadd.f32 %v3623, %v3805
      %v3812 = vcombine.high %v3430, %v3430
      %v3813 = vunpack.i.l.s16 %v3812
      %v3814 = vpack.i.b16 %v2639, %v2209
      %v3815 = vpack.i.b16 %v3624, %v3436
      %v3817 = vcombine.low %v2006, %v2213
      %v3818 = vcombine.low %v2214, %v2009
      %v3819 = vcombine.low %v2215, %v2011
      %v3820 = vcombine.low %v2216, %v3814
      %v3822 = vunpack.c.l.s4 1966171168
      %v3823 = vunpack.c.0.s8 %v3822
      %v3824 = vlaneseq
      %v3825 = vshrl.u32 %v3824, 7
      %v3826 = vsub.s32 %v3823, %v3825
      %v3827 = vrot.slane %v3817, %v3826
      %v3829 = vunpack.c.l.s4 1966171168
      %v3830 = vunpack.c.0.s8 %v3829
      %v3831 = vlaneseq
      %v3832 = vshrl.u32 %v3831, 7
      %v3833 = vsub.s32 %v3830, %v3832
      %v3834 = vrot.slane %v3818, %v3833
      %v3836 = vunpack.c.l.s4 1966171168
      %v3837 = vunpack.c.0.s8 %v3836
      %v3838 = vlaneseq
      %v3839 = vshrl.u32 %v3838, 7
      %v3840 = vsub.s32 %v3837, %v3839
      %v3841 = vrot.slane %v3819, %v3840
      %v3843 = vunpack.c.l.s4 1966171168
      %v3844 = vunpack.c.0.s8 %v3843
      %v3845 = vlaneseq
      %v3846 = vshrl.u32 %v3845, 7
      %v3847 = vsub.s32 %v3844, %v3846
      %v3848 = vrot.slane %v3820, %v3847
      %v3849 = vcombine.low %v3827, %v3834
      %v3850 = vcombine.low %v3841, %v3848
      %v3852 = vunpack.c.l.s4 1966171168
      %v3853 = vunpack.c.0.s8 %v3852
      %v3854 = vlaneseq
      %v3855 = vshrl.u32 %v3854, 7
      %v3856 = vsub.s32 %v3853, %v3855
      %v3857 = vrot.slane %v3849, %v3856
      %v3859 = vunpack.c.l.s4 1966171168
      %v3860 = vunpack.c.0.s8 %v3859
      %v3861 = vlaneseq
      %v3862 = vshrl.u32 %v3861, 7
      %v3863 = vsub.s32 %v3860, %v3862
      %v3864 = vrot.slane %v3850, %v3863
      %v3865 = vcombine.low %v3857, %v3864
      %v3866 = vcombine.low %v3439, %v3815
      %v3868 = vunpack.c.l.s4 1966171168
      %v3869 = vunpack.c.0.s8 %v3868
      %v3870 = vlaneseq
      %v3871 = vshrl.u32 %v3870, 7
      %v3872 = vsub.s32 %v3869, %v3871
      %v3873 = vrot.slane %v3866, %v3872
      %v3875 = vunpack.c.l.s4 1966171168
      %v3876 = vunpack.c.0.s8 %v3875
      %v3877 = vlaneseq
      %v3878 = vshrl.u32 %v3877, 7
      %v3879 = vsub.s32 %v3876, %v3878
      %v3880 = vrot.slane %v3813, %v3879
      %v3881 = vcombine.low %v3281, %v3873
      %v3883 = vunpack.c.l.s4 1966171168
      %v3884 = vunpack.c.0.s8 %v3883
      %v3885 = vlaneseq
      %v3886 = vshrl.u32 %v3885, 7
      %v3887 = vsub.s32 %v3884, %v3886
      %v3888 = vrot.slane %v3881, %v3887
      %v3890 = vunpack.c.l.s4 1966171168
      %v3891 = vunpack.c.0.s8 %v3890
      %v3892 = vlaneseq
      %v3893 = vshrl.u32 %v3892, 7
      %v3894 = vsub.s32 %v3891, %v3893
      %v3895 = vrot.slane %v3880, %v3894
      %v3896 = vcombine.low %v3888, %v3895
      %v3915 = vunpack.c.l.b16 %v1554
      %v3916 = vunpack.c.l.b16 %v1555
      %v3917 = vunpack.c.l.b16 %v1556
      %v3918 = vunpack.c.l.b16 %v1557
      %v3919 = vunpack.c.l.b16 %v1558
      %v3920 = vunpack.c.l.b16 %v1559
      %v3921 = vunpack.c.l.b16 %v1560
      %v3922 = vunpack.c.l.b16 %v1561
      %v3923 = vunpack.c.l.b16 %v1562
      %v3924 = vunpack.c.l.b16 %v1563
      %v3925 = vunpack.c.l.b16 %v1564
      %v3926 = vunpack.c.l.b16 %v1565
      %v3927 = vunpack.c.l.b16 %v1566
      %v3928 = vunpack.c.l.b16 %v1567
      %v3929 = vunpack.c.l.b16 %v1568
      %v3930 = vunpack.c.l.b16 %v1569
      %v3931 = vpack.c.b16 %v3916, %v3915
      %v3932 = vpack.c.b16 %v3918, %v3917
      %v3933 = vpack.c.b16 %v3920, %v3919
      %v3934 = vpack.c.b16 %v3922, %v3921
      %v3935 = vpack.c.b16 %v3924, %v3923
      %v3936 = vpack.c.b16 %v3926, %v3925
      %v3937 = vpack.c.b16 %v3928, %v3927
      %v3938 = vpack.c.b16 %v3930, %v3929
      %3947 = vmatprep.subr.bf16.mxu0 0
      %3948 = vmatpush1.bf16.msra.mxu0 %v3931
      %3949 = vmatprep.subr.bf16.mxu0 0
      %3950 = vmatpush1.bf16.msra.mxu0 %v3932
      %3951 = vmatprep.subr.bf16.mxu0 0
      %3952 = vmatpush1.bf16.msra.mxu0 %v3933
      %3953 = vmatprep.subr.bf16.mxu0 0
      %3954 = vmatpush1.bf16.msra.mxu0 %v3934
      %3955 = vmatprep.subr.bf16.mxu0 0
      %3956 = vmatpush1.bf16.msra.mxu0 %v3935
      %3957 = vmatprep.subr.bf16.mxu0 0
      %3958 = vmatpush1.bf16.msra.mxu0 %v3936
      %3959 = vmatprep.subr.bf16.mxu0 0
      %3960 = vmatpush1.bf16.msra.mxu0 %v3937
      %3961 = vmatprep.subr.bf16.mxu0 0
      %3962 = vmatpush1.bf16.msra.mxu0 %v3938
      %3963 = vmatprep.subr.bf16.mxu0 0
      %3964 = vmatpush1.bf16.msra.mxu0 0
      %3965 = vmatprep.subr.bf16.mxu0 0
      %3966 = vmatpush1.bf16.msra.mxu0 0
      %3967 = vmatprep.subr.bf16.mxu0 0
      %3968 = vmatpush1.bf16.msra.mxu0 0
      %3969 = vmatprep.subr.bf16.mxu0 0
      %3970 = vmatpush1.bf16.msra.mxu0 0
      %3971 = vmatprep.subr.bf16.mxu0 0
      %3972 = vmatpush1.bf16.msra.mxu0 0
      %3973 = vmatprep.subr.bf16.mxu0 0
      %3974 = vmatpush1.bf16.msra.mxu0 0
      %3975 = vmatprep.subr.bf16.mxu0 0
      %3976 = vmatpush1.bf16.msra.mxu0 0
      %3977 = vmatprep.subr.bf16.mxu0 0
      %3978 = vmatpush1.bf16.msra.mxu0 0
      %3979 = vmatprep.mubr.bf16.mxu0 0
      %3980 = vmatmul.mubr.bf16.gmra.mrb[0].mxu0 %v3865
      %v3981 = vpop.f32.mrb[0].mxu0
      %v3982 = vadd.f32 0.0, %v3981
      %v3983 = vpop.f32.mrb[0].mxu0
      %v3984 = vpop.f32.mrb[0].mxu0
      %v3985 = vadd.f32 0.0, %v3984
      %v3986 = vpop.f32.mrb[0].mxu0
      %3987 = vmatprep.mubr.bf16.mxu0 0
      %3988 = vmatmul.mubr.bf16.gmra.mrb[0].mxu0 %v3896
      %v3989 = vpop.f32.mrb[0].mxu0
      %v3990 = vadd.f32 0.0, %v3989
      %v3991 = vpop.f32.mrb[0].mxu0
      %v3992 = vpop.f32.mrb[0].mxu0
      %v3993 = vadd.f32 0.0, %v3992
      %v3994 = vpop.f32.mrb[0].mxu0
      %3995 = vdwg.mxu0
      %v3996 = vadd.f32 %v3808, %v3982
      %v3997 = vadd.f32 %v3809, %v3985
      %v3998 = vadd.f32 %v3810, %v3990
      %v3999 = vadd.f32 %v3811, %v3993
      %v4000 = vunpack.i.h.s16 %v3812
      %v4001 = vpack.i.b16 %v2640, %v2413
      %v4002 = vpack.i.b16 %v3210, %v3022
      %v4003 = vpack.i.b16 %v3813, %v3624
      %v4005 = vcombine.low %v1806, %v2417
      %v4006 = vcombine.low %v2418, %v1809
      %v4007 = vcombine.low %v2419, %v1811
      %v4008 = vcombine.low %v2420, %v4001
      %v4010 = vunpack.c.l.s4 1966171168
      %v4011 = vunpack.c.0.s8 %v4010
      %v4012 = vlaneseq
      %v4013 = vshrl.u32 %v4012, 7
      %v4014 = vsub.s32 %v4011, %v4013
      %v4015 = vrot.slane %v4005, %v4014
      %v4017 = vunpack.c.l.s4 1966171168
      %v4018 = vunpack.c.0.s8 %v4017
      %v4019 = vlaneseq
      %v4020 = vshrl.u32 %v4019, 7
      %v4021 = vsub.s32 %v4018, %v4020
      %v4022 = vrot.slane %v4006, %v4021
      %v4024 = vunpack.c.l.s4 1966171168
      %v4025 = vunpack.c.0.s8 %v4024
      %v4026 = vlaneseq
      %v4027 = vshrl.u32 %v4026, 7
      %v4028 = vsub.s32 %v4025, %v4027
      %v4029 = vrot.slane %v4007, %v4028
      %v4031 = vunpack.c.l.s4 1966171168
      %v4032 = vunpack.c.0.s8 %v4031
      %v4033 = vlaneseq
      %v4034 = vshrl.u32 %v4033, 7
      %v4035 = vsub.s32 %v4032, %v4034
      %v4036 = vrot.slane %v4008, %v4035
      %v4037 = vcombine.low %v4015, %v4022
      %v4038 = vcombine.low %v4029, %v4036
      %v4040 = vunpack.c.l.s4 1966171168
      %v4041 = vunpack.c.0.s8 %v4040
      %v4042 = vlaneseq
      %v4043 = vshrl.u32 %v4042, 7
      %v4044 = vsub.s32 %v4041, %v4043
      %v4045 = vrot.slane %v4037, %v4044
      %v4047 = vunpack.c.l.s4 1966171168
      %v4048 = vunpack.c.0.s8 %v4047
      %v4049 = vlaneseq
      %v4050 = vshrl.u32 %v4049, 7
      %v4051 = vsub.s32 %v4048, %v4050
      %v4052 = vrot.slane %v4038, %v4051
      %v4053 = vcombine.low %v4045, %v4052
      %v4054 = vcombine.low %v3025, %v4002
      %v4055 = vcombine.low %v3627, %v4003
      %v4057 = vunpack.c.l.s4 1966171168
      %v4058 = vunpack.c.0.s8 %v4057
      %v4059 = vlaneseq
      %v4060 = vshrl.u32 %v4059, 7
      %v4061 = vsub.s32 %v4058, %v4060
      %v4062 = vrot.slane %v4054, %v4061
      %v4064 = vunpack.c.l.s4 1966171168
      %v4065 = vunpack.c.0.s8 %v4064
      %v4066 = vlaneseq
      %v4067 = vshrl.u32 %v4066, 7
      %v4068 = vsub.s32 %v4065, %v4067
      %v4069 = vrot.slane %v4055, %v4068
      %v4071 = vunpack.c.l.s4 1966171168
      %v4072 = vunpack.c.0.s8 %v4071
      %v4073 = vlaneseq
      %v4074 = vshrl.u32 %v4073, 7
      %v4075 = vsub.s32 %v4072, %v4074
      %v4076 = vrot.slane %v4000, %v4075
      %v4077 = vcombine.low %v4062, %v4069
      %v4079 = vunpack.c.l.s4 1966171168
      %v4080 = vunpack.c.0.s8 %v4079
      %v4081 = vlaneseq
      %v4082 = vshrl.u32 %v4081, 7
      %v4083 = vsub.s32 %v4080, %v4082
      %v4084 = vrot.slane %v4077, %v4083
      %v4086 = vunpack.c.l.s4 1966171168
      %v4087 = vunpack.c.0.s8 %v4086
      %v4088 = vlaneseq
      %v4089 = vshrl.u32 %v4088, 7
      %v4090 = vsub.s32 %v4087, %v4089
      %v4091 = vrot.slane %v4076, %v4090
      %v4092 = vcombine.low %v4084, %v4091
      %v4111 = vunpack.c.l.b16 %v1570
      %v4112 = vunpack.c.l.b16 %v1571
      %v4113 = vunpack.c.l.b16 %v1572
      %v4114 = vunpack.c.l.b16 %v1573
      %v4115 = vunpack.c.l.b16 %v1574
      %v4116 = vunpack.c.l.b16 %v1575
      %v4117 = vunpack.c.l.b16 %v1576
      %v4118 = vunpack.c.l.b16 %v1577
      %v4119 = vunpack.c.l.b16 %v1578
      %v4120 = vunpack.c.l.b16 %v1579
      %v4121 = vunpack.c.l.b16 %v1580
      %v4122 = vunpack.c.l.b16 %v1581
      %v4123 = vunpack.c.l.b16 %v1582
      %v4124 = vunpack.c.l.b16 %v1583
      %v4125 = vunpack.c.l.b16 %v1584
      %v4126 = vunpack.c.l.b16 %v1585
      %v4127 = vpack.c.b16 %v4112, %v4111
      %v4128 = vpack.c.b16 %v4114, %v4113
      %v4129 = vpack.c.b16 %v4116, %v4115
      %v4130 = vpack.c.b16 %v4118, %v4117
      %v4131 = vpack.c.b16 %v4120, %v4119
      %v4132 = vpack.c.b16 %v4122, %v4121
      %v4133 = vpack.c.b16 %v4124, %v4123
      %v4134 = vpack.c.b16 %v4126, %v4125
      %4143 = vmatprep.subr.bf16.mxu0 0
      %4144 = vmatpush1.bf16.msra.mxu0 %v4127
      %4145 = vmatprep.subr.bf16.mxu0 0
      %4146 = vmatpush1.bf16.msra.mxu0 %v4128
      %4147 = vmatprep.subr.bf16.mxu0 0
      %4148 = vmatpush1.bf16.msra.mxu0 %v4129
      %4149 = vmatprep.subr.bf16.mxu0 0
      %4150 = vmatpush1.bf16.msra.mxu0 %v4130
      %4151 = vmatprep.subr.bf16.mxu0 0
      %4152 = vmatpush1.bf16.msra.mxu0 %v4131
      %4153 = vmatprep.subr.bf16.mxu0 0
      %4154 = vmatpush1.bf16.msra.mxu0 %v4132
      %4155 = vmatprep.subr.bf16.mxu0 0
      %4156 = vmatpush1.bf16.msra.mxu0 %v4133
      %4157 = vmatprep.subr.bf16.mxu0 0
      %4158 = vmatpush1.bf16.msra.mxu0 %v4134
      %4159 = vmatprep.subr.bf16.mxu0 0
      %4160 = vmatpush1.bf16.msra.mxu0 0
      %4161 = vmatprep.subr.bf16.mxu0 0
      %4162 = vmatpush1.bf16.msra.mxu0 0
      %4163 = vmatprep.subr.bf16.mxu0 0
      %4164 = vmatpush1.bf16.msra.mxu0 0
      %4165 = vmatprep.subr.bf16.mxu0 0
      %4166 = vmatpush1.bf16.msra.mxu0 0
      %4167 = vmatprep.subr.bf16.mxu0 0
      %4168 = vmatpush1.bf16.msra.mxu0 0
      %4169 = vmatprep.subr.bf16.mxu0 0
      %4170 = vmatpush1.bf16.msra.mxu0 0
      %4171 = vmatprep.subr.bf16.mxu0 0
      %4172 = vmatpush1.bf16.msra.mxu0 0
      %4173 = vmatprep.subr.bf16.mxu0 0
      %4174 = vmatpush1.bf16.msra.mxu0 0
      %4175 = vmatprep.mubr.bf16.mxu0 0
      %4176 = vmatmul.mubr.bf16.gmra.mrb[0].mxu0 %v4053
      %v4177 = vpop.f32.mrb[0].mxu0
      %v4178 = vadd.f32 0.0, %v4177
      %v4179 = vpop.f32.mrb[0].mxu0
      %v4180 = vpop.f32.mrb[0].mxu0
      %v4181 = vadd.f32 0.0, %v4180
      %v4182 = vpop.f32.mrb[0].mxu0
      %4183 = vmatprep.mubr.bf16.mxu0 0
      %4184 = vmatmul.mubr.bf16.gmra.mrb[0].mxu0 %v4092
      %v4185 = vpop.f32.mrb[0].mxu0
      %v4186 = vadd.f32 0.0, %v4185
      %v4187 = vpop.f32.mrb[0].mxu0
      %v4188 = vpop.f32.mrb[0].mxu0
      %v4189 = vadd.f32 0.0, %v4188
      %v4190 = vpop.f32.mrb[0].mxu0
      %4191 = vdwg.mxu0
      %v4192 = vadd.f32 %v3996, %v4178
      %v4193 = vadd.f32 %v3997, %v4181
      %v4194 = vadd.f32 %v3998, %v4186
      %v4195 = vadd.f32 %v3999, %v4189
      %v4198 = vunpack.c.l.s4 1966171168
      %v4199 = vunpack.c.0.s8 %v4198
      %v4200 = vlaneseq
      %v4201 = vshrl.u32 %v4200, 7
      %v4202 = vsub.s32 %v4199, %v4201
      %v4203 = vrot.slane %v1393, %v4202
      %v4204 = vcombine.high %v4203, %v4203
      %v4206 = vunpack.c.l.s4 1966171168
      %v4207 = vunpack.c.0.s8 %v4206
      %v4208 = vlaneseq
      %v4209 = vshrl.u32 %v4208, 7
      %v4210 = vsub.s32 %v4207, %v4209
      %v4211 = vrot.slane %v4203, %v4210
      %v4213 = vunpack.c.l.s4 1966171168
      %v4214 = vunpack.c.0.s8 %v4213
      %v4215 = vlaneseq
      %v4216 = vshrl.u32 %v4215, 7
      %v4217 = vsub.s32 %v4214, %v4216
      %v4218 = vrot.slane %v4204, %v4217
      %v4219 = vcombine.high %v4211, %v4211
      %v4220 = vunpack.i.l.s16 %v4211
      %v4221 = vunpack.i.h.s16 %v4211
      %v4222 = vunpack.i.l.s16 %v4218
      %v4223 = vunpack.i.h.s16 %v4218
      %v4224 = vunpack.i.l.s16 %v4219
      %v4225 = vpack.i.b16 %v3432, %v2641
      %v4226 = vpack.i.b16 %v4221, %v4220
      %v4227 = vpack.i.b16 %v4223, %v4222
      %v4229 = vcombine.low %v2644, %v1808
      %v4230 = vcombine.low %v2645, %v1810
      %v4231 = vcombine.low %v1811, %v2646
      %v4232 = vcombine.low %v2647, %v4225
      %v4234 = vunpack.c.l.s4 1966171168
      %v4235 = vunpack.c.0.s8 %v4234
      %v4236 = vlaneseq
      %v4237 = vshrl.u32 %v4236, 7
      %v4238 = vsub.s32 %v4235, %v4237
      %v4239 = vrot.slane %v4229, %v4238
      %v4241 = vunpack.c.l.s4 1966171168
      %v4242 = vunpack.c.0.s8 %v4241
      %v4243 = vlaneseq
      %v4244 = vshrl.u32 %v4243, 7
      %v4245 = vsub.s32 %v4242, %v4244
      %v4246 = vrot.slane %v4230, %v4245
      %v4248 = vunpack.c.l.s4 1966171168
      %v4249 = vunpack.c.0.s8 %v4248
      %v4250 = vlaneseq
      %v4251 = vshrl.u32 %v4250, 7
      %v4252 = vsub.s32 %v4249, %v4251
      %v4253 = vrot.slane %v4231, %v4252
      %v4255 = vunpack.c.l.s4 1966171168
      %v4256 = vunpack.c.0.s8 %v4255
      %v4257 = vlaneseq
      %v4258 = vshrl.u32 %v4257, 7
      %v4259 = vsub.s32 %v4256, %v4258
      %v4260 = vrot.slane %v4232, %v4259
      %v4261 = vcombine.low %v4239, %v4246
      %v4262 = vcombine.low %v4253, %v4260
      %v4264 = vunpack.c.l.s4 1966171168
      %v4265 = vunpack.c.0.s8 %v4264
      %v4266 = vlaneseq
      %v4267 = vshrl.u32 %v4266, 7
      %v4268 = vsub.s32 %v4265, %v4267
      %v4269 = vrot.slane %v4261, %v4268
      %v4271 = vunpack.c.l.s4 1966171168
      %v4272 = vunpack.c.0.s8 %v4271
      %v4273 = vlaneseq
      %v4274 = vshrl.u32 %v4273, 7
      %v4275 = vsub.s32 %v4272, %v4274
      %v4276 = vrot.slane %v4262, %v4275
      %v4277 = vcombine.low %v4269, %v4276
      %v4278 = vcombine.low %v4226, %v4227
      %v4280 = vunpack.c.l.s4 1966171168
      %v4281 = vunpack.c.0.s8 %v4280
      %v4282 = vlaneseq
      %v4283 = vshrl.u32 %v4282, 7
      %v4284 = vsub.s32 %v4281, %v4283
      %v4285 = vrot.slane %v4278, %v4284
      %v4287 = vunpack.c.l.s4 1966171168
      %v4288 = vunpack.c.0.s8 %v4287
      %v4289 = vlaneseq
      %v4290 = vshrl.u32 %v4289, 7
      %v4291 = vsub.s32 %v4288, %v4290
      %v4292 = vrot.slane %v4224, %v4291
      %v4293 = vcombine.low %v3685, %v4285
      %v4295 = vunpack.c.l.s4 1966171168
      %v4296 = vunpack.c.0.s8 %v4295
      %v4297 = vlaneseq
      %v4298 = vshrl.u32 %v4297, 7
      %v4299 = vsub.s32 %v4296, %v4298
      %v4300 = vrot.slane %v4293, %v4299
      %v4302 = vunpack.c.l.s4 1966171168
      %v4303 = vunpack.c.0.s8 %v4302
      %v4304 = vlaneseq
      %v4305 = vshrl.u32 %v4304, 7
      %v4306 = vsub.s32 %v4303, %v4305
      %v4307 = vrot.slane %v4292, %v4306
      %v4308 = vcombine.low %v4300, %v4307
      %v4327 = vunpack.c.l.b16 %v1586
      %v4328 = vunpack.c.l.b16 %v1587
      %v4329 = vunpack.c.l.b16 %v1588
      %v4330 = vunpack.c.l.b16 %v1589
      %v4331 = vunpack.c.l.b16 %v1590
      %v4332 = vunpack.c.l.b16 %v1591
      %v4333 = vunpack.c.l.b16 %v1592
      %v4334 = vunpack.c.l.b16 %v1593
      %v4335 = vunpack.c.l.b16 %v1594
      %v4336 = vunpack.c.l.b16 %v1595
      %v4337 = vunpack.c.l.b16 %v1596
      %v4338 = vunpack.c.l.b16 %v1597
      %v4339 = vunpack.c.l.b16 %v1598
      %v4340 = vunpack.c.l.b16 %v1599
      %v4341 = vunpack.c.l.b16 %v1600
      %v4342 = vunpack.c.l.b16 %v1601
      %v4343 = vpack.c.b16 %v4328, %v4327
      %v4344 = vpack.c.b16 %v4330, %v4329
      %v4345 = vpack.c.b16 %v4332, %v4331
      %v4346 = vpack.c.b16 %v4334, %v4333
      %v4347 = vpack.c.b16 %v4336, %v4335
      %v4348 = vpack.c.b16 %v4338, %v4337
      %v4349 = vpack.c.b16 %v4340, %v4339
      %v4350 = vpack.c.b16 %v4342, %v4341
      %4359 = vmatprep.subr.bf16.mxu0 0
      %4360 = vmatpush1.bf16.msra.mxu0 %v4343
      %4361 = vmatprep.subr.bf16.mxu0 0
      %4362 = vmatpush1.bf16.msra.mxu0 %v4344
      %4363 = vmatprep.subr.bf16.mxu0 0
      %4364 = vmatpush1.bf16.msra.mxu0 %v4345
      %4365 = vmatprep.subr.bf16.mxu0 0
      %4366 = vmatpush1.bf16.msra.mxu0 %v4346
      %4367 = vmatprep.subr.bf16.mxu0 0
      %4368 = vmatpush1.bf16.msra.mxu0 %v4347
      %4369 = vmatprep.subr.bf16.mxu0 0
      %4370 = vmatpush1.bf16.msra.mxu0 %v4348
      %4371 = vmatprep.subr.bf16.mxu0 0
      %4372 = vmatpush1.bf16.msra.mxu0 %v4349
      %4373 = vmatprep.subr.bf16.mxu0 0
      %4374 = vmatpush1.bf16.msra.mxu0 %v4350
      %4375 = vmatprep.subr.bf16.mxu0 0
      %4376 = vmatpush1.bf16.msra.mxu0 0
      %4377 = vmatprep.subr.bf16.mxu0 0
      %4378 = vmatpush1.bf16.msra.mxu0 0
      %4379 = vmatprep.subr.bf16.mxu0 0
      %4380 = vmatpush1.bf16.msra.mxu0 0
      %4381 = vmatprep.subr.bf16.mxu0 0
      %4382 = vmatpush1.bf16.msra.mxu0 0
      %4383 = vmatprep.subr.bf16.mxu0 0
      %4384 = vmatpush1.bf16.msra.mxu0 0
      %4385 = vmatprep.subr.bf16.mxu0 0
      %4386 = vmatpush1.bf16.msra.mxu0 0
      %4387 = vmatprep.subr.bf16.mxu0 0
      %4388 = vmatpush1.bf16.msra.mxu0 0
      %4389 = vmatprep.subr.bf16.mxu0 0
      %4390 = vmatpush1.bf16.msra.mxu0 0
      %4391 = vmatprep.mubr.bf16.mxu0 0
      %4392 = vmatmul.mubr.bf16.gmra.mrb[0].mxu0 %v4277
      %v4393 = vpop.f32.mrb[0].mxu0
      %v4394 = vadd.f32 0.0, %v4393
      %v4395 = vpop.f32.mrb[0].mxu0
      %v4396 = vpop.f32.mrb[0].mxu0
      %v4397 = vadd.f32 0.0, %v4396
      %v4398 = vpop.f32.mrb[0].mxu0
      %4399 = vmatprep.mubr.bf16.mxu0 0
      %4400 = vmatmul.mubr.bf16.gmra.mrb[0].mxu0 %v4308
      %v4401 = vpop.f32.mrb[0].mxu0
      %v4402 = vadd.f32 0.0, %v4401
      %v4403 = vpop.f32.mrb[0].mxu0
      %v4404 = vpop.f32.mrb[0].mxu0
      %v4405 = vadd.f32 0.0, %v4404
      %v4406 = vpop.f32.mrb[0].mxu0
      %4407 = vdwg.mxu0
      %v4408 = vadd.f32 %v4192, %v4394
      %v4409 = vadd.f32 %v4193, %v4397
      %v4410 = vadd.f32 %v4194, %v4402
      %v4411 = vadd.f32 %v4195, %v4405
      %v4412 = vunpack.i.h.s16 %v4219
      %v4413 = vpack.i.b16 %v3433, %v2832
      %v4414 = vpack.i.b16 %v4222, %v4221
      %v4415 = vpack.i.b16 %v4224, %v4223
      %v4417 = vcombine.low %v2834, %v2011
      %v4418 = vcombine.low %v2216, %v2835
      %v4419 = vcombine.low %v2836, %v4413
      %v4421 = vunpack.c.l.s4 1966171168
      %v4422 = vunpack.c.0.s8 %v4421
      %v4423 = vlaneseq
      %v4424 = vshrl.u32 %v4423, 7
      %v4425 = vsub.s32 %v4422, %v4424
      %v4426 = vrot.slane %v4417, %v4425
      %v4428 = vunpack.c.l.s4 1966171168
      %v4429 = vunpack.c.0.s8 %v4428
      %v4430 = vlaneseq
      %v4431 = vshrl.u32 %v4430, 7
      %v4432 = vsub.s32 %v4429, %v4431
      %v4433 = vrot.slane %v4418, %v4432
      %v4435 = vunpack.c.l.s4 1966171168
      %v4436 = vunpack.c.0.s8 %v4435
      %v4437 = vlaneseq
      %v4438 = vshrl.u32 %v4437, 7
      %v4439 = vsub.s32 %v4436, %v4438
      %v4440 = vrot.slane %v4419, %v4439
      %v4441 = vcombine.low %v2070, %v4426
      %v4442 = vcombine.low %v4433, %v4440
      %v4444 = vunpack.c.l.s4 1966171168
      %v4445 = vunpack.c.0.s8 %v4444
      %v4446 = vlaneseq
      %v4447 = vshrl.u32 %v4446, 7
      %v4448 = vsub.s32 %v4445, %v4447
      %v4449 = vrot.slane %v4441, %v4448
      %v4451 = vunpack.c.l.s4 1966171168
      %v4452 = vunpack.c.0.s8 %v4451
      %v4453 = vlaneseq
      %v4454 = vshrl.u32 %v4453, 7
      %v4455 = vsub.s32 %v4452, %v4454
      %v4456 = vrot.slane %v4442, %v4455
      %v4457 = vcombine.low %v4449, %v4456
      %v4458 = vcombine.low %v4414, %v4415
      %v4460 = vunpack.c.l.s4 1966171168
      %v4461 = vunpack.c.0.s8 %v4460
      %v4462 = vlaneseq
      %v4463 = vshrl.u32 %v4462, 7
      %v4464 = vsub.s32 %v4461, %v4463
      %v4465 = vrot.slane %v4458, %v4464
      %v4467 = vunpack.c.l.s4 1966171168
      %v4468 = vunpack.c.0.s8 %v4467
      %v4469 = vlaneseq
      %v4470 = vshrl.u32 %v4469, 7
      %v4471 = vsub.s32 %v4468, %v4470
      %v4472 = vrot.slane %v4412, %v4471
      %v4473 = vcombine.low %v3873, %v4465
      %v4475 = vunpack.c.l.s4 1966171168
      %v4476 = vunpack.c.0.s8 %v4475
      %v4477 = vlaneseq
      %v4478 = vshrl.u32 %v4477, 7
      %v4479 = vsub.s32 %v4476, %v4478
      %v4480 = vrot.slane %v4473, %v4479
      %v4482 = vunpack.c.l.s4 1966171168
      %v4483 = vunpack.c.0.s8 %v4482
      %v4484 = vlaneseq
      %v4485 = vshrl.u32 %v4484, 7
      %v4486 = vsub.s32 %v4483, %v4485
      %v4487 = vrot.slane %v4472, %v4486
      %v4488 = vcombine.low %v4480, %v4487
      %v4507 = vunpack.c.l.b16 %v1602
      %v4508 = vunpack.c.l.b16 %v1603
      %v4509 = vunpack.c.l.b16 %v1604
      %v4510 = vunpack.c.l.b16 %v1605
      %v4511 = vunpack.c.l.b16 %v1606
      %v4512 = vunpack.c.l.b16 %v1607
      %v4513 = vunpack.c.l.b16 %v1608
      %v4514 = vunpack.c.l.b16 %v1609
      %v4515 = vunpack.c.l.b16 %v1610
      %v4516 = vunpack.c.l.b16 %v1611
      %v4517 = vunpack.c.l.b16 %v1612
      %v4518 = vunpack.c.l.b16 %v1613
      %v4519 = vunpack.c.l.b16 %v1614
      %v4520 = vunpack.c.l.b16 %v1615
      %v4521 = vunpack.c.l.b16 %v1616
      %v4522 = vunpack.c.l.b16 %v1617
      %v4523 = vpack.c.b16 %v4508, %v4507
      %v4524 = vpack.c.b16 %v4510, %v4509
      %v4525 = vpack.c.b16 %v4512, %v4511
      %v4526 = vpack.c.b16 %v4514, %v4513
      %v4527 = vpack.c.b16 %v4516, %v4515
      %v4528 = vpack.c.b16 %v4518, %v4517
      %v4529 = vpack.c.b16 %v4520, %v4519
      %v4530 = vpack.c.b16 %v4522, %v4521
      %4539 = vmatprep.subr.bf16.mxu0 0
      %4540 = vmatpush1.bf16.msra.mxu0 %v4523
      %4541 = vmatprep.subr.bf16.mxu0 0
      %4542 = vmatpush1.bf16.msra.mxu0 %v4524
      %4543 = vmatprep.subr.bf16.mxu0 0
      %4544 = vmatpush1.bf16.msra.mxu0 %v4525
      %4545 = vmatprep.subr.bf16.mxu0 0
      %4546 = vmatpush1.bf16.msra.mxu0 %v4526
      %4547 = vmatprep.subr.bf16.mxu0 0
      %4548 = vmatpush1.bf16.msra.mxu0 %v4527
      %4549 = vmatprep.subr.bf16.mxu0 0
      %4550 = vmatpush1.bf16.msra.mxu0 %v4528
      %4551 = vmatprep.subr.bf16.mxu0 0
      %4552 = vmatpush1.bf16.msra.mxu0 %v4529
      %4553 = vmatprep.subr.bf16.mxu0 0
      %4554 = vmatpush1.bf16.msra.mxu0 %v4530
      %4555 = vmatprep.subr.bf16.mxu0 0
      %4556 = vmatpush1.bf16.msra.mxu0 0
      %4557 = vmatprep.subr.bf16.mxu0 0
      %4558 = vmatpush1.bf16.msra.mxu0 0
      %4559 = vmatprep.subr.bf16.mxu0 0
      %4560 = vmatpush1.bf16.msra.mxu0 0
      %4561 = vmatprep.subr.bf16.mxu0 0
      %4562 = vmatpush1.bf16.msra.mxu0 0
      %4563 = vmatprep.subr.bf16.mxu0 0
      %4564 = vmatpush1.bf16.msra.mxu0 0
      %4565 = vmatprep.subr.bf16.mxu0 0
      %4566 = vmatpush1.bf16.msra.mxu0 0
      %4567 = vmatprep.subr.bf16.mxu0 0
      %4568 = vmatpush1.bf16.msra.mxu0 0
      %4569 = vmatprep.subr.bf16.mxu0 0
      %4570 = vmatpush1.bf16.msra.mxu0 0
      %4571 = vmatprep.mubr.bf16.mxu0 0
      %4572 = vmatmul.mubr.bf16.gmra.mrb[0].mxu0 %v4457
      %v4573 = vpop.f32.mrb[0].mxu0
      %v4574 = vadd.f32 0.0, %v4573
      %v4575 = vpop.f32.mrb[0].mxu0
      %v4576 = vpop.f32.mrb[0].mxu0
      %v4577 = vadd.f32 0.0, %v4576
      %v4578 = vpop.f32.mrb[0].mxu0
      %4579 = vmatprep.mubr.bf16.mxu0 0
      %4580 = vmatmul.mubr.bf16.gmra.mrb[0].mxu0 %v4488
      %v4581 = vpop.f32.mrb[0].mxu0
      %v4582 = vadd.f32 0.0, %v4581
      %v4583 = vpop.f32.mrb[0].mxu0
      %v4584 = vpop.f32.mrb[0].mxu0
      %v4585 = vadd.f32 0.0, %v4584
      %v4586 = vpop.f32.mrb[0].mxu0
      %4587 = vdwg.mxu0
      %v4588 = vadd.f32 %v4408, %v4574
      %v4589 = vadd.f32 %v4409, %v4577
      %v4590 = vadd.f32 %v4410, %v4582
      %v4591 = vadd.f32 %v4411, %v4585
      %v4592 = vcombine.high %v4218, %v4218
      %v4593 = vunpack.i.l.s16 %v4592
      %v4594 = vpack.i.b16 %v3434, %v3022
      %v4595 = vpack.i.b16 %v4412, %v4224
      %v4597 = vcombine.low %v3024, %v1811
      %v4598 = vcombine.low %v2420, %v2647
      %v4599 = vcombine.low %v3025, %v4594
      %v4601 = vunpack.c.l.s4 1966171168
      %v4602 = vunpack.c.0.s8 %v4601
      %v4603 = vlaneseq
      %v4604 = vshrl.u32 %v4603, 7
      %v4605 = vsub.s32 %v4602, %v4604
      %v4606 = vrot.slane %v4597, %v4605
      %v4608 = vunpack.c.l.s4 1966171168
      %v4609 = vunpack.c.0.s8 %v4608
      %v4610 = vlaneseq
      %v4611 = vshrl.u32 %v4610, 7
      %v4612 = vsub.s32 %v4609, %v4611
      %v4613 = vrot.slane %v4598, %v4612
      %v4615 = vunpack.c.l.s4 1966171168
      %v4616 = vunpack.c.0.s8 %v4615
      %v4617 = vlaneseq
      %v4618 = vshrl.u32 %v4617, 7
      %v4619 = vsub.s32 %v4616, %v4618
      %v4620 = vrot.slane %v4599, %v4619
      %v4621 = vcombine.low %v1870, %v4606
      %v4622 = vcombine.low %v4613, %v4620
      %v4624 = vunpack.c.l.s4 1966171168
      %v4625 = vunpack.c.0.s8 %v4624
      %v4626 = vlaneseq
      %v4627 = vshrl.u32 %v4626, 7
      %v4628 = vsub.s32 %v4625, %v4627
      %v4629 = vrot.slane %v4621, %v4628
      %v4631 = vunpack.c.l.s4 1966171168
      %v4632 = vunpack.c.0.s8 %v4631
      %v4633 = vlaneseq
      %v4634 = vshrl.u32 %v4633, 7
      %v4635 = vsub.s32 %v4632, %v4634
      %v4636 = vrot.slane %v4622, %v4635
      %v4637 = vcombine.low %v4629, %v4636
      %v4638 = vcombine.low %v4227, %v4595
      %v4640 = vunpack.c.l.s4 1966171168
      %v4641 = vunpack.c.0.s8 %v4640
      %v4642 = vlaneseq
      %v4643 = vshrl.u32 %v4642, 7
      %v4644 = vsub.s32 %v4641, %v4643
      %v4645 = vrot.slane %v4638, %v4644
      %v4647 = vunpack.c.l.s4 1966171168
      %v4648 = vunpack.c.0.s8 %v4647
      %v4649 = vlaneseq
      %v4650 = vshrl.u32 %v4649, 7
      %v4651 = vsub.s32 %v4648, %v4650
      %v4652 = vrot.slane %v4593, %v4651
      %v4653 = vcombine.low %v4069, %v4645
      %v4655 = vunpack.c.l.s4 1966171168
      %v4656 = vunpack.c.0.s8 %v4655
      %v4657 = vlaneseq
      %v4658 = vshrl.u32 %v4657, 7
      %v4659 = vsub.s32 %v4656, %v4658
      %v4660 = vrot.slane %v4653, %v4659
      %v4662 = vunpack.c.l.s4 1966171168
      %v4663 = vunpack.c.0.s8 %v4662
      %v4664 = vlaneseq
      %v4665 = vshrl.u32 %v4664, 7
      %v4666 = vsub.s32 %v4663, %v4665
      %v4667 = vrot.slane %v4652, %v4666
      %v4668 = vcombine.low %v4660, %v4667
      %v4687 = vunpack.c.l.b16 %v1618
      %v4688 = vunpack.c.l.b16 %v1619
      %v4689 = vunpack.c.l.b16 %v1620
      %v4690 = vunpack.c.l.b16 %v1621
      %v4691 = vunpack.c.l.b16 %v1622
      %v4692 = vunpack.c.l.b16 %v1623
      %v4693 = vunpack.c.l.b16 %v1624
      %v4694 = vunpack.c.l.b16 %v1625
      %v4695 = vunpack.c.l.b16 %v1626
      %v4696 = vunpack.c.l.b16 %v1627
      %v4697 = vunpack.c.l.b16 %v1628
      %v4698 = vunpack.c.l.b16 %v1629
      %v4699 = vunpack.c.l.b16 %v1630
      %v4700 = vunpack.c.l.b16 %v1631
      %v4701 = vunpack.c.l.b16 %v1632
      %v4702 = vunpack.c.l.b16 %v1633
      %v4703 = vpack.c.b16 %v4688, %v4687
      %v4704 = vpack.c.b16 %v4690, %v4689
      %v4705 = vpack.c.b16 %v4692, %v4691
      %v4706 = vpack.c.b16 %v4694, %v4693
      %v4707 = vpack.c.b16 %v4696, %v4695
      %v4708 = vpack.c.b16 %v4698, %v4697
      %v4709 = vpack.c.b16 %v4700, %v4699
      %v4710 = vpack.c.b16 %v4702, %v4701
      %4719 = vmatprep.subr.bf16.mxu0 0
      %4720 = vmatpush1.bf16.msra.mxu0 %v4703
      %4721 = vmatprep.subr.bf16.mxu0 0
      %4722 = vmatpush1.bf16.msra.mxu0 %v4704
      %4723 = vmatprep.subr.bf16.mxu0 0
      %4724 = vmatpush1.bf16.msra.mxu0 %v4705
      %4725 = vmatprep.subr.bf16.mxu0 0
      %4726 = vmatpush1.bf16.msra.mxu0 %v4706
      %4727 = vmatprep.subr.bf16.mxu0 0
      %4728 = vmatpush1.bf16.msra.mxu0 %v4707
      %4729 = vmatprep.subr.bf16.mxu0 0
      %4730 = vmatpush1.bf16.msra.mxu0 %v4708
      %4731 = vmatprep.subr.bf16.mxu0 0
      %4732 = vmatpush1.bf16.msra.mxu0 %v4709
      %4733 = vmatprep.subr.bf16.mxu0 0
      %4734 = vmatpush1.bf16.msra.mxu0 %v4710
      %4735 = vmatprep.subr.bf16.mxu0 0
      %4736 = vmatpush1.bf16.msra.mxu0 0
      %4737 = vmatprep.subr.bf16.mxu0 0
      %4738 = vmatpush1.bf16.msra.mxu0 0
      %4739 = vmatprep.subr.bf16.mxu0 0
      %4740 = vmatpush1.bf16.msra.mxu0 0
      %4741 = vmatprep.subr.bf16.mxu0 0
      %4742 = vmatpush1.bf16.msra.mxu0 0
      %4743 = vmatprep.subr.bf16.mxu0 0
      %4744 = vmatpush1.bf16.msra.mxu0 0
      %4745 = vmatprep.subr.bf16.mxu0 0
      %4746 = vmatpush1.bf16.msra.mxu0 0
      %4747 = vmatprep.subr.bf16.mxu0 0
      %4748 = vmatpush1.bf16.msra.mxu0 0
      %4749 = vmatprep.subr.bf16.mxu0 0
      %4750 = vmatpush1.bf16.msra.mxu0 0
      %4751 = vmatprep.mubr.bf16.mxu0 0
      %4752 = vmatmul.mubr.bf16.gmra.mrb[0].mxu0 %v4637
      %v4753 = vpop.f32.mrb[0].mxu0
      %v4754 = vadd.f32 0.0, %v4753
      %v4755 = vpop.f32.mrb[0].mxu0
      %v4756 = vpop.f32.mrb[0].mxu0
      %v4757 = vadd.f32 0.0, %v4756
      %v4758 = vpop.f32.mrb[0].mxu0
      %4759 = vmatprep.mubr.bf16.mxu0 0
      %4760 = vmatmul.mubr.bf16.gmra.mrb[0].mxu0 %v4668
      %v4761 = vpop.f32.mrb[0].mxu0
      %v4762 = vadd.f32 0.0, %v4761
      %v4763 = vpop.f32.mrb[0].mxu0
      %v4764 = vpop.f32.mrb[0].mxu0
      %v4765 = vadd.f32 0.0, %v4764
      %v4766 = vpop.f32.mrb[0].mxu0
      %4767 = vdwg.mxu0
      %v4768 = vadd.f32 %v4588, %v4754
      %v4769 = vadd.f32 %v4589, %v4757
      %v4770 = vadd.f32 %v4590, %v4762
      %v4771 = vadd.f32 %v4591, %v4765
      %v4772 = vunpack.i.h.s16 %v4592
      %v4773 = vpack.i.b16 %v3435, %v3210
      %v4774 = vpack.i.b16 %v4000, %v3813
      %v4775 = vpack.i.b16 %v4593, %v4412
      %v4777 = vcombine.low %v3213, %v2216
      %v4778 = vcombine.low %v3214, %v2836
      %v4779 = vcombine.low %v3215, %v4773
      %v4781 = vunpack.c.l.s4 1966171168
      %v4782 = vunpack.c.0.s8 %v4781
      %v4783 = vlaneseq
      %v4784 = vshrl.u32 %v4783, 7
      %v4785 = vsub.s32 %v4782, %v4784
      %v4786 = vrot.slane %v4777, %v4785
      %v4788 = vunpack.c.l.s4 1966171168
      %v4789 = vunpack.c.0.s8 %v4788
      %v4790 = vlaneseq
      %v4791 = vshrl.u32 %v4790, 7
      %v4792 = vsub.s32 %v4789, %v4791
      %v4793 = vrot.slane %v4778, %v4792
      %v4795 = vunpack.c.l.s4 1966171168
      %v4796 = vunpack.c.0.s8 %v4795
      %v4797 = vlaneseq
      %v4798 = vshrl.u32 %v4797, 7
      %v4799 = vsub.s32 %v4796, %v4798
      %v4800 = vrot.slane %v4779, %v4799
      %v4801 = vcombine.low %v2275, %v4786
      %v4802 = vcombine.low %v4793, %v4800
      %v4804 = vunpack.c.l.s4 1966171168
      %v4805 = vunpack.c.0.s8 %v4804
      %v4806 = vlaneseq
      %v4807 = vshrl.u32 %v4806, 7
      %v4808 = vsub.s32 %v4805, %v4807
      %v4809 = vrot.slane %v4801, %v4808
      %v4811 = vunpack.c.l.s4 1966171168
      %v4812 = vunpack.c.0.s8 %v4811
      %v4813 = vlaneseq
      %v4814 = vshrl.u32 %v4813, 7
      %v4815 = vsub.s32 %v4812, %v4814
      %v4816 = vrot.slane %v4802, %v4815
      %v4817 = vcombine.low %v4809, %v4816
      %v4818 = vcombine.low %v3815, %v4774
      %v4819 = vcombine.low %v4415, %v4775
      %v4821 = vunpack.c.l.s4 1966171168
      %v4822 = vunpack.c.0.s8 %v4821
      %v4823 = vlaneseq
      %v4824 = vshrl.u32 %v4823, 7
      %v4825 = vsub.s32 %v4822, %v4824
      %v4826 = vrot.slane %v4818, %v4825
      %v4828 = vunpack.c.l.s4 1966171168
      %v4829 = vunpack.c.0.s8 %v4828
      %v4830 = vlaneseq
      %v4831 = vshrl.u32 %v4830, 7
      %v4832 = vsub.s32 %v4829, %v4831
      %v4833 = vrot.slane %v4819, %v4832
      %v4835 = vunpack.c.l.s4 1966171168
      %v4836 = vunpack.c.0.s8 %v4835
      %v4837 = vlaneseq
      %v4838 = vshrl.u32 %v4837, 7
      %v4839 = vsub.s32 %v4836, %v4838
      %v4840 = vrot.slane %v4772, %v4839
      %v4841 = vcombine.low %v4826, %v4833
      %v4843 = vunpack.c.l.s4 1966171168
      %v4844 = vunpack.c.0.s8 %v4843
      %v4845 = vlaneseq
      %v4846 = vshrl.u32 %v4845, 7
      %v4847 = vsub.s32 %v4844, %v4846
      %v4848 = vrot.slane %v4841, %v4847
      %v4850 = vunpack.c.l.s4 1966171168
      %v4851 = vunpack.c.0.s8 %v4850
      %v4852 = vlaneseq
      %v4853 = vshrl.u32 %v4852, 7
      %v4854 = vsub.s32 %v4851, %v4853
      %v4855 = vrot.slane %v4840, %v4854
      %v4856 = vcombine.low %v4848, %v4855
      %v4875 = vunpack.c.l.b16 %v1634
      %v4876 = vunpack.c.l.b16 %v1635
      %v4877 = vunpack.c.l.b16 %v1636
      %v4878 = vunpack.c.l.b16 %v1637
      %v4879 = vunpack.c.l.b16 %v1638
      %v4880 = vunpack.c.l.b16 %v1639
      %v4881 = vunpack.c.l.b16 %v1640
      %v4882 = vunpack.c.l.b16 %v1641
      %v4883 = vunpack.c.l.b16 %v1642
      %v4884 = vunpack.c.l.b16 %v1643
      %v4885 = vunpack.c.l.b16 %v1644
      %v4886 = vunpack.c.l.b16 %v1645
      %v4887 = vunpack.c.l.b16 %v1646
      %v4888 = vunpack.c.l.b16 %v1647
      %v4889 = vunpack.c.l.b16 %v1648
      %v4890 = vunpack.c.l.b16 %v1649
      %v4891 = vpack.c.b16 %v4876, %v4875
      %v4892 = vpack.c.b16 %v4878, %v4877
      %v4893 = vpack.c.b16 %v4880, %v4879
      %v4894 = vpack.c.b16 %v4882, %v4881
      %v4895 = vpack.c.b16 %v4884, %v4883
      %v4896 = vpack.c.b16 %v4886, %v4885
      %v4897 = vpack.c.b16 %v4888, %v4887
      %v4898 = vpack.c.b16 %v4890, %v4889
      %4907 = vmatprep.subr.bf16.mxu0 0
      %4908 = vmatpush1.bf16.msra.mxu0 %v4891
      %4909 = vmatprep.subr.bf16.mxu0 0
      %4910 = vmatpush1.bf16.msra.mxu0 %v4892
      %4911 = vmatprep.subr.bf16.mxu0 0
      %4912 = vmatpush1.bf16.msra.mxu0 %v4893
      %4913 = vmatprep.subr.bf16.mxu0 0
      %4914 = vmatpush1.bf16.msra.mxu0 %v4894
      %4915 = vmatprep.subr.bf16.mxu0 0
      %4916 = vmatpush1.bf16.msra.mxu0 %v4895
      %4917 = vmatprep.subr.bf16.mxu0 0
      %4918 = vmatpush1.bf16.msra.mxu0 %v4896
      %4919 = vmatprep.subr.bf16.mxu0 0
      %4920 = vmatpush1.bf16.msra.mxu0 %v4897
      %4921 = vmatprep.subr.bf16.mxu0 0
      %4922 = vmatpush1.bf16.msra.mxu0 %v4898
      %4923 = vmatprep.subr.bf16.mxu0 0
      %4924 = vmatpush1.bf16.msra.mxu0 0
      %4925 = vmatprep.subr.bf16.mxu0 0
      %4926 = vmatpush1.bf16.msra.mxu0 0
      %4927 = vmatprep.subr.bf16.mxu0 0
      %4928 = vmatpush1.bf16.msra.mxu0 0
      %4929 = vmatprep.subr.bf16.mxu0 0
      %4930 = vmatpush1.bf16.msra.mxu0 0
      %4931 = vmatprep.subr.bf16.mxu0 0
      %4932 = vmatpush1.bf16.msra.mxu0 0
      %4933 = vmatprep.subr.bf16.mxu0 0
      %4934 = vmatpush1.bf16.msra.mxu0 0
      %4935 = vmatprep.subr.bf16.mxu0 0
      %4936 = vmatpush1.bf16.msra.mxu0 0
      %4937 = vmatprep.subr.bf16.mxu0 0
      %4938 = vmatpush1.bf16.msra.mxu0 0
      %4939 = vmatprep.mubr.bf16.mxu0 0
      %4940 = vmatmul.mubr.bf16.gmra.mrb[0].mxu0 %v4817
      %v4941 = vpop.f32.mrb[0].mxu0
      %v4942 = vadd.f32 0.0, %v4941
      %v4943 = vpop.f32.mrb[0].mxu0
      %v4944 = vpop.f32.mrb[0].mxu0
      %v4945 = vadd.f32 0.0, %v4944
      %v4946 = vpop.f32.mrb[0].mxu0
      %4947 = vmatprep.mubr.bf16.mxu0 0
      %4948 = vmatmul.mubr.bf16.gmra.mrb[0].mxu0 %v4856
      %v4949 = vpop.f32.mrb[0].mxu0
      %v4950 = vadd.f32 0.0, %v4949
      %v4951 = vpop.f32.mrb[0].mxu0
      %v4952 = vpop.f32.mrb[0].mxu0
      %v4953 = vadd.f32 0.0, %v4952
      %v4954 = vpop.f32.mrb[0].mxu0
      %4955 = vdwg.mxu0
      %v4956 = vadd.f32 %v4768, %v4942
      %v4957 = vadd.f32 %v4769, %v4945
      %v4958 = vadd.f32 %v4770, %v4950
      %v4959 = vadd.f32 %v4771, %v4953
      %v4960 = vld [vmem:[#allocation4] sm:$0x1]
      %v4962 = vlaneseq
      %v4963 = vshrl.u32 %v4962, 7
      %v4964 = vsub.s32 0, %v4963
      %v4965 = vrot.slane %v4960, %v4964
      %v4967 = vadd.f32 %v4956, %v4965
      %v4968 = vadd.f32 %v4957, %v4965
      %v4969 = vadd.f32 %v4958, %v4965
      %v4970 = vadd.f32 %v4959, %v4965
      %v4975 = vcombine.high %v4967, %v4967
      %v4977 = vunpack.c.l.s4 1966171168
      %v4978 = vunpack.c.0.s8 %v4977
      %v4979 = vlaneseq
      %v4980 = vshrl.u32 %v4979, 7
      %v4981 = vsub.s32 %v4978, %v4980
      %v4982 = vrot.slane %v4967, %v4981
      %v4984 = vunpack.c.l.s4 1966171168
      %v4985 = vunpack.c.0.s8 %v4984
      %v4986 = vlaneseq
      %v4987 = vshrl.u32 %v4986, 7
      %v4988 = vsub.s32 %v4985, %v4987
      %v4989 = vrot.slane %v4975, %v4988
      %v4990 = vcombine.high %v4982, %v4982
      %v4991 = vcombine.high %v4989, %v4989
      %v4993 = vunpack.c.l.s4 1966171168
      %v4994 = vunpack.c.0.s8 %v4993
      %v4995 = vlaneseq
      %v4996 = vshrl.u32 %v4995, 7
      %v4997 = vsub.s32 %v4994, %v4996
      %v4998 = vrot.slane %v4982, %v4997
      %v5000 = vunpack.c.l.s4 1966171168
      %v5001 = vunpack.c.0.s8 %v5000
      %v5002 = vlaneseq
      %v5003 = vshrl.u32 %v5002, 7
      %v5004 = vsub.s32 %v5001, %v5003
      %v5005 = vrot.slane %v4989, %v5004
      %v5007 = vunpack.c.l.s4 1966171168
      %v5008 = vunpack.c.0.s8 %v5007
      %v5009 = vlaneseq
      %v5010 = vshrl.u32 %v5009, 7
      %v5011 = vsub.s32 %v5008, %v5010
      %v5012 = vrot.slane %v4990, %v5011
      %v5014 = vunpack.c.l.s4 1966171168
      %v5015 = vunpack.c.0.s8 %v5014
      %v5016 = vlaneseq
      %v5017 = vshrl.u32 %v5016, 7
      %v5018 = vsub.s32 %v5015, %v5017
      %v5019 = vrot.slane %v4991, %v5018
      %v5020 = vcombine.high %v4998, %v4998
      %v5021 = vcombine.high %v5005, %v5005
      %v5022 = vcombine.high %v5012, %v5012
      %v5023 = vcombine.high %v5019, %v5019
      %v5024 = vcombine.high %v4968, %v4968
      %v5026 = vunpack.c.l.s4 1966171168
      %v5027 = vunpack.c.0.s8 %v5026
      %v5028 = vlaneseq
      %v5029 = vshrl.u32 %v5028, 7
      %v5030 = vsub.s32 %v5027, %v5029
      %v5031 = vrot.slane %v4968, %v5030
      %v5033 = vunpack.c.l.s4 1966171168
      %v5034 = vunpack.c.0.s8 %v5033
      %v5035 = vlaneseq
      %v5036 = vshrl.u32 %v5035, 7
      %v5037 = vsub.s32 %v5034, %v5036
      %v5038 = vrot.slane %v5024, %v5037
      %v5039 = vcombine.high %v5031, %v5031
      %v5040 = vcombine.high %v5038, %v5038
      %v5042 = vunpack.c.l.s4 1966171168
      %v5043 = vunpack.c.0.s8 %v5042
      %v5044 = vlaneseq
      %v5045 = vshrl.u32 %v5044, 7
      %v5046 = vsub.s32 %v5043, %v5045
      %v5047 = vrot.slane %v5031, %v5046
      %v5049 = vunpack.c.l.s4 1966171168
      %v5050 = vunpack.c.0.s8 %v5049
      %v5051 = vlaneseq
      %v5052 = vshrl.u32 %v5051, 7
      %v5053 = vsub.s32 %v5050, %v5052
      %v5054 = vrot.slane %v5038, %v5053
      %v5056 = vunpack.c.l.s4 1966171168
      %v5057 = vunpack.c.0.s8 %v5056
      %v5058 = vlaneseq
      %v5059 = vshrl.u32 %v5058, 7
      %v5060 = vsub.s32 %v5057, %v5059
      %v5061 = vrot.slane %v5039, %v5060
      %v5063 = vunpack.c.l.s4 1966171168
      %v5064 = vunpack.c.0.s8 %v5063
      %v5065 = vlaneseq
      %v5066 = vshrl.u32 %v5065, 7
      %v5067 = vsub.s32 %v5064, %v5066
      %v5068 = vrot.slane %v5040, %v5067
      %v5069 = vcombine.high %v5047, %v5047
      %v5070 = vcombine.high %v5054, %v5054
      %v5071 = vcombine.high %v5061, %v5061
      %v5072 = vcombine.high %v5068, %v5068
      %v5073 = vcombine.high %v4969, %v4969
      %v5075 = vunpack.c.l.s4 1966171168
      %v5076 = vunpack.c.0.s8 %v5075
      %v5077 = vlaneseq
      %v5078 = vshrl.u32 %v5077, 7
      %v5079 = vsub.s32 %v5076, %v5078
      %v5080 = vrot.slane %v4969, %v5079
      %v5082 = vunpack.c.l.s4 1966171168
      %v5083 = vunpack.c.0.s8 %v5082
      %v5084 = vlaneseq
      %v5085 = vshrl.u32 %v5084, 7
      %v5086 = vsub.s32 %v5083, %v5085
      %v5087 = vrot.slane %v5073, %v5086
      %v5088 = vcombine.high %v5080, %v5080
      %v5089 = vcombine.high %v5087, %v5087
      %v5091 = vunpack.c.l.s4 1966171168
      %v5092 = vunpack.c.0.s8 %v5091
      %v5093 = vlaneseq
      %v5094 = vshrl.u32 %v5093, 7
      %v5095 = vsub.s32 %v5092, %v5094
      %v5096 = vrot.slane %v5080, %v5095
      %v5098 = vunpack.c.l.s4 1966171168
      %v5099 = vunpack.c.0.s8 %v5098
      %v5100 = vlaneseq
      %v5101 = vshrl.u32 %v5100, 7
      %v5102 = vsub.s32 %v5099, %v5101
      %v5103 = vrot.slane %v5087, %v5102
      %v5105 = vunpack.c.l.s4 1966171168
      %v5106 = vunpack.c.0.s8 %v5105
      %v5107 = vlaneseq
      %v5108 = vshrl.u32 %v5107, 7
      %v5109 = vsub.s32 %v5106, %v5108
      %v5110 = vrot.slane %v5088, %v5109
      %v5112 = vunpack.c.l.s4 1966171168
      %v5113 = vunpack.c.0.s8 %v5112
      %v5114 = vlaneseq
      %v5115 = vshrl.u32 %v5114, 7
      %v5116 = vsub.s32 %v5113, %v5115
      %v5117 = vrot.slane %v5089, %v5116
      %v5118 = vcombine.high %v5096, %v5096
      %v5119 = vcombine.high %v5103, %v5103
      %v5120 = vcombine.high %v5110, %v5110
      %v5121 = vcombine.high %v5117, %v5117
      %v5123 = vunpack.c.l.s4 1966171168
      %v5124 = vunpack.c.0.s8 %v5123
      %v5125 = vlaneseq
      %v5126 = vshrl.u32 %v5125, 7
      %v5127 = vsub.s32 %v5124, %v5126
      %v5128 = vrot.slane %v4970, %v5127
      %v5130 = vunpack.c.l.s4 1966171168
      %v5131 = vunpack.c.0.s8 %v5130
      %v5132 = vlaneseq
      %v5133 = vshrl.u32 %v5132, 7
      %v5134 = vsub.s32 %v5131, %v5133
      %v5135 = vrot.slane %v5128, %v5134
      %v5136 = vcombine.low %v4998, %v5012
      %v5137 = vcombine.low %v5020, %v5022
      %v5139 = vunpack.c.l.s4 1966171168
      %v5140 = vunpack.c.0.s8 %v5139
      %v5141 = vlaneseq
      %v5142 = vshrl.u32 %v5141, 7
      %v5143 = vsub.s32 %v5140, %v5142
      %v5144 = vrot.slane %v5136, %v5143
      %v5146 = vunpack.c.l.s4 1966171168
      %v5147 = vunpack.c.0.s8 %v5146
      %v5148 = vlaneseq
      %v5149 = vshrl.u32 %v5148, 7
      %v5150 = vsub.s32 %v5147, %v5149
      %v5151 = vrot.slane %v5137, %v5150
      %v5153 = vunpack.c.l.s4 1966171168
      %v5154 = vunpack.c.0.s8 %v5153
      %v5155 = vlaneseq
      %v5156 = vshrl.u32 %v5155, 7
      %v5157 = vsub.s32 %v5154, %v5156
      %v5158 = vrot.slane %v5005, %v5157
      %v5159 = vcombine.low %v5144, %v5151
      %v5161 = vunpack.c.l.s4 1966171168
      %v5162 = vunpack.c.0.s8 %v5161
      %v5163 = vlaneseq
      %v5164 = vshrl.u32 %v5163, 7
      %v5165 = vsub.s32 %v5162, %v5164
      %v5166 = vrot.slane %v5159, %v5165
      %v5168 = vunpack.c.l.s4 1966171168
      %v5169 = vunpack.c.0.s8 %v5168
      %v5170 = vlaneseq
      %v5171 = vshrl.u32 %v5170, 7
      %v5172 = vsub.s32 %v5169, %v5171
      %v5173 = vrot.slane %v5158, %v5172
      %v5174 = vcombine.low %v5166, %v5173
      %v5175 = vcombine.low %v5019, %v5021
      %v5176 = vcombine.low %v5023, %v5047
      %v5178 = vunpack.c.l.s4 1966171168
      %v5179 = vunpack.c.0.s8 %v5178
      %v5180 = vlaneseq
      %v5181 = vshrl.u32 %v5180, 7
      %v5182 = vsub.s32 %v5179, %v5181
      %v5183 = vrot.slane %v5175, %v5182
      %v5185 = vunpack.c.l.s4 1966171168
      %v5186 = vunpack.c.0.s8 %v5185
      %v5187 = vlaneseq
      %v5188 = vshrl.u32 %v5187, 7
      %v5189 = vsub.s32 %v5186, %v5188
      %v5190 = vrot.slane %v5176, %v5189
      %v5192 = vunpack.c.l.s4 1966171168
      %v5193 = vunpack.c.0.s8 %v5192
      %v5194 = vlaneseq
      %v5195 = vshrl.u32 %v5194, 7
      %v5196 = vsub.s32 %v5193, %v5195
      %v5197 = vrot.slane %v5061, %v5196
      %v5198 = vcombine.low %v5183, %v5190
      %v5200 = vunpack.c.l.s4 1966171168
      %v5201 = vunpack.c.0.s8 %v5200
      %v5202 = vlaneseq
      %v5203 = vshrl.u32 %v5202, 7
      %v5204 = vsub.s32 %v5201, %v5203
      %v5205 = vrot.slane %v5198, %v5204
      %v5207 = vunpack.c.l.s4 1966171168
      %v5208 = vunpack.c.0.s8 %v5207
      %v5209 = vlaneseq
      %v5210 = vshrl.u32 %v5209, 7
      %v5211 = vsub.s32 %v5208, %v5210
      %v5212 = vrot.slane %v5197, %v5211
      %v5213 = vcombine.low %v5205, %v5212
      %v5214 = vcombine.low %v5069, %v5071
      %v5215 = vcombine.low %v5054, %v5068
      %v5217 = vunpack.c.l.s4 1966171168
      %v5218 = vunpack.c.0.s8 %v5217
      %v5219 = vlaneseq
      %v5220 = vshrl.u32 %v5219, 7
      %v5221 = vsub.s32 %v5218, %v5220
      %v5222 = vrot.slane %v5214, %v5221
      %v5224 = vunpack.c.l.s4 1966171168
      %v5225 = vunpack.c.0.s8 %v5224
      %v5226 = vlaneseq
      %v5227 = vshrl.u32 %v5226, 7
      %v5228 = vsub.s32 %v5225, %v5227
      %v5229 = vrot.slane %v5215, %v5228
      %v5231 = vunpack.c.l.s4 1966171168
      %v5232 = vunpack.c.0.s8 %v5231
      %v5233 = vlaneseq
      %v5234 = vshrl.u32 %v5233, 7
      %v5235 = vsub.s32 %v5232, %v5234
      %v5236 = vrot.slane %v5070, %v5235
      %v5237 = vcombine.low %v5222, %v5229
      %v5239 = vunpack.c.l.s4 1966171168
      %v5240 = vunpack.c.0.s8 %v5239
      %v5241 = vlaneseq
      %v5242 = vshrl.u32 %v5241, 7
      %v5243 = vsub.s32 %v5240, %v5242
      %v5244 = vrot.slane %v5237, %v5243
      %v5246 = vunpack.c.l.s4 1966171168
      %v5247 = vunpack.c.0.s8 %v5246
      %v5248 = vlaneseq
      %v5249 = vshrl.u32 %v5248, 7
      %v5250 = vsub.s32 %v5247, %v5249
      %v5251 = vrot.slane %v5236, %v5250
      %v5252 = vcombine.low %v5244, %v5251
      %v5253 = vcombine.low %v5072, %v5096
      %v5254 = vcombine.low %v5110, %v5118
      %v5256 = vunpack.c.l.s4 1966171168
      %v5257 = vunpack.c.0.s8 %v5256
      %v5258 = vlaneseq
      %v5259 = vshrl.u32 %v5258, 7
      %v5260 = vsub.s32 %v5257, %v5259
      %v5261 = vrot.slane %v5253, %v5260
      %v5263 = vunpack.c.l.s4 1966171168
      %v5264 = vunpack.c.0.s8 %v5263
      %v5265 = vlaneseq
      %v5266 = vshrl.u32 %v5265, 7
      %v5267 = vsub.s32 %v5264, %v5266
      %v5268 = vrot.slane %v5254, %v5267
      %v5270 = vunpack.c.l.s4 1966171168
      %v5271 = vunpack.c.0.s8 %v5270
      %v5272 = vlaneseq
      %v5273 = vshrl.u32 %v5272, 7
      %v5274 = vsub.s32 %v5271, %v5273
      %v5275 = vrot.slane %v5120, %v5274
      %v5276 = vcombine.low %v5261, %v5268
      %v5278 = vunpack.c.l.s4 1966171168
      %v5279 = vunpack.c.0.s8 %v5278
      %v5280 = vlaneseq
      %v5281 = vshrl.u32 %v5280, 7
      %v5282 = vsub.s32 %v5279, %v5281
      %v5283 = vrot.slane %v5276, %v5282
      %v5285 = vunpack.c.l.s4 1966171168
      %v5286 = vunpack.c.0.s8 %v5285
      %v5287 = vlaneseq
      %v5288 = vshrl.u32 %v5287, 7
      %v5289 = vsub.s32 %v5286, %v5288
      %v5290 = vrot.slane %v5275, %v5289
      %v5291 = vcombine.low %v5283, %v5290
      %v5292 = vcombine.low %v5103, %v5117
      %v5293 = vcombine.low %v5119, %v5121
      %v5295 = vunpack.c.l.s4 1966171168
      %v5296 = vunpack.c.0.s8 %v5295
      %v5297 = vlaneseq
      %v5298 = vshrl.u32 %v5297, 7
      %v5299 = vsub.s32 %v5296, %v5298
      %v5300 = vrot.slane %v5292, %v5299
      %v5302 = vunpack.c.l.s4 1966171168
      %v5303 = vunpack.c.0.s8 %v5302
      %v5304 = vlaneseq
      %v5305 = vshrl.u32 %v5304, 7
      %v5306 = vsub.s32 %v5303, %v5305
      %v5307 = vrot.slane %v5293, %v5306
      %v5309 = vunpack.c.l.s4 1966171168
      %v5310 = vunpack.c.0.s8 %v5309
      %v5311 = vlaneseq
      %v5312 = vshrl.u32 %v5311, 7
      %v5313 = vsub.s32 %v5310, %v5312
      %v5314 = vrot.slane %v5135, %v5313
      %v5315 = vcombine.low %v5300, %v5307
      %v5317 = vunpack.c.l.s4 1966171168
      %v5318 = vunpack.c.0.s8 %v5317
      %v5319 = vlaneseq
      %v5320 = vshrl.u32 %v5319, 7
      %v5321 = vsub.s32 %v5318, %v5320
      %v5322 = vrot.slane %v5315, %v5321
      %v5324 = vunpack.c.l.s4 1966171168
      %v5325 = vunpack.c.0.s8 %v5324
      %v5326 = vlaneseq
      %v5327 = vshrl.u32 %v5326, 7
      %v5328 = vsub.s32 %v5325, %v5327
      %v5329 = vrot.slane %v5314, %v5328
      %v5330 = vcombine.low %v5322, %v5329
      %vm5336 = vcmask 4096
      %5337 = vst.msk [vmem:[%s253] sm:$0x1f] %vm5336, %v5174
      %5338 = vst.msk [vmem:[%s253 + $0x8] sm:$0x1f] %vm5336, %v5213
      %5339 = vst.msk [vmem:[%s253 + $0x10] sm:$0x1f] %vm5336, %v5252
      %5340 = vst.msk [vmem:[%s253 + $0x18] sm:$0x1f] %vm5336, %v5291
      %5341 = vst.msk [vmem:[%s253 + $0x20] sm:$0x1f] %vm5336, %v5330
      %p5342 = scmp.lt.s32.totalorder %s19, 1
      %s5343 = scalar_select %p5342, %s19, 1
      %s5344 = smul.addr %s5343, 5
      %s5345 = smul.addr %s5344, 8
      %s5346 = scalar_lea.vmem %s6, %s5345
      // Predicated region
      $region49: #{discriminator_forward.7} parent=43 // pred_check
        %p5347 = pneg %p168
      $region50: #{discriminator_forward.7} parent=43 // pred_check_branch
        %5349 = sbr.rel (%p5347) target = $region52
      $region51: #{discriminator_forward.7} parent=43 // pred_region
        _
      $region52: #{discriminator_forward.7} parent=43 // pred_fallthru
        _
    $region44: #{discriminator_forward.7} parent=5 // pred_fallthru
      _
    %p5350 = scmp.le.s32.totalorder 2, %s14
    // Predicated region
    $region53: #{discriminator_forward.7} parent=5 // pred_check
      %p5351 = pneg %p5350
    $region54: #{discriminator_forward.7} parent=5 // pred_check_branch
      %5353 = sbr.rel (%p5351) target = $region56
    $region55: #{discriminator_forward.7} parent=5 // pred_region
      %s5354 = ssub.s32 %s14, 2
      // Predicated region
      $region57: #{discriminator_forward.7} parent=55 // pred_check
        %p5355 = pneg %p174
      $region58: #{discriminator_forward.7} parent=55 // pred_check_branch
        %5357 = sbr.rel (%p5355) target = $region60
      $region59: #{discriminator_forward.7} parent=55 // pred_region
        %p5358 = scmp.lt.s32.totalorder %s20, 1
        %s5359 = scalar_select %p5358, %s20, 1
        %s5360 = smul.addr %s5359, 5
        %s5361 = smul.addr %s5360, 8
        %s5362 = scalar_lea.vmem %s6, %s5361
      $region60: #{discriminator_forward.7} parent=55 // pred_fallthru
        _
    $region56: #{discriminator_forward.7} parent=5 // pred_fallthru
      _
  $region6: #{discriminator_forward.7} parent=0 // loop_footer
    %s18 = sadd.s32 1, %s14
  $region7: #{discriminator_forward.7} parent=0 // loop_footer_branch
    %13 = sbr.rel target = $region3
  $region8: #{discriminator_forward.7} parent=0 // loop_exit
    _

</llo_original>
